<compile_context>
chip_gen: v7x
topology: tpu7x:2x2x1
jax: 0.10.0
libtpu: 0.0.40
codegen_flags: <defaults>
</compile_context>

<pallas_src>
import functools

import jax
import jax.numpy as jnp
from jax.experimental import pallas as pl
from jax.experimental.pallas import tpu as pltpu

# ----- cfg (synthetic, small) -----
HIDDEN = 32
HEADS = 4
HEAD_DIM = HIDDEN // HEADS
INTERMEDIATE = 4 * HIDDEN
LN_EPS = 1e-12
NUM_LAYERS = 2


# ---------------- fused encoder kernel ----------------

def _encoder_kernel(
    r_ref,                                    # SMEM (NL*8,): [r, 1-r] per block
    x_ref, kv_ref,                            # (B*L, D), (B*Ls, D) f32
    awq_ref, abq_ref, awk_ref, abk_ref,       # attention weights, stacked over
    awv_ref, abv_ref, awo_ref, abo_ref,       #   (layer, {cross,self}, head)
    w1_ref, b1_ref, w2_ref, b2_ref,           # FFN weights, stacked over (layer, {1,2})
    g_ref, bt_ref,                            # shared LayerNorm gamma/beta
    o_ref,                                    # (B*L, D) f32
    *, B, L, Ls, H, dh, num_layers, eps,
):
    D = H * dh

    def mm(a):                                # bf16 MXU operands, f32 accumulation
        return a.astype(jnp.bfloat16)

    def mix_layernorm(r, one_minus_r, identity, h, gamma, beta):
        # y = r*identity + (1-r)*h ; LayerNorm(y) * gamma + beta
        y = r * identity + one_minus_r * h
        mu = jnp.mean(y, axis=-1, keepdims=True)
        ms = jnp.mean(y * y, axis=-1, keepdims=True)
        var = ms - mu * mu                    # single-pass statistics
        return (y - mu) * jax.lax.rsqrt(var + eps) * gamma + beta

    def mha(xq, xkv, l, which, Lq, Lk):
        # Per-head projections: head weights live on a leading (free-to-index)
        # axis of the stacked weight refs, so activations are never lane-sliced.
        # Scores / context are flash-style batched contractions over batch.
        xq_b = mm(xq)
        xkv_b = xq_b if xkv is xq else mm(xkv)
        acc = jnp.zeros((B * Lq, D), jnp.float32)
        for h in range(H):
            qh = (jnp.dot(xq_b, awq_ref[l, which, h],
                          preferred_element_type=jnp.float32)
                  + abq_ref[l, which, h]).reshape(B, Lq, dh)
            kh = (jnp.dot(xkv_b, awk_ref[l, which, h],
                          preferred_element_type=jnp.float32)
                  + abk_ref[l, which, h]).reshape(B, Lk, dh)
            vh = (jnp.dot(xkv_b, awv_ref[l, which, h],
                          preferred_element_type=jnp.float32)
                  + abv_ref[l, which, h]).reshape(B, Lk, dh)
            # 1/sqrt(dh) already folded into awq/abq at stack time.
            s = jnp.einsum('bqd,bkd->bqk', mm(qh), mm(kh),
                           preferred_element_type=jnp.float32)
            m = jnp.max(s, axis=-1, keepdims=True)
            p = jnp.exp(s - m)
            denom = jnp.sum(p, axis=-1, keepdims=True)
            ctx = jnp.einsum('bqk,bkd->bqd', mm(p), mm(vh),
                             preferred_element_type=jnp.float32)
            # Deferred softmax normalization (approx reciprocal -> EUP slot).
            ctx = ctx * pl.reciprocal(denom, approx=True)
            # Output projection accumulated per head with sublane-aligned Wo
            # row blocks (no lane concat of head contexts).
            acc = acc + jnp.dot(mm(ctx.reshape(B * Lq, dh)),
                                awo_ref[l, which, h],
                                preferred_element_type=jnp.float32)
        return acc + abo_ref[l, which]

    def ffn(x, l, which):
        h1 = jnp.dot(mm(x), w1_ref[l, which],
                     preferred_element_type=jnp.float32) + b1_ref[l, which]
        # TODO(synk): Intermediate definition not given; tanh-GELU assumed.
        h1 = jax.nn.gelu(h1, approximate=True)
        return jnp.dot(mm(h1), w2_ref[l, which],
                       preferred_element_type=jnp.float32) + b2_ref[l, which]

    x = x_ref[...]      # (B*L, D)
    kv = kv_ref[...]    # (B*Ls, D)

    for l in range(num_layers):               # statically unrolled layer loop
        gamma = g_ref[l]                      # (1, D)
        beta = bt_ref[l]                      # (1, D)

        h = mha(x, kv, l, 0, L, Ls)                                   # cross-attn
        x = mix_layernorm(r_ref[8 * l + 0], r_ref[8 * l + 1], x, h, gamma, beta)

        h = ffn(x, l, 0)                                              # FFN 1
        x = mix_layernorm(r_ref[8 * l + 2], r_ref[8 * l + 3], x, h, gamma, beta)

        h = mha(x, x, l, 1, L, L)                                     # self-attn
        x = mix_layernorm(r_ref[8 * l + 4], r_ref[8 * l + 5], x, h, gamma, beta)

        h = ffn(x, l, 1)                                              # FFN 2
        x = mix_layernorm(r_ref[8 * l + 6], r_ref[8 * l + 7], x, h, gamma, beta)

    o_ref[...] = x


# ---------------- wrapper (single pallas_call for the whole encoder) ----------------

def cross_attention_encoder(hidden_states, source_kv, params, attention_mask=None):
    del attention_mask  # None path only, as in the provided forward
    B, L, D = hidden_states.shape
    Ls = source_kv.shape[1]
    NL = len(params)
    H = HEADS
    dh = D // H
    scale = 1.0 / float(dh) ** 0.5

    def head_w(w):      # (D, D) -> (H, D, dh): per-head column blocks of W
        return w.reshape(D, H, dh).transpose(1, 0, 2)

    def head_b(b):      # (D,) -> (H, 1, dh)
        return b.reshape(H, 1, dh)

    def attn_mods(lp):
        return (lp["crossmha"], lp["selfmha"])

    def ffn_mods(lp):
        return (lp["linear"], lp["linear2"])

    def stack2(fn, mods):   # -> (NL, 2, ...)
        return jnp.stack([jnp.stack([fn(m) for m in mods(lp)]) for lp in params])

    bf16 = jnp.bfloat16
    # Fold 1/sqrt(dh) into the Q projection (weights + biases) at stack time.
    awq = stack2(lambda m: head_w(m["wq"]) * scale, attn_mods).astype(bf16)
    abq = stack2(lambda m: head_b(m["bq"]) * scale, attn_mods)
    awk = stack2(lambda m: head_w(m["wk"]), attn_mods).astype(bf16)
    abk = stack2(lambda m: head_b(m["bk"]), attn_mods)
    awv = stack2(lambda m: head_w(m["wv"]), attn_mods).astype(bf16)
    abv = stack2(lambda m: head_b(m["bv"]), attn_mods)
    awo = stack2(lambda m: m["wo"].reshape(H, dh, D), attn_mods).astype(bf16)
    abo = stack2(lambda m: m["bo"].reshape(1, D), attn_mods)

    w1 = stack2(lambda m: m["w1"], ffn_mods).astype(bf16)
    b1 = stack2(lambda m: m["b1"].reshape(1, -1), ffn_mods)
    w2 = stack2(lambda m: m["w2"], ffn_mods).astype(bf16)
    b2 = stack2(lambda m: m["b2"].reshape(1, D), ffn_mods)

    gamma = jnp.stack([lp["ln_gamma"].reshape(1, D) for lp in params])
    beta = jnp.stack([lp["ln_beta"].reshape(1, D) for lp in params])

    # Mix scalars r and precomputed (1 - r), via the SMEM scalar path.
    rlist = []
    for lp in params:
        for name in ("rand", "rand_z", "rand2", "rand_z2"):
            r = lp[name].astype(jnp.float32)
            rlist.extend([r, 1.0 - r])
    rands = jnp.stack(rlist)                      # (NL*8,)

    x2 = hidden_states.reshape(B * L, D).astype(jnp.float32)
    kv2 = source_kv.reshape(B * Ls, D).astype(jnp.float32)

    vmem = pl.BlockSpec(memory_space=pltpu.MemorySpace.VMEM)
    smem = pl.BlockSpec(memory_space=pltpu.MemorySpace.SMEM)

    operands = (rands, x2, kv2,
                awq, abq, awk, abk, awv, abv, awo, abo,
                w1, b1, w2, b2, gamma, beta)
    in_specs = [smem] + [vmem] * (len(operands) - 1)

    out = pl.pallas_call(
        functools.partial(_encoder_kernel, B=B, L=L, Ls=Ls, H=H, dh=dh,
                          num_layers=NL, eps=LN_EPS),
        out_shape=jax.ShapeDtypeStruct((B * L, D), jnp.float32),
        in_specs=in_specs,
        out_specs=vmem,
    )(*operands)
    return out.reshape(B, L, D)


# ---------------- pure-JAX reference (correctness check, f32) ----------------

def _reference_forward(hidden_states, source_kv, params):
    def ln(y, gamma, beta):
        mu = jnp.mean(y, axis=-1, keepdims=True)
        var = jnp.mean((y - mu) ** 2, axis=-1, keepdims=True)
        return (y - mu) / jnp.sqrt(var + LN_EPS) * gamma + beta

    def mha(x, kv, p):
        B, Lq, D = x.shape
        Lk = kv.shape[1]
        dh = D // HEADS
        q = (x @ p["wq"] + p["bq"]).reshape(B, Lq, HEADS, dh).transpose(0, 2, 1, 3)
        k = (kv @ p["wk"] + p["bk"]).reshape(B, Lk, HEADS, dh).transpose(0, 2, 1, 3)
        v = (kv @ p["wv"] + p["bv"]).reshape(B, Lk, HEADS, dh).transpose(0, 2, 1, 3)
        s = jnp.einsum("bhqd,bhkd->bhqk", q, k) / (dh ** 0.5)
        a = jax.nn.softmax(s, axis=-1)
        ctx = jnp.einsum("bhqk,bhkd->bhqd", a, v).transpose(0, 2, 1, 3).reshape(B, Lq, D)
        return ctx @ p["wo"] + p["bo"]

    def ffn(x, p):
        return jax.nn.gelu(x @ p["w1"] + p["b1"], approximate=True) @ p["w2"] + p["b2"]

    x = hidden_states
    for lp in params:
        g, b = lp["ln_gamma"], lp["ln_beta"]
        x = ln(lp["rand"] * x + (1 - lp["rand"]) * mha(x, source_kv, lp["crossmha"]), g, b)
        x = ln(lp["rand_z"] * x + (1 - lp["rand_z"]) * ffn(x, lp["linear"]), g, b)
        x = ln(lp["rand2"] * x + (1 - lp["rand2"]) * mha(x, x, lp["selfmha"]), g, b)
        x = ln(lp["rand_z2"] * x + (1 - lp["rand_z2"]) * ffn(x, lp["linear2"]), g, b)
    return x


# ---------------- deterministic parameter init ----------------

def _init_mha(key):
    ks = jax.random.split(key, 4)
    mk = lambda k: (jax.random.normal(k, (HIDDEN, HIDDEN), jnp.float32) * 0.02)
    return {
        "wq": mk(ks[0]), "bq": jnp.zeros((HIDDEN,), jnp.float32),
        "wk": mk(ks[1]), "bk": jnp.zeros((HIDDEN,), jnp.float32),
        "wv": mk(ks[2]), "bv": jnp.zeros((HIDDEN,), jnp.float32),
        "wo": mk(ks[3]), "bo": jnp.zeros((HIDDEN,), jnp.float32),
    }


def _init_ffn(key):
    k1, k2 = jax.random.split(key)
    return {
        "w1": jax.random.normal(k1, (HIDDEN, INTERMEDIATE), jnp.float32) * 0.02,
        "b1": jnp.zeros((INTERMEDIATE,), jnp.float32),
        "w2": jax.random.normal(k2, (INTERMEDIATE, HIDDEN), jnp.float32) * 0.02,
        "b2": jnp.zeros((HIDDEN,), jnp.float32),
    }


def init_params(key):
    params = []
    for _ in range(NUM_LAYERS):
        key, k_cm, k_sm, k_f1, k_f2, k_r = jax.random.split(key, 6)
        r = jax.random.normal(k_r, (4,), jnp.float32)  # rand, rand_z, rand2, rand_z2
        params.append({
            "ln_gamma": jnp.ones((HIDDEN,), jnp.float32),
            "ln_beta": jnp.zeros((HIDDEN,), jnp.float32),
            "crossmha": _init_mha(k_cm),
            "selfmha": _init_mha(k_sm),
            "linear": _init_ffn(k_f1),
            "linear2": _init_ffn(k_f2),
            "rand": r[0], "rand_z": r[1], "rand2": r[2], "rand_z2": r[3],
        })
    return params


# ---------------- main ----------------

if __name__ == "__main__":
    B, L, L_SRC = 2, 8, 16
    key = jax.random.PRNGKey(0)
    k_x, k_kv, k_p = jax.random.split(key, 3)

    hidden_states = jax.random.normal(k_x, (B, L, HIDDEN), jnp.float32)
    source_kv = jax.random.normal(k_kv, (B, L_SRC, HIDDEN), jnp.float32)
    params = init_params(k_p)

    out = jax.jit(cross_attention_encoder)(hidden_states, source_kv, params)
    out = jax.block_until_ready(out)
    assert out.shape == (B, L, HIDDEN) and out.dtype == jnp.float32

    ref = _reference_forward(hidden_states, source_kv, params)
    max_err = float(jnp.max(jnp.abs(out - ref)))
    # Tolerance loosened vs. the f32 reference because the kernel feeds the MXU
    # bf16 operands (f32 accumulation) and uses the approx EUP reciprocal for
    # the softmax denominator, as recommended by the performance review.
    assert jnp.allclose(out, ref, atol=5e-2, rtol=5e-2), max_err

    print("KERNEL_OK")
</pallas_src>

<mosaic_0001>
module attributes {stable_mosaic.version = 11 : i64} {
  func.func @_encoder_kernel(%arg0: memref<16xf32, #tpu.memory_space<smem>>, %arg1: memref<16x32xf32, #tpu.memory_space<vmem>>, %arg2: memref<32x32xf32, #tpu.memory_space<vmem>>, %arg3: memref<2x2x4x32x8xbf16, #tpu.memory_space<vmem>>, %arg4: memref<2x2x4x1x8xf32, #tpu.memory_space<vmem>>, %arg5: memref<2x2x4x32x8xbf16, #tpu.memory_space<vmem>>, %arg6: memref<2x2x4x1x8xf32, #tpu.memory_space<vmem>>, %arg7: memref<2x2x4x32x8xbf16, #tpu.memory_space<vmem>>, %arg8: memref<2x2x4x1x8xf32, #tpu.memory_space<vmem>>, %arg9: memref<2x2x4x8x32xbf16, #tpu.memory_space<vmem>>, %arg10: memref<2x2x1x32xf32, #tpu.memory_space<vmem>>, %arg11: memref<2x2x32x128xbf16, #tpu.memory_space<vmem>>, %arg12: memref<2x2x1x128xf32, #tpu.memory_space<vmem>>, %arg13: memref<2x2x128x32xbf16, #tpu.memory_space<vmem>>, %arg14: memref<2x2x1x32xf32, #tpu.memory_space<vmem>>, %arg15: memref<2x1x32xf32, #tpu.memory_space<vmem>>, %arg16: memref<2x1x32xf32, #tpu.memory_space<vmem>>, %arg17: memref<16x32xf32, #tpu.memory_space<vmem>>) attributes {dimension_semantics = [], scalar_prefetch = 0 : i64, scratch_operands = 0 : i64, tpu.core_type = #tpu.core_type<tc>} {
    %c0 = arith.constant 0 : index
    %c0_0 = arith.constant 0 : index
    %0 = vector.load %arg1[%c0, %c0_0] : memref<16x32xf32, #tpu.memory_space<vmem>>, vector<16x32xf32>
    %c0_1 = arith.constant 0 : index
    %c0_2 = arith.constant 0 : index
    %1 = vector.load %arg2[%c0_1, %c0_2] : memref<32x32xf32, #tpu.memory_space<vmem>>, vector<32x32xf32>
    %c0_3 = arith.constant 0 : index
    %c0_4 = arith.constant 0 : index
    %c0_5 = arith.constant 0 : index
    %2 = vector.load %arg15[%c0_3, %c0_4, %c0_5] : memref<2x1x32xf32, #tpu.memory_space<vmem>>, vector<1x1x32xf32>
    %3 = vector.shape_cast %2 : vector<1x1x32xf32> to vector<1x32xf32>
    %c0_6 = arith.constant 0 : index
    %c0_7 = arith.constant 0 : index
    %c0_8 = arith.constant 0 : index
    %4 = vector.load %arg16[%c0_6, %c0_7, %c0_8] : memref<2x1x32xf32, #tpu.memory_space<vmem>>, vector<1x1x32xf32>
    %5 = vector.shape_cast %4 : vector<1x1x32xf32> to vector<1x32xf32>
    %6 = arith.truncf %0 : vector<16x32xf32> to vector<16x32xbf16>
    %7 = arith.truncf %1 : vector<32x32xf32> to vector<32x32xbf16>
    %cst = arith.constant 0.000000e+00 : f32
    %8 = vector.broadcast %cst : f32 to vector<16x32xf32>
    %c0_9 = arith.constant 0 : index
    %c0_10 = arith.constant 0 : index
    %c0_11 = arith.constant 0 : index
    %c0_12 = arith.constant 0 : index
    %c0_13 = arith.constant 0 : index
    %9 = vector.load %arg3[%c0_9, %c0_10, %c0_11, %c0_12, %c0_13] : memref<2x2x4x32x8xbf16, #tpu.memory_space<vmem>>, vector<1x1x1x32x8xbf16>
    %10 = vector.shape_cast %9 : vector<1x1x1x32x8xbf16> to vector<32x8xbf16>
    %cst_14 = arith.constant dense<0.000000e+00> : vector<16x8xf32>
    %11 = tpu.matmul %6, %10, %cst_14 {dimension_numbers = #tpu.dot_dimension_numbers<[1], [0], [0], [1], [0, 0, 1, 1], [], []>} : vector<16x32xbf16>, vector<32x8xbf16>, vector<16x8xf32> -> vector<16x8xf32>
    %c0_15 = arith.constant 0 : index
    %c0_16 = arith.constant 0 : index
    %c0_17 = arith.constant 0 : index
    %c0_18 = arith.constant 0 : index
    %c0_19 = arith.constant 0 : index
    %12 = vector.load %arg4[%c0_15, %c0_16, %c0_17, %c0_18, %c0_19] : memref<2x2x4x1x8xf32, #tpu.memory_space<vmem>>, vector<1x1x1x1x8xf32>
    %13 = vector.shape_cast %12 : vector<1x1x1x1x8xf32> to vector<1x8xf32>
    %14 = vector.broadcast %13 : vector<1x8xf32> to vector<16x8xf32>
    %15 = arith.addf %11, %14 : vector<16x8xf32>
    %16 = vector.shape_cast %15 : vector<16x8xf32> to vector<2x8x8xf32>
    %c0_20 = arith.constant 0 : index
    %c0_21 = arith.constant 0 : index
    %c0_22 = arith.constant 0 : index
    %c0_23 = arith.constant 0 : index
    %c0_24 = arith.constant 0 : index
    %17 = vector.load %arg5[%c0_20, %c0_21, %c0_22, %c0_23, %c0_24] : memref<2x2x4x32x8xbf16, #tpu.memory_space<vmem>>, vector<1x1x1x32x8xbf16>
    %18 = vector.shape_cast %17 : vector<1x1x1x32x8xbf16> to vector<32x8xbf16>
    %cst_25 = arith.constant dense<0.000000e+00> : vector<32x8xf32>
    %19 = tpu.matmul %7, %18, %cst_25 {dimension_numbers = #tpu.dot_dimension_numbers<[1], [0], [0], [1], [0, 0, 1, 1], [], []>} : vector<32x32xbf16>, vector<32x8xbf16>, vector<32x8xf32> -> vector<32x8xf32>
    %c0_26 = arith.constant 0 : index
    %c0_27 = arith.constant 0 : index
    %c0_28 = arith.constant 0 : index
    %c0_29 = arith.constant 0 : index
    %c0_30 = arith.constant 0 : index
    %20 = vector.load %arg6[%c0_26, %c0_27, %c0_28, %c0_29, %c0_30] : memref<2x2x4x1x8xf32, #tpu.memory_space<vmem>>, vector<1x1x1x1x8xf32>
    %21 = vector.shape_cast %20 : vector<1x1x1x1x8xf32> to vector<1x8xf32>
    %22 = vector.broadcast %21 : vector<1x8xf32> to vector<32x8xf32>
    %23 = arith.addf %19, %22 : vector<32x8xf32>
    %24 = vector.shape_cast %23 : vector<32x8xf32> to vector<2x16x8xf32>
    %c0_31 = arith.constant 0 : index
    %c0_32 = arith.constant 0 : index
    %c0_33 = arith.constant 0 : index
    %c0_34 = arith.constant 0 : index
    %c0_35 = arith.constant 0 : index
    %25 = vector.load %arg7[%c0_31, %c0_32, %c0_33, %c0_34, %c0_35] : memref<2x2x4x32x8xbf16, #tpu.memory_space<vmem>>, vector<1x1x1x32x8xbf16>
    %26 = vector.shape_cast %25 : vector<1x1x1x32x8xbf16> to vector<32x8xbf16>
    %cst_36 = arith.constant dense<0.000000e+00> : vector<32x8xf32>
    %27 = tpu.matmul %7, %26, %cst_36 {dimension_numbers = #tpu.dot_dimension_numbers<[1], [0], [0], [1], [0, 0, 1, 1], [], []>} : vector<32x32xbf16>, vector<32x8xbf16>, vector<32x8xf32> -> vector<32x8xf32>
    %c0_37 = arith.constant 0 : index
    %c0_38 = arith.constant 0 : index
    %c0_39 = arith.constant 0 : index
    %c0_40 = arith.constant 0 : index
    %c0_41 = arith.constant 0 : index
    %28 = vector.load %arg8[%c0_37, %c0_38, %c0_39, %c0_40, %c0_41] : memref<2x2x4x1x8xf32, #tpu.memory_space<vmem>>, vector<1x1x1x1x8xf32>
    %29 = vector.shape_cast %28 : vector<1x1x1x1x8xf32> to vector<1x8xf32>
    %30 = vector.broadcast %29 : vector<1x8xf32> to vector<32x8xf32>
    %31 = arith.addf %27, %30 : vector<32x8xf32>
    %32 = vector.shape_cast %31 : vector<32x8xf32> to vector<2x16x8xf32>
    %33 = arith.truncf %16 : vector<2x8x8xf32> to vector<2x8x8xbf16>
    %34 = arith.truncf %24 : vector<2x16x8xf32> to vector<2x16x8xbf16>
    "tpu.trace_start"() <{level = 10 : i32, message = "bqd,bkd->bqk"}> : () -> ()
    %cst_42 = arith.constant dense<0.000000e+00> : vector<2x8x16xf32>
    %35 = tpu.matmul %33, %34, %cst_42 {dimension_numbers = #tpu.dot_dimension_numbers<[2], [2], [1], [1], [0, 0, 0, 1, 1, 1], [0], [0]>} : vector<2x8x8xbf16>, vector<2x16x8xbf16>, vector<2x8x16xf32> -> vector<2x8x16xf32>
    "tpu.trace_stop"() : () -> ()
    %cst_43 = arith.constant dense<0xFF800000> : vector<2x8xf32>
    %36 = vector.multi_reduction <maximumf>, %35, %cst_43 [2] : vector<2x8x16xf32> to vector<2x8xf32>
    %37 = vector.shape_cast %36 : vector<2x8xf32> to vector<2x8x1xf32>
    %38 = vector.broadcast %37 : vector<2x8x1xf32> to vector<2x8x16xf32>
    %39 = arith.subf %35, %38 : vector<2x8x16xf32>
    %40 = math.exp %39 : vector<2x8x16xf32>
    %cst_44 = arith.constant dense<0.000000e+00> : vector<2x8xf32>
    %41 = vector.multi_reduction <add>, %40, %cst_44 [2] : vector<2x8x16xf32> to vector<2x8xf32>
    %42 = vector.shape_cast %41 : vector<2x8xf32> to vector<2x8x1xf32>
    %43 = arith.truncf %40 : vector<2x8x16xf32> to vector<2x8x16xbf16>
    %44 = arith.truncf %32 : vector<2x16x8xf32> to vector<2x16x8xbf16>
    "tpu.trace_start"() <{level = 10 : i32, message = "bqk,bkd->bqd"}> : () -> ()
    %cst_45 = arith.constant dense<0.000000e+00> : vector<2x8x8xf32>
    %45 = tpu.matmul %43, %44, %cst_45 {dimension_numbers = #tpu.dot_dimension_numbers<[2], [1], [1], [2], [0, 0, 0, 1, 1, 2], [0], [0]>} : vector<2x8x16xbf16>, vector<2x16x8xbf16>, vector<2x8x8xf32> -> vector<2x8x8xf32>
    "tpu.trace_stop"() : () -> ()
    %46 = tpu.reciprocal %42 {approx = true} : vector<2x8x1xf32> -> vector<2x8x1xf32>
    %47 = vector.broadcast %46 : vector<2x8x1xf32> to vector<2x8x8xf32>
    %48 = arith.mulf %45, %47 : vector<2x8x8xf32>
    %49 = vector.shape_cast %48 : vector<2x8x8xf32> to vector<16x8xf32>
    %50 = arith.truncf %49 : vector<16x8xf32> to vector<16x8xbf16>
    %c0_46 = arith.constant 0 : index
    %c0_47 = arith.constant 0 : index
    %c0_48 = arith.constant 0 : index
    %c0_49 = arith.constant 0 : index
    %c0_50 = arith.constant 0 : index
    %51 = vector.load %arg9[%c0_46, %c0_47, %c0_48, %c0_49, %c0_50] : memref<2x2x4x8x32xbf16, #tpu.memory_space<vmem>>, vector<1x1x1x8x32xbf16>
    %52 = vector.shape_cast %51 : vector<1x1x1x8x32xbf16> to vector<8x32xbf16>
    %cst_51 = arith.constant dense<0.000000e+00> : vector<16x32xf32>
    %53 = tpu.matmul %50, %52, %cst_51 {dimension_numbers = #tpu.dot_dimension_numbers<[1], [0], [0], [1], [0, 0, 1, 1], [], []>} : vector<16x8xbf16>, vector<8x32xbf16>, vector<16x32xf32> -> vector<16x32xf32>
    %54 = arith.addf %8, %53 : vector<16x32xf32>
    %c0_52 = arith.constant 0 : index
    %c0_53 = arith.constant 0 : index
    %c1 = arith.constant 1 : index
    %c0_54 = arith.constant 0 : index
    %c0_55 = arith.constant 0 : index
    %55 = vector.load %arg3[%c0_52, %c0_53, %c1, %c0_54, %c0_55] : memref<2x2x4x32x8xbf16, #tpu.memory_space<vmem>>, vector<1x1x1x32x8xbf16>
    %56 = vector.shape_cast %55 : vector<1x1x1x32x8xbf16> to vector<32x8xbf16>
    %cst_56 = arith.constant dense<0.000000e+00> : vector<16x8xf32>
    %57 = tpu.matmul %6, %56, %cst_56 {dimension_numbers = #tpu.dot_dimension_numbers<[1], [0], [0], [1], [0, 0, 1, 1], [], []>} : vector<16x32xbf16>, vector<32x8xbf16>, vector<16x8xf32> -> vector<16x8xf32>
    %c0_57 = arith.constant 0 : index
    %c0_58 = arith.constant 0 : index
    %c1_59 = arith.constant 1 : index
    %c0_60 = arith.constant 0 : index
    %c0_61 = arith.constant 0 : index
    %58 = vector.load %arg4[%c0_57, %c0_58, %c1_59, %c0_60, %c0_61] : memref<2x2x4x1x8xf32, #tpu.memory_space<vmem>>, vector<1x1x1x1x8xf32>
    %59 = vector.shape_cast %58 : vector<1x1x1x1x8xf32> to vector<1x8xf32>
    %60 = vector.broadcast %59 : vector<1x8xf32> to vector<16x8xf32>
    %61 = arith.addf %57, %60 : vector<16x8xf32>
    %62 = vector.shape_cast %61 : vector<16x8xf32> to vector<2x8x8xf32>
    %c0_62 = arith.constant 0 : index
    %c0_63 = arith.constant 0 : index
    %c1_64 = arith.constant 1 : index
    %c0_65 = arith.constant 0 : index
    %c0_66 = arith.constant 0 : index
    %63 = vector.load %arg5[%c0_62, %c0_63, %c1_64, %c0_65, %c0_66] : memref<2x2x4x32x8xbf16, #tpu.memory_space<vmem>>, vector<1x1x1x32x8xbf16>
    %64 = vector.shape_cast %63 : vector<1x1x1x32x8xbf16> to vector<32x8xbf16>
    %cst_67 = arith.constant dense<0.000000e+00> : vector<32x8xf32>
    %65 = tpu.matmul %7, %64, %cst_67 {dimension_numbers = #tpu.dot_dimension_numbers<[1], [0], [0], [1], [0, 0, 1, 1], [], []>} : vector<32x32xbf16>, vector<32x8xbf16>, vector<32x8xf32> -> vector<32x8xf32>
    %c0_68 = arith.constant 0 : index
    %c0_69 = arith.constant 0 : index
    %c1_70 = arith.constant 1 : index
    %c0_71 = arith.constant 0 : index
    %c0_72 = arith.constant 0 : index
    %66 = vector.load %arg6[%c0_68, %c0_69, %c1_70, %c0_71, %c0_72] : memref<2x2x4x1x8xf32, #tpu.memory_space<vmem>>, vector<1x1x1x1x8xf32>
    %67 = vector.shape_cast %66 : vector<1x1x1x1x8xf32> to vector<1x8xf32>
    %68 = vector.broadcast %67 : vector<1x8xf32> to vector<32x8xf32>
    %69 = arith.addf %65, %68 : vector<32x8xf32>
    %70 = vector.shape_cast %69 : vector<32x8xf32> to vector<2x16x8xf32>
    %c0_73 = arith.constant 0 : index
    %c0_74 = arith.constant 0 : index
    %c1_75 = arith.constant 1 : index
    %c0_76 = arith.constant 0 : index
    %c0_77 = arith.constant 0 : index
    %71 = vector.load %arg7[%c0_73, %c0_74, %c1_75, %c0_76, %c0_77] : memref<2x2x4x32x8xbf16, #tpu.memory_space<vmem>>, vector<1x1x1x32x8xbf16>
    %72 = vector.shape_cast %71 : vector<1x1x1x32x8xbf16> to vector<32x8xbf16>
    %cst_78 = arith.constant dense<0.000000e+00> : vector<32x8xf32>
    %73 = tpu.matmul %7, %72, %cst_78 {dimension_numbers = #tpu.dot_dimension_numbers<[1], [0], [0], [1], [0, 0, 1, 1], [], []>} : vector<32x32xbf16>, vector<32x8xbf16>, vector<32x8xf32> -> vector<32x8xf32>
    %c0_79 = arith.constant 0 : index
    %c0_80 = arith.constant 0 : index
    %c1_81 = arith.constant 1 : index
    %c0_82 = arith.constant 0 : index
    %c0_83 = arith.constant 0 : index
    %74 = vector.load %arg8[%c0_79, %c0_80, %c1_81, %c0_82, %c0_83] : memref<2x2x4x1x8xf32, #tpu.memory_space<vmem>>, vector<1x1x1x1x8xf32>
    %75 = vector.shape_cast %74 : vector<1x1x1x1x8xf32> to vector<1x8xf32>
    %76 = vector.broadcast %75 : vector<1x8xf32> to vector<32x8xf32>
    %77 = arith.addf %73, %76 : vector<32x8xf32>
    %78 = vector.shape_cast %77 : vector<32x8xf32> to vector<2x16x8xf32>
    %79 = arith.truncf %62 : vector<2x8x8xf32> to vector<2x8x8xbf16>
    %80 = arith.truncf %70 : vector<2x16x8xf32> to vector<2x16x8xbf16>
    "tpu.trace_start"() <{level = 10 : i32, message = "bqd,bkd->bqk"}> : () -> ()
    %cst_84 = arith.constant dense<0.000000e+00> : vector<2x8x16xf32>
    %81 = tpu.matmul %79, %80, %cst_84 {dimension_numbers = #tpu.dot_dimension_numbers<[2], [2], [1], [1], [0, 0, 0, 1, 1, 1], [0], [0]>} : vector<2x8x8xbf16>, vector<2x16x8xbf16>, vector<2x8x16xf32> -> vector<2x8x16xf32>
    "tpu.trace_stop"() : () -> ()
    %cst_85 = arith.constant dense<0xFF800000> : vector<2x8xf32>
    %82 = vector.multi_reduction <maximumf>, %81, %cst_85 [2] : vector<2x8x16xf32> to vector<2x8xf32>
    %83 = vector.shape_cast %82 : vector<2x8xf32> to vector<2x8x1xf32>
    %84 = vector.broadcast %83 : vector<2x8x1xf32> to vector<2x8x16xf32>
    %85 = arith.subf %81, %84 : vector<2x8x16xf32>
    %86 = math.exp %85 : vector<2x8x16xf32>
    %cst_86 = arith.constant dense<0.000000e+00> : vector<2x8xf32>
    %87 = vector.multi_reduction <add>, %86, %cst_86 [2] : vector<2x8x16xf32> to vector<2x8xf32>
    %88 = vector.shape_cast %87 : vector<2x8xf32> to vector<2x8x1xf32>
    %89 = arith.truncf %86 : vector<2x8x16xf32> to vector<2x8x16xbf16>
    %90 = arith.truncf %78 : vector<2x16x8xf32> to vector<2x16x8xbf16>
    "tpu.trace_start"() <{level = 10 : i32, message = "bqk,bkd->bqd"}> : () -> ()
    %cst_87 = arith.constant dense<0.000000e+00> : vector<2x8x8xf32>
    %91 = tpu.matmul %89, %90, %cst_87 {dimension_numbers = #tpu.dot_dimension_numbers<[2], [1], [1], [2], [0, 0, 0, 1, 1, 2], [0], [0]>} : vector<2x8x16xbf16>, vector<2x16x8xbf16>, vector<2x8x8xf32> -> vector<2x8x8xf32>
    "tpu.trace_stop"() : () -> ()
    %92 = tpu.reciprocal %88 {approx = true} : vector<2x8x1xf32> -> vector<2x8x1xf32>
    %93 = vector.broadcast %92 : vector<2x8x1xf32> to vector<2x8x8xf32>
    %94 = arith.mulf %91, %93 : vector<2x8x8xf32>
    %95 = vector.shape_cast %94 : vector<2x8x8xf32> to vector<16x8xf32>
    %96 = arith.truncf %95 : vector<16x8xf32> to vector<16x8xbf16>
    %c0_88 = arith.constant 0 : index
    %c0_89 = arith.constant 0 : index
    %c1_90 = arith.constant 1 : index
    %c0_91 = arith.constant 0 : index
    %c0_92 = arith.constant 0 : index
    %97 = vector.load %arg9[%c0_88, %c0_89, %c1_90, %c0_91, %c0_92] : memref<2x2x4x8x32xbf16, #tpu.memory_space<vmem>>, vector<1x1x1x8x32xbf16>
    %98 = vector.shape_cast %97 : vector<1x1x1x8x32xbf16> to vector<8x32xbf16>
    %cst_93 = arith.constant dense<0.000000e+00> : vector<16x32xf32>
    %99 = tpu.matmul %96, %98, %cst_93 {dimension_numbers = #tpu.dot_dimension_numbers<[1], [0], [0], [1], [0, 0, 1, 1], [], []>} : vector<16x8xbf16>, vector<8x32xbf16>, vector<16x32xf32> -> vector<16x32xf32>
    %100 = arith.addf %54, %99 : vector<16x32xf32>
    %c0_94 = arith.constant 0 : index
    %c0_95 = arith.constant 0 : index
    %c2 = arith.constant 2 : index
    %c0_96 = arith.constant 0 : index
    %c0_97 = arith.constant 0 : index
    %101 = vector.load %arg3[%c0_94, %c0_95, %c2, %c0_96, %c0_97] : memref<2x2x4x32x8xbf16, #tpu.memory_space<vmem>>, vector<1x1x1x32x8xbf16>
    %102 = vector.shape_cast %101 : vector<1x1x1x32x8xbf16> to vector<32x8xbf16>
    %cst_98 = arith.constant dense<0.000000e+00> : vector<16x8xf32>
    %103 = tpu.matmul %6, %102, %cst_98 {dimension_numbers = #tpu.dot_dimension_numbers<[1], [0], [0], [1], [0, 0, 1, 1], [], []>} : vector<16x32xbf16>, vector<32x8xbf16>, vector<16x8xf32> -> vector<16x8xf32>
    %c0_99 = arith.constant 0 : index
    %c0_100 = arith.constant 0 : index
    %c2_101 = arith.constant 2 : index
    %c0_102 = arith.constant 0 : index
    %c0_103 = arith.constant 0 : index
    %104 = vector.load %arg4[%c0_99, %c0_100, %c2_101, %c0_102, %c0_103] : memref<2x2x4x1x8xf32, #tpu.memory_space<vmem>>, vector<1x1x1x1x8xf32>
    %105 = vector.shape_cast %104 : vector<1x1x1x1x8xf32> to vector<1x8xf32>
    %106 = vector.broadcast %105 : vector<1x8xf32> to vector<16x8xf32>
    %107 = arith.addf %103, %106 : vector<16x8xf32>
    %108 = vector.shape_cast %107 : vector<16x8xf32> to vector<2x8x8xf32>
    %c0_104 = arith.constant 0 : index
    %c0_105 = arith.constant 0 : index
    %c2_106 = arith.constant 2 : index
    %c0_107 = arith.constant 0 : index
    %c0_108 = arith.constant 0 : index
    %109 = vector.load %arg5[%c0_104, %c0_105, %c2_106, %c0_107, %c0_108] : memref<2x2x4x32x8xbf16, #tpu.memory_space<vmem>>, vector<1x1x1x32x8xbf16>
    %110 = vector.shape_cast %109 : vector<1x1x1x32x8xbf16> to vector<32x8xbf16>
    %cst_109 = arith.constant dense<0.000000e+00> : vector<32x8xf32>
    %111 = tpu.matmul %7, %110, %cst_109 {dimension_numbers = #tpu.dot_dimension_numbers<[1], [0], [0], [1], [0, 0, 1, 1], [], []>} : vector<32x32xbf16>, vector<32x8xbf16>, vector<32x8xf32> -> vector<32x8xf32>
    %c0_110 = arith.constant 0 : index
    %c0_111 = arith.constant 0 : index
    %c2_112 = arith.constant 2 : index
    %c0_113 = arith.constant 0 : index
    %c0_114 = arith.constant 0 : index
    %112 = vector.load %arg6[%c0_110, %c0_111, %c2_112, %c0_113, %c0_114] : memref<2x2x4x1x8xf32, #tpu.memory_space<vmem>>, vector<1x1x1x1x8xf32>
    %113 = vector.shape_cast %112 : vector<1x1x1x1x8xf32> to vector<1x8xf32>
    %114 = vector.broadcast %113 : vector<1x8xf32> to vector<32x8xf32>
    %115 = arith.addf %111, %114 : vector<32x8xf32>
    %116 = vector.shape_cast %115 : vector<32x8xf32> to vector<2x16x8xf32>
    %c0_115 = arith.constant 0 : index
    %c0_116 = arith.constant 0 : index
    %c2_117 = arith.constant 2 : index
    %c0_118 = arith.constant 0 : index
    %c0_119 = arith.constant 0 : index
    %117 = vector.load %arg7[%c0_115, %c0_116, %c2_117, %c0_118, %c0_119] : memref<2x2x4x32x8xbf16, #tpu.memory_space<vmem>>, vector<1x1x1x32x8xbf16>
    %118 = vector.shape_cast %117 : vector<1x1x1x32x8xbf16> to vector<32x8xbf16>
    %cst_120 = arith.constant dense<0.000000e+00> : vector<32x8xf32>
    %119 = tpu.matmul %7, %118, %cst_120 {dimension_numbers = #tpu.dot_dimension_numbers<[1], [0], [0], [1], [0, 0, 1, 1], [], []>} : vector<32x32xbf16>, vector<32x8xbf16>, vector<32x8xf32> -> vector<32x8xf32>
    %c0_121 = arith.constant 0 : index
    %c0_122 = arith.constant 0 : index
    %c2_123 = arith.constant 2 : index
    %c0_124 = arith.constant 0 : index
    %c0_125 = arith.constant 0 : index
    %120 = vector.load %arg8[%c0_121, %c0_122, %c2_123, %c0_124, %c0_125] : memref<2x2x4x1x8xf32, #tpu.memory_space<vmem>>, vector<1x1x1x1x8xf32>
    %121 = vector.shape_cast %120 : vector<1x1x1x1x8xf32> to vector<1x8xf32>
    %122 = vector.broadcast %121 : vector<1x8xf32> to vector<32x8xf32>
    %123 = arith.addf %119, %122 : vector<32x8xf32>
    %124 = vector.shape_cast %123 : vector<32x8xf32> to vector<2x16x8xf32>
    %125 = arith.truncf %108 : vector<2x8x8xf32> to vector<2x8x8xbf16>
    %126 = arith.truncf %116 : vector<2x16x8xf32> to vector<2x16x8xbf16>
    "tpu.trace_start"() <{level = 10 : i32, message = "bqd,bkd->bqk"}> : () -> ()
    %cst_126 = arith.constant dense<0.000000e+00> : vector<2x8x16xf32>
    %127 = tpu.matmul %125, %126, %cst_126 {dimension_numbers = #tpu.dot_dimension_numbers<[2], [2], [1], [1], [0, 0, 0, 1, 1, 1], [0], [0]>} : vector<2x8x8xbf16>, vector<2x16x8xbf16>, vector<2x8x16xf32> -> vector<2x8x16xf32>
    "tpu.trace_stop"() : () -> ()
    %cst_127 = arith.constant dense<0xFF800000> : vector<2x8xf32>
    %128 = vector.multi_reduction <maximumf>, %127, %cst_127 [2] : vector<2x8x16xf32> to vector<2x8xf32>
    %129 = vector.shape_cast %128 : vector<2x8xf32> to vector<2x8x1xf32>
    %130 = vector.broadcast %129 : vector<2x8x1xf32> to vector<2x8x16xf32>
    %131 = arith.subf %127, %130 : vector<2x8x16xf32>
    %132 = math.exp %131 : vector<2x8x16xf32>
    %cst_128 = arith.constant dense<0.000000e+00> : vector<2x8xf32>
    %133 = vector.multi_reduction <add>, %132, %cst_128 [2] : vector<2x8x16xf32> to vector<2x8xf32>
    %134 = vector.shape_cast %133 : vector<2x8xf32> to vector<2x8x1xf32>
    %135 = arith.truncf %132 : vector<2x8x16xf32> to vector<2x8x16xbf16>
    %136 = arith.truncf %124 : vector<2x16x8xf32> to vector<2x16x8xbf16>
    "tpu.trace_start"() <{level = 10 : i32, message = "bqk,bkd->bqd"}> : () -> ()
    %cst_129 = arith.constant dense<0.000000e+00> : vector<2x8x8xf32>
    %137 = tpu.matmul %135, %136, %cst_129 {dimension_numbers = #tpu.dot_dimension_numbers<[2], [1], [1], [2], [0, 0, 0, 1, 1, 2], [0], [0]>} : vector<2x8x16xbf16>, vector<2x16x8xbf16>, vector<2x8x8xf32> -> vector<2x8x8xf32>
    "tpu.trace_stop"() : () -> ()
    %138 = tpu.reciprocal %134 {approx = true} : vector<2x8x1xf32> -> vector<2x8x1xf32>
    %139 = vector.broadcast %138 : vector<2x8x1xf32> to vector<2x8x8xf32>
    %140 = arith.mulf %137, %139 : vector<2x8x8xf32>
    %141 = vector.shape_cast %140 : vector<2x8x8xf32> to vector<16x8xf32>
    %142 = arith.truncf %141 : vector<16x8xf32> to vector<16x8xbf16>
    %c0_130 = arith.constant 0 : index
    %c0_131 = arith.constant 0 : index
    %c2_132 = arith.constant 2 : index
    %c0_133 = arith.constant 0 : index
    %c0_134 = arith.constant 0 : index
    %143 = vector.load %arg9[%c0_130, %c0_131, %c2_132, %c0_133, %c0_134] : memref<2x2x4x8x32xbf16, #tpu.memory_space<vmem>>, vector<1x1x1x8x32xbf16>
    %144 = vector.shape_cast %143 : vector<1x1x1x8x32xbf16> to vector<8x32xbf16>
    %cst_135 = arith.constant dense<0.000000e+00> : vector<16x32xf32>
    %145 = tpu.matmul %142, %144, %cst_135 {dimension_numbers = #tpu.dot_dimension_numbers<[1], [0], [0], [1], [0, 0, 1, 1], [], []>} : vector<16x8xbf16>, vector<8x32xbf16>, vector<16x32xf32> -> vector<16x32xf32>
    %146 = arith.addf %100, %145 : vector<16x32xf32>
    %c0_136 = arith.constant 0 : index
    %c0_137 = arith.constant 0 : index
    %c3 = arith.constant 3 : index
    %c0_138 = arith.constant 0 : index
    %c0_139 = arith.constant 0 : index
    %147 = vector.load %arg3[%c0_136, %c0_137, %c3, %c0_138, %c0_139] : memref<2x2x4x32x8xbf16, #tpu.memory_space<vmem>>, vector<1x1x1x32x8xbf16>
    %148 = vector.shape_cast %147 : vector<1x1x1x32x8xbf16> to vector<32x8xbf16>
    %cst_140 = arith.constant dense<0.000000e+00> : vector<16x8xf32>
    %149 = tpu.matmul %6, %148, %cst_140 {dimension_numbers = #tpu.dot_dimension_numbers<[1], [0], [0], [1], [0, 0, 1, 1], [], []>} : vector<16x32xbf16>, vector<32x8xbf16>, vector<16x8xf32> -> vector<16x8xf32>
    %c0_141 = arith.constant 0 : index
    %c0_142 = arith.constant 0 : index
    %c3_143 = arith.constant 3 : index
    %c0_144 = arith.constant 0 : index
    %c0_145 = arith.constant 0 : index
    %150 = vector.load %arg4[%c0_141, %c0_142, %c3_143, %c0_144, %c0_145] : memref<2x2x4x1x8xf32, #tpu.memory_space<vmem>>, vector<1x1x1x1x8xf32>
    %151 = vector.shape_cast %150 : vector<1x1x1x1x8xf32> to vector<1x8xf32>
    %152 = vector.broadcast %151 : vector<1x8xf32> to vector<16x8xf32>
    %153 = arith.addf %149, %152 : vector<16x8xf32>
    %154 = vector.shape_cast %153 : vector<16x8xf32> to vector<2x8x8xf32>
    %c0_146 = arith.constant 0 : index
    %c0_147 = arith.constant 0 : index
    %c3_148 = arith.constant 3 : index
    %c0_149 = arith.constant 0 : index
    %c0_150 = arith.constant 0 : index
    %155 = vector.load %arg5[%c0_146, %c0_147, %c3_148, %c0_149, %c0_150] : memref<2x2x4x32x8xbf16, #tpu.memory_space<vmem>>, vector<1x1x1x32x8xbf16>
    %156 = vector.shape_cast %155 : vector<1x1x1x32x8xbf16> to vector<32x8xbf16>
    %cst_151 = arith.constant dense<0.000000e+00> : vector<32x8xf32>
    %157 = tpu.matmul %7, %156, %cst_151 {dimension_numbers = #tpu.dot_dimension_numbers<[1], [0], [0], [1], [0, 0, 1, 1], [], []>} : vector<32x32xbf16>, vector<32x8xbf16>, vector<32x8xf32> -> vector<32x8xf32>
    %c0_152 = arith.constant 0 : index
    %c0_153 = arith.constant 0 : index
    %c3_154 = arith.constant 3 : index
    %c0_155 = arith.constant 0 : index
    %c0_156 = arith.constant 0 : index
    %158 = vector.load %arg6[%c0_152, %c0_153, %c3_154, %c0_155, %c0_156] : memref<2x2x4x1x8xf32, #tpu.memory_space<vmem>>, vector<1x1x1x1x8xf32>
    %159 = vector.shape_cast %158 : vector<1x1x1x1x8xf32> to vector<1x8xf32>
    %160 = vector.broadcast %159 : vector<1x8xf32> to vector<32x8xf32>
    %161 = arith.addf %157, %160 : vector<32x8xf32>
    %162 = vector.shape_cast %161 : vector<32x8xf32> to vector<2x16x8xf32>
    %c0_157 = arith.constant 0 : index
    %c0_158 = arith.constant 0 : index
    %c3_159 = arith.constant 3 : index
    %c0_160 = arith.constant 0 : index
    %c0_161 = arith.constant 0 : index
    %163 = vector.load %arg7[%c0_157, %c0_158, %c3_159, %c0_160, %c0_161] : memref<2x2x4x32x8xbf16, #tpu.memory_space<vmem>>, vector<1x1x1x32x8xbf16>
    %164 = vector.shape_cast %163 : vector<1x1x1x32x8xbf16> to vector<32x8xbf16>
    %cst_162 = arith.constant dense<0.000000e+00> : vector<32x8xf32>
    %165 = tpu.matmul %7, %164, %cst_162 {dimension_numbers = #tpu.dot_dimension_numbers<[1], [0], [0], [1], [0, 0, 1, 1], [], []>} : vector<32x32xbf16>, vector<32x8xbf16>, vector<32x8xf32> -> vector<32x8xf32>
    %c0_163 = arith.constant 0 : index
    %c0_164 = arith.constant 0 : index
    %c3_165 = arith.constant 3 : index
    %c0_166 = arith.constant 0 : index
    %c0_167 = arith.constant 0 : index
    %166 = vector.load %arg8[%c0_163, %c0_164, %c3_165, %c0_166, %c0_167] : memref<2x2x4x1x8xf32, #tpu.memory_space<vmem>>, vector<1x1x1x1x8xf32>
    %167 = vector.shape_cast %166 : vector<1x1x1x1x8xf32> to vector<1x8xf32>
    %168 = vector.broadcast %167 : vector<1x8xf32> to vector<32x8xf32>
    %169 = arith.addf %165, %168 : vector<32x8xf32>
    %170 = vector.shape_cast %169 : vector<32x8xf32> to vector<2x16x8xf32>
    %171 = arith.truncf %154 : vector<2x8x8xf32> to vector<2x8x8xbf16>
    %172 = arith.truncf %162 : vector<2x16x8xf32> to vector<2x16x8xbf16>
    "tpu.trace_start"() <{level = 10 : i32, message = "bqd,bkd->bqk"}> : () -> ()
    %cst_168 = arith.constant dense<0.000000e+00> : vector<2x8x16xf32>
    %173 = tpu.matmul %171, %172, %cst_168 {dimension_numbers = #tpu.dot_dimension_numbers<[2], [2], [1], [1], [0, 0, 0, 1, 1, 1], [0], [0]>} : vector<2x8x8xbf16>, vector<2x16x8xbf16>, vector<2x8x16xf32> -> vector<2x8x16xf32>
    "tpu.trace_stop"() : () -> ()
    %cst_169 = arith.constant dense<0xFF800000> : vector<2x8xf32>
    %174 = vector.multi_reduction <maximumf>, %173, %cst_169 [2] : vector<2x8x16xf32> to vector<2x8xf32>
    %175 = vector.shape_cast %174 : vector<2x8xf32> to vector<2x8x1xf32>
    %176 = vector.broadcast %175 : vector<2x8x1xf32> to vector<2x8x16xf32>
    %177 = arith.subf %173, %176 : vector<2x8x16xf32>
    %178 = math.exp %177 : vector<2x8x16xf32>
    %cst_170 = arith.constant dense<0.000000e+00> : vector<2x8xf32>
    %179 = vector.multi_reduction <add>, %178, %cst_170 [2] : vector<2x8x16xf32> to vector<2x8xf32>
    %180 = vector.shape_cast %179 : vector<2x8xf32> to vector<2x8x1xf32>
    %181 = arith.truncf %178 : vector<2x8x16xf32> to vector<2x8x16xbf16>
    %182 = arith.truncf %170 : vector<2x16x8xf32> to vector<2x16x8xbf16>
    "tpu.trace_start"() <{level = 10 : i32, message = "bqk,bkd->bqd"}> : () -> ()
    %cst_171 = arith.constant dense<0.000000e+00> : vector<2x8x8xf32>
    %183 = tpu.matmul %181, %182, %cst_171 {dimension_numbers = #tpu.dot_dimension_numbers<[2], [1], [1], [2], [0, 0, 0, 1, 1, 2], [0], [0]>} : vector<2x8x16xbf16>, vector<2x16x8xbf16>, vector<2x8x8xf32> -> vector<2x8x8xf32>
    "tpu.trace_stop"() : () -> ()
    %184 = tpu.reciprocal %180 {approx = true} : vector<2x8x1xf32> -> vector<2x8x1xf32>
    %185 = vector.broadcast %184 : vector<2x8x1xf32> to vector<2x8x8xf32>
    %186 = arith.mulf %183, %185 : vector<2x8x8xf32>
    %187 = vector.shape_cast %186 : vector<2x8x8xf32> to vector<16x8xf32>
    %188 = arith.truncf %187 : vector<16x8xf32> to vector<16x8xbf16>
    %c0_172 = arith.constant 0 : index
    %c0_173 = arith.constant 0 : index
    %c3_174 = arith.constant 3 : index
    %c0_175 = arith.constant 0 : index
    %c0_176 = arith.constant 0 : index
    %189 = vector.load %arg9[%c0_172, %c0_173, %c3_174, %c0_175, %c0_176] : memref<2x2x4x8x32xbf16, #tpu.memory_space<vmem>>, vector<1x1x1x8x32xbf16>
    %190 = vector.shape_cast %189 : vector<1x1x1x8x32xbf16> to vector<8x32xbf16>
    %cst_177 = arith.constant dense<0.000000e+00> : vector<16x32xf32>
    %191 = tpu.matmul %188, %190, %cst_177 {dimension_numbers = #tpu.dot_dimension_numbers<[1], [0], [0], [1], [0, 0, 1, 1], [], []>} : vector<16x8xbf16>, vector<8x32xbf16>, vector<16x32xf32> -> vector<16x32xf32>
    %192 = arith.addf %146, %191 : vector<16x32xf32>
    %c0_178 = arith.constant 0 : index
    %c0_179 = arith.constant 0 : index
    %c0_180 = arith.constant 0 : index
    %c0_181 = arith.constant 0 : index
    %193 = vector.load %arg10[%c0_178, %c0_179, %c0_180, %c0_181] : memref<2x2x1x32xf32, #tpu.memory_space<vmem>>, vector<1x1x1x32xf32>
    %194 = vector.shape_cast %193 : vector<1x1x1x32xf32> to vector<1x32xf32>
    %195 = vector.broadcast %194 : vector<1x32xf32> to vector<16x32xf32>
    %196 = arith.addf %192, %195 : vector<16x32xf32>
    %c0_182 = arith.constant 0 : index
    %197 = memref.load %arg0[%c0_182] : memref<16xf32, #tpu.memory_space<smem>>
    %c1_183 = arith.constant 1 : index
    %198 = memref.load %arg0[%c1_183] : memref<16xf32, #tpu.memory_space<smem>>
    %199 = vector.broadcast %197 : f32 to vector<16x32xf32>
    %200 = arith.mulf %199, %0 : vector<16x32xf32>
    %201 = vector.broadcast %198 : f32 to vector<16x32xf32>
    %202 = arith.mulf %201, %196 : vector<16x32xf32>
    %203 = arith.addf %200, %202 : vector<16x32xf32>
    %cst_184 = arith.constant dense<0.000000e+00> : vector<16xf32>
    %204 = vector.multi_reduction <add>, %203, %cst_184 [1] : vector<16x32xf32> to vector<16xf32>
    %205 = vector.shape_cast %204 : vector<16xf32> to vector<16x1xf32>
    %cst_185 = arith.constant 3.200000e+01 : f32
    %206 = vector.broadcast %cst_185 : f32 to vector<16x1xf32>
    %207 = arith.divf %205, %206 : vector<16x1xf32>
    %208 = arith.mulf %203, %203 : vector<16x32xf32>
    %cst_186 = arith.constant dense<0.000000e+00> : vector<16xf32>
    %209 = vector.multi_reduction <add>, %208, %cst_186 [1] : vector<16x32xf32> to vector<16xf32>
    %210 = vector.shape_cast %209 : vector<16xf32> to vector<16x1xf32>
    %cst_187 = arith.constant 3.200000e+01 : f32
    %211 = vector.broadcast %cst_187 : f32 to vector<16x1xf32>
    %212 = arith.divf %210, %211 : vector<16x1xf32>
    %213 = arith.mulf %207, %207 : vector<16x1xf32>
    %214 = arith.subf %212, %213 : vector<16x1xf32>
    %215 = vector.broadcast %207 : vector<16x1xf32> to vector<16x32xf32>
    %216 = arith.subf %203, %215 : vector<16x32xf32>
    %cst_188 = arith.constant 9.99999996E-13 : f32
    %217 = vector.broadcast %cst_188 : f32 to vector<16x1xf32>
    %218 = arith.addf %214, %217 : vector<16x1xf32>
    %219 = math.rsqrt %218 : vector<16x1xf32>
    %220 = vector.broadcast %219 : vector<16x1xf32> to vector<16x32xf32>
    %221 = arith.mulf %216, %220 : vector<16x32xf32>
    %222 = vector.broadcast %3 : vector<1x32xf32> to vector<16x32xf32>
    %223 = arith.mulf %221, %222 : vector<16x32xf32>
    %224 = vector.broadcast %5 : vector<1x32xf32> to vector<16x32xf32>
    %225 = arith.addf %223, %224 : vector<16x32xf32>
    %226 = arith.truncf %225 : vector<16x32xf32> to vector<16x32xbf16>
    %c0_189 = arith.constant 0 : index
    %c0_190 = arith.constant 0 : index
    %c0_191 = arith.constant 0 : index
    %c0_192 = arith.constant 0 : index
    %227 = vector.load %arg11[%c0_189, %c0_190, %c0_191, %c0_192] : memref<2x2x32x128xbf16, #tpu.memory_space<vmem>>, vector<1x1x32x128xbf16>
    %228 = vector.shape_cast %227 : vector<1x1x32x128xbf16> to vector<32x128xbf16>
    %cst_193 = arith.constant dense<0.000000e+00> : vector<16x128xf32>
    %229 = tpu.matmul %226, %228, %cst_193 {dimension_numbers = #tpu.dot_dimension_numbers<[1], [0], [0], [1], [0, 0, 1, 1], [], []>} : vector<16x32xbf16>, vector<32x128xbf16>, vector<16x128xf32> -> vector<16x128xf32>
    %c0_194 = arith.constant 0 : index
    %c0_195 = arith.constant 0 : index
    %c0_196 = arith.constant 0 : index
    %c0_197 = arith.constant 0 : index
    %230 = vector.load %arg12[%c0_194, %c0_195, %c0_196, %c0_197] : memref<2x2x1x128xf32, #tpu.memory_space<vmem>>, vector<1x1x1x128xf32>
    %231 = vector.shape_cast %230 : vector<1x1x1x128xf32> to vector<1x128xf32>
    %232 = vector.broadcast %231 : vector<1x128xf32> to vector<16x128xf32>
    %233 = arith.addf %229, %232 : vector<16x128xf32>
    %234 = arith.mulf %233, %233 : vector<16x128xf32>
    %235 = arith.mulf %233, %234 : vector<16x128xf32>
    %cst_198 = arith.constant 4.471500e-02 : f32
    %236 = vector.broadcast %cst_198 : f32 to vector<16x128xf32>
    %237 = arith.mulf %236, %235 : vector<16x128xf32>
    %238 = arith.addf %233, %237 : vector<16x128xf32>
    %cst_199 = arith.constant 0.797884583 : f32
    %239 = vector.broadcast %cst_199 : f32 to vector<16x128xf32>
    %240 = arith.mulf %239, %238 : vector<16x128xf32>
    %241 = math.tanh %240 : vector<16x128xf32>
    %cst_200 = arith.constant 1.000000e+00 : f32
    %242 = vector.broadcast %cst_200 : f32 to vector<16x128xf32>
    %243 = arith.addf %242, %241 : vector<16x128xf32>
    %cst_201 = arith.constant 5.000000e-01 : f32
    %244 = vector.broadcast %cst_201 : f32 to vector<16x128xf32>
    %245 = arith.mulf %244, %243 : vector<16x128xf32>
    %246 = arith.mulf %233, %245 : vector<16x128xf32>
    %247 = arith.truncf %246 : vector<16x128xf32> to vector<16x128xbf16>
    %c0_202 = arith.constant 0 : index
    %c0_203 = arith.constant 0 : index
    %c0_204 = arith.constant 0 : index
    %c0_205 = arith.constant 0 : index
    %248 = vector.load %arg13[%c0_202, %c0_203, %c0_204, %c0_205] : memref<2x2x128x32xbf16, #tpu.memory_space<vmem>>, vector<1x1x128x32xbf16>
    %249 = vector.shape_cast %248 : vector<1x1x128x32xbf16> to vector<128x32xbf16>
    %cst_206 = arith.constant dense<0.000000e+00> : vector<16x32xf32>
    %250 = tpu.matmul %247, %249, %cst_206 {dimension_numbers = #tpu.dot_dimension_numbers<[1], [0], [0], [1], [0, 0, 1, 1], [], []>} : vector<16x128xbf16>, vector<128x32xbf16>, vector<16x32xf32> -> vector<16x32xf32>
    %c0_207 = arith.constant 0 : index
    %c0_208 = arith.constant 0 : index
    %c0_209 = arith.constant 0 : index
    %c0_210 = arith.constant 0 : index
    %251 = vector.load %arg14[%c0_207, %c0_208, %c0_209, %c0_210] : memref<2x2x1x32xf32, #tpu.memory_space<vmem>>, vector<1x1x1x32xf32>
    %252 = vector.shape_cast %251 : vector<1x1x1x32xf32> to vector<1x32xf32>
    %253 = vector.broadcast %252 : vector<1x32xf32> to vector<16x32xf32>
    %254 = arith.addf %250, %253 : vector<16x32xf32>
    %c2_211 = arith.constant 2 : index
    %255 = memref.load %arg0[%c2_211] : memref<16xf32, #tpu.memory_space<smem>>
    %c3_212 = arith.constant 3 : index
    %256 = memref.load %arg0[%c3_212] : memref<16xf32, #tpu.memory_space<smem>>
    %257 = vector.broadcast %255 : f32 to vector<16x32xf32>
    %258 = arith.mulf %257, %225 : vector<16x32xf32>
    %259 = vector.broadcast %256 : f32 to vector<16x32xf32>
    %260 = arith.mulf %259, %254 : vector<16x32xf32>
    %261 = arith.addf %258, %260 : vector<16x32xf32>
    %cst_213 = arith.constant dense<0.000000e+00> : vector<16xf32>
    %262 = vector.multi_reduction <add>, %261, %cst_213 [1] : vector<16x32xf32> to vector<16xf32>
    %263 = vector.shape_cast %262 : vector<16xf32> to vector<16x1xf32>
    %cst_214 = arith.constant 3.200000e+01 : f32
    %264 = vector.broadcast %cst_214 : f32 to vector<16x1xf32>
    %265 = arith.divf %263, %264 : vector<16x1xf32>
    %266 = arith.mulf %261, %261 : vector<16x32xf32>
    %cst_215 = arith.constant dense<0.000000e+00> : vector<16xf32>
    %267 = vector.multi_reduction <add>, %266, %cst_215 [1] : vector<16x32xf32> to vector<16xf32>
    %268 = vector.shape_cast %267 : vector<16xf32> to vector<16x1xf32>
    %cst_216 = arith.constant 3.200000e+01 : f32
    %269 = vector.broadcast %cst_216 : f32 to vector<16x1xf32>
    %270 = arith.divf %268, %269 : vector<16x1xf32>
    %271 = arith.mulf %265, %265 : vector<16x1xf32>
    %272 = arith.subf %270, %271 : vector<16x1xf32>
    %273 = vector.broadcast %265 : vector<16x1xf32> to vector<16x32xf32>
    %274 = arith.subf %261, %273 : vector<16x32xf32>
    %cst_217 = arith.constant 9.99999996E-13 : f32
    %275 = vector.broadcast %cst_217 : f32 to vector<16x1xf32>
    %276 = arith.addf %272, %275 : vector<16x1xf32>
    %277 = math.rsqrt %276 : vector<16x1xf32>
    %278 = vector.broadcast %277 : vector<16x1xf32> to vector<16x32xf32>
    %279 = arith.mulf %274, %278 : vector<16x32xf32>
    %280 = vector.broadcast %3 : vector<1x32xf32> to vector<16x32xf32>
    %281 = arith.mulf %279, %280 : vector<16x32xf32>
    %282 = vector.broadcast %5 : vector<1x32xf32> to vector<16x32xf32>
    %283 = arith.addf %281, %282 : vector<16x32xf32>
    %284 = arith.truncf %283 : vector<16x32xf32> to vector<16x32xbf16>
    %cst_218 = arith.constant 0.000000e+00 : f32
    %285 = vector.broadcast %cst_218 : f32 to vector<16x32xf32>
    %c0_219 = arith.constant 0 : index
    %c1_220 = arith.constant 1 : index
    %c0_221 = arith.constant 0 : index
    %c0_222 = arith.constant 0 : index
    %c0_223 = arith.constant 0 : index
    %286 = vector.load %arg3[%c0_219, %c1_220, %c0_221, %c0_222, %c0_223] : memref<2x2x4x32x8xbf16, #tpu.memory_space<vmem>>, vector<1x1x1x32x8xbf16>
    %287 = vector.shape_cast %286 : vector<1x1x1x32x8xbf16> to vector<32x8xbf16>
    %cst_224 = arith.constant dense<0.000000e+00> : vector<16x8xf32>
    %288 = tpu.matmul %284, %287, %cst_224 {dimension_numbers = #tpu.dot_dimension_numbers<[1], [0], [0], [1], [0, 0, 1, 1], [], []>} : vector<16x32xbf16>, vector<32x8xbf16>, vector<16x8xf32> -> vector<16x8xf32>
    %c0_225 = arith.constant 0 : index
    %c1_226 = arith.constant 1 : index
    %c0_227 = arith.constant 0 : index
    %c0_228 = arith.constant 0 : index
    %c0_229 = arith.constant 0 : index
    %289 = vector.load %arg4[%c0_225, %c1_226, %c0_227, %c0_228, %c0_229] : memref<2x2x4x1x8xf32, #tpu.memory_space<vmem>>, vector<1x1x1x1x8xf32>
    %290 = vector.shape_cast %289 : vector<1x1x1x1x8xf32> to vector<1x8xf32>
    %291 = vector.broadcast %290 : vector<1x8xf32> to vector<16x8xf32>
    %292 = arith.addf %288, %291 : vector<16x8xf32>
    %293 = vector.shape_cast %292 : vector<16x8xf32> to vector<2x8x8xf32>
    %c0_230 = arith.constant 0 : index
    %c1_231 = arith.constant 1 : index
    %c0_232 = arith.constant 0 : index
    %c0_233 = arith.constant 0 : index
    %c0_234 = arith.constant 0 : index
    %294 = vector.load %arg5[%c0_230, %c1_231, %c0_232, %c0_233, %c0_234] : memref<2x2x4x32x8xbf16, #tpu.memory_space<vmem>>, vector<1x1x1x32x8xbf16>
    %295 = vector.shape_cast %294 : vector<1x1x1x32x8xbf16> to vector<32x8xbf16>
    %cst_235 = arith.constant dense<0.000000e+00> : vector<16x8xf32>
    %296 = tpu.matmul %284, %295, %cst_235 {dimension_numbers = #tpu.dot_dimension_numbers<[1], [0], [0], [1], [0, 0, 1, 1], [], []>} : vector<16x32xbf16>, vector<32x8xbf16>, vector<16x8xf32> -> vector<16x8xf32>
    %c0_236 = arith.constant 0 : index
    %c1_237 = arith.constant 1 : index
    %c0_238 = arith.constant 0 : index
    %c0_239 = arith.constant 0 : index
    %c0_240 = arith.constant 0 : index
    %297 = vector.load %arg6[%c0_236, %c1_237, %c0_238, %c0_239, %c0_240] : memref<2x2x4x1x8xf32, #tpu.memory_space<vmem>>, vector<1x1x1x1x8xf32>
    %298 = vector.shape_cast %297 : vector<1x1x1x1x8xf32> to vector<1x8xf32>
    %299 = vector.broadcast %298 : vector<1x8xf32> to vector<16x8xf32>
    %300 = arith.addf %296, %299 : vector<16x8xf32>
    %301 = vector.shape_cast %300 : vector<16x8xf32> to vector<2x8x8xf32>
    %c0_241 = arith.constant 0 : index
    %c1_242 = arith.constant 1 : index
    %c0_243 = arith.constant 0 : index
    %c0_244 = arith.constant 0 : index
    %c0_245 = arith.constant 0 : index
    %302 = vector.load %arg7[%c0_241, %c1_242, %c0_243, %c0_244, %c0_245] : memref<2x2x4x32x8xbf16, #tpu.memory_space<vmem>>, vector<1x1x1x32x8xbf16>
    %303 = vector.shape_cast %302 : vector<1x1x1x32x8xbf16> to vector<32x8xbf16>
    %cst_246 = arith.constant dense<0.000000e+00> : vector<16x8xf32>
    %304 = tpu.matmul %284, %303, %cst_246 {dimension_numbers = #tpu.dot_dimension_numbers<[1], [0], [0], [1], [0, 0, 1, 1], [], []>} : vector<16x32xbf16>, vector<32x8xbf16>, vector<16x8xf32> -> vector<16x8xf32>
    %c0_247 = arith.constant 0 : index
    %c1_248 = arith.constant 1 : index
    %c0_249 = arith.constant 0 : index
    %c0_250 = arith.constant 0 : index
    %c0_251 = arith.constant 0 : index
    %305 = vector.load %arg8[%c0_247, %c1_248, %c0_249, %c0_250, %c0_251] : memref<2x2x4x1x8xf32, #tpu.memory_space<vmem>>, vector<1x1x1x1x8xf32>
    %306 = vector.shape_cast %305 : vector<1x1x1x1x8xf32> to vector<1x8xf32>
    %307 = vector.broadcast %306 : vector<1x8xf32> to vector<16x8xf32>
    %308 = arith.addf %304, %307 : vector<16x8xf32>
    %309 = vector.shape_cast %308 : vector<16x8xf32> to vector<2x8x8xf32>
    %310 = arith.truncf %293 : vector<2x8x8xf32> to vector<2x8x8xbf16>
    %311 = arith.truncf %301 : vector<2x8x8xf32> to vector<2x8x8xbf16>
    "tpu.trace_start"() <{level = 10 : i32, message = "bqd,bkd->bqk"}> : () -> ()
    %cst_252 = arith.constant dense<0.000000e+00> : vector<2x8x8xf32>
    %312 = tpu.matmul %310, %311, %cst_252 {dimension_numbers = #tpu.dot_dimension_numbers<[2], [2], [1], [1], [0, 0, 0, 1, 1, 1], [0], [0]>} : vector<2x8x8xbf16>, vector<2x8x8xbf16>, vector<2x8x8xf32> -> vector<2x8x8xf32>
    "tpu.trace_stop"() : () -> ()
    %cst_253 = arith.constant dense<0xFF800000> : vector<2x8xf32>
    %313 = vector.multi_reduction <maximumf>, %312, %cst_253 [2] : vector<2x8x8xf32> to vector<2x8xf32>
    %314 = vector.shape_cast %313 : vector<2x8xf32> to vector<2x8x1xf32>
    %315 = vector.broadcast %314 : vector<2x8x1xf32> to vector<2x8x8xf32>
    %316 = arith.subf %312, %315 : vector<2x8x8xf32>
    %317 = math.exp %316 : vector<2x8x8xf32>
    %cst_254 = arith.constant dense<0.000000e+00> : vector<2x8xf32>
    %318 = vector.multi_reduction <add>, %317, %cst_254 [2] : vector<2x8x8xf32> to vector<2x8xf32>
    %319 = vector.shape_cast %318 : vector<2x8xf32> to vector<2x8x1xf32>
    %320 = arith.truncf %317 : vector<2x8x8xf32> to vector<2x8x8xbf16>
    %321 = arith.truncf %309 : vector<2x8x8xf32> to vector<2x8x8xbf16>
    "tpu.trace_start"() <{level = 10 : i32, message = "bqk,bkd->bqd"}> : () -> ()
    %cst_255 = arith.constant dense<0.000000e+00> : vector<2x8x8xf32>
    %322 = tpu.matmul %320, %321, %cst_255 {dimension_numbers = #tpu.dot_dimension_numbers<[2], [1], [1], [2], [0, 0, 0, 1, 1, 2], [0], [0]>} : vector<2x8x8xbf16>, vector<2x8x8xbf16>, vector<2x8x8xf32> -> vector<2x8x8xf32>
    "tpu.trace_stop"() : () -> ()
    %323 = tpu.reciprocal %319 {approx = true} : vector<2x8x1xf32> -> vector<2x8x1xf32>
    %324 = vector.broadcast %323 : vector<2x8x1xf32> to vector<2x8x8xf32>
    %325 = arith.mulf %322, %324 : vector<2x8x8xf32>
    %326 = vector.shape_cast %325 : vector<2x8x8xf32> to vector<16x8xf32>
    %327 = arith.truncf %326 : vector<16x8xf32> to vector<16x8xbf16>
    %c0_256 = arith.constant 0 : index
    %c1_257 = arith.constant 1 : index
    %c0_258 = arith.constant 0 : index
    %c0_259 = arith.constant 0 : index
    %c0_260 = arith.constant 0 : index
    %328 = vector.load %arg9[%c0_256, %c1_257, %c0_258, %c0_259, %c0_260] : memref<2x2x4x8x32xbf16, #tpu.memory_space<vmem>>, vector<1x1x1x8x32xbf16>
    %329 = vector.shape_cast %328 : vector<1x1x1x8x32xbf16> to vector<8x32xbf16>
    %cst_261 = arith.constant dense<0.000000e+00> : vector<16x32xf32>
    %330 = tpu.matmul %327, %329, %cst_261 {dimension_numbers = #tpu.dot_dimension_numbers<[1], [0], [0], [1], [0, 0, 1, 1], [], []>} : vector<16x8xbf16>, vector<8x32xbf16>, vector<16x32xf32> -> vector<16x32xf32>
    %331 = arith.addf %285, %330 : vector<16x32xf32>
    %c0_262 = arith.constant 0 : index
    %c1_263 = arith.constant 1 : index
    %c1_264 = arith.constant 1 : index
    %c0_265 = arith.constant 0 : index
    %c0_266 = arith.constant 0 : index
    %332 = vector.load %arg3[%c0_262, %c1_263, %c1_264, %c0_265, %c0_266] : memref<2x2x4x32x8xbf16, #tpu.memory_space<vmem>>, vector<1x1x1x32x8xbf16>
    %333 = vector.shape_cast %332 : vector<1x1x1x32x8xbf16> to vector<32x8xbf16>
    %cst_267 = arith.constant dense<0.000000e+00> : vector<16x8xf32>
    %334 = tpu.matmul %284, %333, %cst_267 {dimension_numbers = #tpu.dot_dimension_numbers<[1], [0], [0], [1], [0, 0, 1, 1], [], []>} : vector<16x32xbf16>, vector<32x8xbf16>, vector<16x8xf32> -> vector<16x8xf32>
    %c0_268 = arith.constant 0 : index
    %c1_269 = arith.constant 1 : index
    %c1_270 = arith.constant 1 : index
    %c0_271 = arith.constant 0 : index
    %c0_272 = arith.constant 0 : index
    %335 = vector.load %arg4[%c0_268, %c1_269, %c1_270, %c0_271, %c0_272] : memref<2x2x4x1x8xf32, #tpu.memory_space<vmem>>, vector<1x1x1x1x8xf32>
    %336 = vector.shape_cast %335 : vector<1x1x1x1x8xf32> to vector<1x8xf32>
    %337 = vector.broadcast %336 : vector<1x8xf32> to vector<16x8xf32>
    %338 = arith.addf %334, %337 : vector<16x8xf32>
    %339 = vector.shape_cast %338 : vector<16x8xf32> to vector<2x8x8xf32>
    %c0_273 = arith.constant 0 : index
    %c1_274 = arith.constant 1 : index
    %c1_275 = arith.constant 1 : index
    %c0_276 = arith.constant 0 : index
    %c0_277 = arith.constant 0 : index
    %340 = vector.load %arg5[%c0_273, %c1_274, %c1_275, %c0_276, %c0_277] : memref<2x2x4x32x8xbf16, #tpu.memory_space<vmem>>, vector<1x1x1x32x8xbf16>
    %341 = vector.shape_cast %340 : vector<1x1x1x32x8xbf16> to vector<32x8xbf16>
    %cst_278 = arith.constant dense<0.000000e+00> : vector<16x8xf32>
    %342 = tpu.matmul %284, %341, %cst_278 {dimension_numbers = #tpu.dot_dimension_numbers<[1], [0], [0], [1], [0, 0, 1, 1], [], []>} : vector<16x32xbf16>, vector<32x8xbf16>, vector<16x8xf32> -> vector<16x8xf32>
    %c0_279 = arith.constant 0 : index
    %c1_280 = arith.constant 1 : index
    %c1_281 = arith.constant 1 : index
    %c0_282 = arith.constant 0 : index
    %c0_283 = arith.constant 0 : index
    %343 = vector.load %arg6[%c0_279, %c1_280, %c1_281, %c0_282, %c0_283] : memref<2x2x4x1x8xf32, #tpu.memory_space<vmem>>, vector<1x1x1x1x8xf32>
    %344 = vector.shape_cast %343 : vector<1x1x1x1x8xf32> to vector<1x8xf32>
    %345 = vector.broadcast %344 : vector<1x8xf32> to vector<16x8xf32>
    %346 = arith.addf %342, %345 : vector<16x8xf32>
    %347 = vector.shape_cast %346 : vector<16x8xf32> to vector<2x8x8xf32>
    %c0_284 = arith.constant 0 : index
    %c1_285 = arith.constant 1 : index
    %c1_286 = arith.constant 1 : index
    %c0_287 = arith.constant 0 : index
    %c0_288 = arith.constant 0 : index
    %348 = vector.load %arg7[%c0_284, %c1_285, %c1_286, %c0_287, %c0_288] : memref<2x2x4x32x8xbf16, #tpu.memory_space<vmem>>, vector<1x1x1x32x8xbf16>
    %349 = vector.shape_cast %348 : vector<1x1x1x32x8xbf16> to vector<32x8xbf16>
    %cst_289 = arith.constant dense<0.000000e+00> : vector<16x8xf32>
    %350 = tpu.matmul %284, %349, %cst_289 {dimension_numbers = #tpu.dot_dimension_numbers<[1], [0], [0], [1], [0, 0, 1, 1], [], []>} : vector<16x32xbf16>, vector<32x8xbf16>, vector<16x8xf32> -> vector<16x8xf32>
    %c0_290 = arith.constant 0 : index
    %c1_291 = arith.constant 1 : index
    %c1_292 = arith.constant 1 : index
    %c0_293 = arith.constant 0 : index
    %c0_294 = arith.constant 0 : index
    %351 = vector.load %arg8[%c0_290, %c1_291, %c1_292, %c0_293, %c0_294] : memref<2x2x4x1x8xf32, #tpu.memory_space<vmem>>, vector<1x1x1x1x8xf32>
    %352 = vector.shape_cast %351 : vector<1x1x1x1x8xf32> to vector<1x8xf32>
    %353 = vector.broadcast %352 : vector<1x8xf32> to vector<16x8xf32>
    %354 = arith.addf %350, %353 : vector<16x8xf32>
    %355 = vector.shape_cast %354 : vector<16x8xf32> to vector<2x8x8xf32>
    %356 = arith.truncf %339 : vector<2x8x8xf32> to vector<2x8x8xbf16>
    %357 = arith.truncf %347 : vector<2x8x8xf32> to vector<2x8x8xbf16>
    "tpu.trace_start"() <{level = 10 : i32, message = "bqd,bkd->bqk"}> : () -> ()
    %cst_295 = arith.constant dense<0.000000e+00> : vector<2x8x8xf32>
    %358 = tpu.matmul %356, %357, %cst_295 {dimension_numbers = #tpu.dot_dimension_numbers<[2], [2], [1], [1], [0, 0, 0, 1, 1, 1], [0], [0]>} : vector<2x8x8xbf16>, vector<2x8x8xbf16>, vector<2x8x8xf32> -> vector<2x8x8xf32>
    "tpu.trace_stop"() : () -> ()
    %cst_296 = arith.constant dense<0xFF800000> : vector<2x8xf32>
    %359 = vector.multi_reduction <maximumf>, %358, %cst_296 [2] : vector<2x8x8xf32> to vector<2x8xf32>
    %360 = vector.shape_cast %359 : vector<2x8xf32> to vector<2x8x1xf32>
    %361 = vector.broadcast %360 : vector<2x8x1xf32> to vector<2x8x8xf32>
    %362 = arith.subf %358, %361 : vector<2x8x8xf32>
    %363 = math.exp %362 : vector<2x8x8xf32>
    %cst_297 = arith.constant dense<0.000000e+00> : vector<2x8xf32>
    %364 = vector.multi_reduction <add>, %363, %cst_297 [2] : vector<2x8x8xf32> to vector<2x8xf32>
    %365 = vector.shape_cast %364 : vector<2x8xf32> to vector<2x8x1xf32>
    %366 = arith.truncf %363 : vector<2x8x8xf32> to vector<2x8x8xbf16>
    %367 = arith.truncf %355 : vector<2x8x8xf32> to vector<2x8x8xbf16>
    "tpu.trace_start"() <{level = 10 : i32, message = "bqk,bkd->bqd"}> : () -> ()
    %cst_298 = arith.constant dense<0.000000e+00> : vector<2x8x8xf32>
    %368 = tpu.matmul %366, %367, %cst_298 {dimension_numbers = #tpu.dot_dimension_numbers<[2], [1], [1], [2], [0, 0, 0, 1, 1, 2], [0], [0]>} : vector<2x8x8xbf16>, vector<2x8x8xbf16>, vector<2x8x8xf32> -> vector<2x8x8xf32>
    "tpu.trace_stop"() : () -> ()
    %369 = tpu.reciprocal %365 {approx = true} : vector<2x8x1xf32> -> vector<2x8x1xf32>
    %370 = vector.broadcast %369 : vector<2x8x1xf32> to vector<2x8x8xf32>
    %371 = arith.mulf %368, %370 : vector<2x8x8xf32>
    %372 = vector.shape_cast %371 : vector<2x8x8xf32> to vector<16x8xf32>
    %373 = arith.truncf %372 : vector<16x8xf32> to vector<16x8xbf16>
    %c0_299 = arith.constant 0 : index
    %c1_300 = arith.constant 1 : index
    %c1_301 = arith.constant 1 : index
    %c0_302 = arith.constant 0 : index
    %c0_303 = arith.constant 0 : index
    %374 = vector.load %arg9[%c0_299, %c1_300, %c1_301, %c0_302, %c0_303] : memref<2x2x4x8x32xbf16, #tpu.memory_space<vmem>>, vector<1x1x1x8x32xbf16>
    %375 = vector.shape_cast %374 : vector<1x1x1x8x32xbf16> to vector<8x32xbf16>
    %cst_304 = arith.constant dense<0.000000e+00> : vector<16x32xf32>
    %376 = tpu.matmul %373, %375, %cst_304 {dimension_numbers = #tpu.dot_dimension_numbers<[1], [0], [0], [1], [0, 0, 1, 1], [], []>} : vector<16x8xbf16>, vector<8x32xbf16>, vector<16x32xf32> -> vector<16x32xf32>
    %377 = arith.addf %331, %376 : vector<16x32xf32>
    %c0_305 = arith.constant 0 : index
    %c1_306 = arith.constant 1 : index
    %c2_307 = arith.constant 2 : index
    %c0_308 = arith.constant 0 : index
    %c0_309 = arith.constant 0 : index
    %378 = vector.load %arg3[%c0_305, %c1_306, %c2_307, %c0_308, %c0_309] : memref<2x2x4x32x8xbf16, #tpu.memory_space<vmem>>, vector<1x1x1x32x8xbf16>
    %379 = vector.shape_cast %378 : vector<1x1x1x32x8xbf16> to vector<32x8xbf16>
    %cst_310 = arith.constant dense<0.000000e+00> : vector<16x8xf32>
    %380 = tpu.matmul %284, %379, %cst_310 {dimension_numbers = #tpu.dot_dimension_numbers<[1], [0], [0], [1], [0, 0, 1, 1], [], []>} : vector<16x32xbf16>, vector<32x8xbf16>, vector<16x8xf32> -> vector<16x8xf32>
    %c0_311 = arith.constant 0 : index
    %c1_312 = arith.constant 1 : index
    %c2_313 = arith.constant 2 : index
    %c0_314 = arith.constant 0 : index
    %c0_315 = arith.constant 0 : index
    %381 = vector.load %arg4[%c0_311, %c1_312, %c2_313, %c0_314, %c0_315] : memref<2x2x4x1x8xf32, #tpu.memory_space<vmem>>, vector<1x1x1x1x8xf32>
    %382 = vector.shape_cast %381 : vector<1x1x1x1x8xf32> to vector<1x8xf32>
    %383 = vector.broadcast %382 : vector<1x8xf32> to vector<16x8xf32>
    %384 = arith.addf %380, %383 : vector<16x8xf32>
    %385 = vector.shape_cast %384 : vector<16x8xf32> to vector<2x8x8xf32>
    %c0_316 = arith.constant 0 : index
    %c1_317 = arith.constant 1 : index
    %c2_318 = arith.constant 2 : index
    %c0_319 = arith.constant 0 : index
    %c0_320 = arith.constant 0 : index
    %386 = vector.load %arg5[%c0_316, %c1_317, %c2_318, %c0_319, %c0_320] : memref<2x2x4x32x8xbf16, #tpu.memory_space<vmem>>, vector<1x1x1x32x8xbf16>
    %387 = vector.shape_cast %386 : vector<1x1x1x32x8xbf16> to vector<32x8xbf16>
    %cst_321 = arith.constant dense<0.000000e+00> : vector<16x8xf32>
    %388 = tpu.matmul %284, %387, %cst_321 {dimension_numbers = #tpu.dot_dimension_numbers<[1], [0], [0], [1], [0, 0, 1, 1], [], []>} : vector<16x32xbf16>, vector<32x8xbf16>, vector<16x8xf32> -> vector<16x8xf32>
    %c0_322 = arith.constant 0 : index
    %c1_323 = arith.constant 1 : index
    %c2_324 = arith.constant 2 : index
    %c0_325 = arith.constant 0 : index
    %c0_326 = arith.constant 0 : index
    %389 = vector.load %arg6[%c0_322, %c1_323, %c2_324, %c0_325, %c0_326] : memref<2x2x4x1x8xf32, #tpu.memory_space<vmem>>, vector<1x1x1x1x8xf32>
    %390 = vector.shape_cast %389 : vector<1x1x1x1x8xf32> to vector<1x8xf32>
    %391 = vector.broadcast %390 : vector<1x8xf32> to vector<16x8xf32>
    %392 = arith.addf %388, %391 : vector<16x8xf32>
    %393 = vector.shape_cast %392 : vector<16x8xf32> to vector<2x8x8xf32>
    %c0_327 = arith.constant 0 : index
    %c1_328 = arith.constant 1 : index
    %c2_329 = arith.constant 2 : index
    %c0_330 = arith.constant 0 : index
    %c0_331 = arith.constant 0 : index
    %394 = vector.load %arg7[%c0_327, %c1_328, %c2_329, %c0_330, %c0_331] : memref<2x2x4x32x8xbf16, #tpu.memory_space<vmem>>, vector<1x1x1x32x8xbf16>
    %395 = vector.shape_cast %394 : vector<1x1x1x32x8xbf16> to vector<32x8xbf16>
    %cst_332 = arith.constant dense<0.000000e+00> : vector<16x8xf32>
    %396 = tpu.matmul %284, %395, %cst_332 {dimension_numbers = #tpu.dot_dimension_numbers<[1], [0], [0], [1], [0, 0, 1, 1], [], []>} : vector<16x32xbf16>, vector<32x8xbf16>, vector<16x8xf32> -> vector<16x8xf32>
    %c0_333 = arith.constant 0 : index
    %c1_334 = arith.constant 1 : index
    %c2_335 = arith.constant 2 : index
    %c0_336 = arith.constant 0 : index
    %c0_337 = arith.constant 0 : index
    %397 = vector.load %arg8[%c0_333, %c1_334, %c2_335, %c0_336, %c0_337] : memref<2x2x4x1x8xf32, #tpu.memory_space<vmem>>, vector<1x1x1x1x8xf32>
    %398 = vector.shape_cast %397 : vector<1x1x1x1x8xf32> to vector<1x8xf32>
    %399 = vector.broadcast %398 : vector<1x8xf32> to vector<16x8xf32>
    %400 = arith.addf %396, %399 : vector<16x8xf32>
    %401 = vector.shape_cast %400 : vector<16x8xf32> to vector<2x8x8xf32>
    %402 = arith.truncf %385 : vector<2x8x8xf32> to vector<2x8x8xbf16>
    %403 = arith.truncf %393 : vector<2x8x8xf32> to vector<2x8x8xbf16>
    "tpu.trace_start"() <{level = 10 : i32, message = "bqd,bkd->bqk"}> : () -> ()
    %cst_338 = arith.constant dense<0.000000e+00> : vector<2x8x8xf32>
    %404 = tpu.matmul %402, %403, %cst_338 {dimension_numbers = #tpu.dot_dimension_numbers<[2], [2], [1], [1], [0, 0, 0, 1, 1, 1], [0], [0]>} : vector<2x8x8xbf16>, vector<2x8x8xbf16>, vector<2x8x8xf32> -> vector<2x8x8xf32>
    "tpu.trace_stop"() : () -> ()
    %cst_339 = arith.constant dense<0xFF800000> : vector<2x8xf32>
    %405 = vector.multi_reduction <maximumf>, %404, %cst_339 [2] : vector<2x8x8xf32> to vector<2x8xf32>
    %406 = vector.shape_cast %405 : vector<2x8xf32> to vector<2x8x1xf32>
    %407 = vector.broadcast %406 : vector<2x8x1xf32> to vector<2x8x8xf32>
    %408 = arith.subf %404, %407 : vector<2x8x8xf32>
    %409 = math.exp %408 : vector<2x8x8xf32>
    %cst_340 = arith.constant dense<0.000000e+00> : vector<2x8xf32>
    %410 = vector.multi_reduction <add>, %409, %cst_340 [2] : vector<2x8x8xf32> to vector<2x8xf32>
    %411 = vector.shape_cast %410 : vector<2x8xf32> to vector<2x8x1xf32>
    %412 = arith.truncf %409 : vector<2x8x8xf32> to vector<2x8x8xbf16>
    %413 = arith.truncf %401 : vector<2x8x8xf32> to vector<2x8x8xbf16>
    "tpu.trace_start"() <{level = 10 : i32, message = "bqk,bkd->bqd"}> : () -> ()
    %cst_341 = arith.constant dense<0.000000e+00> : vector<2x8x8xf32>
    %414 = tpu.matmul %412, %413, %cst_341 {dimension_numbers = #tpu.dot_dimension_numbers<[2], [1], [1], [2], [0, 0, 0, 1, 1, 2], [0], [0]>} : vector<2x8x8xbf16>, vector<2x8x8xbf16>, vector<2x8x8xf32> -> vector<2x8x8xf32>
    "tpu.trace_stop"() : () -> ()
    %415 = tpu.reciprocal %411 {approx = true} : vector<2x8x1xf32> -> vector<2x8x1xf32>
    %416 = vector.broadcast %415 : vector<2x8x1xf32> to vector<2x8x8xf32>
    %417 = arith.mulf %414, %416 : vector<2x8x8xf32>
    %418 = vector.shape_cast %417 : vector<2x8x8xf32> to vector<16x8xf32>
    %419 = arith.truncf %418 : vector<16x8xf32> to vector<16x8xbf16>
    %c0_342 = arith.constant 0 : index
    %c1_343 = arith.constant 1 : index
    %c2_344 = arith.constant 2 : index
    %c0_345 = arith.constant 0 : index
    %c0_346 = arith.constant 0 : index
    %420 = vector.load %arg9[%c0_342, %c1_343, %c2_344, %c0_345, %c0_346] : memref<2x2x4x8x32xbf16, #tpu.memory_space<vmem>>, vector<1x1x1x8x32xbf16>
    %421 = vector.shape_cast %420 : vector<1x1x1x8x32xbf16> to vector<8x32xbf16>
    %cst_347 = arith.constant dense<0.000000e+00> : vector<16x32xf32>
    %422 = tpu.matmul %419, %421, %cst_347 {dimension_numbers = #tpu.dot_dimension_numbers<[1], [0], [0], [1], [0, 0, 1, 1], [], []>} : vector<16x8xbf16>, vector<8x32xbf16>, vector<16x32xf32> -> vector<16x32xf32>
    %423 = arith.addf %377, %422 : vector<16x32xf32>
    %c0_348 = arith.constant 0 : index
    %c1_349 = arith.constant 1 : index
    %c3_350 = arith.constant 3 : index
    %c0_351 = arith.constant 0 : index
    %c0_352 = arith.constant 0 : index
    %424 = vector.load %arg3[%c0_348, %c1_349, %c3_350, %c0_351, %c0_352] : memref<2x2x4x32x8xbf16, #tpu.memory_space<vmem>>, vector<1x1x1x32x8xbf16>
    %425 = vector.shape_cast %424 : vector<1x1x1x32x8xbf16> to vector<32x8xbf16>
    %cst_353 = arith.constant dense<0.000000e+00> : vector<16x8xf32>
    %426 = tpu.matmul %284, %425, %cst_353 {dimension_numbers = #tpu.dot_dimension_numbers<[1], [0], [0], [1], [0, 0, 1, 1], [], []>} : vector<16x32xbf16>, vector<32x8xbf16>, vector<16x8xf32> -> vector<16x8xf32>
    %c0_354 = arith.constant 0 : index
    %c1_355 = arith.constant 1 : index
    %c3_356 = arith.constant 3 : index
    %c0_357 = arith.constant 0 : index
    %c0_358 = arith.constant 0 : index
    %427 = vector.load %arg4[%c0_354, %c1_355, %c3_356, %c0_357, %c0_358] : memref<2x2x4x1x8xf32, #tpu.memory_space<vmem>>, vector<1x1x1x1x8xf32>
    %428 = vector.shape_cast %427 : vector<1x1x1x1x8xf32> to vector<1x8xf32>
    %429 = vector.broadcast %428 : vector<1x8xf32> to vector<16x8xf32>
    %430 = arith.addf %426, %429 : vector<16x8xf32>
    %431 = vector.shape_cast %430 : vector<16x8xf32> to vector<2x8x8xf32>
    %c0_359 = arith.constant 0 : index
    %c1_360 = arith.constant 1 : index
    %c3_361 = arith.constant 3 : index
    %c0_362 = arith.constant 0 : index
    %c0_363 = arith.constant 0 : index
    %432 = vector.load %arg5[%c0_359, %c1_360, %c3_361, %c0_362, %c0_363] : memref<2x2x4x32x8xbf16, #tpu.memory_space<vmem>>, vector<1x1x1x32x8xbf16>
    %433 = vector.shape_cast %432 : vector<1x1x1x32x8xbf16> to vector<32x8xbf16>
    %cst_364 = arith.constant dense<0.000000e+00> : vector<16x8xf32>
    %434 = tpu.matmul %284, %433, %cst_364 {dimension_numbers = #tpu.dot_dimension_numbers<[1], [0], [0], [1], [0, 0, 1, 1], [], []>} : vector<16x32xbf16>, vector<32x8xbf16>, vector<16x8xf32> -> vector<16x8xf32>
    %c0_365 = arith.constant 0 : index
    %c1_366 = arith.constant 1 : index
    %c3_367 = arith.constant 3 : index
    %c0_368 = arith.constant 0 : index
    %c0_369 = arith.constant 0 : index
    %435 = vector.load %arg6[%c0_365, %c1_366, %c3_367, %c0_368, %c0_369] : memref<2x2x4x1x8xf32, #tpu.memory_space<vmem>>, vector<1x1x1x1x8xf32>
    %436 = vector.shape_cast %435 : vector<1x1x1x1x8xf32> to vector<1x8xf32>
    %437 = vector.broadcast %436 : vector<1x8xf32> to vector<16x8xf32>
    %438 = arith.addf %434, %437 : vector<16x8xf32>
    %439 = vector.shape_cast %438 : vector<16x8xf32> to vector<2x8x8xf32>
    %c0_370 = arith.constant 0 : index
    %c1_371 = arith.constant 1 : index
    %c3_372 = arith.constant 3 : index
    %c0_373 = arith.constant 0 : index
    %c0_374 = arith.constant 0 : index
    %440 = vector.load %arg7[%c0_370, %c1_371, %c3_372, %c0_373, %c0_374] : memref<2x2x4x32x8xbf16, #tpu.memory_space<vmem>>, vector<1x1x1x32x8xbf16>
    %441 = vector.shape_cast %440 : vector<1x1x1x32x8xbf16> to vector<32x8xbf16>
    %cst_375 = arith.constant dense<0.000000e+00> : vector<16x8xf32>
    %442 = tpu.matmul %284, %441, %cst_375 {dimension_numbers = #tpu.dot_dimension_numbers<[1], [0], [0], [1], [0, 0, 1, 1], [], []>} : vector<16x32xbf16>, vector<32x8xbf16>, vector<16x8xf32> -> vector<16x8xf32>
    %c0_376 = arith.constant 0 : index
    %c1_377 = arith.constant 1 : index
    %c3_378 = arith.constant 3 : index
    %c0_379 = arith.constant 0 : index
    %c0_380 = arith.constant 0 : index
    %443 = vector.load %arg8[%c0_376, %c1_377, %c3_378, %c0_379, %c0_380] : memref<2x2x4x1x8xf32, #tpu.memory_space<vmem>>, vector<1x1x1x1x8xf32>
    %444 = vector.shape_cast %443 : vector<1x1x1x1x8xf32> to vector<1x8xf32>
    %445 = vector.broadcast %444 : vector<1x8xf32> to vector<16x8xf32>
    %446 = arith.addf %442, %445 : vector<16x8xf32>
    %447 = vector.shape_cast %446 : vector<16x8xf32> to vector<2x8x8xf32>
    %448 = arith.truncf %431 : vector<2x8x8xf32> to vector<2x8x8xbf16>
    %449 = arith.truncf %439 : vector<2x8x8xf32> to vector<2x8x8xbf16>
    "tpu.trace_start"() <{level = 10 : i32, message = "bqd,bkd->bqk"}> : () -> ()
    %cst_381 = arith.constant dense<0.000000e+00> : vector<2x8x8xf32>
    %450 = tpu.matmul %448, %449, %cst_381 {dimension_numbers = #tpu.dot_dimension_numbers<[2], [2], [1], [1], [0, 0, 0, 1, 1, 1], [0], [0]>} : vector<2x8x8xbf16>, vector<2x8x8xbf16>, vector<2x8x8xf32> -> vector<2x8x8xf32>
    "tpu.trace_stop"() : () -> ()
    %cst_382 = arith.constant dense<0xFF800000> : vector<2x8xf32>
    %451 = vector.multi_reduction <maximumf>, %450, %cst_382 [2] : vector<2x8x8xf32> to vector<2x8xf32>
    %452 = vector.shape_cast %451 : vector<2x8xf32> to vector<2x8x1xf32>
    %453 = vector.broadcast %452 : vector<2x8x1xf32> to vector<2x8x8xf32>
    %454 = arith.subf %450, %453 : vector<2x8x8xf32>
    %455 = math.exp %454 : vector<2x8x8xf32>
    %cst_383 = arith.constant dense<0.000000e+00> : vector<2x8xf32>
    %456 = vector.multi_reduction <add>, %455, %cst_383 [2] : vector<2x8x8xf32> to vector<2x8xf32>
    %457 = vector.shape_cast %456 : vector<2x8xf32> to vector<2x8x1xf32>
    %458 = arith.truncf %455 : vector<2x8x8xf32> to vector<2x8x8xbf16>
    %459 = arith.truncf %447 : vector<2x8x8xf32> to vector<2x8x8xbf16>
    "tpu.trace_start"() <{level = 10 : i32, message = "bqk,bkd->bqd"}> : () -> ()
    %cst_384 = arith.constant dense<0.000000e+00> : vector<2x8x8xf32>
    %460 = tpu.matmul %458, %459, %cst_384 {dimension_numbers = #tpu.dot_dimension_numbers<[2], [1], [1], [2], [0, 0, 0, 1, 1, 2], [0], [0]>} : vector<2x8x8xbf16>, vector<2x8x8xbf16>, vector<2x8x8xf32> -> vector<2x8x8xf32>
    "tpu.trace_stop"() : () -> ()
    %461 = tpu.reciprocal %457 {approx = true} : vector<2x8x1xf32> -> vector<2x8x1xf32>
    %462 = vector.broadcast %461 : vector<2x8x1xf32> to vector<2x8x8xf32>
    %463 = arith.mulf %460, %462 : vector<2x8x8xf32>
    %464 = vector.shape_cast %463 : vector<2x8x8xf32> to vector<16x8xf32>
    %465 = arith.truncf %464 : vector<16x8xf32> to vector<16x8xbf16>
    %c0_385 = arith.constant 0 : index
    %c1_386 = arith.constant 1 : index
    %c3_387 = arith.constant 3 : index
    %c0_388 = arith.constant 0 : index
    %c0_389 = arith.constant 0 : index
    %466 = vector.load %arg9[%c0_385, %c1_386, %c3_387, %c0_388, %c0_389] : memref<2x2x4x8x32xbf16, #tpu.memory_space<vmem>>, vector<1x1x1x8x32xbf16>
    %467 = vector.shape_cast %466 : vector<1x1x1x8x32xbf16> to vector<8x32xbf16>
    %cst_390 = arith.constant dense<0.000000e+00> : vector<16x32xf32>
    %468 = tpu.matmul %465, %467, %cst_390 {dimension_numbers = #tpu.dot_dimension_numbers<[1], [0], [0], [1], [0, 0, 1, 1], [], []>} : vector<16x8xbf16>, vector<8x32xbf16>, vector<16x32xf32> -> vector<16x32xf32>
    %469 = arith.addf %423, %468 : vector<16x32xf32>
    %c0_391 = arith.constant 0 : index
    %c1_392 = arith.constant 1 : index
    %c0_393 = arith.constant 0 : index
    %c0_394 = arith.constant 0 : index
    %470 = vector.load %arg10[%c0_391, %c1_392, %c0_393, %c0_394] : memref<2x2x1x32xf32, #tpu.memory_space<vmem>>, vector<1x1x1x32xf32>
    %471 = vector.shape_cast %470 : vector<1x1x1x32xf32> to vector<1x32xf32>
    %472 = vector.broadcast %471 : vector<1x32xf32> to vector<16x32xf32>
    %473 = arith.addf %469, %472 : vector<16x32xf32>
    %c4 = arith.constant 4 : index
    %474 = memref.load %arg0[%c4] : memref<16xf32, #tpu.memory_space<smem>>
    %c5 = arith.constant 5 : index
    %475 = memref.load %arg0[%c5] : memref<16xf32, #tpu.memory_space<smem>>
    %476 = vector.broadcast %474 : f32 to vector<16x32xf32>
    %477 = arith.mulf %476, %283 : vector<16x32xf32>
    %478 = vector.broadcast %475 : f32 to vector<16x32xf32>
    %479 = arith.mulf %478, %473 : vector<16x32xf32>
    %480 = arith.addf %477, %479 : vector<16x32xf32>
    %cst_395 = arith.constant dense<0.000000e+00> : vector<16xf32>
    %481 = vector.multi_reduction <add>, %480, %cst_395 [1] : vector<16x32xf32> to vector<16xf32>
    %482 = vector.shape_cast %481 : vector<16xf32> to vector<16x1xf32>
    %cst_396 = arith.constant 3.200000e+01 : f32
    %483 = vector.broadcast %cst_396 : f32 to vector<16x1xf32>
    %484 = arith.divf %482, %483 : vector<16x1xf32>
    %485 = arith.mulf %480, %480 : vector<16x32xf32>
    %cst_397 = arith.constant dense<0.000000e+00> : vector<16xf32>
    %486 = vector.multi_reduction <add>, %485, %cst_397 [1] : vector<16x32xf32> to vector<16xf32>
    %487 = vector.shape_cast %486 : vector<16xf32> to vector<16x1xf32>
    %cst_398 = arith.constant 3.200000e+01 : f32
    %488 = vector.broadcast %cst_398 : f32 to vector<16x1xf32>
    %489 = arith.divf %487, %488 : vector<16x1xf32>
    %490 = arith.mulf %484, %484 : vector<16x1xf32>
    %491 = arith.subf %489, %490 : vector<16x1xf32>
    %492 = vector.broadcast %484 : vector<16x1xf32> to vector<16x32xf32>
    %493 = arith.subf %480, %492 : vector<16x32xf32>
    %cst_399 = arith.constant 9.99999996E-13 : f32
    %494 = vector.broadcast %cst_399 : f32 to vector<16x1xf32>
    %495 = arith.addf %491, %494 : vector<16x1xf32>
    %496 = math.rsqrt %495 : vector<16x1xf32>
    %497 = vector.broadcast %496 : vector<16x1xf32> to vector<16x32xf32>
    %498 = arith.mulf %493, %497 : vector<16x32xf32>
    %499 = vector.broadcast %3 : vector<1x32xf32> to vector<16x32xf32>
    %500 = arith.mulf %498, %499 : vector<16x32xf32>
    %501 = vector.broadcast %5 : vector<1x32xf32> to vector<16x32xf32>
    %502 = arith.addf %500, %501 : vector<16x32xf32>
    %503 = arith.truncf %502 : vector<16x32xf32> to vector<16x32xbf16>
    %c0_400 = arith.constant 0 : index
    %c1_401 = arith.constant 1 : index
    %c0_402 = arith.constant 0 : index
    %c0_403 = arith.constant 0 : index
    %504 = vector.load %arg11[%c0_400, %c1_401, %c0_402, %c0_403] : memref<2x2x32x128xbf16, #tpu.memory_space<vmem>>, vector<1x1x32x128xbf16>
    %505 = vector.shape_cast %504 : vector<1x1x32x128xbf16> to vector<32x128xbf16>
    %cst_404 = arith.constant dense<0.000000e+00> : vector<16x128xf32>
    %506 = tpu.matmul %503, %505, %cst_404 {dimension_numbers = #tpu.dot_dimension_numbers<[1], [0], [0], [1], [0, 0, 1, 1], [], []>} : vector<16x32xbf16>, vector<32x128xbf16>, vector<16x128xf32> -> vector<16x128xf32>
    %c0_405 = arith.constant 0 : index
    %c1_406 = arith.constant 1 : index
    %c0_407 = arith.constant 0 : index
    %c0_408 = arith.constant 0 : index
    %507 = vector.load %arg12[%c0_405, %c1_406, %c0_407, %c0_408] : memref<2x2x1x128xf32, #tpu.memory_space<vmem>>, vector<1x1x1x128xf32>
    %508 = vector.shape_cast %507 : vector<1x1x1x128xf32> to vector<1x128xf32>
    %509 = vector.broadcast %508 : vector<1x128xf32> to vector<16x128xf32>
    %510 = arith.addf %506, %509 : vector<16x128xf32>
    %511 = arith.mulf %510, %510 : vector<16x128xf32>
    %512 = arith.mulf %510, %511 : vector<16x128xf32>
    %cst_409 = arith.constant 4.471500e-02 : f32
    %513 = vector.broadcast %cst_409 : f32 to vector<16x128xf32>
    %514 = arith.mulf %513, %512 : vector<16x128xf32>
    %515 = arith.addf %510, %514 : vector<16x128xf32>
    %cst_410 = arith.constant 0.797884583 : f32
    %516 = vector.broadcast %cst_410 : f32 to vector<16x128xf32>
    %517 = arith.mulf %516, %515 : vector<16x128xf32>
    %518 = math.tanh %517 : vector<16x128xf32>
    %cst_411 = arith.constant 1.000000e+00 : f32
    %519 = vector.broadcast %cst_411 : f32 to vector<16x128xf32>
    %520 = arith.addf %519, %518 : vector<16x128xf32>
    %cst_412 = arith.constant 5.000000e-01 : f32
    %521 = vector.broadcast %cst_412 : f32 to vector<16x128xf32>
    %522 = arith.mulf %521, %520 : vector<16x128xf32>
    %523 = arith.mulf %510, %522 : vector<16x128xf32>
    %524 = arith.truncf %523 : vector<16x128xf32> to vector<16x128xbf16>
    %c0_413 = arith.constant 0 : index
    %c1_414 = arith.constant 1 : index
    %c0_415 = arith.constant 0 : index
    %c0_416 = arith.constant 0 : index
    %525 = vector.load %arg13[%c0_413, %c1_414, %c0_415, %c0_416] : memref<2x2x128x32xbf16, #tpu.memory_space<vmem>>, vector<1x1x128x32xbf16>
    %526 = vector.shape_cast %525 : vector<1x1x128x32xbf16> to vector<128x32xbf16>
    %cst_417 = arith.constant dense<0.000000e+00> : vector<16x32xf32>
    %527 = tpu.matmul %524, %526, %cst_417 {dimension_numbers = #tpu.dot_dimension_numbers<[1], [0], [0], [1], [0, 0, 1, 1], [], []>} : vector<16x128xbf16>, vector<128x32xbf16>, vector<16x32xf32> -> vector<16x32xf32>
    %c0_418 = arith.constant 0 : index
    %c1_419 = arith.constant 1 : index
    %c0_420 = arith.constant 0 : index
    %c0_421 = arith.constant 0 : index
    %528 = vector.load %arg14[%c0_418, %c1_419, %c0_420, %c0_421] : memref<2x2x1x32xf32, #tpu.memory_space<vmem>>, vector<1x1x1x32xf32>
    %529 = vector.shape_cast %528 : vector<1x1x1x32xf32> to vector<1x32xf32>
    %530 = vector.broadcast %529 : vector<1x32xf32> to vector<16x32xf32>
    %531 = arith.addf %527, %530 : vector<16x32xf32>
    %c6 = arith.constant 6 : index
    %532 = memref.load %arg0[%c6] : memref<16xf32, #tpu.memory_space<smem>>
    %c7 = arith.constant 7 : index
    %533 = memref.load %arg0[%c7] : memref<16xf32, #tpu.memory_space<smem>>
    %534 = vector.broadcast %532 : f32 to vector<16x32xf32>
    %535 = arith.mulf %534, %502 : vector<16x32xf32>
    %536 = vector.broadcast %533 : f32 to vector<16x32xf32>
    %537 = arith.mulf %536, %531 : vector<16x32xf32>
    %538 = arith.addf %535, %537 : vector<16x32xf32>
    %cst_422 = arith.constant dense<0.000000e+00> : vector<16xf32>
    %539 = vector.multi_reduction <add>, %538, %cst_422 [1] : vector<16x32xf32> to vector<16xf32>
    %540 = vector.shape_cast %539 : vector<16xf32> to vector<16x1xf32>
    %cst_423 = arith.constant 3.200000e+01 : f32
    %541 = vector.broadcast %cst_423 : f32 to vector<16x1xf32>
    %542 = arith.divf %540, %541 : vector<16x1xf32>
    %543 = arith.mulf %538, %538 : vector<16x32xf32>
    %cst_424 = arith.constant dense<0.000000e+00> : vector<16xf32>
    %544 = vector.multi_reduction <add>, %543, %cst_424 [1] : vector<16x32xf32> to vector<16xf32>
    %545 = vector.shape_cast %544 : vector<16xf32> to vector<16x1xf32>
    %cst_425 = arith.constant 3.200000e+01 : f32
    %546 = vector.broadcast %cst_425 : f32 to vector<16x1xf32>
    %547 = arith.divf %545, %546 : vector<16x1xf32>
    %548 = arith.mulf %542, %542 : vector<16x1xf32>
    %549 = arith.subf %547, %548 : vector<16x1xf32>
    %550 = vector.broadcast %542 : vector<16x1xf32> to vector<16x32xf32>
    %551 = arith.subf %538, %550 : vector<16x32xf32>
    %cst_426 = arith.constant 9.99999996E-13 : f32
    %552 = vector.broadcast %cst_426 : f32 to vector<16x1xf32>
    %553 = arith.addf %549, %552 : vector<16x1xf32>
    %554 = math.rsqrt %553 : vector<16x1xf32>
    %555 = vector.broadcast %554 : vector<16x1xf32> to vector<16x32xf32>
    %556 = arith.mulf %551, %555 : vector<16x32xf32>
    %557 = vector.broadcast %3 : vector<1x32xf32> to vector<16x32xf32>
    %558 = arith.mulf %556, %557 : vector<16x32xf32>
    %559 = vector.broadcast %5 : vector<1x32xf32> to vector<16x32xf32>
    %560 = arith.addf %558, %559 : vector<16x32xf32>
    %c1_427 = arith.constant 1 : index
    %c0_428 = arith.constant 0 : index
    %c0_429 = arith.constant 0 : index
    %561 = vector.load %arg15[%c1_427, %c0_428, %c0_429] : memref<2x1x32xf32, #tpu.memory_space<vmem>>, vector<1x1x32xf32>
    %562 = vector.shape_cast %561 : vector<1x1x32xf32> to vector<1x32xf32>
    %c1_430 = arith.constant 1 : index
    %c0_431 = arith.constant 0 : index
    %c0_432 = arith.constant 0 : index
    %563 = vector.load %arg16[%c1_430, %c0_431, %c0_432] : memref<2x1x32xf32, #tpu.memory_space<vmem>>, vector<1x1x32xf32>
    %564 = vector.shape_cast %563 : vector<1x1x32xf32> to vector<1x32xf32>
    %565 = arith.truncf %560 : vector<16x32xf32> to vector<16x32xbf16>
    %566 = arith.truncf %1 : vector<32x32xf32> to vector<32x32xbf16>
    %cst_433 = arith.constant 0.000000e+00 : f32
    %567 = vector.broadcast %cst_433 : f32 to vector<16x32xf32>
    %c1_434 = arith.constant 1 : index
    %c0_435 = arith.constant 0 : index
    %c0_436 = arith.constant 0 : index
    %c0_437 = arith.constant 0 : index
    %c0_438 = arith.constant 0 : index
    %568 = vector.load %arg3[%c1_434, %c0_435, %c0_436, %c0_437, %c0_438] : memref<2x2x4x32x8xbf16, #tpu.memory_space<vmem>>, vector<1x1x1x32x8xbf16>
    %569 = vector.shape_cast %568 : vector<1x1x1x32x8xbf16> to vector<32x8xbf16>
    %cst_439 = arith.constant dense<0.000000e+00> : vector<16x8xf32>
    %570 = tpu.matmul %565, %569, %cst_439 {dimension_numbers = #tpu.dot_dimension_numbers<[1], [0], [0], [1], [0, 0, 1, 1], [], []>} : vector<16x32xbf16>, vector<32x8xbf16>, vector<16x8xf32> -> vector<16x8xf32>
    %c1_440 = arith.constant 1 : index
    %c0_441 = arith.constant 0 : index
    %c0_442 = arith.constant 0 : index
    %c0_443 = arith.constant 0 : index
    %c0_444 = arith.constant 0 : index
    %571 = vector.load %arg4[%c1_440, %c0_441, %c0_442, %c0_443, %c0_444] : memref<2x2x4x1x8xf32, #tpu.memory_space<vmem>>, vector<1x1x1x1x8xf32>
    %572 = vector.shape_cast %571 : vector<1x1x1x1x8xf32> to vector<1x8xf32>
    %573 = vector.broadcast %572 : vector<1x8xf32> to vector<16x8xf32>
    %574 = arith.addf %570, %573 : vector<16x8xf32>
    %575 = vector.shape_cast %574 : vector<16x8xf32> to vector<2x8x8xf32>
    %c1_445 = arith.constant 1 : index
    %c0_446 = arith.constant 0 : index
    %c0_447 = arith.constant 0 : index
    %c0_448 = arith.constant 0 : index
    %c0_449 = arith.constant 0 : index
    %576 = vector.load %arg5[%c1_445, %c0_446, %c0_447, %c0_448, %c0_449] : memref<2x2x4x32x8xbf16, #tpu.memory_space<vmem>>, vector<1x1x1x32x8xbf16>
    %577 = vector.shape_cast %576 : vector<1x1x1x32x8xbf16> to vector<32x8xbf16>
    %cst_450 = arith.constant dense<0.000000e+00> : vector<32x8xf32>
    %578 = tpu.matmul %566, %577, %cst_450 {dimension_numbers = #tpu.dot_dimension_numbers<[1], [0], [0], [1], [0, 0, 1, 1], [], []>} : vector<32x32xbf16>, vector<32x8xbf16>, vector<32x8xf32> -> vector<32x8xf32>
    %c1_451 = arith.constant 1 : index
    %c0_452 = arith.constant 0 : index
    %c0_453 = arith.constant 0 : index
    %c0_454 = arith.constant 0 : index
    %c0_455 = arith.constant 0 : index
    %579 = vector.load %arg6[%c1_451, %c0_452, %c0_453, %c0_454, %c0_455] : memref<2x2x4x1x8xf32, #tpu.memory_space<vmem>>, vector<1x1x1x1x8xf32>
    %580 = vector.shape_cast %579 : vector<1x1x1x1x8xf32> to vector<1x8xf32>
    %581 = vector.broadcast %580 : vector<1x8xf32> to vector<32x8xf32>
    %582 = arith.addf %578, %581 : vector<32x8xf32>
    %583 = vector.shape_cast %582 : vector<32x8xf32> to vector<2x16x8xf32>
    %c1_456 = arith.constant 1 : index
    %c0_457 = arith.constant 0 : index
    %c0_458 = arith.constant 0 : index
    %c0_459 = arith.constant 0 : index
    %c0_460 = arith.constant 0 : index
    %584 = vector.load %arg7[%c1_456, %c0_457, %c0_458, %c0_459, %c0_460] : memref<2x2x4x32x8xbf16, #tpu.memory_space<vmem>>, vector<1x1x1x32x8xbf16>
    %585 = vector.shape_cast %584 : vector<1x1x1x32x8xbf16> to vector<32x8xbf16>
    %cst_461 = arith.constant dense<0.000000e+00> : vector<32x8xf32>
    %586 = tpu.matmul %566, %585, %cst_461 {dimension_numbers = #tpu.dot_dimension_numbers<[1], [0], [0], [1], [0, 0, 1, 1], [], []>} : vector<32x32xbf16>, vector<32x8xbf16>, vector<32x8xf32> -> vector<32x8xf32>
    %c1_462 = arith.constant 1 : index
    %c0_463 = arith.constant 0 : index
    %c0_464 = arith.constant 0 : index
    %c0_465 = arith.constant 0 : index
    %c0_466 = arith.constant 0 : index
    %587 = vector.load %arg8[%c1_462, %c0_463, %c0_464, %c0_465, %c0_466] : memref<2x2x4x1x8xf32, #tpu.memory_space<vmem>>, vector<1x1x1x1x8xf32>
    %588 = vector.shape_cast %587 : vector<1x1x1x1x8xf32> to vector<1x8xf32>
    %589 = vector.broadcast %588 : vector<1x8xf32> to vector<32x8xf32>
    %590 = arith.addf %586, %589 : vector<32x8xf32>
    %591 = vector.shape_cast %590 : vector<32x8xf32> to vector<2x16x8xf32>
    %592 = arith.truncf %575 : vector<2x8x8xf32> to vector<2x8x8xbf16>
    %593 = arith.truncf %583 : vector<2x16x8xf32> to vector<2x16x8xbf16>
    "tpu.trace_start"() <{level = 10 : i32, message = "bqd,bkd->bqk"}> : () -> ()
    %cst_467 = arith.constant dense<0.000000e+00> : vector<2x8x16xf32>
    %594 = tpu.matmul %592, %593, %cst_467 {dimension_numbers = #tpu.dot_dimension_numbers<[2], [2], [1], [1], [0, 0, 0, 1, 1, 1], [0], [0]>} : vector<2x8x8xbf16>, vector<2x16x8xbf16>, vector<2x8x16xf32> -> vector<2x8x16xf32>
    "tpu.trace_stop"() : () -> ()
    %cst_468 = arith.constant dense<0xFF800000> : vector<2x8xf32>
    %595 = vector.multi_reduction <maximumf>, %594, %cst_468 [2] : vector<2x8x16xf32> to vector<2x8xf32>
    %596 = vector.shape_cast %595 : vector<2x8xf32> to vector<2x8x1xf32>
    %597 = vector.broadcast %596 : vector<2x8x1xf32> to vector<2x8x16xf32>
    %598 = arith.subf %594, %597 : vector<2x8x16xf32>
    %599 = math.exp %598 : vector<2x8x16xf32>
    %cst_469 = arith.constant dense<0.000000e+00> : vector<2x8xf32>
    %600 = vector.multi_reduction <add>, %599, %cst_469 [2] : vector<2x8x16xf32> to vector<2x8xf32>
    %601 = vector.shape_cast %600 : vector<2x8xf32> to vector<2x8x1xf32>
    %602 = arith.truncf %599 : vector<2x8x16xf32> to vector<2x8x16xbf16>
    %603 = arith.truncf %591 : vector<2x16x8xf32> to vector<2x16x8xbf16>
    "tpu.trace_start"() <{level = 10 : i32, message = "bqk,bkd->bqd"}> : () -> ()
    %cst_470 = arith.constant dense<0.000000e+00> : vector<2x8x8xf32>
    %604 = tpu.matmul %602, %603, %cst_470 {dimension_numbers = #tpu.dot_dimension_numbers<[2], [1], [1], [2], [0, 0, 0, 1, 1, 2], [0], [0]>} : vector<2x8x16xbf16>, vector<2x16x8xbf16>, vector<2x8x8xf32> -> vector<2x8x8xf32>
    "tpu.trace_stop"() : () -> ()
    %605 = tpu.reciprocal %601 {approx = true} : vector<2x8x1xf32> -> vector<2x8x1xf32>
    %606 = vector.broadcast %605 : vector<2x8x1xf32> to vector<2x8x8xf32>
    %607 = arith.mulf %604, %606 : vector<2x8x8xf32>
    %608 = vector.shape_cast %607 : vector<2x8x8xf32> to vector<16x8xf32>
    %609 = arith.truncf %608 : vector<16x8xf32> to vector<16x8xbf16>
    %c1_471 = arith.constant 1 : index
    %c0_472 = arith.constant 0 : index
    %c0_473 = arith.constant 0 : index
    %c0_474 = arith.constant 0 : index
    %c0_475 = arith.constant 0 : index
    %610 = vector.load %arg9[%c1_471, %c0_472, %c0_473, %c0_474, %c0_475] : memref<2x2x4x8x32xbf16, #tpu.memory_space<vmem>>, vector<1x1x1x8x32xbf16>
    %611 = vector.shape_cast %610 : vector<1x1x1x8x32xbf16> to vector<8x32xbf16>
    %cst_476 = arith.constant dense<0.000000e+00> : vector<16x32xf32>
    %612 = tpu.matmul %609, %611, %cst_476 {dimension_numbers = #tpu.dot_dimension_numbers<[1], [0], [0], [1], [0, 0, 1, 1], [], []>} : vector<16x8xbf16>, vector<8x32xbf16>, vector<16x32xf32> -> vector<16x32xf32>
    %613 = arith.addf %567, %612 : vector<16x32xf32>
    %c1_477 = arith.constant 1 : index
    %c0_478 = arith.constant 0 : index
    %c1_479 = arith.constant 1 : index
    %c0_480 = arith.constant 0 : index
    %c0_481 = arith.constant 0 : index
    %614 = vector.load %arg3[%c1_477, %c0_478, %c1_479, %c0_480, %c0_481] : memref<2x2x4x32x8xbf16, #tpu.memory_space<vmem>>, vector<1x1x1x32x8xbf16>
    %615 = vector.shape_cast %614 : vector<1x1x1x32x8xbf16> to vector<32x8xbf16>
    %cst_482 = arith.constant dense<0.000000e+00> : vector<16x8xf32>
    %616 = tpu.matmul %565, %615, %cst_482 {dimension_numbers = #tpu.dot_dimension_numbers<[1], [0], [0], [1], [0, 0, 1, 1], [], []>} : vector<16x32xbf16>, vector<32x8xbf16>, vector<16x8xf32> -> vector<16x8xf32>
    %c1_483 = arith.constant 1 : index
    %c0_484 = arith.constant 0 : index
    %c1_485 = arith.constant 1 : index
    %c0_486 = arith.constant 0 : index
    %c0_487 = arith.constant 0 : index
    %617 = vector.load %arg4[%c1_483, %c0_484, %c1_485, %c0_486, %c0_487] : memref<2x2x4x1x8xf32, #tpu.memory_space<vmem>>, vector<1x1x1x1x8xf32>
    %618 = vector.shape_cast %617 : vector<1x1x1x1x8xf32> to vector<1x8xf32>
    %619 = vector.broadcast %618 : vector<1x8xf32> to vector<16x8xf32>
    %620 = arith.addf %616, %619 : vector<16x8xf32>
    %621 = vector.shape_cast %620 : vector<16x8xf32> to vector<2x8x8xf32>
    %c1_488 = arith.constant 1 : index
    %c0_489 = arith.constant 0 : index
    %c1_490 = arith.constant 1 : index
    %c0_491 = arith.constant 0 : index
    %c0_492 = arith.constant 0 : index
    %622 = vector.load %arg5[%c1_488, %c0_489, %c1_490, %c0_491, %c0_492] : memref<2x2x4x32x8xbf16, #tpu.memory_space<vmem>>, vector<1x1x1x32x8xbf16>
    %623 = vector.shape_cast %622 : vector<1x1x1x32x8xbf16> to vector<32x8xbf16>
    %cst_493 = arith.constant dense<0.000000e+00> : vector<32x8xf32>
    %624 = tpu.matmul %566, %623, %cst_493 {dimension_numbers = #tpu.dot_dimension_numbers<[1], [0], [0], [1], [0, 0, 1, 1], [], []>} : vector<32x32xbf16>, vector<32x8xbf16>, vector<32x8xf32> -> vector<32x8xf32>
    %c1_494 = arith.constant 1 : index
    %c0_495 = arith.constant 0 : index
    %c1_496 = arith.constant 1 : index
    %c0_497 = arith.constant 0 : index
    %c0_498 = arith.constant 0 : index
    %625 = vector.load %arg6[%c1_494, %c0_495, %c1_496, %c0_497, %c0_498] : memref<2x2x4x1x8xf32, #tpu.memory_space<vmem>>, vector<1x1x1x1x8xf32>
    %626 = vector.shape_cast %625 : vector<1x1x1x1x8xf32> to vector<1x8xf32>
    %627 = vector.broadcast %626 : vector<1x8xf32> to vector<32x8xf32>
    %628 = arith.addf %624, %627 : vector<32x8xf32>
    %629 = vector.shape_cast %628 : vector<32x8xf32> to vector<2x16x8xf32>
    %c1_499 = arith.constant 1 : index
    %c0_500 = arith.constant 0 : index
    %c1_501 = arith.constant 1 : index
    %c0_502 = arith.constant 0 : index
    %c0_503 = arith.constant 0 : index
    %630 = vector.load %arg7[%c1_499, %c0_500, %c1_501, %c0_502, %c0_503] : memref<2x2x4x32x8xbf16, #tpu.memory_space<vmem>>, vector<1x1x1x32x8xbf16>
    %631 = vector.shape_cast %630 : vector<1x1x1x32x8xbf16> to vector<32x8xbf16>
    %cst_504 = arith.constant dense<0.000000e+00> : vector<32x8xf32>
    %632 = tpu.matmul %566, %631, %cst_504 {dimension_numbers = #tpu.dot_dimension_numbers<[1], [0], [0], [1], [0, 0, 1, 1], [], []>} : vector<32x32xbf16>, vector<32x8xbf16>, vector<32x8xf32> -> vector<32x8xf32>
    %c1_505 = arith.constant 1 : index
    %c0_506 = arith.constant 0 : index
    %c1_507 = arith.constant 1 : index
    %c0_508 = arith.constant 0 : index
    %c0_509 = arith.constant 0 : index
    %633 = vector.load %arg8[%c1_505, %c0_506, %c1_507, %c0_508, %c0_509] : memref<2x2x4x1x8xf32, #tpu.memory_space<vmem>>, vector<1x1x1x1x8xf32>
    %634 = vector.shape_cast %633 : vector<1x1x1x1x8xf32> to vector<1x8xf32>
    %635 = vector.broadcast %634 : vector<1x8xf32> to vector<32x8xf32>
    %636 = arith.addf %632, %635 : vector<32x8xf32>
    %637 = vector.shape_cast %636 : vector<32x8xf32> to vector<2x16x8xf32>
    %638 = arith.truncf %621 : vector<2x8x8xf32> to vector<2x8x8xbf16>
    %639 = arith.truncf %629 : vector<2x16x8xf32> to vector<2x16x8xbf16>
    "tpu.trace_start"() <{level = 10 : i32, message = "bqd,bkd->bqk"}> : () -> ()
    %cst_510 = arith.constant dense<0.000000e+00> : vector<2x8x16xf32>
    %640 = tpu.matmul %638, %639, %cst_510 {dimension_numbers = #tpu.dot_dimension_numbers<[2], [2], [1], [1], [0, 0, 0, 1, 1, 1], [0], [0]>} : vector<2x8x8xbf16>, vector<2x16x8xbf16>, vector<2x8x16xf32> -> vector<2x8x16xf32>
    "tpu.trace_stop"() : () -> ()
    %cst_511 = arith.constant dense<0xFF800000> : vector<2x8xf32>
    %641 = vector.multi_reduction <maximumf>, %640, %cst_511 [2] : vector<2x8x16xf32> to vector<2x8xf32>
    %642 = vector.shape_cast %641 : vector<2x8xf32> to vector<2x8x1xf32>
    %643 = vector.broadcast %642 : vector<2x8x1xf32> to vector<2x8x16xf32>
    %644 = arith.subf %640, %643 : vector<2x8x16xf32>
    %645 = math.exp %644 : vector<2x8x16xf32>
    %cst_512 = arith.constant dense<0.000000e+00> : vector<2x8xf32>
    %646 = vector.multi_reduction <add>, %645, %cst_512 [2] : vector<2x8x16xf32> to vector<2x8xf32>
    %647 = vector.shape_cast %646 : vector<2x8xf32> to vector<2x8x1xf32>
    %648 = arith.truncf %645 : vector<2x8x16xf32> to vector<2x8x16xbf16>
    %649 = arith.truncf %637 : vector<2x16x8xf32> to vector<2x16x8xbf16>
    "tpu.trace_start"() <{level = 10 : i32, message = "bqk,bkd->bqd"}> : () -> ()
    %cst_513 = arith.constant dense<0.000000e+00> : vector<2x8x8xf32>
    %650 = tpu.matmul %648, %649, %cst_513 {dimension_numbers = #tpu.dot_dimension_numbers<[2], [1], [1], [2], [0, 0, 0, 1, 1, 2], [0], [0]>} : vector<2x8x16xbf16>, vector<2x16x8xbf16>, vector<2x8x8xf32> -> vector<2x8x8xf32>
    "tpu.trace_stop"() : () -> ()
    %651 = tpu.reciprocal %647 {approx = true} : vector<2x8x1xf32> -> vector<2x8x1xf32>
    %652 = vector.broadcast %651 : vector<2x8x1xf32> to vector<2x8x8xf32>
    %653 = arith.mulf %650, %652 : vector<2x8x8xf32>
    %654 = vector.shape_cast %653 : vector<2x8x8xf32> to vector<16x8xf32>
    %655 = arith.truncf %654 : vector<16x8xf32> to vector<16x8xbf16>
    %c1_514 = arith.constant 1 : index
    %c0_515 = arith.constant 0 : index
    %c1_516 = arith.constant 1 : index
    %c0_517 = arith.constant 0 : index
    %c0_518 = arith.constant 0 : index
    %656 = vector.load %arg9[%c1_514, %c0_515, %c1_516, %c0_517, %c0_518] : memref<2x2x4x8x32xbf16, #tpu.memory_space<vmem>>, vector<1x1x1x8x32xbf16>
    %657 = vector.shape_cast %656 : vector<1x1x1x8x32xbf16> to vector<8x32xbf16>
    %cst_519 = arith.constant dense<0.000000e+00> : vector<16x32xf32>
    %658 = tpu.matmul %655, %657, %cst_519 {dimension_numbers = #tpu.dot_dimension_numbers<[1], [0], [0], [1], [0, 0, 1, 1], [], []>} : vector<16x8xbf16>, vector<8x32xbf16>, vector<16x32xf32> -> vector<16x32xf32>
    %659 = arith.addf %613, %658 : vector<16x32xf32>
    %c1_520 = arith.constant 1 : index
    %c0_521 = arith.constant 0 : index
    %c2_522 = arith.constant 2 : index
    %c0_523 = arith.constant 0 : index
    %c0_524 = arith.constant 0 : index
    %660 = vector.load %arg3[%c1_520, %c0_521, %c2_522, %c0_523, %c0_524] : memref<2x2x4x32x8xbf16, #tpu.memory_space<vmem>>, vector<1x1x1x32x8xbf16>
    %661 = vector.shape_cast %660 : vector<1x1x1x32x8xbf16> to vector<32x8xbf16>
    %cst_525 = arith.constant dense<0.000000e+00> : vector<16x8xf32>
    %662 = tpu.matmul %565, %661, %cst_525 {dimension_numbers = #tpu.dot_dimension_numbers<[1], [0], [0], [1], [0, 0, 1, 1], [], []>} : vector<16x32xbf16>, vector<32x8xbf16>, vector<16x8xf32> -> vector<16x8xf32>
    %c1_526 = arith.constant 1 : index
    %c0_527 = arith.constant 0 : index
    %c2_528 = arith.constant 2 : index
    %c0_529 = arith.constant 0 : index
    %c0_530 = arith.constant 0 : index
    %663 = vector.load %arg4[%c1_526, %c0_527, %c2_528, %c0_529, %c0_530] : memref<2x2x4x1x8xf32, #tpu.memory_space<vmem>>, vector<1x1x1x1x8xf32>
    %664 = vector.shape_cast %663 : vector<1x1x1x1x8xf32> to vector<1x8xf32>
    %665 = vector.broadcast %664 : vector<1x8xf32> to vector<16x8xf32>
    %666 = arith.addf %662, %665 : vector<16x8xf32>
    %667 = vector.shape_cast %666 : vector<16x8xf32> to vector<2x8x8xf32>
    %c1_531 = arith.constant 1 : index
    %c0_532 = arith.constant 0 : index
    %c2_533 = arith.constant 2 : index
    %c0_534 = arith.constant 0 : index
    %c0_535 = arith.constant 0 : index
    %668 = vector.load %arg5[%c1_531, %c0_532, %c2_533, %c0_534, %c0_535] : memref<2x2x4x32x8xbf16, #tpu.memory_space<vmem>>, vector<1x1x1x32x8xbf16>
    %669 = vector.shape_cast %668 : vector<1x1x1x32x8xbf16> to vector<32x8xbf16>
    %cst_536 = arith.constant dense<0.000000e+00> : vector<32x8xf32>
    %670 = tpu.matmul %566, %669, %cst_536 {dimension_numbers = #tpu.dot_dimension_numbers<[1], [0], [0], [1], [0, 0, 1, 1], [], []>} : vector<32x32xbf16>, vector<32x8xbf16>, vector<32x8xf32> -> vector<32x8xf32>
    %c1_537 = arith.constant 1 : index
    %c0_538 = arith.constant 0 : index
    %c2_539 = arith.constant 2 : index
    %c0_540 = arith.constant 0 : index
    %c0_541 = arith.constant 0 : index
    %671 = vector.load %arg6[%c1_537, %c0_538, %c2_539, %c0_540, %c0_541] : memref<2x2x4x1x8xf32, #tpu.memory_space<vmem>>, vector<1x1x1x1x8xf32>
    %672 = vector.shape_cast %671 : vector<1x1x1x1x8xf32> to vector<1x8xf32>
    %673 = vector.broadcast %672 : vector<1x8xf32> to vector<32x8xf32>
    %674 = arith.addf %670, %673 : vector<32x8xf32>
    %675 = vector.shape_cast %674 : vector<32x8xf32> to vector<2x16x8xf32>
    %c1_542 = arith.constant 1 : index
    %c0_543 = arith.constant 0 : index
    %c2_544 = arith.constant 2 : index
    %c0_545 = arith.constant 0 : index
    %c0_546 = arith.constant 0 : index
    %676 = vector.load %arg7[%c1_542, %c0_543, %c2_544, %c0_545, %c0_546] : memref<2x2x4x32x8xbf16, #tpu.memory_space<vmem>>, vector<1x1x1x32x8xbf16>
    %677 = vector.shape_cast %676 : vector<1x1x1x32x8xbf16> to vector<32x8xbf16>
    %cst_547 = arith.constant dense<0.000000e+00> : vector<32x8xf32>
    %678 = tpu.matmul %566, %677, %cst_547 {dimension_numbers = #tpu.dot_dimension_numbers<[1], [0], [0], [1], [0, 0, 1, 1], [], []>} : vector<32x32xbf16>, vector<32x8xbf16>, vector<32x8xf32> -> vector<32x8xf32>
    %c1_548 = arith.constant 1 : index
    %c0_549 = arith.constant 0 : index
    %c2_550 = arith.constant 2 : index
    %c0_551 = arith.constant 0 : index
    %c0_552 = arith.constant 0 : index
    %679 = vector.load %arg8[%c1_548, %c0_549, %c2_550, %c0_551, %c0_552] : memref<2x2x4x1x8xf32, #tpu.memory_space<vmem>>, vector<1x1x1x1x8xf32>
    %680 = vector.shape_cast %679 : vector<1x1x1x1x8xf32> to vector<1x8xf32>
    %681 = vector.broadcast %680 : vector<1x8xf32> to vector<32x8xf32>
    %682 = arith.addf %678, %681 : vector<32x8xf32>
    %683 = vector.shape_cast %682 : vector<32x8xf32> to vector<2x16x8xf32>
    %684 = arith.truncf %667 : vector<2x8x8xf32> to vector<2x8x8xbf16>
    %685 = arith.truncf %675 : vector<2x16x8xf32> to vector<2x16x8xbf16>
    "tpu.trace_start"() <{level = 10 : i32, message = "bqd,bkd->bqk"}> : () -> ()
    %cst_553 = arith.constant dense<0.000000e+00> : vector<2x8x16xf32>
    %686 = tpu.matmul %684, %685, %cst_553 {dimension_numbers = #tpu.dot_dimension_numbers<[2], [2], [1], [1], [0, 0, 0, 1, 1, 1], [0], [0]>} : vector<2x8x8xbf16>, vector<2x16x8xbf16>, vector<2x8x16xf32> -> vector<2x8x16xf32>
    "tpu.trace_stop"() : () -> ()
    %cst_554 = arith.constant dense<0xFF800000> : vector<2x8xf32>
    %687 = vector.multi_reduction <maximumf>, %686, %cst_554 [2] : vector<2x8x16xf32> to vector<2x8xf32>
    %688 = vector.shape_cast %687 : vector<2x8xf32> to vector<2x8x1xf32>
    %689 = vector.broadcast %688 : vector<2x8x1xf32> to vector<2x8x16xf32>
    %690 = arith.subf %686, %689 : vector<2x8x16xf32>
    %691 = math.exp %690 : vector<2x8x16xf32>
    %cst_555 = arith.constant dense<0.000000e+00> : vector<2x8xf32>
    %692 = vector.multi_reduction <add>, %691, %cst_555 [2] : vector<2x8x16xf32> to vector<2x8xf32>
    %693 = vector.shape_cast %692 : vector<2x8xf32> to vector<2x8x1xf32>
    %694 = arith.truncf %691 : vector<2x8x16xf32> to vector<2x8x16xbf16>
    %695 = arith.truncf %683 : vector<2x16x8xf32> to vector<2x16x8xbf16>
    "tpu.trace_start"() <{level = 10 : i32, message = "bqk,bkd->bqd"}> : () -> ()
    %cst_556 = arith.constant dense<0.000000e+00> : vector<2x8x8xf32>
    %696 = tpu.matmul %694, %695, %cst_556 {dimension_numbers = #tpu.dot_dimension_numbers<[2], [1], [1], [2], [0, 0, 0, 1, 1, 2], [0], [0]>} : vector<2x8x16xbf16>, vector<2x16x8xbf16>, vector<2x8x8xf32> -> vector<2x8x8xf32>
    "tpu.trace_stop"() : () -> ()
    %697 = tpu.reciprocal %693 {approx = true} : vector<2x8x1xf32> -> vector<2x8x1xf32>
    %698 = vector.broadcast %697 : vector<2x8x1xf32> to vector<2x8x8xf32>
    %699 = arith.mulf %696, %698 : vector<2x8x8xf32>
    %700 = vector.shape_cast %699 : vector<2x8x8xf32> to vector<16x8xf32>
    %701 = arith.truncf %700 : vector<16x8xf32> to vector<16x8xbf16>
    %c1_557 = arith.constant 1 : index
    %c0_558 = arith.constant 0 : index
    %c2_559 = arith.constant 2 : index
    %c0_560 = arith.constant 0 : index
    %c0_561 = arith.constant 0 : index
    %702 = vector.load %arg9[%c1_557, %c0_558, %c2_559, %c0_560, %c0_561] : memref<2x2x4x8x32xbf16, #tpu.memory_space<vmem>>, vector<1x1x1x8x32xbf16>
    %703 = vector.shape_cast %702 : vector<1x1x1x8x32xbf16> to vector<8x32xbf16>
    %cst_562 = arith.constant dense<0.000000e+00> : vector<16x32xf32>
    %704 = tpu.matmul %701, %703, %cst_562 {dimension_numbers = #tpu.dot_dimension_numbers<[1], [0], [0], [1], [0, 0, 1, 1], [], []>} : vector<16x8xbf16>, vector<8x32xbf16>, vector<16x32xf32> -> vector<16x32xf32>
    %705 = arith.addf %659, %704 : vector<16x32xf32>
    %c1_563 = arith.constant 1 : index
    %c0_564 = arith.constant 0 : index
    %c3_565 = arith.constant 3 : index
    %c0_566 = arith.constant 0 : index
    %c0_567 = arith.constant 0 : index
    %706 = vector.load %arg3[%c1_563, %c0_564, %c3_565, %c0_566, %c0_567] : memref<2x2x4x32x8xbf16, #tpu.memory_space<vmem>>, vector<1x1x1x32x8xbf16>
    %707 = vector.shape_cast %706 : vector<1x1x1x32x8xbf16> to vector<32x8xbf16>
    %cst_568 = arith.constant dense<0.000000e+00> : vector<16x8xf32>
    %708 = tpu.matmul %565, %707, %cst_568 {dimension_numbers = #tpu.dot_dimension_numbers<[1], [0], [0], [1], [0, 0, 1, 1], [], []>} : vector<16x32xbf16>, vector<32x8xbf16>, vector<16x8xf32> -> vector<16x8xf32>
    %c1_569 = arith.constant 1 : index
    %c0_570 = arith.constant 0 : index
    %c3_571 = arith.constant 3 : index
    %c0_572 = arith.constant 0 : index
    %c0_573 = arith.constant 0 : index
    %709 = vector.load %arg4[%c1_569, %c0_570, %c3_571, %c0_572, %c0_573] : memref<2x2x4x1x8xf32, #tpu.memory_space<vmem>>, vector<1x1x1x1x8xf32>
    %710 = vector.shape_cast %709 : vector<1x1x1x1x8xf32> to vector<1x8xf32>
    %711 = vector.broadcast %710 : vector<1x8xf32> to vector<16x8xf32>
    %712 = arith.addf %708, %711 : vector<16x8xf32>
    %713 = vector.shape_cast %712 : vector<16x8xf32> to vector<2x8x8xf32>
    %c1_574 = arith.constant 1 : index
    %c0_575 = arith.constant 0 : index
    %c3_576 = arith.constant 3 : index
    %c0_577 = arith.constant 0 : index
    %c0_578 = arith.constant 0 : index
    %714 = vector.load %arg5[%c1_574, %c0_575, %c3_576, %c0_577, %c0_578] : memref<2x2x4x32x8xbf16, #tpu.memory_space<vmem>>, vector<1x1x1x32x8xbf16>
    %715 = vector.shape_cast %714 : vector<1x1x1x32x8xbf16> to vector<32x8xbf16>
    %cst_579 = arith.constant dense<0.000000e+00> : vector<32x8xf32>
    %716 = tpu.matmul %566, %715, %cst_579 {dimension_numbers = #tpu.dot_dimension_numbers<[1], [0], [0], [1], [0, 0, 1, 1], [], []>} : vector<32x32xbf16>, vector<32x8xbf16>, vector<32x8xf32> -> vector<32x8xf32>
    %c1_580 = arith.constant 1 : index
    %c0_581 = arith.constant 0 : index
    %c3_582 = arith.constant 3 : index
    %c0_583 = arith.constant 0 : index
    %c0_584 = arith.constant 0 : index
    %717 = vector.load %arg6[%c1_580, %c0_581, %c3_582, %c0_583, %c0_584] : memref<2x2x4x1x8xf32, #tpu.memory_space<vmem>>, vector<1x1x1x1x8xf32>
    %718 = vector.shape_cast %717 : vector<1x1x1x1x8xf32> to vector<1x8xf32>
    %719 = vector.broadcast %718 : vector<1x8xf32> to vector<32x8xf32>
    %720 = arith.addf %716, %719 : vector<32x8xf32>
    %721 = vector.shape_cast %720 : vector<32x8xf32> to vector<2x16x8xf32>
    %c1_585 = arith.constant 1 : index
    %c0_586 = arith.constant 0 : index
    %c3_587 = arith.constant 3 : index
    %c0_588 = arith.constant 0 : index
    %c0_589 = arith.constant 0 : index
    %722 = vector.load %arg7[%c1_585, %c0_586, %c3_587, %c0_588, %c0_589] : memref<2x2x4x32x8xbf16, #tpu.memory_space<vmem>>, vector<1x1x1x32x8xbf16>
    %723 = vector.shape_cast %722 : vector<1x1x1x32x8xbf16> to vector<32x8xbf16>
    %cst_590 = arith.constant dense<0.000000e+00> : vector<32x8xf32>
    %724 = tpu.matmul %566, %723, %cst_590 {dimension_numbers = #tpu.dot_dimension_numbers<[1], [0], [0], [1], [0, 0, 1, 1], [], []>} : vector<32x32xbf16>, vector<32x8xbf16>, vector<32x8xf32> -> vector<32x8xf32>
    %c1_591 = arith.constant 1 : index
    %c0_592 = arith.constant 0 : index
    %c3_593 = arith.constant 3 : index
    %c0_594 = arith.constant 0 : index
    %c0_595 = arith.constant 0 : index
    %725 = vector.load %arg8[%c1_591, %c0_592, %c3_593, %c0_594, %c0_595] : memref<2x2x4x1x8xf32, #tpu.memory_space<vmem>>, vector<1x1x1x1x8xf32>
    %726 = vector.shape_cast %725 : vector<1x1x1x1x8xf32> to vector<1x8xf32>
    %727 = vector.broadcast %726 : vector<1x8xf32> to vector<32x8xf32>
    %728 = arith.addf %724, %727 : vector<32x8xf32>
    %729 = vector.shape_cast %728 : vector<32x8xf32> to vector<2x16x8xf32>
    %730 = arith.truncf %713 : vector<2x8x8xf32> to vector<2x8x8xbf16>
    %731 = arith.truncf %721 : vector<2x16x8xf32> to vector<2x16x8xbf16>
    "tpu.trace_start"() <{level = 10 : i32, message = "bqd,bkd->bqk"}> : () -> ()
    %cst_596 = arith.constant dense<0.000000e+00> : vector<2x8x16xf32>
    %732 = tpu.matmul %730, %731, %cst_596 {dimension_numbers = #tpu.dot_dimension_numbers<[2], [2], [1], [1], [0, 0, 0, 1, 1, 1], [0], [0]>} : vector<2x8x8xbf16>, vector<2x16x8xbf16>, vector<2x8x16xf32> -> vector<2x8x16xf32>
    "tpu.trace_stop"() : () -> ()
    %cst_597 = arith.constant dense<0xFF800000> : vector<2x8xf32>
    %733 = vector.multi_reduction <maximumf>, %732, %cst_597 [2] : vector<2x8x16xf32> to vector<2x8xf32>
    %734 = vector.shape_cast %733 : vector<2x8xf32> to vector<2x8x1xf32>
    %735 = vector.broadcast %734 : vector<2x8x1xf32> to vector<2x8x16xf32>
    %736 = arith.subf %732, %735 : vector<2x8x16xf32>
    %737 = math.exp %736 : vector<2x8x16xf32>
    %cst_598 = arith.constant dense<0.000000e+00> : vector<2x8xf32>
    %738 = vector.multi_reduction <add>, %737, %cst_598 [2] : vector<2x8x16xf32> to vector<2x8xf32>
    %739 = vector.shape_cast %738 : vector<2x8xf32> to vector<2x8x1xf32>
    %740 = arith.truncf %737 : vector<2x8x16xf32> to vector<2x8x16xbf16>
    %741 = arith.truncf %729 : vector<2x16x8xf32> to vector<2x16x8xbf16>
    "tpu.trace_start"() <{level = 10 : i32, message = "bqk,bkd->bqd"}> : () -> ()
    %cst_599 = arith.constant dense<0.000000e+00> : vector<2x8x8xf32>
    %742 = tpu.matmul %740, %741, %cst_599 {dimension_numbers = #tpu.dot_dimension_numbers<[2], [1], [1], [2], [0, 0, 0, 1, 1, 2], [0], [0]>} : vector<2x8x16xbf16>, vector<2x16x8xbf16>, vector<2x8x8xf32> -> vector<2x8x8xf32>
    "tpu.trace_stop"() : () -> ()
    %743 = tpu.reciprocal %739 {approx = true} : vector<2x8x1xf32> -> vector<2x8x1xf32>
    %744 = vector.broadcast %743 : vector<2x8x1xf32> to vector<2x8x8xf32>
    %745 = arith.mulf %742, %744 : vector<2x8x8xf32>
    %746 = vector.shape_cast %745 : vector<2x8x8xf32> to vector<16x8xf32>
    %747 = arith.truncf %746 : vector<16x8xf32> to vector<16x8xbf16>
    %c1_600 = arith.constant 1 : index
    %c0_601 = arith.constant 0 : index
    %c3_602 = arith.constant 3 : index
    %c0_603 = arith.constant 0 : index
    %c0_604 = arith.constant 0 : index
    %748 = vector.load %arg9[%c1_600, %c0_601, %c3_602, %c0_603, %c0_604] : memref<2x2x4x8x32xbf16, #tpu.memory_space<vmem>>, vector<1x1x1x8x32xbf16>
    %749 = vector.shape_cast %748 : vector<1x1x1x8x32xbf16> to vector<8x32xbf16>
    %cst_605 = arith.constant dense<0.000000e+00> : vector<16x32xf32>
    %750 = tpu.matmul %747, %749, %cst_605 {dimension_numbers = #tpu.dot_dimension_numbers<[1], [0], [0], [1], [0, 0, 1, 1], [], []>} : vector<16x8xbf16>, vector<8x32xbf16>, vector<16x32xf32> -> vector<16x32xf32>
    %751 = arith.addf %705, %750 : vector<16x32xf32>
    %c1_606 = arith.constant 1 : index
    %c0_607 = arith.constant 0 : index
    %c0_608 = arith.constant 0 : index
    %c0_609 = arith.constant 0 : index
    %752 = vector.load %arg10[%c1_606, %c0_607, %c0_608, %c0_609] : memref<2x2x1x32xf32, #tpu.memory_space<vmem>>, vector<1x1x1x32xf32>
    %753 = vector.shape_cast %752 : vector<1x1x1x32xf32> to vector<1x32xf32>
    %754 = vector.broadcast %753 : vector<1x32xf32> to vector<16x32xf32>
    %755 = arith.addf %751, %754 : vector<16x32xf32>
    %c8 = arith.constant 8 : index
    %756 = memref.load %arg0[%c8] : memref<16xf32, #tpu.memory_space<smem>>
    %c9 = arith.constant 9 : index
    %757 = memref.load %arg0[%c9] : memref<16xf32, #tpu.memory_space<smem>>
    %758 = vector.broadcast %756 : f32 to vector<16x32xf32>
    %759 = arith.mulf %758, %560 : vector<16x32xf32>
    %760 = vector.broadcast %757 : f32 to vector<16x32xf32>
    %761 = arith.mulf %760, %755 : vector<16x32xf32>
    %762 = arith.addf %759, %761 : vector<16x32xf32>
    %cst_610 = arith.constant dense<0.000000e+00> : vector<16xf32>
    %763 = vector.multi_reduction <add>, %762, %cst_610 [1] : vector<16x32xf32> to vector<16xf32>
    %764 = vector.shape_cast %763 : vector<16xf32> to vector<16x1xf32>
    %cst_611 = arith.constant 3.200000e+01 : f32
    %765 = vector.broadcast %cst_611 : f32 to vector<16x1xf32>
    %766 = arith.divf %764, %765 : vector<16x1xf32>
    %767 = arith.mulf %762, %762 : vector<16x32xf32>
    %cst_612 = arith.constant dense<0.000000e+00> : vector<16xf32>
    %768 = vector.multi_reduction <add>, %767, %cst_612 [1] : vector<16x32xf32> to vector<16xf32>
    %769 = vector.shape_cast %768 : vector<16xf32> to vector<16x1xf32>
    %cst_613 = arith.constant 3.200000e+01 : f32
    %770 = vector.broadcast %cst_613 : f32 to vector<16x1xf32>
    %771 = arith.divf %769, %770 : vector<16x1xf32>
    %772 = arith.mulf %766, %766 : vector<16x1xf32>
    %773 = arith.subf %771, %772 : vector<16x1xf32>
    %774 = vector.broadcast %766 : vector<16x1xf32> to vector<16x32xf32>
    %775 = arith.subf %762, %774 : vector<16x32xf32>
    %cst_614 = arith.constant 9.99999996E-13 : f32
    %776 = vector.broadcast %cst_614 : f32 to vector<16x1xf32>
    %777 = arith.addf %773, %776 : vector<16x1xf32>
    %778 = math.rsqrt %777 : vector<16x1xf32>
    %779 = vector.broadcast %778 : vector<16x1xf32> to vector<16x32xf32>
    %780 = arith.mulf %775, %779 : vector<16x32xf32>
    %781 = vector.broadcast %562 : vector<1x32xf32> to vector<16x32xf32>
    %782 = arith.mulf %780, %781 : vector<16x32xf32>
    %783 = vector.broadcast %564 : vector<1x32xf32> to vector<16x32xf32>
    %784 = arith.addf %782, %783 : vector<16x32xf32>
    %785 = arith.truncf %784 : vector<16x32xf32> to vector<16x32xbf16>
    %c1_615 = arith.constant 1 : index
    %c0_616 = arith.constant 0 : index
    %c0_617 = arith.constant 0 : index
    %c0_618 = arith.constant 0 : index
    %786 = vector.load %arg11[%c1_615, %c0_616, %c0_617, %c0_618] : memref<2x2x32x128xbf16, #tpu.memory_space<vmem>>, vector<1x1x32x128xbf16>
    %787 = vector.shape_cast %786 : vector<1x1x32x128xbf16> to vector<32x128xbf16>
    %cst_619 = arith.constant dense<0.000000e+00> : vector<16x128xf32>
    %788 = tpu.matmul %785, %787, %cst_619 {dimension_numbers = #tpu.dot_dimension_numbers<[1], [0], [0], [1], [0, 0, 1, 1], [], []>} : vector<16x32xbf16>, vector<32x128xbf16>, vector<16x128xf32> -> vector<16x128xf32>
    %c1_620 = arith.constant 1 : index
    %c0_621 = arith.constant 0 : index
    %c0_622 = arith.constant 0 : index
    %c0_623 = arith.constant 0 : index
    %789 = vector.load %arg12[%c1_620, %c0_621, %c0_622, %c0_623] : memref<2x2x1x128xf32, #tpu.memory_space<vmem>>, vector<1x1x1x128xf32>
    %790 = vector.shape_cast %789 : vector<1x1x1x128xf32> to vector<1x128xf32>
    %791 = vector.broadcast %790 : vector<1x128xf32> to vector<16x128xf32>
    %792 = arith.addf %788, %791 : vector<16x128xf32>
    %793 = arith.mulf %792, %792 : vector<16x128xf32>
    %794 = arith.mulf %792, %793 : vector<16x128xf32>
    %cst_624 = arith.constant 4.471500e-02 : f32
    %795 = vector.broadcast %cst_624 : f32 to vector<16x128xf32>
    %796 = arith.mulf %795, %794 : vector<16x128xf32>
    %797 = arith.addf %792, %796 : vector<16x128xf32>
    %cst_625 = arith.constant 0.797884583 : f32
    %798 = vector.broadcast %cst_625 : f32 to vector<16x128xf32>
    %799 = arith.mulf %798, %797 : vector<16x128xf32>
    %800 = math.tanh %799 : vector<16x128xf32>
    %cst_626 = arith.constant 1.000000e+00 : f32
    %801 = vector.broadcast %cst_626 : f32 to vector<16x128xf32>
    %802 = arith.addf %801, %800 : vector<16x128xf32>
    %cst_627 = arith.constant 5.000000e-01 : f32
    %803 = vector.broadcast %cst_627 : f32 to vector<16x128xf32>
    %804 = arith.mulf %803, %802 : vector<16x128xf32>
    %805 = arith.mulf %792, %804 : vector<16x128xf32>
    %806 = arith.truncf %805 : vector<16x128xf32> to vector<16x128xbf16>
    %c1_628 = arith.constant 1 : index
    %c0_629 = arith.constant 0 : index
    %c0_630 = arith.constant 0 : index
    %c0_631 = arith.constant 0 : index
    %807 = vector.load %arg13[%c1_628, %c0_629, %c0_630, %c0_631] : memref<2x2x128x32xbf16, #tpu.memory_space<vmem>>, vector<1x1x128x32xbf16>
    %808 = vector.shape_cast %807 : vector<1x1x128x32xbf16> to vector<128x32xbf16>
    %cst_632 = arith.constant dense<0.000000e+00> : vector<16x32xf32>
    %809 = tpu.matmul %806, %808, %cst_632 {dimension_numbers = #tpu.dot_dimension_numbers<[1], [0], [0], [1], [0, 0, 1, 1], [], []>} : vector<16x128xbf16>, vector<128x32xbf16>, vector<16x32xf32> -> vector<16x32xf32>
    %c1_633 = arith.constant 1 : index
    %c0_634 = arith.constant 0 : index
    %c0_635 = arith.constant 0 : index
    %c0_636 = arith.constant 0 : index
    %810 = vector.load %arg14[%c1_633, %c0_634, %c0_635, %c0_636] : memref<2x2x1x32xf32, #tpu.memory_space<vmem>>, vector<1x1x1x32xf32>
    %811 = vector.shape_cast %810 : vector<1x1x1x32xf32> to vector<1x32xf32>
    %812 = vector.broadcast %811 : vector<1x32xf32> to vector<16x32xf32>
    %813 = arith.addf %809, %812 : vector<16x32xf32>
    %c10 = arith.constant 10 : index
    %814 = memref.load %arg0[%c10] : memref<16xf32, #tpu.memory_space<smem>>
    %c11 = arith.constant 11 : index
    %815 = memref.load %arg0[%c11] : memref<16xf32, #tpu.memory_space<smem>>
    %816 = vector.broadcast %814 : f32 to vector<16x32xf32>
    %817 = arith.mulf %816, %784 : vector<16x32xf32>
    %818 = vector.broadcast %815 : f32 to vector<16x32xf32>
    %819 = arith.mulf %818, %813 : vector<16x32xf32>
    %820 = arith.addf %817, %819 : vector<16x32xf32>
    %cst_637 = arith.constant dense<0.000000e+00> : vector<16xf32>
    %821 = vector.multi_reduction <add>, %820, %cst_637 [1] : vector<16x32xf32> to vector<16xf32>
    %822 = vector.shape_cast %821 : vector<16xf32> to vector<16x1xf32>
    %cst_638 = arith.constant 3.200000e+01 : f32
    %823 = vector.broadcast %cst_638 : f32 to vector<16x1xf32>
    %824 = arith.divf %822, %823 : vector<16x1xf32>
    %825 = arith.mulf %820, %820 : vector<16x32xf32>
    %cst_639 = arith.constant dense<0.000000e+00> : vector<16xf32>
    %826 = vector.multi_reduction <add>, %825, %cst_639 [1] : vector<16x32xf32> to vector<16xf32>
    %827 = vector.shape_cast %826 : vector<16xf32> to vector<16x1xf32>
    %cst_640 = arith.constant 3.200000e+01 : f32
    %828 = vector.broadcast %cst_640 : f32 to vector<16x1xf32>
    %829 = arith.divf %827, %828 : vector<16x1xf32>
    %830 = arith.mulf %824, %824 : vector<16x1xf32>
    %831 = arith.subf %829, %830 : vector<16x1xf32>
    %832 = vector.broadcast %824 : vector<16x1xf32> to vector<16x32xf32>
    %833 = arith.subf %820, %832 : vector<16x32xf32>
    %cst_641 = arith.constant 9.99999996E-13 : f32
    %834 = vector.broadcast %cst_641 : f32 to vector<16x1xf32>
    %835 = arith.addf %831, %834 : vector<16x1xf32>
    %836 = math.rsqrt %835 : vector<16x1xf32>
    %837 = vector.broadcast %836 : vector<16x1xf32> to vector<16x32xf32>
    %838 = arith.mulf %833, %837 : vector<16x32xf32>
    %839 = vector.broadcast %562 : vector<1x32xf32> to vector<16x32xf32>
    %840 = arith.mulf %838, %839 : vector<16x32xf32>
    %841 = vector.broadcast %564 : vector<1x32xf32> to vector<16x32xf32>
    %842 = arith.addf %840, %841 : vector<16x32xf32>
    %843 = arith.truncf %842 : vector<16x32xf32> to vector<16x32xbf16>
    %cst_642 = arith.constant 0.000000e+00 : f32
    %844 = vector.broadcast %cst_642 : f32 to vector<16x32xf32>
    %c1_643 = arith.constant 1 : index
    %c1_644 = arith.constant 1 : index
    %c0_645 = arith.constant 0 : index
    %c0_646 = arith.constant 0 : index
    %c0_647 = arith.constant 0 : index
    %845 = vector.load %arg3[%c1_643, %c1_644, %c0_645, %c0_646, %c0_647] : memref<2x2x4x32x8xbf16, #tpu.memory_space<vmem>>, vector<1x1x1x32x8xbf16>
    %846 = vector.shape_cast %845 : vector<1x1x1x32x8xbf16> to vector<32x8xbf16>
    %cst_648 = arith.constant dense<0.000000e+00> : vector<16x8xf32>
    %847 = tpu.matmul %843, %846, %cst_648 {dimension_numbers = #tpu.dot_dimension_numbers<[1], [0], [0], [1], [0, 0, 1, 1], [], []>} : vector<16x32xbf16>, vector<32x8xbf16>, vector<16x8xf32> -> vector<16x8xf32>
    %c1_649 = arith.constant 1 : index
    %c1_650 = arith.constant 1 : index
    %c0_651 = arith.constant 0 : index
    %c0_652 = arith.constant 0 : index
    %c0_653 = arith.constant 0 : index
    %848 = vector.load %arg4[%c1_649, %c1_650, %c0_651, %c0_652, %c0_653] : memref<2x2x4x1x8xf32, #tpu.memory_space<vmem>>, vector<1x1x1x1x8xf32>
    %849 = vector.shape_cast %848 : vector<1x1x1x1x8xf32> to vector<1x8xf32>
    %850 = vector.broadcast %849 : vector<1x8xf32> to vector<16x8xf32>
    %851 = arith.addf %847, %850 : vector<16x8xf32>
    %852 = vector.shape_cast %851 : vector<16x8xf32> to vector<2x8x8xf32>
    %c1_654 = arith.constant 1 : index
    %c1_655 = arith.constant 1 : index
    %c0_656 = arith.constant 0 : index
    %c0_657 = arith.constant 0 : index
    %c0_658 = arith.constant 0 : index
    %853 = vector.load %arg5[%c1_654, %c1_655, %c0_656, %c0_657, %c0_658] : memref<2x2x4x32x8xbf16, #tpu.memory_space<vmem>>, vector<1x1x1x32x8xbf16>
    %854 = vector.shape_cast %853 : vector<1x1x1x32x8xbf16> to vector<32x8xbf16>
    %cst_659 = arith.constant dense<0.000000e+00> : vector<16x8xf32>
    %855 = tpu.matmul %843, %854, %cst_659 {dimension_numbers = #tpu.dot_dimension_numbers<[1], [0], [0], [1], [0, 0, 1, 1], [], []>} : vector<16x32xbf16>, vector<32x8xbf16>, vector<16x8xf32> -> vector<16x8xf32>
    %c1_660 = arith.constant 1 : index
    %c1_661 = arith.constant 1 : index
    %c0_662 = arith.constant 0 : index
    %c0_663 = arith.constant 0 : index
    %c0_664 = arith.constant 0 : index
    %856 = vector.load %arg6[%c1_660, %c1_661, %c0_662, %c0_663, %c0_664] : memref<2x2x4x1x8xf32, #tpu.memory_space<vmem>>, vector<1x1x1x1x8xf32>
    %857 = vector.shape_cast %856 : vector<1x1x1x1x8xf32> to vector<1x8xf32>
    %858 = vector.broadcast %857 : vector<1x8xf32> to vector<16x8xf32>
    %859 = arith.addf %855, %858 : vector<16x8xf32>
    %860 = vector.shape_cast %859 : vector<16x8xf32> to vector<2x8x8xf32>
    %c1_665 = arith.constant 1 : index
    %c1_666 = arith.constant 1 : index
    %c0_667 = arith.constant 0 : index
    %c0_668 = arith.constant 0 : index
    %c0_669 = arith.constant 0 : index
    %861 = vector.load %arg7[%c1_665, %c1_666, %c0_667, %c0_668, %c0_669] : memref<2x2x4x32x8xbf16, #tpu.memory_space<vmem>>, vector<1x1x1x32x8xbf16>
    %862 = vector.shape_cast %861 : vector<1x1x1x32x8xbf16> to vector<32x8xbf16>
    %cst_670 = arith.constant dense<0.000000e+00> : vector<16x8xf32>
    %863 = tpu.matmul %843, %862, %cst_670 {dimension_numbers = #tpu.dot_dimension_numbers<[1], [0], [0], [1], [0, 0, 1, 1], [], []>} : vector<16x32xbf16>, vector<32x8xbf16>, vector<16x8xf32> -> vector<16x8xf32>
    %c1_671 = arith.constant 1 : index
    %c1_672 = arith.constant 1 : index
    %c0_673 = arith.constant 0 : index
    %c0_674 = arith.constant 0 : index
    %c0_675 = arith.constant 0 : index
    %864 = vector.load %arg8[%c1_671, %c1_672, %c0_673, %c0_674, %c0_675] : memref<2x2x4x1x8xf32, #tpu.memory_space<vmem>>, vector<1x1x1x1x8xf32>
    %865 = vector.shape_cast %864 : vector<1x1x1x1x8xf32> to vector<1x8xf32>
    %866 = vector.broadcast %865 : vector<1x8xf32> to vector<16x8xf32>
    %867 = arith.addf %863, %866 : vector<16x8xf32>
    %868 = vector.shape_cast %867 : vector<16x8xf32> to vector<2x8x8xf32>
    %869 = arith.truncf %852 : vector<2x8x8xf32> to vector<2x8x8xbf16>
    %870 = arith.truncf %860 : vector<2x8x8xf32> to vector<2x8x8xbf16>
    "tpu.trace_start"() <{level = 10 : i32, message = "bqd,bkd->bqk"}> : () -> ()
    %cst_676 = arith.constant dense<0.000000e+00> : vector<2x8x8xf32>
    %871 = tpu.matmul %869, %870, %cst_676 {dimension_numbers = #tpu.dot_dimension_numbers<[2], [2], [1], [1], [0, 0, 0, 1, 1, 1], [0], [0]>} : vector<2x8x8xbf16>, vector<2x8x8xbf16>, vector<2x8x8xf32> -> vector<2x8x8xf32>
    "tpu.trace_stop"() : () -> ()
    %cst_677 = arith.constant dense<0xFF800000> : vector<2x8xf32>
    %872 = vector.multi_reduction <maximumf>, %871, %cst_677 [2] : vector<2x8x8xf32> to vector<2x8xf32>
    %873 = vector.shape_cast %872 : vector<2x8xf32> to vector<2x8x1xf32>
    %874 = vector.broadcast %873 : vector<2x8x1xf32> to vector<2x8x8xf32>
    %875 = arith.subf %871, %874 : vector<2x8x8xf32>
    %876 = math.exp %875 : vector<2x8x8xf32>
    %cst_678 = arith.constant dense<0.000000e+00> : vector<2x8xf32>
    %877 = vector.multi_reduction <add>, %876, %cst_678 [2] : vector<2x8x8xf32> to vector<2x8xf32>
    %878 = vector.shape_cast %877 : vector<2x8xf32> to vector<2x8x1xf32>
    %879 = arith.truncf %876 : vector<2x8x8xf32> to vector<2x8x8xbf16>
    %880 = arith.truncf %868 : vector<2x8x8xf32> to vector<2x8x8xbf16>
    "tpu.trace_start"() <{level = 10 : i32, message = "bqk,bkd->bqd"}> : () -> ()
    %cst_679 = arith.constant dense<0.000000e+00> : vector<2x8x8xf32>
    %881 = tpu.matmul %879, %880, %cst_679 {dimension_numbers = #tpu.dot_dimension_numbers<[2], [1], [1], [2], [0, 0, 0, 1, 1, 2], [0], [0]>} : vector<2x8x8xbf16>, vector<2x8x8xbf16>, vector<2x8x8xf32> -> vector<2x8x8xf32>
    "tpu.trace_stop"() : () -> ()
    %882 = tpu.reciprocal %878 {approx = true} : vector<2x8x1xf32> -> vector<2x8x1xf32>
    %883 = vector.broadcast %882 : vector<2x8x1xf32> to vector<2x8x8xf32>
    %884 = arith.mulf %881, %883 : vector<2x8x8xf32>
    %885 = vector.shape_cast %884 : vector<2x8x8xf32> to vector<16x8xf32>
    %886 = arith.truncf %885 : vector<16x8xf32> to vector<16x8xbf16>
    %c1_680 = arith.constant 1 : index
    %c1_681 = arith.constant 1 : index
    %c0_682 = arith.constant 0 : index
    %c0_683 = arith.constant 0 : index
    %c0_684 = arith.constant 0 : index
    %887 = vector.load %arg9[%c1_680, %c1_681, %c0_682, %c0_683, %c0_684] : memref<2x2x4x8x32xbf16, #tpu.memory_space<vmem>>, vector<1x1x1x8x32xbf16>
    %888 = vector.shape_cast %887 : vector<1x1x1x8x32xbf16> to vector<8x32xbf16>
    %cst_685 = arith.constant dense<0.000000e+00> : vector<16x32xf32>
    %889 = tpu.matmul %886, %888, %cst_685 {dimension_numbers = #tpu.dot_dimension_numbers<[1], [0], [0], [1], [0, 0, 1, 1], [], []>} : vector<16x8xbf16>, vector<8x32xbf16>, vector<16x32xf32> -> vector<16x32xf32>
    %890 = arith.addf %844, %889 : vector<16x32xf32>
    %c1_686 = arith.constant 1 : index
    %c1_687 = arith.constant 1 : index
    %c1_688 = arith.constant 1 : index
    %c0_689 = arith.constant 0 : index
    %c0_690 = arith.constant 0 : index
    %891 = vector.load %arg3[%c1_686, %c1_687, %c1_688, %c0_689, %c0_690] : memref<2x2x4x32x8xbf16, #tpu.memory_space<vmem>>, vector<1x1x1x32x8xbf16>
    %892 = vector.shape_cast %891 : vector<1x1x1x32x8xbf16> to vector<32x8xbf16>
    %cst_691 = arith.constant dense<0.000000e+00> : vector<16x8xf32>
    %893 = tpu.matmul %843, %892, %cst_691 {dimension_numbers = #tpu.dot_dimension_numbers<[1], [0], [0], [1], [0, 0, 1, 1], [], []>} : vector<16x32xbf16>, vector<32x8xbf16>, vector<16x8xf32> -> vector<16x8xf32>
    %c1_692 = arith.constant 1 : index
    %c1_693 = arith.constant 1 : index
    %c1_694 = arith.constant 1 : index
    %c0_695 = arith.constant 0 : index
    %c0_696 = arith.constant 0 : index
    %894 = vector.load %arg4[%c1_692, %c1_693, %c1_694, %c0_695, %c0_696] : memref<2x2x4x1x8xf32, #tpu.memory_space<vmem>>, vector<1x1x1x1x8xf32>
    %895 = vector.shape_cast %894 : vector<1x1x1x1x8xf32> to vector<1x8xf32>
    %896 = vector.broadcast %895 : vector<1x8xf32> to vector<16x8xf32>
    %897 = arith.addf %893, %896 : vector<16x8xf32>
    %898 = vector.shape_cast %897 : vector<16x8xf32> to vector<2x8x8xf32>
    %c1_697 = arith.constant 1 : index
    %c1_698 = arith.constant 1 : index
    %c1_699 = arith.constant 1 : index
    %c0_700 = arith.constant 0 : index
    %c0_701 = arith.constant 0 : index
    %899 = vector.load %arg5[%c1_697, %c1_698, %c1_699, %c0_700, %c0_701] : memref<2x2x4x32x8xbf16, #tpu.memory_space<vmem>>, vector<1x1x1x32x8xbf16>
    %900 = vector.shape_cast %899 : vector<1x1x1x32x8xbf16> to vector<32x8xbf16>
    %cst_702 = arith.constant dense<0.000000e+00> : vector<16x8xf32>
    %901 = tpu.matmul %843, %900, %cst_702 {dimension_numbers = #tpu.dot_dimension_numbers<[1], [0], [0], [1], [0, 0, 1, 1], [], []>} : vector<16x32xbf16>, vector<32x8xbf16>, vector<16x8xf32> -> vector<16x8xf32>
    %c1_703 = arith.constant 1 : index
    %c1_704 = arith.constant 1 : index
    %c1_705 = arith.constant 1 : index
    %c0_706 = arith.constant 0 : index
    %c0_707 = arith.constant 0 : index
    %902 = vector.load %arg6[%c1_703, %c1_704, %c1_705, %c0_706, %c0_707] : memref<2x2x4x1x8xf32, #tpu.memory_space<vmem>>, vector<1x1x1x1x8xf32>
    %903 = vector.shape_cast %902 : vector<1x1x1x1x8xf32> to vector<1x8xf32>
    %904 = vector.broadcast %903 : vector<1x8xf32> to vector<16x8xf32>
    %905 = arith.addf %901, %904 : vector<16x8xf32>
    %906 = vector.shape_cast %905 : vector<16x8xf32> to vector<2x8x8xf32>
    %c1_708 = arith.constant 1 : index
    %c1_709 = arith.constant 1 : index
    %c1_710 = arith.constant 1 : index
    %c0_711 = arith.constant 0 : index
    %c0_712 = arith.constant 0 : index
    %907 = vector.load %arg7[%c1_708, %c1_709, %c1_710, %c0_711, %c0_712] : memref<2x2x4x32x8xbf16, #tpu.memory_space<vmem>>, vector<1x1x1x32x8xbf16>
    %908 = vector.shape_cast %907 : vector<1x1x1x32x8xbf16> to vector<32x8xbf16>
    %cst_713 = arith.constant dense<0.000000e+00> : vector<16x8xf32>
    %909 = tpu.matmul %843, %908, %cst_713 {dimension_numbers = #tpu.dot_dimension_numbers<[1], [0], [0], [1], [0, 0, 1, 1], [], []>} : vector<16x32xbf16>, vector<32x8xbf16>, vector<16x8xf32> -> vector<16x8xf32>
    %c1_714 = arith.constant 1 : index
    %c1_715 = arith.constant 1 : index
    %c1_716 = arith.constant 1 : index
    %c0_717 = arith.constant 0 : index
    %c0_718 = arith.constant 0 : index
    %910 = vector.load %arg8[%c1_714, %c1_715, %c1_716, %c0_717, %c0_718] : memref<2x2x4x1x8xf32, #tpu.memory_space<vmem>>, vector<1x1x1x1x8xf32>
    %911 = vector.shape_cast %910 : vector<1x1x1x1x8xf32> to vector<1x8xf32>
    %912 = vector.broadcast %911 : vector<1x8xf32> to vector<16x8xf32>
    %913 = arith.addf %909, %912 : vector<16x8xf32>
    %914 = vector.shape_cast %913 : vector<16x8xf32> to vector<2x8x8xf32>
    %915 = arith.truncf %898 : vector<2x8x8xf32> to vector<2x8x8xbf16>
    %916 = arith.truncf %906 : vector<2x8x8xf32> to vector<2x8x8xbf16>
    "tpu.trace_start"() <{level = 10 : i32, message = "bqd,bkd->bqk"}> : () -> ()
    %cst_719 = arith.constant dense<0.000000e+00> : vector<2x8x8xf32>
    %917 = tpu.matmul %915, %916, %cst_719 {dimension_numbers = #tpu.dot_dimension_numbers<[2], [2], [1], [1], [0, 0, 0, 1, 1, 1], [0], [0]>} : vector<2x8x8xbf16>, vector<2x8x8xbf16>, vector<2x8x8xf32> -> vector<2x8x8xf32>
    "tpu.trace_stop"() : () -> ()
    %cst_720 = arith.constant dense<0xFF800000> : vector<2x8xf32>
    %918 = vector.multi_reduction <maximumf>, %917, %cst_720 [2] : vector<2x8x8xf32> to vector<2x8xf32>
    %919 = vector.shape_cast %918 : vector<2x8xf32> to vector<2x8x1xf32>
    %920 = vector.broadcast %919 : vector<2x8x1xf32> to vector<2x8x8xf32>
    %921 = arith.subf %917, %920 : vector<2x8x8xf32>
    %922 = math.exp %921 : vector<2x8x8xf32>
    %cst_721 = arith.constant dense<0.000000e+00> : vector<2x8xf32>
    %923 = vector.multi_reduction <add>, %922, %cst_721 [2] : vector<2x8x8xf32> to vector<2x8xf32>
    %924 = vector.shape_cast %923 : vector<2x8xf32> to vector<2x8x1xf32>
    %925 = arith.truncf %922 : vector<2x8x8xf32> to vector<2x8x8xbf16>
    %926 = arith.truncf %914 : vector<2x8x8xf32> to vector<2x8x8xbf16>
    "tpu.trace_start"() <{level = 10 : i32, message = "bqk,bkd->bqd"}> : () -> ()
    %cst_722 = arith.constant dense<0.000000e+00> : vector<2x8x8xf32>
    %927 = tpu.matmul %925, %926, %cst_722 {dimension_numbers = #tpu.dot_dimension_numbers<[2], [1], [1], [2], [0, 0, 0, 1, 1, 2], [0], [0]>} : vector<2x8x8xbf16>, vector<2x8x8xbf16>, vector<2x8x8xf32> -> vector<2x8x8xf32>
    "tpu.trace_stop"() : () -> ()
    %928 = tpu.reciprocal %924 {approx = true} : vector<2x8x1xf32> -> vector<2x8x1xf32>
    %929 = vector.broadcast %928 : vector<2x8x1xf32> to vector<2x8x8xf32>
    %930 = arith.mulf %927, %929 : vector<2x8x8xf32>
    %931 = vector.shape_cast %930 : vector<2x8x8xf32> to vector<16x8xf32>
    %932 = arith.truncf %931 : vector<16x8xf32> to vector<16x8xbf16>
    %c1_723 = arith.constant 1 : index
    %c1_724 = arith.constant 1 : index
    %c1_725 = arith.constant 1 : index
    %c0_726 = arith.constant 0 : index
    %c0_727 = arith.constant 0 : index
    %933 = vector.load %arg9[%c1_723, %c1_724, %c1_725, %c0_726, %c0_727] : memref<2x2x4x8x32xbf16, #tpu.memory_space<vmem>>, vector<1x1x1x8x32xbf16>
    %934 = vector.shape_cast %933 : vector<1x1x1x8x32xbf16> to vector<8x32xbf16>
    %cst_728 = arith.constant dense<0.000000e+00> : vector<16x32xf32>
    %935 = tpu.matmul %932, %934, %cst_728 {dimension_numbers = #tpu.dot_dimension_numbers<[1], [0], [0], [1], [0, 0, 1, 1], [], []>} : vector<16x8xbf16>, vector<8x32xbf16>, vector<16x32xf32> -> vector<16x32xf32>
    %936 = arith.addf %890, %935 : vector<16x32xf32>
    %c1_729 = arith.constant 1 : index
    %c1_730 = arith.constant 1 : index
    %c2_731 = arith.constant 2 : index
    %c0_732 = arith.constant 0 : index
    %c0_733 = arith.constant 0 : index
    %937 = vector.load %arg3[%c1_729, %c1_730, %c2_731, %c0_732, %c0_733] : memref<2x2x4x32x8xbf16, #tpu.memory_space<vmem>>, vector<1x1x1x32x8xbf16>
    %938 = vector.shape_cast %937 : vector<1x1x1x32x8xbf16> to vector<32x8xbf16>
    %cst_734 = arith.constant dense<0.000000e+00> : vector<16x8xf32>
    %939 = tpu.matmul %843, %938, %cst_734 {dimension_numbers = #tpu.dot_dimension_numbers<[1], [0], [0], [1], [0, 0, 1, 1], [], []>} : vector<16x32xbf16>, vector<32x8xbf16>, vector<16x8xf32> -> vector<16x8xf32>
    %c1_735 = arith.constant 1 : index
    %c1_736 = arith.constant 1 : index
    %c2_737 = arith.constant 2 : index
    %c0_738 = arith.constant 0 : index
    %c0_739 = arith.constant 0 : index
    %940 = vector.load %arg4[%c1_735, %c1_736, %c2_737, %c0_738, %c0_739] : memref<2x2x4x1x8xf32, #tpu.memory_space<vmem>>, vector<1x1x1x1x8xf32>
    %941 = vector.shape_cast %940 : vector<1x1x1x1x8xf32> to vector<1x8xf32>
    %942 = vector.broadcast %941 : vector<1x8xf32> to vector<16x8xf32>
    %943 = arith.addf %939, %942 : vector<16x8xf32>
    %944 = vector.shape_cast %943 : vector<16x8xf32> to vector<2x8x8xf32>
    %c1_740 = arith.constant 1 : index
    %c1_741 = arith.constant 1 : index
    %c2_742 = arith.constant 2 : index
    %c0_743 = arith.constant 0 : index
    %c0_744 = arith.constant 0 : index
    %945 = vector.load %arg5[%c1_740, %c1_741, %c2_742, %c0_743, %c0_744] : memref<2x2x4x32x8xbf16, #tpu.memory_space<vmem>>, vector<1x1x1x32x8xbf16>
    %946 = vector.shape_cast %945 : vector<1x1x1x32x8xbf16> to vector<32x8xbf16>
    %cst_745 = arith.constant dense<0.000000e+00> : vector<16x8xf32>
    %947 = tpu.matmul %843, %946, %cst_745 {dimension_numbers = #tpu.dot_dimension_numbers<[1], [0], [0], [1], [0, 0, 1, 1], [], []>} : vector<16x32xbf16>, vector<32x8xbf16>, vector<16x8xf32> -> vector<16x8xf32>
    %c1_746 = arith.constant 1 : index
    %c1_747 = arith.constant 1 : index
    %c2_748 = arith.constant 2 : index
    %c0_749 = arith.constant 0 : index
    %c0_750 = arith.constant 0 : index
    %948 = vector.load %arg6[%c1_746, %c1_747, %c2_748, %c0_749, %c0_750] : memref<2x2x4x1x8xf32, #tpu.memory_space<vmem>>, vector<1x1x1x1x8xf32>
    %949 = vector.shape_cast %948 : vector<1x1x1x1x8xf32> to vector<1x8xf32>
    %950 = vector.broadcast %949 : vector<1x8xf32> to vector<16x8xf32>
    %951 = arith.addf %947, %950 : vector<16x8xf32>
    %952 = vector.shape_cast %951 : vector<16x8xf32> to vector<2x8x8xf32>
    %c1_751 = arith.constant 1 : index
    %c1_752 = arith.constant 1 : index
    %c2_753 = arith.constant 2 : index
    %c0_754 = arith.constant 0 : index
    %c0_755 = arith.constant 0 : index
    %953 = vector.load %arg7[%c1_751, %c1_752, %c2_753, %c0_754, %c0_755] : memref<2x2x4x32x8xbf16, #tpu.memory_space<vmem>>, vector<1x1x1x32x8xbf16>
    %954 = vector.shape_cast %953 : vector<1x1x1x32x8xbf16> to vector<32x8xbf16>
    %cst_756 = arith.constant dense<0.000000e+00> : vector<16x8xf32>
    %955 = tpu.matmul %843, %954, %cst_756 {dimension_numbers = #tpu.dot_dimension_numbers<[1], [0], [0], [1], [0, 0, 1, 1], [], []>} : vector<16x32xbf16>, vector<32x8xbf16>, vector<16x8xf32> -> vector<16x8xf32>
    %c1_757 = arith.constant 1 : index
    %c1_758 = arith.constant 1 : index
    %c2_759 = arith.constant 2 : index
    %c0_760 = arith.constant 0 : index
    %c0_761 = arith.constant 0 : index
    %956 = vector.load %arg8[%c1_757, %c1_758, %c2_759, %c0_760, %c0_761] : memref<2x2x4x1x8xf32, #tpu.memory_space<vmem>>, vector<1x1x1x1x8xf32>
    %957 = vector.shape_cast %956 : vector<1x1x1x1x8xf32> to vector<1x8xf32>
    %958 = vector.broadcast %957 : vector<1x8xf32> to vector<16x8xf32>
    %959 = arith.addf %955, %958 : vector<16x8xf32>
    %960 = vector.shape_cast %959 : vector<16x8xf32> to vector<2x8x8xf32>
    %961 = arith.truncf %944 : vector<2x8x8xf32> to vector<2x8x8xbf16>
    %962 = arith.truncf %952 : vector<2x8x8xf32> to vector<2x8x8xbf16>
    "tpu.trace_start"() <{level = 10 : i32, message = "bqd,bkd->bqk"}> : () -> ()
    %cst_762 = arith.constant dense<0.000000e+00> : vector<2x8x8xf32>
    %963 = tpu.matmul %961, %962, %cst_762 {dimension_numbers = #tpu.dot_dimension_numbers<[2], [2], [1], [1], [0, 0, 0, 1, 1, 1], [0], [0]>} : vector<2x8x8xbf16>, vector<2x8x8xbf16>, vector<2x8x8xf32> -> vector<2x8x8xf32>
    "tpu.trace_stop"() : () -> ()
    %cst_763 = arith.constant dense<0xFF800000> : vector<2x8xf32>
    %964 = vector.multi_reduction <maximumf>, %963, %cst_763 [2] : vector<2x8x8xf32> to vector<2x8xf32>
    %965 = vector.shape_cast %964 : vector<2x8xf32> to vector<2x8x1xf32>
    %966 = vector.broadcast %965 : vector<2x8x1xf32> to vector<2x8x8xf32>
    %967 = arith.subf %963, %966 : vector<2x8x8xf32>
    %968 = math.exp %967 : vector<2x8x8xf32>
    %cst_764 = arith.constant dense<0.000000e+00> : vector<2x8xf32>
    %969 = vector.multi_reduction <add>, %968, %cst_764 [2] : vector<2x8x8xf32> to vector<2x8xf32>
    %970 = vector.shape_cast %969 : vector<2x8xf32> to vector<2x8x1xf32>
    %971 = arith.truncf %968 : vector<2x8x8xf32> to vector<2x8x8xbf16>
    %972 = arith.truncf %960 : vector<2x8x8xf32> to vector<2x8x8xbf16>
    "tpu.trace_start"() <{level = 10 : i32, message = "bqk,bkd->bqd"}> : () -> ()
    %cst_765 = arith.constant dense<0.000000e+00> : vector<2x8x8xf32>
    %973 = tpu.matmul %971, %972, %cst_765 {dimension_numbers = #tpu.dot_dimension_numbers<[2], [1], [1], [2], [0, 0, 0, 1, 1, 2], [0], [0]>} : vector<2x8x8xbf16>, vector<2x8x8xbf16>, vector<2x8x8xf32> -> vector<2x8x8xf32>
    "tpu.trace_stop"() : () -> ()
    %974 = tpu.reciprocal %970 {approx = true} : vector<2x8x1xf32> -> vector<2x8x1xf32>
    %975 = vector.broadcast %974 : vector<2x8x1xf32> to vector<2x8x8xf32>
    %976 = arith.mulf %973, %975 : vector<2x8x8xf32>
    %977 = vector.shape_cast %976 : vector<2x8x8xf32> to vector<16x8xf32>
    %978 = arith.truncf %977 : vector<16x8xf32> to vector<16x8xbf16>
    %c1_766 = arith.constant 1 : index
    %c1_767 = arith.constant 1 : index
    %c2_768 = arith.constant 2 : index
    %c0_769 = arith.constant 0 : index
    %c0_770 = arith.constant 0 : index
    %979 = vector.load %arg9[%c1_766, %c1_767, %c2_768, %c0_769, %c0_770] : memref<2x2x4x8x32xbf16, #tpu.memory_space<vmem>>, vector<1x1x1x8x32xbf16>
    %980 = vector.shape_cast %979 : vector<1x1x1x8x32xbf16> to vector<8x32xbf16>
    %cst_771 = arith.constant dense<0.000000e+00> : vector<16x32xf32>
    %981 = tpu.matmul %978, %980, %cst_771 {dimension_numbers = #tpu.dot_dimension_numbers<[1], [0], [0], [1], [0, 0, 1, 1], [], []>} : vector<16x8xbf16>, vector<8x32xbf16>, vector<16x32xf32> -> vector<16x32xf32>
    %982 = arith.addf %936, %981 : vector<16x32xf32>
    %c1_772 = arith.constant 1 : index
    %c1_773 = arith.constant 1 : index
    %c3_774 = arith.constant 3 : index
    %c0_775 = arith.constant 0 : index
    %c0_776 = arith.constant 0 : index
    %983 = vector.load %arg3[%c1_772, %c1_773, %c3_774, %c0_775, %c0_776] : memref<2x2x4x32x8xbf16, #tpu.memory_space<vmem>>, vector<1x1x1x32x8xbf16>
    %984 = vector.shape_cast %983 : vector<1x1x1x32x8xbf16> to vector<32x8xbf16>
    %cst_777 = arith.constant dense<0.000000e+00> : vector<16x8xf32>
    %985 = tpu.matmul %843, %984, %cst_777 {dimension_numbers = #tpu.dot_dimension_numbers<[1], [0], [0], [1], [0, 0, 1, 1], [], []>} : vector<16x32xbf16>, vector<32x8xbf16>, vector<16x8xf32> -> vector<16x8xf32>
    %c1_778 = arith.constant 1 : index
    %c1_779 = arith.constant 1 : index
    %c3_780 = arith.constant 3 : index
    %c0_781 = arith.constant 0 : index
    %c0_782 = arith.constant 0 : index
    %986 = vector.load %arg4[%c1_778, %c1_779, %c3_780, %c0_781, %c0_782] : memref<2x2x4x1x8xf32, #tpu.memory_space<vmem>>, vector<1x1x1x1x8xf32>
    %987 = vector.shape_cast %986 : vector<1x1x1x1x8xf32> to vector<1x8xf32>
    %988 = vector.broadcast %987 : vector<1x8xf32> to vector<16x8xf32>
    %989 = arith.addf %985, %988 : vector<16x8xf32>
    %990 = vector.shape_cast %989 : vector<16x8xf32> to vector<2x8x8xf32>
    %c1_783 = arith.constant 1 : index
    %c1_784 = arith.constant 1 : index
    %c3_785 = arith.constant 3 : index
    %c0_786 = arith.constant 0 : index
    %c0_787 = arith.constant 0 : index
    %991 = vector.load %arg5[%c1_783, %c1_784, %c3_785, %c0_786, %c0_787] : memref<2x2x4x32x8xbf16, #tpu.memory_space<vmem>>, vector<1x1x1x32x8xbf16>
    %992 = vector.shape_cast %991 : vector<1x1x1x32x8xbf16> to vector<32x8xbf16>
    %cst_788 = arith.constant dense<0.000000e+00> : vector<16x8xf32>
    %993 = tpu.matmul %843, %992, %cst_788 {dimension_numbers = #tpu.dot_dimension_numbers<[1], [0], [0], [1], [0, 0, 1, 1], [], []>} : vector<16x32xbf16>, vector<32x8xbf16>, vector<16x8xf32> -> vector<16x8xf32>
    %c1_789 = arith.constant 1 : index
    %c1_790 = arith.constant 1 : index
    %c3_791 = arith.constant 3 : index
    %c0_792 = arith.constant 0 : index
    %c0_793 = arith.constant 0 : index
    %994 = vector.load %arg6[%c1_789, %c1_790, %c3_791, %c0_792, %c0_793] : memref<2x2x4x1x8xf32, #tpu.memory_space<vmem>>, vector<1x1x1x1x8xf32>
    %995 = vector.shape_cast %994 : vector<1x1x1x1x8xf32> to vector<1x8xf32>
    %996 = vector.broadcast %995 : vector<1x8xf32> to vector<16x8xf32>
    %997 = arith.addf %993, %996 : vector<16x8xf32>
    %998 = vector.shape_cast %997 : vector<16x8xf32> to vector<2x8x8xf32>
    %c1_794 = arith.constant 1 : index
    %c1_795 = arith.constant 1 : index
    %c3_796 = arith.constant 3 : index
    %c0_797 = arith.constant 0 : index
    %c0_798 = arith.constant 0 : index
    %999 = vector.load %arg7[%c1_794, %c1_795, %c3_796, %c0_797, %c0_798] : memref<2x2x4x32x8xbf16, #tpu.memory_space<vmem>>, vector<1x1x1x32x8xbf16>
    %1000 = vector.shape_cast %999 : vector<1x1x1x32x8xbf16> to vector<32x8xbf16>
    %cst_799 = arith.constant dense<0.000000e+00> : vector<16x8xf32>
    %1001 = tpu.matmul %843, %1000, %cst_799 {dimension_numbers = #tpu.dot_dimension_numbers<[1], [0], [0], [1], [0, 0, 1, 1], [], []>} : vector<16x32xbf16>, vector<32x8xbf16>, vector<16x8xf32> -> vector<16x8xf32>
    %c1_800 = arith.constant 1 : index
    %c1_801 = arith.constant 1 : index
    %c3_802 = arith.constant 3 : index
    %c0_803 = arith.constant 0 : index
    %c0_804 = arith.constant 0 : index
    %1002 = vector.load %arg8[%c1_800, %c1_801, %c3_802, %c0_803, %c0_804] : memref<2x2x4x1x8xf32, #tpu.memory_space<vmem>>, vector<1x1x1x1x8xf32>
    %1003 = vector.shape_cast %1002 : vector<1x1x1x1x8xf32> to vector<1x8xf32>
    %1004 = vector.broadcast %1003 : vector<1x8xf32> to vector<16x8xf32>
    %1005 = arith.addf %1001, %1004 : vector<16x8xf32>
    %1006 = vector.shape_cast %1005 : vector<16x8xf32> to vector<2x8x8xf32>
    %1007 = arith.truncf %990 : vector<2x8x8xf32> to vector<2x8x8xbf16>
    %1008 = arith.truncf %998 : vector<2x8x8xf32> to vector<2x8x8xbf16>
    "tpu.trace_start"() <{level = 10 : i32, message = "bqd,bkd->bqk"}> : () -> ()
    %cst_805 = arith.constant dense<0.000000e+00> : vector<2x8x8xf32>
    %1009 = tpu.matmul %1007, %1008, %cst_805 {dimension_numbers = #tpu.dot_dimension_numbers<[2], [2], [1], [1], [0, 0, 0, 1, 1, 1], [0], [0]>} : vector<2x8x8xbf16>, vector<2x8x8xbf16>, vector<2x8x8xf32> -> vector<2x8x8xf32>
    "tpu.trace_stop"() : () -> ()
    %cst_806 = arith.constant dense<0xFF800000> : vector<2x8xf32>
    %1010 = vector.multi_reduction <maximumf>, %1009, %cst_806 [2] : vector<2x8x8xf32> to vector<2x8xf32>
    %1011 = vector.shape_cast %1010 : vector<2x8xf32> to vector<2x8x1xf32>
    %1012 = vector.broadcast %1011 : vector<2x8x1xf32> to vector<2x8x8xf32>
    %1013 = arith.subf %1009, %1012 : vector<2x8x8xf32>
    %1014 = math.exp %1013 : vector<2x8x8xf32>
    %cst_807 = arith.constant dense<0.000000e+00> : vector<2x8xf32>
    %1015 = vector.multi_reduction <add>, %1014, %cst_807 [2] : vector<2x8x8xf32> to vector<2x8xf32>
    %1016 = vector.shape_cast %1015 : vector<2x8xf32> to vector<2x8x1xf32>
    %1017 = arith.truncf %1014 : vector<2x8x8xf32> to vector<2x8x8xbf16>
    %1018 = arith.truncf %1006 : vector<2x8x8xf32> to vector<2x8x8xbf16>
    "tpu.trace_start"() <{level = 10 : i32, message = "bqk,bkd->bqd"}> : () -> ()
    %cst_808 = arith.constant dense<0.000000e+00> : vector<2x8x8xf32>
    %1019 = tpu.matmul %1017, %1018, %cst_808 {dimension_numbers = #tpu.dot_dimension_numbers<[2], [1], [1], [2], [0, 0, 0, 1, 1, 2], [0], [0]>} : vector<2x8x8xbf16>, vector<2x8x8xbf16>, vector<2x8x8xf32> -> vector<2x8x8xf32>
    "tpu.trace_stop"() : () -> ()
    %1020 = tpu.reciprocal %1016 {approx = true} : vector<2x8x1xf32> -> vector<2x8x1xf32>
    %1021 = vector.broadcast %1020 : vector<2x8x1xf32> to vector<2x8x8xf32>
    %1022 = arith.mulf %1019, %1021 : vector<2x8x8xf32>
    %1023 = vector.shape_cast %1022 : vector<2x8x8xf32> to vector<16x8xf32>
    %1024 = arith.truncf %1023 : vector<16x8xf32> to vector<16x8xbf16>
    %c1_809 = arith.constant 1 : index
    %c1_810 = arith.constant 1 : index
    %c3_811 = arith.constant 3 : index
    %c0_812 = arith.constant 0 : index
    %c0_813 = arith.constant 0 : index
    %1025 = vector.load %arg9[%c1_809, %c1_810, %c3_811, %c0_812, %c0_813] : memref<2x2x4x8x32xbf16, #tpu.memory_space<vmem>>, vector<1x1x1x8x32xbf16>
    %1026 = vector.shape_cast %1025 : vector<1x1x1x8x32xbf16> to vector<8x32xbf16>
    %cst_814 = arith.constant dense<0.000000e+00> : vector<16x32xf32>
    %1027 = tpu.matmul %1024, %1026, %cst_814 {dimension_numbers = #tpu.dot_dimension_numbers<[1], [0], [0], [1], [0, 0, 1, 1], [], []>} : vector<16x8xbf16>, vector<8x32xbf16>, vector<16x32xf32> -> vector<16x32xf32>
    %1028 = arith.addf %982, %1027 : vector<16x32xf32>
    %c1_815 = arith.constant 1 : index
    %c1_816 = arith.constant 1 : index
    %c0_817 = arith.constant 0 : index
    %c0_818 = arith.constant 0 : index
    %1029 = vector.load %arg10[%c1_815, %c1_816, %c0_817, %c0_818] : memref<2x2x1x32xf32, #tpu.memory_space<vmem>>, vector<1x1x1x32xf32>
    %1030 = vector.shape_cast %1029 : vector<1x1x1x32xf32> to vector<1x32xf32>
    %1031 = vector.broadcast %1030 : vector<1x32xf32> to vector<16x32xf32>
    %1032 = arith.addf %1028, %1031 : vector<16x32xf32>
    %c12 = arith.constant 12 : index
    %1033 = memref.load %arg0[%c12] : memref<16xf32, #tpu.memory_space<smem>>
    %c13 = arith.constant 13 : index
    %1034 = memref.load %arg0[%c13] : memref<16xf32, #tpu.memory_space<smem>>
    %1035 = vector.broadcast %1033 : f32 to vector<16x32xf32>
    %1036 = arith.mulf %1035, %842 : vector<16x32xf32>
    %1037 = vector.broadcast %1034 : f32 to vector<16x32xf32>
    %1038 = arith.mulf %1037, %1032 : vector<16x32xf32>
    %1039 = arith.addf %1036, %1038 : vector<16x32xf32>
    %cst_819 = arith.constant dense<0.000000e+00> : vector<16xf32>
    %1040 = vector.multi_reduction <add>, %1039, %cst_819 [1] : vector<16x32xf32> to vector<16xf32>
    %1041 = vector.shape_cast %1040 : vector<16xf32> to vector<16x1xf32>
    %cst_820 = arith.constant 3.200000e+01 : f32
    %1042 = vector.broadcast %cst_820 : f32 to vector<16x1xf32>
    %1043 = arith.divf %1041, %1042 : vector<16x1xf32>
    %1044 = arith.mulf %1039, %1039 : vector<16x32xf32>
    %cst_821 = arith.constant dense<0.000000e+00> : vector<16xf32>
    %1045 = vector.multi_reduction <add>, %1044, %cst_821 [1] : vector<16x32xf32> to vector<16xf32>
    %1046 = vector.shape_cast %1045 : vector<16xf32> to vector<16x1xf32>
    %cst_822 = arith.constant 3.200000e+01 : f32
    %1047 = vector.broadcast %cst_822 : f32 to vector<16x1xf32>
    %1048 = arith.divf %1046, %1047 : vector<16x1xf32>
    %1049 = arith.mulf %1043, %1043 : vector<16x1xf32>
    %1050 = arith.subf %1048, %1049 : vector<16x1xf32>
    %1051 = vector.broadcast %1043 : vector<16x1xf32> to vector<16x32xf32>
    %1052 = arith.subf %1039, %1051 : vector<16x32xf32>
    %cst_823 = arith.constant 9.99999996E-13 : f32
    %1053 = vector.broadcast %cst_823 : f32 to vector<16x1xf32>
    %1054 = arith.addf %1050, %1053 : vector<16x1xf32>
    %1055 = math.rsqrt %1054 : vector<16x1xf32>
    %1056 = vector.broadcast %1055 : vector<16x1xf32> to vector<16x32xf32>
    %1057 = arith.mulf %1052, %1056 : vector<16x32xf32>
    %1058 = vector.broadcast %562 : vector<1x32xf32> to vector<16x32xf32>
    %1059 = arith.mulf %1057, %1058 : vector<16x32xf32>
    %1060 = vector.broadcast %564 : vector<1x32xf32> to vector<16x32xf32>
    %1061 = arith.addf %1059, %1060 : vector<16x32xf32>
    %1062 = arith.truncf %1061 : vector<16x32xf32> to vector<16x32xbf16>
    %c1_824 = arith.constant 1 : index
    %c1_825 = arith.constant 1 : index
    %c0_826 = arith.constant 0 : index
    %c0_827 = arith.constant 0 : index
    %1063 = vector.load %arg11[%c1_824, %c1_825, %c0_826, %c0_827] : memref<2x2x32x128xbf16, #tpu.memory_space<vmem>>, vector<1x1x32x128xbf16>
    %1064 = vector.shape_cast %1063 : vector<1x1x32x128xbf16> to vector<32x128xbf16>
    %cst_828 = arith.constant dense<0.000000e+00> : vector<16x128xf32>
    %1065 = tpu.matmul %1062, %1064, %cst_828 {dimension_numbers = #tpu.dot_dimension_numbers<[1], [0], [0], [1], [0, 0, 1, 1], [], []>} : vector<16x32xbf16>, vector<32x128xbf16>, vector<16x128xf32> -> vector<16x128xf32>
    %c1_829 = arith.constant 1 : index
    %c1_830 = arith.constant 1 : index
    %c0_831 = arith.constant 0 : index
    %c0_832 = arith.constant 0 : index
    %1066 = vector.load %arg12[%c1_829, %c1_830, %c0_831, %c0_832] : memref<2x2x1x128xf32, #tpu.memory_space<vmem>>, vector<1x1x1x128xf32>
    %1067 = vector.shape_cast %1066 : vector<1x1x1x128xf32> to vector<1x128xf32>
    %1068 = vector.broadcast %1067 : vector<1x128xf32> to vector<16x128xf32>
    %1069 = arith.addf %1065, %1068 : vector<16x128xf32>
    %1070 = arith.mulf %1069, %1069 : vector<16x128xf32>
    %1071 = arith.mulf %1069, %1070 : vector<16x128xf32>
    %cst_833 = arith.constant 4.471500e-02 : f32
    %1072 = vector.broadcast %cst_833 : f32 to vector<16x128xf32>
    %1073 = arith.mulf %1072, %1071 : vector<16x128xf32>
    %1074 = arith.addf %1069, %1073 : vector<16x128xf32>
    %cst_834 = arith.constant 0.797884583 : f32
    %1075 = vector.broadcast %cst_834 : f32 to vector<16x128xf32>
    %1076 = arith.mulf %1075, %1074 : vector<16x128xf32>
    %1077 = math.tanh %1076 : vector<16x128xf32>
    %cst_835 = arith.constant 1.000000e+00 : f32
    %1078 = vector.broadcast %cst_835 : f32 to vector<16x128xf32>
    %1079 = arith.addf %1078, %1077 : vector<16x128xf32>
    %cst_836 = arith.constant 5.000000e-01 : f32
    %1080 = vector.broadcast %cst_836 : f32 to vector<16x128xf32>
    %1081 = arith.mulf %1080, %1079 : vector<16x128xf32>
    %1082 = arith.mulf %1069, %1081 : vector<16x128xf32>
    %1083 = arith.truncf %1082 : vector<16x128xf32> to vector<16x128xbf16>
    %c1_837 = arith.constant 1 : index
    %c1_838 = arith.constant 1 : index
    %c0_839 = arith.constant 0 : index
    %c0_840 = arith.constant 0 : index
    %1084 = vector.load %arg13[%c1_837, %c1_838, %c0_839, %c0_840] : memref<2x2x128x32xbf16, #tpu.memory_space<vmem>>, vector<1x1x128x32xbf16>
    %1085 = vector.shape_cast %1084 : vector<1x1x128x32xbf16> to vector<128x32xbf16>
    %cst_841 = arith.constant dense<0.000000e+00> : vector<16x32xf32>
    %1086 = tpu.matmul %1083, %1085, %cst_841 {dimension_numbers = #tpu.dot_dimension_numbers<[1], [0], [0], [1], [0, 0, 1, 1], [], []>} : vector<16x128xbf16>, vector<128x32xbf16>, vector<16x32xf32> -> vector<16x32xf32>
    %c1_842 = arith.constant 1 : index
    %c1_843 = arith.constant 1 : index
    %c0_844 = arith.constant 0 : index
    %c0_845 = arith.constant 0 : index
    %1087 = vector.load %arg14[%c1_842, %c1_843, %c0_844, %c0_845] : memref<2x2x1x32xf32, #tpu.memory_space<vmem>>, vector<1x1x1x32xf32>
    %1088 = vector.shape_cast %1087 : vector<1x1x1x32xf32> to vector<1x32xf32>
    %1089 = vector.broadcast %1088 : vector<1x32xf32> to vector<16x32xf32>
    %1090 = arith.addf %1086, %1089 : vector<16x32xf32>
    %c14 = arith.constant 14 : index
    %1091 = memref.load %arg0[%c14] : memref<16xf32, #tpu.memory_space<smem>>
    %c15 = arith.constant 15 : index
    %1092 = memref.load %arg0[%c15] : memref<16xf32, #tpu.memory_space<smem>>
    %1093 = vector.broadcast %1091 : f32 to vector<16x32xf32>
    %1094 = arith.mulf %1093, %1061 : vector<16x32xf32>
    %1095 = vector.broadcast %1092 : f32 to vector<16x32xf32>
    %1096 = arith.mulf %1095, %1090 : vector<16x32xf32>
    %1097 = arith.addf %1094, %1096 : vector<16x32xf32>
    %cst_846 = arith.constant dense<0.000000e+00> : vector<16xf32>
    %1098 = vector.multi_reduction <add>, %1097, %cst_846 [1] : vector<16x32xf32> to vector<16xf32>
    %1099 = vector.shape_cast %1098 : vector<16xf32> to vector<16x1xf32>
    %cst_847 = arith.constant 3.200000e+01 : f32
    %1100 = vector.broadcast %cst_847 : f32 to vector<16x1xf32>
    %1101 = arith.divf %1099, %1100 : vector<16x1xf32>
    %1102 = arith.mulf %1097, %1097 : vector<16x32xf32>
    %cst_848 = arith.constant dense<0.000000e+00> : vector<16xf32>
    %1103 = vector.multi_reduction <add>, %1102, %cst_848 [1] : vector<16x32xf32> to vector<16xf32>
    %1104 = vector.shape_cast %1103 : vector<16xf32> to vector<16x1xf32>
    %cst_849 = arith.constant 3.200000e+01 : f32
    %1105 = vector.broadcast %cst_849 : f32 to vector<16x1xf32>
    %1106 = arith.divf %1104, %1105 : vector<16x1xf32>
    %1107 = arith.mulf %1101, %1101 : vector<16x1xf32>
    %1108 = arith.subf %1106, %1107 : vector<16x1xf32>
    %1109 = vector.broadcast %1101 : vector<16x1xf32> to vector<16x32xf32>
    %1110 = arith.subf %1097, %1109 : vector<16x32xf32>
    %cst_850 = arith.constant 9.99999996E-13 : f32
    %1111 = vector.broadcast %cst_850 : f32 to vector<16x1xf32>
    %1112 = arith.addf %1108, %1111 : vector<16x1xf32>
    %1113 = math.rsqrt %1112 : vector<16x1xf32>
    %1114 = vector.broadcast %1113 : vector<16x1xf32> to vector<16x32xf32>
    %1115 = arith.mulf %1110, %1114 : vector<16x32xf32>
    %1116 = vector.broadcast %562 : vector<1x32xf32> to vector<16x32xf32>
    %1117 = arith.mulf %1115, %1116 : vector<16x32xf32>
    %1118 = vector.broadcast %564 : vector<1x32xf32> to vector<16x32xf32>
    %1119 = arith.addf %1117, %1118 : vector<16x32xf32>
    %c0_851 = arith.constant 0 : index
    %c0_852 = arith.constant 0 : index
    %1120 = vector.load %arg17[%c0_851, %c0_852] : memref<16x32xf32, #tpu.memory_space<vmem>>, vector<16x32xf32>
    tpu.vector_store %arg17[%c0_851, %c0_852], %1119 {strides = array<i32>} : memref<16x32xf32, #tpu.memory_space<vmem>>, vector<16x32xf32>,
    return
  }
}

</mosaic_0001>

<llo_original>
// kernel: cross_attention_encoder.1
$region0: #{cross_attention_encoder.1}
  #allocation0 [shape = 'u32[]', space=smem, size = 0x4, offset = 0x4, fixed_abs, tag = 'smem constant byte address 0x4 - core index']
  #allocation1 [shape = 'u32[144,128]{1,0:T(1,128)}', space=vmem, size = 0x12000, scoped, tag = 'internal scratch']
  %s0 = inlined_call_operand.vmem [shape: f32[16], index: 0, kind: input, shape index: {}]
  %s1 = inlined_call_operand.vmem [shape: f32[16,32], index: 1, kind: input, shape index: {}]
  %s2 = inlined_call_operand.vmem [shape: f32[32,32], index: 2, kind: input, shape index: {}]
  %s3 = inlined_call_operand.vmem [shape: bf16[2,2,4,32,8], index: 3, kind: input, shape index: {}]
  %s4 = inlined_call_operand.vmem [shape: f32[2,2,4,1,8], index: 4, kind: input, shape index: {}]
  %s5 = inlined_call_operand.vmem [shape: bf16[2,2,4,32,8], index: 5, kind: input, shape index: {}]
  %s6 = inlined_call_operand.vmem [shape: f32[2,2,4,1,8], index: 6, kind: input, shape index: {}]
  %s7 = inlined_call_operand.vmem [shape: bf16[2,2,4,32,8], index: 7, kind: input, shape index: {}]
  %s8 = inlined_call_operand.vmem [shape: f32[2,2,4,1,8], index: 8, kind: input, shape index: {}]
  %s9 = inlined_call_operand.vmem [shape: bf16[2,2,4,8,32], index: 9, kind: input, shape index: {}]
  %s10 = inlined_call_operand.vmem [shape: f32[2,2,1,32], index: 10, kind: input, shape index: {}]
  %s11 = inlined_call_operand.vmem [shape: bf16[2,2,32,128], index: 11, kind: input, shape index: {}]
  %s12 = inlined_call_operand.vmem [shape: f32[2,2,1,128], index: 12, kind: input, shape index: {}]
  %s13 = inlined_call_operand.vmem [shape: bf16[2,2,128,32], index: 13, kind: input, shape index: {}]
  %s14 = inlined_call_operand.vmem [shape: f32[2,2,1,32], index: 14, kind: input, shape index: {}]
  %s15 = inlined_call_operand.vmem [shape: f32[2,1,32], index: 15, kind: input, shape index: {}]
  %s16 = inlined_call_operand.vmem [shape: f32[2,1,32], index: 16, kind: input, shape index: {}]
  %s17 = inlined_call_operand.hbm [shape: f32[16,32], index: 17, kind: output, shape index: {}]
  %s18 = sld [smem:[#allocation0]]
  $region82: #{cross_attention_encoder.1} parent=0
    _
  %s20 = ssub.s32 1, %s18
  %s21 = scalar_select 0, %s20, %s18
  $region1: #{cross_attention_encoder.1} parent=0
    #allocation2 [shape = 'u8[512]{0}', space=smem, size = 0x200, scoped, tag = 'input window, operand 0, single buffered']
    #allocation3 [shape = 's32[1]{0}', space=sflag, size = 0x4, scoped, tag = 'scoped memory for cross_attention_encoder.1']
    #allocation4 [shape = 's32[1]{0}', space=sflag, size = 0x4, scoped, tag = 'scoped memory for cross_attention_encoder.1']
    #allocation5 [shape = 'u8[8192]{0}', space=vmem, size = 0x2000, scoped, tag = 'output window, operand 0, single buffered']
    %22 = vsyncpa [#allocation4], 0
    %23 = vsyncpa [#allocation3], 0
    // Predicated region
    $region2: #{cross_attention_encoder.1} parent=1 // pred_check
      _
    $region3: #{cross_attention_encoder.1} parent=1 // pred_check_branch
      %25 = sbr.rel (0) target = $region5
    $region4: #{cross_attention_encoder.1} parent=1 // pred_region
      %s27 = ssub.s32 16, 16
      %28 = vsyncadd [#allocation4], %s27
      %s30 = sshll.u32 %s0, 4
      %s31 = int_to_ptr.vmem [resolvable:$true] %s30
      %33 = dma.vmem_to_smem %s31, 16, [#allocation2], [#allocation4]
    $region5: #{cross_attention_encoder.1} parent=1 // pred_fallthru
      _
    // Predicated region
    $region6: #{cross_attention_encoder.1} parent=1 // pred_check
      _
    $region7: #{cross_attention_encoder.1} parent=1 // pred_check_branch
      %35 = sbr.rel (0) target = $region9
    $region8: #{cross_attention_encoder.1} parent=1 // pred_region
      _
    $region9: #{cross_attention_encoder.1} parent=1 // pred_fallthru
      _
    // Predicated region
    $region10: #{cross_attention_encoder.1} parent=1 // pred_check
      _
    $region11: #{cross_attention_encoder.1} parent=1 // pred_check_branch
      %37 = sbr.rel (0) target = $region13
    $region12: #{cross_attention_encoder.1} parent=1 // pred_region
      _
    $region13: #{cross_attention_encoder.1} parent=1 // pred_fallthru
      _
    // Predicated region
    $region14: #{cross_attention_encoder.1} parent=1 // pred_check
      _
    $region15: #{cross_attention_encoder.1} parent=1 // pred_check_branch
      %39 = sbr.rel (0) target = $region17
    $region16: #{cross_attention_encoder.1} parent=1 // pred_region
      _
    $region17: #{cross_attention_encoder.1} parent=1 // pred_fallthru
      _
    // Predicated region
    $region18: #{cross_attention_encoder.1} parent=1 // pred_check
      _
    $region19: #{cross_attention_encoder.1} parent=1 // pred_check_branch
      %41 = sbr.rel (0) target = $region21
    $region20: #{cross_attention_encoder.1} parent=1 // pred_region
      _
    $region21: #{cross_attention_encoder.1} parent=1 // pred_fallthru
      _
    // Predicated region
    $region22: #{cross_attention_encoder.1} parent=1 // pred_check
      _
    $region23: #{cross_attention_encoder.1} parent=1 // pred_check_branch
      %43 = sbr.rel (0) target = $region25
    $region24: #{cross_attention_encoder.1} parent=1 // pred_region
      _
    $region25: #{cross_attention_encoder.1} parent=1 // pred_fallthru
      _
    // Predicated region
    $region26: #{cross_attention_encoder.1} parent=1 // pred_check
      _
    $region27: #{cross_attention_encoder.1} parent=1 // pred_check_branch
      %45 = sbr.rel (0) target = $region29
    $region28: #{cross_attention_encoder.1} parent=1 // pred_region
      _
    $region29: #{cross_attention_encoder.1} parent=1 // pred_fallthru
      _
    // Predicated region
    $region30: #{cross_attention_encoder.1} parent=1 // pred_check
      _
    $region31: #{cross_attention_encoder.1} parent=1 // pred_check_branch
      %47 = sbr.rel (0) target = $region33
    $region32: #{cross_attention_encoder.1} parent=1 // pred_region
      _
    $region33: #{cross_attention_encoder.1} parent=1 // pred_fallthru
      _
    // Predicated region
    $region34: #{cross_attention_encoder.1} parent=1 // pred_check
      _
    $region35: #{cross_attention_encoder.1} parent=1 // pred_check_branch
      %49 = sbr.rel (0) target = $region37
    $region36: #{cross_attention_encoder.1} parent=1 // pred_region
      _
    $region37: #{cross_attention_encoder.1} parent=1 // pred_fallthru
      _
    // Predicated region
    $region38: #{cross_attention_encoder.1} parent=1 // pred_check
      _
    $region39: #{cross_attention_encoder.1} parent=1 // pred_check_branch
      %51 = sbr.rel (0) target = $region41
    $region40: #{cross_attention_encoder.1} parent=1 // pred_region
      _
    $region41: #{cross_attention_encoder.1} parent=1 // pred_fallthru
      _
    // Predicated region
    $region42: #{cross_attention_encoder.1} parent=1 // pred_check
      _
    $region43: #{cross_attention_encoder.1} parent=1 // pred_check_branch
      %53 = sbr.rel (0) target = $region45
    $region44: #{cross_attention_encoder.1} parent=1 // pred_region
      _
    $region45: #{cross_attention_encoder.1} parent=1 // pred_fallthru
      _
    // Predicated region
    $region46: #{cross_attention_encoder.1} parent=1 // pred_check
      _
    $region47: #{cross_attention_encoder.1} parent=1 // pred_check_branch
      %55 = sbr.rel (0) target = $region49
    $region48: #{cross_attention_encoder.1} parent=1 // pred_region
      _
    $region49: #{cross_attention_encoder.1} parent=1 // pred_fallthru
      _
    // Predicated region
    $region50: #{cross_attention_encoder.1} parent=1 // pred_check
      _
    $region51: #{cross_attention_encoder.1} parent=1 // pred_check_branch
      %57 = sbr.rel (0) target = $region53
    $region52: #{cross_attention_encoder.1} parent=1 // pred_region
      _
    $region53: #{cross_attention_encoder.1} parent=1 // pred_fallthru
      _
    // Predicated region
    $region54: #{cross_attention_encoder.1} parent=1 // pred_check
      _
    $region55: #{cross_attention_encoder.1} parent=1 // pred_check_branch
      %59 = sbr.rel (0) target = $region57
    $region56: #{cross_attention_encoder.1} parent=1 // pred_region
      _
    $region57: #{cross_attention_encoder.1} parent=1 // pred_fallthru
      _
    // Predicated region
    $region58: #{cross_attention_encoder.1} parent=1 // pred_check
      _
    $region59: #{cross_attention_encoder.1} parent=1 // pred_check_branch
      %61 = sbr.rel (0) target = $region61
    $region60: #{cross_attention_encoder.1} parent=1 // pred_region
      _
    $region61: #{cross_attention_encoder.1} parent=1 // pred_fallthru
      _
    // Predicated region
    $region62: #{cross_attention_encoder.1} parent=1 // pred_check
      _
    $region63: #{cross_attention_encoder.1} parent=1 // pred_check_branch
      %63 = sbr.rel (0) target = $region65
    $region64: #{cross_attention_encoder.1} parent=1 // pred_region
      _
    $region65: #{cross_attention_encoder.1} parent=1 // pred_fallthru
      _
    // Predicated region
    $region66: #{cross_attention_encoder.1} parent=1 // pred_check
      _
    $region67: #{cross_attention_encoder.1} parent=1 // pred_check_branch
      %65 = sbr.rel (0) target = $region69
    $region68: #{cross_attention_encoder.1} parent=1 // pred_region
      _
    $region69: #{cross_attention_encoder.1} parent=1 // pred_fallthru
      _
    // Predicated region
    $region70: #{cross_attention_encoder.1} parent=1 // pred_check
      _
    $region71: #{cross_attention_encoder.1} parent=1 // pred_check_branch
      %67 = sbr.rel (0) target = $region73
    $region72: #{cross_attention_encoder.1} parent=1 // pred_region
      %68 = dma.done [#allocation4], 16
    $region73: #{cross_attention_encoder.1} parent=1 // pred_fallthru
      _
    %69 = sfence
    %v71 = vld [vmem:[%s1] sm:$0xff]
    %v72 = vld [vmem:[%s1 + $0x8] sm:$0xff]
    %v73 = vld [vmem:[%s2] sm:$0xff]
    %v74 = vld [vmem:[%s2 + $0x8] sm:$0xff]
    %v75 = vld [vmem:[%s2 + $0x10] sm:$0xff]
    %v76 = vld [vmem:[%s2 + $0x18] sm:$0xff]
    %v77 = vld [vmem:[%s15] sm:$0x1]
    %v78 = vld [vmem:[%s16] sm:$0x1]
    %v79 = vpack.c.bf16 %v72, %v71
    %v80 = vpack.c.bf16 %v74, %v73
    %v81 = vpack.c.bf16 %v76, %v75
    %v82 = vld [vmem:[%s3] sm:$0xf]
    %v83 = vld [vmem:[%s3 + $0x4] sm:$0xf]
    %v84 = vld [vmem:[%s3 + $0x8] sm:$0xf]
    %v85 = vld [vmem:[%s3 + $0xc] sm:$0xf]
    %v86 = vld [vmem:[%s4] sm:$0x1]
    %v88 = vlaneseq
    %v89 = vshrl.u32 %v88, 7
    %v90 = vsub.s32 0, %v89
    %v91 = vrot.slane %v86, %v90
    %v97 = vunpack.c.l.b16 %v82
    %v98 = vunpack.c.l.b16 %v83
    %v99 = vunpack.c.l.b16 %v84
    %v100 = vunpack.c.l.b16 %v85
    %v101 = vpack.c.b16 %v98, %v97
    %v102 = vpack.c.b16 %v100, %v99
    %vm105 = vcmask 261120
    %v107 = vsel %vm105, %v79, 0
    %109 = vmatprep.subr.bf16.mxu0 0
    %110 = vmatpush1.bf16.msra.mxu0 %v101
    %111 = vmatprep.subr.bf16.mxu0 0
    %112 = vmatpush1.bf16.msra.mxu0 %v102
    %113 = vmatprep.subr.bf16.mxu0 0
    %114 = vmatpush1.bf16.msra.mxu0 0
    %115 = vmatprep.subr.bf16.mxu0 0
    %116 = vmatpush1.bf16.msra.mxu0 0
    %117 = vmatprep.subr.bf16.mxu0 0
    %118 = vmatpush1.bf16.msra.mxu0 0
    %119 = vmatprep.subr.bf16.mxu0 0
    %120 = vmatpush1.bf16.msra.mxu0 0
    %121 = vmatprep.subr.bf16.mxu0 0
    %122 = vmatpush1.bf16.msra.mxu0 0
    %123 = vmatprep.subr.bf16.mxu0 0
    %124 = vmatpush1.bf16.msra.mxu0 0
    %125 = vmatprep.subr.bf16.mxu0 0
    %126 = vmatpush1.bf16.msra.mxu0 0
    %127 = vmatprep.subr.bf16.mxu0 0
    %128 = vmatpush1.bf16.msra.mxu0 0
    %129 = vmatprep.subr.bf16.mxu0 0
    %130 = vmatpush1.bf16.msra.mxu0 0
    %131 = vmatprep.subr.bf16.mxu0 0
    %132 = vmatpush1.bf16.msra.mxu0 0
    %133 = vmatprep.subr.bf16.mxu0 0
    %134 = vmatpush1.bf16.msra.mxu0 0
    %135 = vmatprep.subr.bf16.mxu0 0
    %136 = vmatpush1.bf16.msra.mxu0 0
    %137 = vmatprep.subr.bf16.mxu0 0
    %138 = vmatpush1.bf16.msra.mxu0 0
    %139 = vmatprep.subr.bf16.mxu0 0
    %140 = vmatpush1.bf16.msra.mxu0 0
    %141 = vmatprep.mubr.bf16.mxu0 0
    %142 = vmatmul.mubr.bf16.gmra.mrb[0].mxu0 %v107
    %v143 = vpop.f32.mrb[0].mxu0
    %v144 = vadd.f32 %v91, %v143
    %v145 = vpop.f32.mrb[0].mxu0
    %v146 = vpop.f32.mrb[0].mxu0
    %v147 = vadd.f32 %v91, %v146
    %v148 = vpop.f32.mrb[0].mxu0
    %149 = vdwg.mxu0
    %v150 = vld [vmem:[%s5] sm:$0xf]
    %v151 = vld [vmem:[%s5 + $0x4] sm:$0xf]
    %v152 = vld [vmem:[%s5 + $0x8] sm:$0xf]
    %v153 = vld [vmem:[%s5 + $0xc] sm:$0xf]
    %v154 = vld [vmem:[%s6] sm:$0x1]
    %v156 = vlaneseq
    %v157 = vshrl.u32 %v156, 7
    %v158 = vsub.s32 0, %v157
    %v159 = vrot.slane %v154, %v158
    %v165 = vunpack.c.l.b16 %v150
    %v166 = vunpack.c.l.b16 %v151
    %v167 = vunpack.c.l.b16 %v152
    %v168 = vunpack.c.l.b16 %v153
    %v169 = vpack.c.b16 %v166, %v165
    %v170 = vpack.c.b16 %v168, %v167
    %v174 = vsel %vm105, %v80, 0
    %v177 = vsel %vm105, %v81, 0
    %179 = vmatprep.subr.bf16.mxu0 0
    %180 = vmatpush1.bf16.msra.mxu0 %v169
    %181 = vmatprep.subr.bf16.mxu0 0
    %182 = vmatpush1.bf16.msra.mxu0 %v170
    %183 = vmatprep.subr.bf16.mxu0 0
    %184 = vmatpush1.bf16.msra.mxu0 0
    %185 = vmatprep.subr.bf16.mxu0 0
    %186 = vmatpush1.bf16.msra.mxu0 0
    %187 = vmatprep.subr.bf16.mxu0 0
    %188 = vmatpush1.bf16.msra.mxu0 0
    %189 = vmatprep.subr.bf16.mxu0 0
    %190 = vmatpush1.bf16.msra.mxu0 0
    %191 = vmatprep.subr.bf16.mxu0 0
    %192 = vmatpush1.bf16.msra.mxu0 0
    %193 = vmatprep.subr.bf16.mxu0 0
    %194 = vmatpush1.bf16.msra.mxu0 0
    %195 = vmatprep.subr.bf16.mxu0 0
    %196 = vmatpush1.bf16.msra.mxu0 0
    %197 = vmatprep.subr.bf16.mxu0 0
    %198 = vmatpush1.bf16.msra.mxu0 0
    %199 = vmatprep.subr.bf16.mxu0 0
    %200 = vmatpush1.bf16.msra.mxu0 0
    %201 = vmatprep.subr.bf16.mxu0 0
    %202 = vmatpush1.bf16.msra.mxu0 0
    %203 = vmatprep.subr.bf16.mxu0 0
    %204 = vmatpush1.bf16.msra.mxu0 0
    %205 = vmatprep.subr.bf16.mxu0 0
    %206 = vmatpush1.bf16.msra.mxu0 0
    %207 = vmatprep.subr.bf16.mxu0 0
    %208 = vmatpush1.bf16.msra.mxu0 0
    %209 = vmatprep.subr.bf16.mxu0 0
    %210 = vmatpush1.bf16.msra.mxu0 0
    %211 = vmatprep.mubr.bf16.mxu0 0
    %212 = vmatmul.mubr.bf16.gmra.mrb[0].mxu0 %v174
    %v213 = vpop.f32.mrb[0].mxu0
    %v214 = vadd.f32 %v159, %v213
    %v215 = vpop.f32.mrb[0].mxu0
    %v216 = vpop.f32.mrb[0].mxu0
    %v217 = vadd.f32 %v159, %v216
    %v218 = vpop.f32.mrb[0].mxu0
    %219 = vmatprep.mubr.bf16.mxu0 0
    %220 = vmatmul.mubr.bf16.gmra.mrb[0].mxu0 %v177
    %v221 = vpop.f32.mrb[0].mxu0
    %v222 = vadd.f32 %v159, %v221
    %v223 = vpop.f32.mrb[0].mxu0
    %v224 = vpop.f32.mrb[0].mxu0
    %v225 = vadd.f32 %v159, %v224
    %v226 = vpop.f32.mrb[0].mxu0
    %227 = vdwg.mxu0
    %v228 = vld [vmem:[%s7] sm:$0xf]
    %v229 = vld [vmem:[%s7 + $0x4] sm:$0xf]
    %v230 = vld [vmem:[%s7 + $0x8] sm:$0xf]
    %v231 = vld [vmem:[%s7 + $0xc] sm:$0xf]
    %v232 = vld [vmem:[%s8] sm:$0x1]
    %v234 = vlaneseq
    %v235 = vshrl.u32 %v234, 7
    %v236 = vsub.s32 0, %v235
    %v237 = vrot.slane %v232, %v236
    %v243 = vunpack.c.l.b16 %v228
    %v244 = vunpack.c.l.b16 %v229
    %v245 = vunpack.c.l.b16 %v230
    %v246 = vunpack.c.l.b16 %v231
    %v247 = vpack.c.b16 %v244, %v243
    %v248 = vpack.c.b16 %v246, %v245
    %251 = vmatprep.subr.bf16.mxu0 0
    %252 = vmatpush1.bf16.msra.mxu0 %v247
    %253 = vmatprep.subr.bf16.mxu0 0
    %254 = vmatpush1.bf16.msra.mxu0 %v248
    %255 = vmatprep.subr.bf16.mxu0 0
    %256 = vmatpush1.bf16.msra.mxu0 0
    %257 = vmatprep.subr.bf16.mxu0 0
    %258 = vmatpush1.bf16.msra.mxu0 0
    %259 = vmatprep.subr.bf16.mxu0 0
    %260 = vmatpush1.bf16.msra.mxu0 0
    %261 = vmatprep.subr.bf16.mxu0 0
    %262 = vmatpush1.bf16.msra.mxu0 0
    %263 = vmatprep.subr.bf16.mxu0 0
    %264 = vmatpush1.bf16.msra.mxu0 0
    %265 = vmatprep.subr.bf16.mxu0 0
    %266 = vmatpush1.bf16.msra.mxu0 0
    %267 = vmatprep.subr.bf16.mxu0 0
    %268 = vmatpush1.bf16.msra.mxu0 0
    %269 = vmatprep.subr.bf16.mxu0 0
    %270 = vmatpush1.bf16.msra.mxu0 0
    %271 = vmatprep.subr.bf16.mxu0 0
    %272 = vmatpush1.bf16.msra.mxu0 0
    %273 = vmatprep.subr.bf16.mxu0 0
    %274 = vmatpush1.bf16.msra.mxu0 0
    %275 = vmatprep.subr.bf16.mxu0 0
    %276 = vmatpush1.bf16.msra.mxu0 0
    %277 = vmatprep.subr.bf16.mxu0 0
    %278 = vmatpush1.bf16.msra.mxu0 0
    %279 = vmatprep.subr.bf16.mxu0 0
    %280 = vmatpush1.bf16.msra.mxu0 0
    %281 = vmatprep.subr.bf16.mxu0 0
    %282 = vmatpush1.bf16.msra.mxu0 0
    %283 = vmatprep.mubr.bf16.mxu0 0
    %284 = vmatmul.mubr.bf16.gmra.mrb[0].mxu0 %v174
    %v285 = vpop.f32.mrb[0].mxu0
    %v286 = vadd.f32 %v237, %v285
    %v287 = vpop.f32.mrb[0].mxu0
    %v288 = vpop.f32.mrb[0].mxu0
    %v289 = vadd.f32 %v237, %v288
    %v290 = vpop.f32.mrb[0].mxu0
    %291 = vmatprep.mubr.bf16.mxu0 0
    %292 = vmatmul.mubr.bf16.gmra.mrb[0].mxu0 %v177
    %v293 = vpop.f32.mrb[0].mxu0
    %v294 = vadd.f32 %v237, %v293
    %v295 = vpop.f32.mrb[0].mxu0
    %v296 = vpop.f32.mrb[0].mxu0
    %v297 = vadd.f32 %v237, %v296
    %v298 = vpop.f32.mrb[0].mxu0
    %299 = vdwg.mxu0
    %v300 = vpack.c.bf16 %v144, %v144
    %v301 = vpack.c.bf16 %v147, %v147
    %v302 = vpack.c.bf16 %v217, %v214
    %v303 = vpack.c.bf16 %v225, %v222
    %vm304 = vcmask 64512
    %v306 = vsel %vm304, %v300, 0
    %v309 = vsel %vm304, %v302, 0
    %311 = vmatprep.subr.bf16.mxu0 0
    %312 = vmatpush1.bf16.xpose.msra.mxu0 %v309
    %313 = vmatprep.subr.bf16.mxu0 0
    %314 = vmatpush1.bf16.xpose.msra.mxu0 0
    %315 = vmatprep.subr.bf16.mxu0 0
    %316 = vmatpush1.bf16.xpose.msra.mxu0 0
    %317 = vmatprep.subr.bf16.mxu0 0
    %318 = vmatpush1.bf16.xpose.msra.mxu0 0
    %319 = vmatprep.subr.bf16.mxu0 0
    %320 = vmatpush1.bf16.xpose.msra.mxu0 0
    %321 = vmatprep.subr.bf16.mxu0 0
    %322 = vmatpush1.bf16.xpose.msra.mxu0 0
    %323 = vmatprep.subr.bf16.mxu0 0
    %324 = vmatpush1.bf16.xpose.msra.mxu0 0
    %325 = vmatprep.subr.bf16.mxu0 0
    %326 = vmatpush1.bf16.xpose.msra.mxu0 0
    %327 = vmatprep.subr.bf16.mxu0 0
    %328 = vmatpush1.bf16.xpose.msra.mxu0 0
    %329 = vmatprep.subr.bf16.mxu0 0
    %330 = vmatpush1.bf16.xpose.msra.mxu0 0
    %331 = vmatprep.subr.bf16.mxu0 0
    %332 = vmatpush1.bf16.xpose.msra.mxu0 0
    %333 = vmatprep.subr.bf16.mxu0 0
    %334 = vmatpush1.bf16.xpose.msra.mxu0 0
    %335 = vmatprep.subr.bf16.mxu0 0
    %336 = vmatpush1.bf16.xpose.msra.mxu0 0
    %337 = vmatprep.subr.bf16.mxu0 0
    %338 = vmatpush1.bf16.xpose.msra.mxu0 0
    %339 = vmatprep.subr.bf16.mxu0 0
    %340 = vmatpush1.bf16.xpose.msra.mxu0 0
    %341 = vmatprep.subr.bf16.mxu0 0
    %342 = vmatpush1.bf16.xpose.msra.mxu0 0
    %343 = vmatprep.mubr.bf16.mxu0 0
    %344 = vmatmul.mubr.bf16.gmra.mrb[0].mxu0 %v306
    %v345 = vpop.f32.mrb[0].mxu0
    %v346 = vadd.f32 0.0, %v345
    %v347 = vpop.f32.mrb[0].mxu0
    %v348 = vpop.f32.mrb[0].mxu0
    %v349 = vpop.f32.mrb[0].mxu0
    %350 = vdwg.mxu0
    %v352 = vsel %vm304, %v301, 0
    %v355 = vsel %vm304, %v303, 0
    %357 = vmatprep.subr.bf16.mxu0 0
    %358 = vmatpush1.bf16.xpose.msra.mxu0 %v355
    %359 = vmatprep.subr.bf16.mxu0 0
    %360 = vmatpush1.bf16.xpose.msra.mxu0 0
    %361 = vmatprep.subr.bf16.mxu0 0
    %362 = vmatpush1.bf16.xpose.msra.mxu0 0
    %363 = vmatprep.subr.bf16.mxu0 0
    %364 = vmatpush1.bf16.xpose.msra.mxu0 0
    %365 = vmatprep.subr.bf16.mxu0 0
    %366 = vmatpush1.bf16.xpose.msra.mxu0 0
    %367 = vmatprep.subr.bf16.mxu0 0
    %368 = vmatpush1.bf16.xpose.msra.mxu0 0
    %369 = vmatprep.subr.bf16.mxu0 0
    %370 = vmatpush1.bf16.xpose.msra.mxu0 0
    %371 = vmatprep.subr.bf16.mxu0 0
    %372 = vmatpush1.bf16.xpose.msra.mxu0 0
    %373 = vmatprep.subr.bf16.mxu0 0
    %374 = vmatpush1.bf16.xpose.msra.mxu0 0
    %375 = vmatprep.subr.bf16.mxu0 0
    %376 = vmatpush1.bf16.xpose.msra.mxu0 0
    %377 = vmatprep.subr.bf16.mxu0 0
    %378 = vmatpush1.bf16.xpose.msra.mxu0 0
    %379 = vmatprep.subr.bf16.mxu0 0
    %380 = vmatpush1.bf16.xpose.msra.mxu0 0
    %381 = vmatprep.subr.bf16.mxu0 0
    %382 = vmatpush1.bf16.xpose.msra.mxu0 0
    %383 = vmatprep.subr.bf16.mxu0 0
    %384 = vmatpush1.bf16.xpose.msra.mxu0 0
    %385 = vmatprep.subr.bf16.mxu0 0
    %386 = vmatpush1.bf16.xpose.msra.mxu0 0
    %387 = vmatprep.subr.bf16.mxu0 0
    %388 = vmatpush1.bf16.xpose.msra.mxu0 0
    %389 = vmatprep.mubr.bf16.mxu0 0
    %390 = vmatmul.mubr.bf16.gmra.mrb[0].mxu0 %v352
    %v391 = vpop.f32.mrb[0].mxu0
    %v392 = vadd.f32 0.0, %v391
    %v393 = vpop.f32.mrb[0].mxu0
    %v394 = vpop.f32.mrb[0].mxu0
    %v395 = vpop.f32.mrb[0].mxu0
    %396 = vdwg.mxu0
    %vm397 = vcmask 130048
    %v398 = vsel %vm397, %v346, -inf
    %399 = vmax.xlane.f32.xlu0 %v398
    %v400 = vpop.xlane.xlu0 %399
    %v401 = vsel %vm397, %v392, -inf
    %402 = vmax.xlane.f32.xlu0 %v401
    %v403 = vpop.xlane.xlu0 %402
    %v404 = vsub.f32 %v346, %v400
    %v405 = vsub.f32 %v392, %v403
    %v406 = vmul.f32 %v404, 1.442695
    %v407 = vpow.pop %v406
    %v408 = vmul.f32 %v405, 1.442695
    %v409 = vpow.pop %v408
    %v410 = vsel %vm397, %v407, 0.0
    %411 = vadd.xlane.f32.xlu0 %v410
    %v412 = vpop.xlane.xlu0 %411
    %v413 = vsel %vm397, %v409, 0.0
    %414 = vadd.xlane.f32.xlu0 %v413
    %v415 = vpop.xlane.xlu0 %414
    %v416 = vpack.c.bf16 %v407, %v407
    %v417 = vpack.c.bf16 %v409, %v409
    %v418 = vpack.c.bf16 %v289, %v286
    %v419 = vpack.c.bf16 %v297, %v294
    %v421 = vsel %vm397, %v416, 0
    %423 = vmatprep.subr.bf16.mxu0 0
    %424 = vmatpush1.bf16.msra.mxu0 %v418
    %425 = vmatprep.subr.bf16.mxu0 0
    %426 = vmatpush1.bf16.msra.mxu0 0
    %427 = vmatprep.subr.bf16.mxu0 0
    %428 = vmatpush1.bf16.msra.mxu0 0
    %429 = vmatprep.subr.bf16.mxu0 0
    %430 = vmatpush1.bf16.msra.mxu0 0
    %431 = vmatprep.subr.bf16.mxu0 0
    %432 = vmatpush1.bf16.msra.mxu0 0
    %433 = vmatprep.subr.bf16.mxu0 0
    %434 = vmatpush1.bf16.msra.mxu0 0
    %435 = vmatprep.subr.bf16.mxu0 0
    %436 = vmatpush1.bf16.msra.mxu0 0
    %437 = vmatprep.subr.bf16.mxu0 0
    %438 = vmatpush1.bf16.msra.mxu0 0
    %439 = vmatprep.subr.bf16.mxu0 0
    %440 = vmatpush1.bf16.msra.mxu0 0
    %441 = vmatprep.subr.bf16.mxu0 0
    %442 = vmatpush1.bf16.msra.mxu0 0
    %443 = vmatprep.subr.bf16.mxu0 0
    %444 = vmatpush1.bf16.msra.mxu0 0
    %445 = vmatprep.subr.bf16.mxu0 0
    %446 = vmatpush1.bf16.msra.mxu0 0
    %447 = vmatprep.subr.bf16.mxu0 0
    %448 = vmatpush1.bf16.msra.mxu0 0
    %449 = vmatprep.subr.bf16.mxu0 0
    %450 = vmatpush1.bf16.msra.mxu0 0
    %451 = vmatprep.subr.bf16.mxu0 0
    %452 = vmatpush1.bf16.msra.mxu0 0
    %453 = vmatprep.subr.bf16.mxu0 0
    %454 = vmatpush1.bf16.msra.mxu0 0
    %455 = vmatprep.mubr.bf16.mxu0 0
    %456 = vmatmul.mubr.bf16.gmra.mrb[0].mxu0 %v421
    %v457 = vpop.f32.mrb[0].mxu0
    %v458 = vadd.f32 0.0, %v457
    %v459 = vpop.f32.mrb[0].mxu0
    %v460 = vpop.f32.mrb[0].mxu0
    %v461 = vpop.f32.mrb[0].mxu0
    %462 = vdwg.mxu0
    %v464 = vsel %vm397, %v417, 0
    %466 = vmatprep.subr.bf16.mxu0 0
    %467 = vmatpush1.bf16.msra.mxu0 %v419
    %468 = vmatprep.subr.bf16.mxu0 0
    %469 = vmatpush1.bf16.msra.mxu0 0
    %470 = vmatprep.subr.bf16.mxu0 0
    %471 = vmatpush1.bf16.msra.mxu0 0
    %472 = vmatprep.subr.bf16.mxu0 0
    %473 = vmatpush1.bf16.msra.mxu0 0
    %474 = vmatprep.subr.bf16.mxu0 0
    %475 = vmatpush1.bf16.msra.mxu0 0
    %476 = vmatprep.subr.bf16.mxu0 0
    %477 = vmatpush1.bf16.msra.mxu0 0
    %478 = vmatprep.subr.bf16.mxu0 0
    %479 = vmatpush1.bf16.msra.mxu0 0
    %480 = vmatprep.subr.bf16.mxu0 0
    %481 = vmatpush1.bf16.msra.mxu0 0
    %482 = vmatprep.subr.bf16.mxu0 0
    %483 = vmatpush1.bf16.msra.mxu0 0
    %484 = vmatprep.subr.bf16.mxu0 0
    %485 = vmatpush1.bf16.msra.mxu0 0
    %486 = vmatprep.subr.bf16.mxu0 0
    %487 = vmatpush1.bf16.msra.mxu0 0
    %488 = vmatprep.subr.bf16.mxu0 0
    %489 = vmatpush1.bf16.msra.mxu0 0
    %490 = vmatprep.subr.bf16.mxu0 0
    %491 = vmatpush1.bf16.msra.mxu0 0
    %492 = vmatprep.subr.bf16.mxu0 0
    %493 = vmatpush1.bf16.msra.mxu0 0
    %494 = vmatprep.subr.bf16.mxu0 0
    %495 = vmatpush1.bf16.msra.mxu0 0
    %496 = vmatprep.subr.bf16.mxu0 0
    %497 = vmatpush1.bf16.msra.mxu0 0
    %498 = vmatprep.mubr.bf16.mxu0 0
    %499 = vmatmul.mubr.bf16.gmra.mrb[0].mxu0 %v464
    %v500 = vpop.f32.mrb[0].mxu0
    %v501 = vadd.f32 0.0, %v500
    %v502 = vpop.f32.mrb[0].mxu0
    %v503 = vpop.f32.mrb[0].mxu0
    %v504 = vpop.f32.mrb[0].mxu0
    %505 = vdwg.mxu0
    %v506 = vrcp.pop %v412
    %v507 = vrcp.pop %v415
    %v508 = vmul.f32 %v458, %v506
    %v509 = vmul.f32 %v501, %v507
    %v510 = vpack.c.bf16 %v509, %v508
    %v511 = vld [vmem:[%s9] sm:$0xf]
    %s512 = scalar_lea.vmem %s3, 16
    %v513 = vld [vmem:[%s512] sm:$0xf]
    %v514 = vld [vmem:[%s512 + $0x4] sm:$0xf]
    %v515 = vld [vmem:[%s512 + $0x8] sm:$0xf]
    %v516 = vld [vmem:[%s512 + $0xc] sm:$0xf]
    %s517 = scalar_lea.vmem %s4, 1
    %v518 = vld [vmem:[%s517] sm:$0x1]
    %v520 = vlaneseq
    %v521 = vshrl.u32 %v520, 7
    %v522 = vsub.s32 0, %v521
    %v523 = vrot.slane %v518, %v522
    %v529 = vunpack.c.l.b16 %v513
    %v530 = vunpack.c.l.b16 %v514
    %v531 = vunpack.c.l.b16 %v515
    %v532 = vunpack.c.l.b16 %v516
    %v533 = vpack.c.b16 %v530, %v529
    %v534 = vpack.c.b16 %v532, %v531
    %537 = vmatprep.subr.bf16.mxu0 0
    %538 = vmatpush1.bf16.msra.mxu0 %v533
    %539 = vmatprep.subr.bf16.mxu0 0
    %540 = vmatpush1.bf16.msra.mxu0 %v534
    %541 = vmatprep.subr.bf16.mxu0 0
    %542 = vmatpush1.bf16.msra.mxu0 0
    %543 = vmatprep.subr.bf16.mxu0 0
    %544 = vmatpush1.bf16.msra.mxu0 0
    %545 = vmatprep.subr.bf16.mxu0 0
    %546 = vmatpush1.bf16.msra.mxu0 0
    %547 = vmatprep.subr.bf16.mxu0 0
    %548 = vmatpush1.bf16.msra.mxu0 0
    %549 = vmatprep.subr.bf16.mxu0 0
    %550 = vmatpush1.bf16.msra.mxu0 0
    %551 = vmatprep.subr.bf16.mxu0 0
    %552 = vmatpush1.bf16.msra.mxu0 0
    %553 = vmatprep.subr.bf16.mxu0 0
    %554 = vmatpush1.bf16.msra.mxu0 0
    %555 = vmatprep.subr.bf16.mxu0 0
    %556 = vmatpush1.bf16.msra.mxu0 0
    %557 = vmatprep.subr.bf16.mxu0 0
    %558 = vmatpush1.bf16.msra.mxu0 0
    %559 = vmatprep.subr.bf16.mxu0 0
    %560 = vmatpush1.bf16.msra.mxu0 0
    %561 = vmatprep.subr.bf16.mxu0 0
    %562 = vmatpush1.bf16.msra.mxu0 0
    %563 = vmatprep.subr.bf16.mxu0 0
    %564 = vmatpush1.bf16.msra.mxu0 0
    %565 = vmatprep.subr.bf16.mxu0 0
    %566 = vmatpush1.bf16.msra.mxu0 0
    %567 = vmatprep.subr.bf16.mxu0 0
    %568 = vmatpush1.bf16.msra.mxu0 0
    %569 = vmatprep.mubr.bf16.mxu0 0
    %570 = vmatmul.mubr.bf16.gmra.mrb[0].mxu0 %v107
    %v571 = vpop.f32.mrb[0].mxu0
    %v572 = vadd.f32 %v523, %v571
    %v573 = vpop.f32.mrb[0].mxu0
    %v574 = vpop.f32.mrb[0].mxu0
    %v575 = vadd.f32 %v523, %v574
    %v576 = vpop.f32.mrb[0].mxu0
    %577 = vdwg.mxu0
    %s578 = scalar_lea.vmem %s5, 16
    %v579 = vld [vmem:[%s578] sm:$0xf]
    %v580 = vld [vmem:[%s578 + $0x4] sm:$0xf]
    %v581 = vld [vmem:[%s578 + $0x8] sm:$0xf]
    %v582 = vld [vmem:[%s578 + $0xc] sm:$0xf]
    %s583 = scalar_lea.vmem %s6, 1
    %v584 = vld [vmem:[%s583] sm:$0x1]
    %v586 = vlaneseq
    %v587 = vshrl.u32 %v586, 7
    %v588 = vsub.s32 0, %v587
    %v589 = vrot.slane %v584, %v588
    %v595 = vunpack.c.l.b16 %v579
    %v596 = vunpack.c.l.b16 %v580
    %v597 = vunpack.c.l.b16 %v581
    %v598 = vunpack.c.l.b16 %v582
    %v599 = vpack.c.b16 %v596, %v595
    %v600 = vpack.c.b16 %v598, %v597
    %603 = vmatprep.subr.bf16.mxu0 0
    %604 = vmatpush1.bf16.msra.mxu0 %v599
    %605 = vmatprep.subr.bf16.mxu0 0
    %606 = vmatpush1.bf16.msra.mxu0 %v600
    %607 = vmatprep.subr.bf16.mxu0 0
    %608 = vmatpush1.bf16.msra.mxu0 0
    %609 = vmatprep.subr.bf16.mxu0 0
    %610 = vmatpush1.bf16.msra.mxu0 0
    %611 = vmatprep.subr.bf16.mxu0 0
    %612 = vmatpush1.bf16.msra.mxu0 0
    %613 = vmatprep.subr.bf16.mxu0 0
    %614 = vmatpush1.bf16.msra.mxu0 0
    %615 = vmatprep.subr.bf16.mxu0 0
    %616 = vmatpush1.bf16.msra.mxu0 0
    %617 = vmatprep.subr.bf16.mxu0 0
    %618 = vmatpush1.bf16.msra.mxu0 0
    %619 = vmatprep.subr.bf16.mxu0 0
    %620 = vmatpush1.bf16.msra.mxu0 0
    %621 = vmatprep.subr.bf16.mxu0 0
    %622 = vmatpush1.bf16.msra.mxu0 0
    %623 = vmatprep.subr.bf16.mxu0 0
    %624 = vmatpush1.bf16.msra.mxu0 0
    %625 = vmatprep.subr.bf16.mxu0 0
    %626 = vmatpush1.bf16.msra.mxu0 0
    %627 = vmatprep.subr.bf16.mxu0 0
    %628 = vmatpush1.bf16.msra.mxu0 0
    %629 = vmatprep.subr.bf16.mxu0 0
    %630 = vmatpush1.bf16.msra.mxu0 0
    %631 = vmatprep.subr.bf16.mxu0 0
    %632 = vmatpush1.bf16.msra.mxu0 0
    %633 = vmatprep.subr.bf16.mxu0 0
    %634 = vmatpush1.bf16.msra.mxu0 0
    %635 = vmatprep.mubr.bf16.mxu0 0
    %636 = vmatmul.mubr.bf16.gmra.mrb[0].mxu0 %v174
    %v637 = vpop.f32.mrb[0].mxu0
    %v638 = vadd.f32 %v589, %v637
    %v639 = vpop.f32.mrb[0].mxu0
    %v640 = vpop.f32.mrb[0].mxu0
    %v641 = vadd.f32 %v589, %v640
    %v642 = vpop.f32.mrb[0].mxu0
    %643 = vmatprep.mubr.bf16.mxu0 0
    %644 = vmatmul.mubr.bf16.gmra.mrb[0].mxu0 %v177
    %v645 = vpop.f32.mrb[0].mxu0
    %v646 = vadd.f32 %v589, %v645
    %v647 = vpop.f32.mrb[0].mxu0
    %v648 = vpop.f32.mrb[0].mxu0
    %v649 = vadd.f32 %v589, %v648
    %v650 = vpop.f32.mrb[0].mxu0
    %651 = vdwg.mxu0
    %s652 = scalar_lea.vmem %s7, 16
    %v653 = vld [vmem:[%s652] sm:$0xf]
    %v654 = vld [vmem:[%s652 + $0x4] sm:$0xf]
    %v655 = vld [vmem:[%s652 + $0x8] sm:$0xf]
    %v656 = vld [vmem:[%s652 + $0xc] sm:$0xf]
    %s657 = scalar_lea.vmem %s8, 1
    %v658 = vld [vmem:[%s657] sm:$0x1]
    %v660 = vlaneseq
    %v661 = vshrl.u32 %v660, 7
    %v662 = vsub.s32 0, %v661
    %v663 = vrot.slane %v658, %v662
    %v669 = vunpack.c.l.b16 %v653
    %v670 = vunpack.c.l.b16 %v654
    %v671 = vunpack.c.l.b16 %v655
    %v672 = vunpack.c.l.b16 %v656
    %v673 = vpack.c.b16 %v670, %v669
    %v674 = vpack.c.b16 %v672, %v671
    %677 = vmatprep.subr.bf16.mxu0 0
    %678 = vmatpush1.bf16.msra.mxu0 %v673
    %679 = vmatprep.subr.bf16.mxu0 0
    %680 = vmatpush1.bf16.msra.mxu0 %v674
    %681 = vmatprep.subr.bf16.mxu0 0
    %682 = vmatpush1.bf16.msra.mxu0 0
    %683 = vmatprep.subr.bf16.mxu0 0
    %684 = vmatpush1.bf16.msra.mxu0 0
    %685 = vmatprep.subr.bf16.mxu0 0
    %686 = vmatpush1.bf16.msra.mxu0 0
    %687 = vmatprep.subr.bf16.mxu0 0
    %688 = vmatpush1.bf16.msra.mxu0 0
    %689 = vmatprep.subr.bf16.mxu0 0
    %690 = vmatpush1.bf16.msra.mxu0 0
    %691 = vmatprep.subr.bf16.mxu0 0
    %692 = vmatpush1.bf16.msra.mxu0 0
    %693 = vmatprep.subr.bf16.mxu0 0
    %694 = vmatpush1.bf16.msra.mxu0 0
    %695 = vmatprep.subr.bf16.mxu0 0
    %696 = vmatpush1.bf16.msra.mxu0 0
    %697 = vmatprep.subr.bf16.mxu0 0
    %698 = vmatpush1.bf16.msra.mxu0 0
    %699 = vmatprep.subr.bf16.mxu0 0
    %700 = vmatpush1.bf16.msra.mxu0 0
    %701 = vmatprep.subr.bf16.mxu0 0
    %702 = vmatpush1.bf16.msra.mxu0 0
    %703 = vmatprep.subr.bf16.mxu0 0
    %704 = vmatpush1.bf16.msra.mxu0 0
    %705 = vmatprep.subr.bf16.mxu0 0
    %706 = vmatpush1.bf16.msra.mxu0 0
    %707 = vmatprep.subr.bf16.mxu0 0
    %708 = vmatpush1.bf16.msra.mxu0 0
    %709 = vmatprep.mubr.bf16.mxu0 0
    %710 = vmatmul.mubr.bf16.gmra.mrb[0].mxu0 %v174
    %v711 = vpop.f32.mrb[0].mxu0
    %v712 = vadd.f32 %v663, %v711
    %v713 = vpop.f32.mrb[0].mxu0
    %v714 = vpop.f32.mrb[0].mxu0
    %v715 = vadd.f32 %v663, %v714
    %v716 = vpop.f32.mrb[0].mxu0
    %717 = vmatprep.mubr.bf16.mxu0 0
    %718 = vmatmul.mubr.bf16.gmra.mrb[0].mxu0 %v177
    %v719 = vpop.f32.mrb[0].mxu0
    %v720 = vadd.f32 %v663, %v719
    %v721 = vpop.f32.mrb[0].mxu0
    %v722 = vpop.f32.mrb[0].mxu0
    %v723 = vadd.f32 %v663, %v722
    %v724 = vpop.f32.mrb[0].mxu0
    %725 = vdwg.mxu0
    %v726 = vpack.c.bf16 %v572, %v572
    %v727 = vpack.c.bf16 %v575, %v575
    %v728 = vpack.c.bf16 %v641, %v638
    %v729 = vpack.c.bf16 %v649, %v646
    %v731 = vsel %vm304, %v726, 0
    %v734 = vsel %vm304, %v728, 0
    %736 = vmatprep.subr.bf16.mxu0 0
    %737 = vmatpush1.bf16.xpose.msra.mxu0 %v734
    %738 = vmatprep.subr.bf16.mxu0 0
    %739 = vmatpush1.bf16.xpose.msra.mxu0 0
    %740 = vmatprep.subr.bf16.mxu0 0
    %741 = vmatpush1.bf16.xpose.msra.mxu0 0
    %742 = vmatprep.subr.bf16.mxu0 0
    %743 = vmatpush1.bf16.xpose.msra.mxu0 0
    %744 = vmatprep.subr.bf16.mxu0 0
    %745 = vmatpush1.bf16.xpose.msra.mxu0 0
    %746 = vmatprep.subr.bf16.mxu0 0
    %747 = vmatpush1.bf16.xpose.msra.mxu0 0
    %748 = vmatprep.subr.bf16.mxu0 0
    %749 = vmatpush1.bf16.xpose.msra.mxu0 0
    %750 = vmatprep.subr.bf16.mxu0 0
    %751 = vmatpush1.bf16.xpose.msra.mxu0 0
    %752 = vmatprep.subr.bf16.mxu0 0
    %753 = vmatpush1.bf16.xpose.msra.mxu0 0
    %754 = vmatprep.subr.bf16.mxu0 0
    %755 = vmatpush1.bf16.xpose.msra.mxu0 0
    %756 = vmatprep.subr.bf16.mxu0 0
    %757 = vmatpush1.bf16.xpose.msra.mxu0 0
    %758 = vmatprep.subr.bf16.mxu0 0
    %759 = vmatpush1.bf16.xpose.msra.mxu0 0
    %760 = vmatprep.subr.bf16.mxu0 0
    %761 = vmatpush1.bf16.xpose.msra.mxu0 0
    %762 = vmatprep.subr.bf16.mxu0 0
    %763 = vmatpush1.bf16.xpose.msra.mxu0 0
    %764 = vmatprep.subr.bf16.mxu0 0
    %765 = vmatpush1.bf16.xpose.msra.mxu0 0
    %766 = vmatprep.subr.bf16.mxu0 0
    %767 = vmatpush1.bf16.xpose.msra.mxu0 0
    %768 = vmatprep.mubr.bf16.mxu0 0
    %769 = vmatmul.mubr.bf16.gmra.mrb[0].mxu0 %v731
    %v770 = vpop.f32.mrb[0].mxu0
    %v771 = vadd.f32 0.0, %v770
    %v772 = vpop.f32.mrb[0].mxu0
    %v773 = vpop.f32.mrb[0].mxu0
    %v774 = vpop.f32.mrb[0].mxu0
    %775 = vdwg.mxu0
    %v777 = vsel %vm304, %v727, 0
    %v780 = vsel %vm304, %v729, 0
    %782 = vmatprep.subr.bf16.mxu0 0
    %783 = vmatpush1.bf16.xpose.msra.mxu0 %v780
    %784 = vmatprep.subr.bf16.mxu0 0
    %785 = vmatpush1.bf16.xpose.msra.mxu0 0
    %786 = vmatprep.subr.bf16.mxu0 0
    %787 = vmatpush1.bf16.xpose.msra.mxu0 0
    %788 = vmatprep.subr.bf16.mxu0 0
    %789 = vmatpush1.bf16.xpose.msra.mxu0 0
    %790 = vmatprep.subr.bf16.mxu0 0
    %791 = vmatpush1.bf16.xpose.msra.mxu0 0
    %792 = vmatprep.subr.bf16.mxu0 0
    %793 = vmatpush1.bf16.xpose.msra.mxu0 0
    %794 = vmatprep.subr.bf16.mxu0 0
    %795 = vmatpush1.bf16.xpose.msra.mxu0 0
    %796 = vmatprep.subr.bf16.mxu0 0
    %797 = vmatpush1.bf16.xpose.msra.mxu0 0
    %798 = vmatprep.subr.bf16.mxu0 0
    %799 = vmatpush1.bf16.xpose.msra.mxu0 0
    %800 = vmatprep.subr.bf16.mxu0 0
    %801 = vmatpush1.bf16.xpose.msra.mxu0 0
    %802 = vmatprep.subr.bf16.mxu0 0
    %803 = vmatpush1.bf16.xpose.msra.mxu0 0
    %804 = vmatprep.subr.bf16.mxu0 0
    %805 = vmatpush1.bf16.xpose.msra.mxu0 0
    %806 = vmatprep.subr.bf16.mxu0 0
    %807 = vmatpush1.bf16.xpose.msra.mxu0 0
    %808 = vmatprep.subr.bf16.mxu0 0
    %809 = vmatpush1.bf16.xpose.msra.mxu0 0
    %810 = vmatprep.subr.bf16.mxu0 0
    %811 = vmatpush1.bf16.xpose.msra.mxu0 0
    %812 = vmatprep.subr.bf16.mxu0 0
    %813 = vmatpush1.bf16.xpose.msra.mxu0 0
    %814 = vmatprep.mubr.bf16.mxu0 0
    %815 = vmatmul.mubr.bf16.gmra.mrb[0].mxu0 %v777
    %v816 = vpop.f32.mrb[0].mxu0
    %v817 = vadd.f32 0.0, %v816
    %v818 = vpop.f32.mrb[0].mxu0
    %v819 = vpop.f32.mrb[0].mxu0
    %v820 = vpop.f32.mrb[0].mxu0
    %821 = vdwg.mxu0
    %v822 = vsel %vm397, %v771, -inf
    %823 = vmax.xlane.f32.xlu0 %v822
    %v824 = vpop.xlane.xlu0 %823
    %v825 = vsel %vm397, %v817, -inf
    %826 = vmax.xlane.f32.xlu0 %v825
    %v827 = vpop.xlane.xlu0 %826
    %v828 = vsub.f32 %v771, %v824
    %v829 = vsub.f32 %v817, %v827
    %v830 = vmul.f32 %v828, 1.442695
    %v831 = vpow.pop %v830
    %v832 = vmul.f32 %v829, 1.442695
    %v833 = vpow.pop %v832
    %v834 = vsel %vm397, %v831, 0.0
    %835 = vadd.xlane.f32.xlu0 %v834
    %v836 = vpop.xlane.xlu0 %835
    %v837 = vsel %vm397, %v833, 0.0
    %838 = vadd.xlane.f32.xlu0 %v837
    %v839 = vpop.xlane.xlu0 %838
    %v840 = vpack.c.bf16 %v831, %v831
    %v841 = vpack.c.bf16 %v833, %v833
    %v842 = vpack.c.bf16 %v715, %v712
    %v843 = vpack.c.bf16 %v723, %v720
    %v845 = vsel %vm397, %v840, 0
    %847 = vmatprep.subr.bf16.mxu0 0
    %848 = vmatpush1.bf16.msra.mxu0 %v842
    %849 = vmatprep.subr.bf16.mxu0 0
    %850 = vmatpush1.bf16.msra.mxu0 0
    %851 = vmatprep.subr.bf16.mxu0 0
    %852 = vmatpush1.bf16.msra.mxu0 0
    %853 = vmatprep.subr.bf16.mxu0 0
    %854 = vmatpush1.bf16.msra.mxu0 0
    %855 = vmatprep.subr.bf16.mxu0 0
    %856 = vmatpush1.bf16.msra.mxu0 0
    %857 = vmatprep.subr.bf16.mxu0 0
    %858 = vmatpush1.bf16.msra.mxu0 0
    %859 = vmatprep.subr.bf16.mxu0 0
    %860 = vmatpush1.bf16.msra.mxu0 0
    %861 = vmatprep.subr.bf16.mxu0 0
    %862 = vmatpush1.bf16.msra.mxu0 0
    %863 = vmatprep.subr.bf16.mxu0 0
    %864 = vmatpush1.bf16.msra.mxu0 0
    %865 = vmatprep.subr.bf16.mxu0 0
    %866 = vmatpush1.bf16.msra.mxu0 0
    %867 = vmatprep.subr.bf16.mxu0 0
    %868 = vmatpush1.bf16.msra.mxu0 0
    %869 = vmatprep.subr.bf16.mxu0 0
    %870 = vmatpush1.bf16.msra.mxu0 0
    %871 = vmatprep.subr.bf16.mxu0 0
    %872 = vmatpush1.bf16.msra.mxu0 0
    %873 = vmatprep.subr.bf16.mxu0 0
    %874 = vmatpush1.bf16.msra.mxu0 0
    %875 = vmatprep.subr.bf16.mxu0 0
    %876 = vmatpush1.bf16.msra.mxu0 0
    %877 = vmatprep.subr.bf16.mxu0 0
    %878 = vmatpush1.bf16.msra.mxu0 0
    %879 = vmatprep.mubr.bf16.mxu0 0
    %880 = vmatmul.mubr.bf16.gmra.mrb[0].mxu0 %v845
    %v881 = vpop.f32.mrb[0].mxu0
    %v882 = vadd.f32 0.0, %v881
    %v883 = vpop.f32.mrb[0].mxu0
    %v884 = vpop.f32.mrb[0].mxu0
    %v885 = vpop.f32.mrb[0].mxu0
    %886 = vdwg.mxu0
    %v888 = vsel %vm397, %v841, 0
    %890 = vmatprep.subr.bf16.mxu0 0
    %891 = vmatpush1.bf16.msra.mxu0 %v843
    %892 = vmatprep.subr.bf16.mxu0 0
    %893 = vmatpush1.bf16.msra.mxu0 0
    %894 = vmatprep.subr.bf16.mxu0 0
    %895 = vmatpush1.bf16.msra.mxu0 0
    %896 = vmatprep.subr.bf16.mxu0 0
    %897 = vmatpush1.bf16.msra.mxu0 0
    %898 = vmatprep.subr.bf16.mxu0 0
    %899 = vmatpush1.bf16.msra.mxu0 0
    %900 = vmatprep.subr.bf16.mxu0 0
    %901 = vmatpush1.bf16.msra.mxu0 0
    %902 = vmatprep.subr.bf16.mxu0 0
    %903 = vmatpush1.bf16.msra.mxu0 0
    %904 = vmatprep.subr.bf16.mxu0 0
    %905 = vmatpush1.bf16.msra.mxu0 0
    %906 = vmatprep.subr.bf16.mxu0 0
    %907 = vmatpush1.bf16.msra.mxu0 0
    %908 = vmatprep.subr.bf16.mxu0 0
    %909 = vmatpush1.bf16.msra.mxu0 0
    %910 = vmatprep.subr.bf16.mxu0 0
    %911 = vmatpush1.bf16.msra.mxu0 0
    %912 = vmatprep.subr.bf16.mxu0 0
    %913 = vmatpush1.bf16.msra.mxu0 0
    %914 = vmatprep.subr.bf16.mxu0 0
    %915 = vmatpush1.bf16.msra.mxu0 0
    %916 = vmatprep.subr.bf16.mxu0 0
    %917 = vmatpush1.bf16.msra.mxu0 0
    %918 = vmatprep.subr.bf16.mxu0 0
    %919 = vmatpush1.bf16.msra.mxu0 0
    %920 = vmatprep.subr.bf16.mxu0 0
    %921 = vmatpush1.bf16.msra.mxu0 0
    %922 = vmatprep.mubr.bf16.mxu0 0
    %923 = vmatmul.mubr.bf16.gmra.mrb[0].mxu0 %v888
    %v924 = vpop.f32.mrb[0].mxu0
    %v925 = vadd.f32 0.0, %v924
    %v926 = vpop.f32.mrb[0].mxu0
    %v927 = vpop.f32.mrb[0].mxu0
    %v928 = vpop.f32.mrb[0].mxu0
    %929 = vdwg.mxu0
    %v930 = vrcp.pop %v836
    %v931 = vrcp.pop %v839
    %v932 = vmul.f32 %v882, %v930
    %v933 = vmul.f32 %v925, %v931
    %v934 = vpack.c.bf16 %v933, %v932
    %s935 = scalar_lea.vmem %s9, 4
    %v936 = vld [vmem:[%s935] sm:$0xf]
    %v938 = vsel %vm304, %v934, 0
    %vm940 = vcmask 1043456
    %v942 = vsel %vm940, %v936, 0
    %944 = vmatprep.subr.bf16.mxu0 0
    %945 = vmatpush1.bf16.msra.mxu0 %v942
    %946 = vmatprep.subr.bf16.mxu0 0
    %947 = vmatpush1.bf16.msra.mxu0 0
    %948 = vmatprep.subr.bf16.mxu0 0
    %949 = vmatpush1.bf16.msra.mxu0 0
    %950 = vmatprep.subr.bf16.mxu0 0
    %951 = vmatpush1.bf16.msra.mxu0 0
    %952 = vmatprep.subr.bf16.mxu0 0
    %953 = vmatpush1.bf16.msra.mxu0 0
    %954 = vmatprep.subr.bf16.mxu0 0
    %955 = vmatpush1.bf16.msra.mxu0 0
    %956 = vmatprep.subr.bf16.mxu0 0
    %957 = vmatpush1.bf16.msra.mxu0 0
    %958 = vmatprep.subr.bf16.mxu0 0
    %959 = vmatpush1.bf16.msra.mxu0 0
    %960 = vmatprep.subr.bf16.mxu0 0
    %961 = vmatpush1.bf16.msra.mxu0 0
    %962 = vmatprep.subr.bf16.mxu0 0
    %963 = vmatpush1.bf16.msra.mxu0 0
    %964 = vmatprep.subr.bf16.mxu0 0
    %965 = vmatpush1.bf16.msra.mxu0 0
    %966 = vmatprep.subr.bf16.mxu0 0
    %967 = vmatpush1.bf16.msra.mxu0 0
    %968 = vmatprep.subr.bf16.mxu0 0
    %969 = vmatpush1.bf16.msra.mxu0 0
    %970 = vmatprep.subr.bf16.mxu0 0
    %971 = vmatpush1.bf16.msra.mxu0 0
    %972 = vmatprep.subr.bf16.mxu0 0
    %973 = vmatpush1.bf16.msra.mxu0 0
    %974 = vmatprep.subr.bf16.mxu0 0
    %975 = vmatpush1.bf16.msra.mxu0 0
    %976 = vmatprep.mubr.bf16.mxu0 0
    %977 = vmatmul.mubr.bf16.gmra.mrb[0].mxu0 %v938
    %v978 = vpop.f32.mrb[0].mxu0
    %v979 = vadd.f32 0.0, %v978
    %v980 = vpop.f32.mrb[0].mxu0
    %v981 = vpop.f32.mrb[0].mxu0
    %v982 = vadd.f32 0.0, %v981
    %v983 = vpop.f32.mrb[0].mxu0
    %984 = vdwg.mxu0
    %v986 = vsel %vm304, %v510, 0
    %v989 = vsel %vm940, %v511, 0
    %991 = vmatprep.subr.bf16.mxu0 0
    %992 = vmatpush1.bf16.msra.mxu0 %v989
    %993 = vmatprep.subr.bf16.mxu0 0
    %994 = vmatpush1.bf16.msra.mxu0 0
    %995 = vmatprep.subr.bf16.mxu0 0
    %996 = vmatpush1.bf16.msra.mxu0 0
    %997 = vmatprep.subr.bf16.mxu0 0
    %998 = vmatpush1.bf16.msra.mxu0 0
    %999 = vmatprep.subr.bf16.mxu0 0
    %1000 = vmatpush1.bf16.msra.mxu0 0
    %1001 = vmatprep.subr.bf16.mxu0 0
    %1002 = vmatpush1.bf16.msra.mxu0 0
    %1003 = vmatprep.subr.bf16.mxu0 0
    %1004 = vmatpush1.bf16.msra.mxu0 0
    %1005 = vmatprep.subr.bf16.mxu0 0
    %1006 = vmatpush1.bf16.msra.mxu0 0
    %1007 = vmatprep.subr.bf16.mxu0 0
    %1008 = vmatpush1.bf16.msra.mxu0 0
    %1009 = vmatprep.subr.bf16.mxu0 0
    %1010 = vmatpush1.bf16.msra.mxu0 0
    %1011 = vmatprep.subr.bf16.mxu0 0
    %1012 = vmatpush1.bf16.msra.mxu0 0
    %1013 = vmatprep.subr.bf16.mxu0 0
    %1014 = vmatpush1.bf16.msra.mxu0 0
    %1015 = vmatprep.subr.bf16.mxu0 0
    %1016 = vmatpush1.bf16.msra.mxu0 0
    %1017 = vmatprep.subr.bf16.mxu0 0
    %1018 = vmatpush1.bf16.msra.mxu0 0
    %1019 = vmatprep.subr.bf16.mxu0 0
    %1020 = vmatpush1.bf16.msra.mxu0 0
    %1021 = vmatprep.subr.bf16.mxu0 0
    %1022 = vmatpush1.bf16.msra.mxu0 0
    %1023 = vmatprep.mubr.bf16.mxu0 0
    %1024 = vmatmul.mubr.bf16.gmra.mrb[0].mxu0 %v986
    %v1025 = vpop.f32.mrb[0].mxu0
    %v1026 = vadd.f32 %v979, %v1025
    %v1027 = vpop.f32.mrb[0].mxu0
    %v1028 = vpop.f32.mrb[0].mxu0
    %v1029 = vadd.f32 %v982, %v1028
    %v1030 = vpop.f32.mrb[0].mxu0
    %1031 = vdwg.mxu0
    %s1032 = scalar_lea.vmem %s3, 32
    %v1033 = vld [vmem:[%s1032] sm:$0xf]
    %v1034 = vld [vmem:[%s1032 + $0x4] sm:$0xf]
    %v1035 = vld [vmem:[%s1032 + $0x8] sm:$0xf]
    %v1036 = vld [vmem:[%s1032 + $0xc] sm:$0xf]
    %s1037 = scalar_lea.vmem %s4, 2
    %v1038 = vld [vmem:[%s1037] sm:$0x1]
    %v1040 = vlaneseq
    %v1041 = vshrl.u32 %v1040, 7
    %v1042 = vsub.s32 0, %v1041
    %v1043 = vrot.slane %v1038, %v1042
    %v1049 = vunpack.c.l.b16 %v1033
    %v1050 = vunpack.c.l.b16 %v1034
    %v1051 = vunpack.c.l.b16 %v1035
    %v1052 = vunpack.c.l.b16 %v1036
    %v1053 = vpack.c.b16 %v1050, %v1049
    %v1054 = vpack.c.b16 %v1052, %v1051
    %1057 = vmatprep.subr.bf16.mxu0 0
    %1058 = vmatpush1.bf16.msra.mxu0 %v1053
    %1059 = vmatprep.subr.bf16.mxu0 0
    %1060 = vmatpush1.bf16.msra.mxu0 %v1054
    %1061 = vmatprep.subr.bf16.mxu0 0
    %1062 = vmatpush1.bf16.msra.mxu0 0
    %1063 = vmatprep.subr.bf16.mxu0 0
    %1064 = vmatpush1.bf16.msra.mxu0 0
    %1065 = vmatprep.subr.bf16.mxu0 0
    %1066 = vmatpush1.bf16.msra.mxu0 0
    %1067 = vmatprep.subr.bf16.mxu0 0
    %1068 = vmatpush1.bf16.msra.mxu0 0
    %1069 = vmatprep.subr.bf16.mxu0 0
    %1070 = vmatpush1.bf16.msra.mxu0 0
    %1071 = vmatprep.subr.bf16.mxu0 0
    %1072 = vmatpush1.bf16.msra.mxu0 0
    %1073 = vmatprep.subr.bf16.mxu0 0
    %1074 = vmatpush1.bf16.msra.mxu0 0
    %1075 = vmatprep.subr.bf16.mxu0 0
    %1076 = vmatpush1.bf16.msra.mxu0 0
    %1077 = vmatprep.subr.bf16.mxu0 0
    %1078 = vmatpush1.bf16.msra.mxu0 0
    %1079 = vmatprep.subr.bf16.mxu0 0
    %1080 = vmatpush1.bf16.msra.mxu0 0
    %1081 = vmatprep.subr.bf16.mxu0 0
    %1082 = vmatpush1.bf16.msra.mxu0 0
    %1083 = vmatprep.subr.bf16.mxu0 0
    %1084 = vmatpush1.bf16.msra.mxu0 0
    %1085 = vmatprep.subr.bf16.mxu0 0
    %1086 = vmatpush1.bf16.msra.mxu0 0
    %1087 = vmatprep.subr.bf16.mxu0 0
    %1088 = vmatpush1.bf16.msra.mxu0 0
    %1089 = vmatprep.mubr.bf16.mxu0 0
    %1090 = vmatmul.mubr.bf16.gmra.mrb[0].mxu0 %v107
    %v1091 = vpop.f32.mrb[0].mxu0
    %v1092 = vadd.f32 %v1043, %v1091
    %v1093 = vpop.f32.mrb[0].mxu0
    %v1094 = vpop.f32.mrb[0].mxu0
    %v1095 = vadd.f32 %v1043, %v1094
    %v1096 = vpop.f32.mrb[0].mxu0
    %1097 = vdwg.mxu0
    %s1098 = scalar_lea.vmem %s5, 32
    %v1099 = vld [vmem:[%s1098] sm:$0xf]
    %v1100 = vld [vmem:[%s1098 + $0x4] sm:$0xf]
    %v1101 = vld [vmem:[%s1098 + $0x8] sm:$0xf]
    %v1102 = vld [vmem:[%s1098 + $0xc] sm:$0xf]
    %s1103 = scalar_lea.vmem %s6, 2
    %v1104 = vld [vmem:[%s1103] sm:$0x1]
    %v1106 = vlaneseq
    %v1107 = vshrl.u32 %v1106, 7
    %v1108 = vsub.s32 0, %v1107
    %v1109 = vrot.slane %v1104, %v1108
    %v1115 = vunpack.c.l.b16 %v1099
    %v1116 = vunpack.c.l.b16 %v1100
    %v1117 = vunpack.c.l.b16 %v1101
    %v1118 = vunpack.c.l.b16 %v1102
    %v1119 = vpack.c.b16 %v1116, %v1115
    %v1120 = vpack.c.b16 %v1118, %v1117
    %1123 = vmatprep.subr.bf16.mxu0 0
    %1124 = vmatpush1.bf16.msra.mxu0 %v1119
    %1125 = vmatprep.subr.bf16.mxu0 0
    %1126 = vmatpush1.bf16.msra.mxu0 %v1120
    %1127 = vmatprep.subr.bf16.mxu0 0
    %1128 = vmatpush1.bf16.msra.mxu0 0
    %1129 = vmatprep.subr.bf16.mxu0 0
    %1130 = vmatpush1.bf16.msra.mxu0 0
    %1131 = vmatprep.subr.bf16.mxu0 0
    %1132 = vmatpush1.bf16.msra.mxu0 0
    %1133 = vmatprep.subr.bf16.mxu0 0
    %1134 = vmatpush1.bf16.msra.mxu0 0
    %1135 = vmatprep.subr.bf16.mxu0 0
    %1136 = vmatpush1.bf16.msra.mxu0 0
    %1137 = vmatprep.subr.bf16.mxu0 0
    %1138 = vmatpush1.bf16.msra.mxu0 0
    %1139 = vmatprep.subr.bf16.mxu0 0
    %1140 = vmatpush1.bf16.msra.mxu0 0
    %1141 = vmatprep.subr.bf16.mxu0 0
    %1142 = vmatpush1.bf16.msra.mxu0 0
    %1143 = vmatprep.subr.bf16.mxu0 0
    %1144 = vmatpush1.bf16.msra.mxu0 0
    %1145 = vmatprep.subr.bf16.mxu0 0
    %1146 = vmatpush1.bf16.msra.mxu0 0
    %1147 = vmatprep.subr.bf16.mxu0 0
    %1148 = vmatpush1.bf16.msra.mxu0 0
    %1149 = vmatprep.subr.bf16.mxu0 0
    %1150 = vmatpush1.bf16.msra.mxu0 0
    %1151 = vmatprep.subr.bf16.mxu0 0
    %1152 = vmatpush1.bf16.msra.mxu0 0
    %1153 = vmatprep.subr.bf16.mxu0 0
    %1154 = vmatpush1.bf16.msra.mxu0 0
    %1155 = vmatprep.mubr.bf16.mxu0 0
    %1156 = vmatmul.mubr.bf16.gmra.mrb[0].mxu0 %v174
    %v1157 = vpop.f32.mrb[0].mxu0
    %v1158 = vadd.f32 %v1109, %v1157
    %v1159 = vpop.f32.mrb[0].mxu0
    %v1160 = vpop.f32.mrb[0].mxu0
    %v1161 = vadd.f32 %v1109, %v1160
    %v1162 = vpop.f32.mrb[0].mxu0
    %1163 = vmatprep.mubr.bf16.mxu0 0
    %1164 = vmatmul.mubr.bf16.gmra.mrb[0].mxu0 %v177
    %v1165 = vpop.f32.mrb[0].mxu0
    %v1166 = vadd.f32 %v1109, %v1165
    %v1167 = vpop.f32.mrb[0].mxu0
    %v1168 = vpop.f32.mrb[0].mxu0
    %v1169 = vadd.f32 %v1109, %v1168
    %v1170 = vpop.f32.mrb[0].mxu0
    %1171 = vdwg.mxu0
    %s1172 = scalar_lea.vmem %s7, 32
    %v1173 = vld [vmem:[%s1172] sm:$0xf]
    %v1174 = vld [vmem:[%s1172 + $0x4] sm:$0xf]
    %v1175 = vld [vmem:[%s1172 + $0x8] sm:$0xf]
    %v1176 = vld [vmem:[%s1172 + $0xc] sm:$0xf]
    %s1177 = scalar_lea.vmem %s8, 2
    %v1178 = vld [vmem:[%s1177] sm:$0x1]
    %v1180 = vlaneseq
    %v1181 = vshrl.u32 %v1180, 7
    %v1182 = vsub.s32 0, %v1181
    %v1183 = vrot.slane %v1178, %v1182
    %v1189 = vunpack.c.l.b16 %v1173
    %v1190 = vunpack.c.l.b16 %v1174
    %v1191 = vunpack.c.l.b16 %v1175
    %v1192 = vunpack.c.l.b16 %v1176
    %v1193 = vpack.c.b16 %v1190, %v1189
    %v1194 = vpack.c.b16 %v1192, %v1191
    %1197 = vmatprep.subr.bf16.mxu0 0
    %1198 = vmatpush1.bf16.msra.mxu0 %v1193
    %1199 = vmatprep.subr.bf16.mxu0 0
    %1200 = vmatpush1.bf16.msra.mxu0 %v1194
    %1201 = vmatprep.subr.bf16.mxu0 0
    %1202 = vmatpush1.bf16.msra.mxu0 0
    %1203 = vmatprep.subr.bf16.mxu0 0
    %1204 = vmatpush1.bf16.msra.mxu0 0
    %1205 = vmatprep.subr.bf16.mxu0 0
    %1206 = vmatpush1.bf16.msra.mxu0 0
    %1207 = vmatprep.subr.bf16.mxu0 0
    %1208 = vmatpush1.bf16.msra.mxu0 0
    %1209 = vmatprep.subr.bf16.mxu0 0
    %1210 = vmatpush1.bf16.msra.mxu0 0
    %1211 = vmatprep.subr.bf16.mxu0 0
    %1212 = vmatpush1.bf16.msra.mxu0 0
    %1213 = vmatprep.subr.bf16.mxu0 0
    %1214 = vmatpush1.bf16.msra.mxu0 0
    %1215 = vmatprep.subr.bf16.mxu0 0
    %1216 = vmatpush1.bf16.msra.mxu0 0
    %1217 = vmatprep.subr.bf16.mxu0 0
    %1218 = vmatpush1.bf16.msra.mxu0 0
    %1219 = vmatprep.subr.bf16.mxu0 0
    %1220 = vmatpush1.bf16.msra.mxu0 0
    %1221 = vmatprep.subr.bf16.mxu0 0
    %1222 = vmatpush1.bf16.msra.mxu0 0
    %1223 = vmatprep.subr.bf16.mxu0 0
    %1224 = vmatpush1.bf16.msra.mxu0 0
    %1225 = vmatprep.subr.bf16.mxu0 0
    %1226 = vmatpush1.bf16.msra.mxu0 0
    %1227 = vmatprep.subr.bf16.mxu0 0
    %1228 = vmatpush1.bf16.msra.mxu0 0
    %1229 = vmatprep.mubr.bf16.mxu0 0
    %1230 = vmatmul.mubr.bf16.gmra.mrb[0].mxu0 %v174
    %v1231 = vpop.f32.mrb[0].mxu0
    %v1232 = vadd.f32 %v1183, %v1231
    %v1233 = vpop.f32.mrb[0].mxu0
    %v1234 = vpop.f32.mrb[0].mxu0
    %v1235 = vadd.f32 %v1183, %v1234
    %v1236 = vpop.f32.mrb[0].mxu0
    %1237 = vmatprep.mubr.bf16.mxu0 0
    %1238 = vmatmul.mubr.bf16.gmra.mrb[0].mxu0 %v177
    %v1239 = vpop.f32.mrb[0].mxu0
    %v1240 = vadd.f32 %v1183, %v1239
    %v1241 = vpop.f32.mrb[0].mxu0
    %v1242 = vpop.f32.mrb[0].mxu0
    %v1243 = vadd.f32 %v1183, %v1242
    %v1244 = vpop.f32.mrb[0].mxu0
    %1245 = vdwg.mxu0
    %v1246 = vpack.c.bf16 %v1092, %v1092
    %v1247 = vpack.c.bf16 %v1095, %v1095
    %v1248 = vpack.c.bf16 %v1161, %v1158
    %v1249 = vpack.c.bf16 %v1169, %v1166
    %v1251 = vsel %vm304, %v1246, 0
    %v1254 = vsel %vm304, %v1248, 0
    %1256 = vmatprep.subr.bf16.mxu0 0
    %1257 = vmatpush1.bf16.xpose.msra.mxu0 %v1254
    %1258 = vmatprep.subr.bf16.mxu0 0
    %1259 = vmatpush1.bf16.xpose.msra.mxu0 0
    %1260 = vmatprep.subr.bf16.mxu0 0
    %1261 = vmatpush1.bf16.xpose.msra.mxu0 0
    %1262 = vmatprep.subr.bf16.mxu0 0
    %1263 = vmatpush1.bf16.xpose.msra.mxu0 0
    %1264 = vmatprep.subr.bf16.mxu0 0
    %1265 = vmatpush1.bf16.xpose.msra.mxu0 0
    %1266 = vmatprep.subr.bf16.mxu0 0
    %1267 = vmatpush1.bf16.xpose.msra.mxu0 0
    %1268 = vmatprep.subr.bf16.mxu0 0
    %1269 = vmatpush1.bf16.xpose.msra.mxu0 0
    %1270 = vmatprep.subr.bf16.mxu0 0
    %1271 = vmatpush1.bf16.xpose.msra.mxu0 0
    %1272 = vmatprep.subr.bf16.mxu0 0
    %1273 = vmatpush1.bf16.xpose.msra.mxu0 0
    %1274 = vmatprep.subr.bf16.mxu0 0
    %1275 = vmatpush1.bf16.xpose.msra.mxu0 0
    %1276 = vmatprep.subr.bf16.mxu0 0
    %1277 = vmatpush1.bf16.xpose.msra.mxu0 0
    %1278 = vmatprep.subr.bf16.mxu0 0
    %1279 = vmatpush1.bf16.xpose.msra.mxu0 0
    %1280 = vmatprep.subr.bf16.mxu0 0
    %1281 = vmatpush1.bf16.xpose.msra.mxu0 0
    %1282 = vmatprep.subr.bf16.mxu0 0
    %1283 = vmatpush1.bf16.xpose.msra.mxu0 0
    %1284 = vmatprep.subr.bf16.mxu0 0
    %1285 = vmatpush1.bf16.xpose.msra.mxu0 0
    %1286 = vmatprep.subr.bf16.mxu0 0
    %1287 = vmatpush1.bf16.xpose.msra.mxu0 0
    %1288 = vmatprep.mubr.bf16.mxu0 0
    %1289 = vmatmul.mubr.bf16.gmra.mrb[0].mxu0 %v1251
    %v1290 = vpop.f32.mrb[0].mxu0
    %v1291 = vadd.f32 0.0, %v1290
    %v1292 = vpop.f32.mrb[0].mxu0
    %v1293 = vpop.f32.mrb[0].mxu0
    %v1294 = vpop.f32.mrb[0].mxu0
    %1295 = vdwg.mxu0
    %v1297 = vsel %vm304, %v1247, 0
    %v1300 = vsel %vm304, %v1249, 0
    %1302 = vmatprep.subr.bf16.mxu0 0
    %1303 = vmatpush1.bf16.xpose.msra.mxu0 %v1300
    %1304 = vmatprep.subr.bf16.mxu0 0
    %1305 = vmatpush1.bf16.xpose.msra.mxu0 0
    %1306 = vmatprep.subr.bf16.mxu0 0
    %1307 = vmatpush1.bf16.xpose.msra.mxu0 0
    %1308 = vmatprep.subr.bf16.mxu0 0
    %1309 = vmatpush1.bf16.xpose.msra.mxu0 0
    %1310 = vmatprep.subr.bf16.mxu0 0
    %1311 = vmatpush1.bf16.xpose.msra.mxu0 0
    %1312 = vmatprep.subr.bf16.mxu0 0
    %1313 = vmatpush1.bf16.xpose.msra.mxu0 0
    %1314 = vmatprep.subr.bf16.mxu0 0
    %1315 = vmatpush1.bf16.xpose.msra.mxu0 0
    %1316 = vmatprep.subr.bf16.mxu0 0
    %1317 = vmatpush1.bf16.xpose.msra.mxu0 0
    %1318 = vmatprep.subr.bf16.mxu0 0
    %1319 = vmatpush1.bf16.xpose.msra.mxu0 0
    %1320 = vmatprep.subr.bf16.mxu0 0
    %1321 = vmatpush1.bf16.xpose.msra.mxu0 0
    %1322 = vmatprep.subr.bf16.mxu0 0
    %1323 = vmatpush1.bf16.xpose.msra.mxu0 0
    %1324 = vmatprep.subr.bf16.mxu0 0
    %1325 = vmatpush1.bf16.xpose.msra.mxu0 0
    %1326 = vmatprep.subr.bf16.mxu0 0
    %1327 = vmatpush1.bf16.xpose.msra.mxu0 0
    %1328 = vmatprep.subr.bf16.mxu0 0
    %1329 = vmatpush1.bf16.xpose.msra.mxu0 0
    %1330 = vmatprep.subr.bf16.mxu0 0
    %1331 = vmatpush1.bf16.xpose.msra.mxu0 0
    %1332 = vmatprep.subr.bf16.mxu0 0
    %1333 = vmatpush1.bf16.xpose.msra.mxu0 0
    %1334 = vmatprep.mubr.bf16.mxu0 0
    %1335 = vmatmul.mubr.bf16.gmra.mrb[0].mxu0 %v1297
    %v1336 = vpop.f32.mrb[0].mxu0
    %v1337 = vadd.f32 0.0, %v1336
    %v1338 = vpop.f32.mrb[0].mxu0
    %v1339 = vpop.f32.mrb[0].mxu0
    %v1340 = vpop.f32.mrb[0].mxu0
    %1341 = vdwg.mxu0
    %v1342 = vsel %vm397, %v1291, -inf
    %1343 = vmax.xlane.f32.xlu0 %v1342
    %v1344 = vpop.xlane.xlu0 %1343
    %v1345 = vsel %vm397, %v1337, -inf
    %1346 = vmax.xlane.f32.xlu0 %v1345
    %v1347 = vpop.xlane.xlu0 %1346
    %v1348 = vsub.f32 %v1291, %v1344
    %v1349 = vsub.f32 %v1337, %v1347
    %v1350 = vmul.f32 %v1348, 1.442695
    %v1351 = vpow.pop %v1350
    %v1352 = vmul.f32 %v1349, 1.442695
    %v1353 = vpow.pop %v1352
    %v1354 = vsel %vm397, %v1351, 0.0
    %1355 = vadd.xlane.f32.xlu0 %v1354
    %v1356 = vpop.xlane.xlu0 %1355
    %v1357 = vsel %vm397, %v1353, 0.0
    %1358 = vadd.xlane.f32.xlu0 %v1357
    %v1359 = vpop.xlane.xlu0 %1358
    %v1360 = vpack.c.bf16 %v1351, %v1351
    %v1361 = vpack.c.bf16 %v1353, %v1353
    %v1362 = vpack.c.bf16 %v1235, %v1232
    %v1363 = vpack.c.bf16 %v1243, %v1240
    %v1365 = vsel %vm397, %v1360, 0
    %1367 = vmatprep.subr.bf16.mxu0 0
    %1368 = vmatpush1.bf16.msra.mxu0 %v1362
    %1369 = vmatprep.subr.bf16.mxu0 0
    %1370 = vmatpush1.bf16.msra.mxu0 0
    %1371 = vmatprep.subr.bf16.mxu0 0
    %1372 = vmatpush1.bf16.msra.mxu0 0
    %1373 = vmatprep.subr.bf16.mxu0 0
    %1374 = vmatpush1.bf16.msra.mxu0 0
    %1375 = vmatprep.subr.bf16.mxu0 0
    %1376 = vmatpush1.bf16.msra.mxu0 0
    %1377 = vmatprep.subr.bf16.mxu0 0
    %1378 = vmatpush1.bf16.msra.mxu0 0
    %1379 = vmatprep.subr.bf16.mxu0 0
    %1380 = vmatpush1.bf16.msra.mxu0 0
    %1381 = vmatprep.subr.bf16.mxu0 0
    %1382 = vmatpush1.bf16.msra.mxu0 0
    %1383 = vmatprep.subr.bf16.mxu0 0
    %1384 = vmatpush1.bf16.msra.mxu0 0
    %1385 = vmatprep.subr.bf16.mxu0 0
    %1386 = vmatpush1.bf16.msra.mxu0 0
    %1387 = vmatprep.subr.bf16.mxu0 0
    %1388 = vmatpush1.bf16.msra.mxu0 0
    %1389 = vmatprep.subr.bf16.mxu0 0
    %1390 = vmatpush1.bf16.msra.mxu0 0
    %1391 = vmatprep.subr.bf16.mxu0 0
    %1392 = vmatpush1.bf16.msra.mxu0 0
    %1393 = vmatprep.subr.bf16.mxu0 0
    %1394 = vmatpush1.bf16.msra.mxu0 0
    %1395 = vmatprep.subr.bf16.mxu0 0
    %1396 = vmatpush1.bf16.msra.mxu0 0
    %1397 = vmatprep.subr.bf16.mxu0 0
    %1398 = vmatpush1.bf16.msra.mxu0 0
    %1399 = vmatprep.mubr.bf16.mxu0 0
    %1400 = vmatmul.mubr.bf16.gmra.mrb[0].mxu0 %v1365
    %v1401 = vpop.f32.mrb[0].mxu0
    %v1402 = vadd.f32 0.0, %v1401
    %v1403 = vpop.f32.mrb[0].mxu0
    %v1404 = vpop.f32.mrb[0].mxu0
    %v1405 = vpop.f32.mrb[0].mxu0
    %1406 = vdwg.mxu0
    %v1408 = vsel %vm397, %v1361, 0
    %1410 = vmatprep.subr.bf16.mxu0 0
    %1411 = vmatpush1.bf16.msra.mxu0 %v1363
    %1412 = vmatprep.subr.bf16.mxu0 0
    %1413 = vmatpush1.bf16.msra.mxu0 0
    %1414 = vmatprep.subr.bf16.mxu0 0
    %1415 = vmatpush1.bf16.msra.mxu0 0
    %1416 = vmatprep.subr.bf16.mxu0 0
    %1417 = vmatpush1.bf16.msra.mxu0 0
    %1418 = vmatprep.subr.bf16.mxu0 0
    %1419 = vmatpush1.bf16.msra.mxu0 0
    %1420 = vmatprep.subr.bf16.mxu0 0
    %1421 = vmatpush1.bf16.msra.mxu0 0
    %1422 = vmatprep.subr.bf16.mxu0 0
    %1423 = vmatpush1.bf16.msra.mxu0 0
    %1424 = vmatprep.subr.bf16.mxu0 0
    %1425 = vmatpush1.bf16.msra.mxu0 0
    %1426 = vmatprep.subr.bf16.mxu0 0
    %1427 = vmatpush1.bf16.msra.mxu0 0
    %1428 = vmatprep.subr.bf16.mxu0 0
    %1429 = vmatpush1.bf16.msra.mxu0 0
    %1430 = vmatprep.subr.bf16.mxu0 0
    %1431 = vmatpush1.bf16.msra.mxu0 0
    %1432 = vmatprep.subr.bf16.mxu0 0
    %1433 = vmatpush1.bf16.msra.mxu0 0
    %1434 = vmatprep.subr.bf16.mxu0 0
    %1435 = vmatpush1.bf16.msra.mxu0 0
    %1436 = vmatprep.subr.bf16.mxu0 0
    %1437 = vmatpush1.bf16.msra.mxu0 0
    %1438 = vmatprep.subr.bf16.mxu0 0
    %1439 = vmatpush1.bf16.msra.mxu0 0
    %1440 = vmatprep.subr.bf16.mxu0 0
    %1441 = vmatpush1.bf16.msra.mxu0 0
    %1442 = vmatprep.mubr.bf16.mxu0 0
    %1443 = vmatmul.mubr.bf16.gmra.mrb[0].mxu0 %v1408
    %v1444 = vpop.f32.mrb[0].mxu0
    %v1445 = vadd.f32 0.0, %v1444
    %v1446 = vpop.f32.mrb[0].mxu0
    %v1447 = vpop.f32.mrb[0].mxu0
    %v1448 = vpop.f32.mrb[0].mxu0
    %1449 = vdwg.mxu0
    %v1450 = vrcp.pop %v1356
    %v1451 = vrcp.pop %v1359
    %v1452 = vmul.f32 %v1402, %v1450
    %v1453 = vmul.f32 %v1445, %v1451
    %v1454 = vpack.c.bf16 %v1453, %v1452
    %s1455 = scalar_lea.vmem %s9, 8
    %v1456 = vld [vmem:[%s1455] sm:$0xf]
    %v1458 = vsel %vm304, %v1454, 0
    %v1461 = vsel %vm940, %v1456, 0
    %1463 = vmatprep.subr.bf16.mxu0 0
    %1464 = vmatpush1.bf16.msra.mxu0 %v1461
    %1465 = vmatprep.subr.bf16.mxu0 0
    %1466 = vmatpush1.bf16.msra.mxu0 0
    %1467 = vmatprep.subr.bf16.mxu0 0
    %1468 = vmatpush1.bf16.msra.mxu0 0
    %1469 = vmatprep.subr.bf16.mxu0 0
    %1470 = vmatpush1.bf16.msra.mxu0 0
    %1471 = vmatprep.subr.bf16.mxu0 0
    %1472 = vmatpush1.bf16.msra.mxu0 0
    %1473 = vmatprep.subr.bf16.mxu0 0
    %1474 = vmatpush1.bf16.msra.mxu0 0
    %1475 = vmatprep.subr.bf16.mxu0 0
    %1476 = vmatpush1.bf16.msra.mxu0 0
    %1477 = vmatprep.subr.bf16.mxu0 0
    %1478 = vmatpush1.bf16.msra.mxu0 0
    %1479 = vmatprep.subr.bf16.mxu0 0
    %1480 = vmatpush1.bf16.msra.mxu0 0
    %1481 = vmatprep.subr.bf16.mxu0 0
    %1482 = vmatpush1.bf16.msra.mxu0 0
    %1483 = vmatprep.subr.bf16.mxu0 0
    %1484 = vmatpush1.bf16.msra.mxu0 0
    %1485 = vmatprep.subr.bf16.mxu0 0
    %1486 = vmatpush1.bf16.msra.mxu0 0
    %1487 = vmatprep.subr.bf16.mxu0 0
    %1488 = vmatpush1.bf16.msra.mxu0 0
    %1489 = vmatprep.subr.bf16.mxu0 0
    %1490 = vmatpush1.bf16.msra.mxu0 0
    %1491 = vmatprep.subr.bf16.mxu0 0
    %1492 = vmatpush1.bf16.msra.mxu0 0
    %1493 = vmatprep.subr.bf16.mxu0 0
    %1494 = vmatpush1.bf16.msra.mxu0 0
    %1495 = vmatprep.mubr.bf16.mxu0 0
    %1496 = vmatmul.mubr.bf16.gmra.mrb[0].mxu0 %v1458
    %v1497 = vpop.f32.mrb[0].mxu0
    %v1498 = vadd.f32 0.0, %v1497
    %v1499 = vpop.f32.mrb[0].mxu0
    %v1500 = vpop.f32.mrb[0].mxu0
    %v1501 = vadd.f32 0.0, %v1500
    %v1502 = vpop.f32.mrb[0].mxu0
    %1503 = vdwg.mxu0
    %v1504 = vadd.f32 %v1026, %v1498
    %v1505 = vadd.f32 %v1029, %v1501
    %s1506 = scalar_lea.vmem %s3, 48
    %v1507 = vld [vmem:[%s1506] sm:$0xf]
    %v1508 = vld [vmem:[%s1506 + $0x4] sm:$0xf]
    %v1509 = vld [vmem:[%s1506 + $0x8] sm:$0xf]
    %v1510 = vld [vmem:[%s1506 + $0xc] sm:$0xf]
    %s1511 = scalar_lea.vmem %s4, 3
    %v1512 = vld [vmem:[%s1511] sm:$0x1]
    %v1514 = vlaneseq
    %v1515 = vshrl.u32 %v1514, 7
    %v1516 = vsub.s32 0, %v1515
    %v1517 = vrot.slane %v1512, %v1516
    %v1523 = vunpack.c.l.b16 %v1507
    %v1524 = vunpack.c.l.b16 %v1508
    %v1525 = vunpack.c.l.b16 %v1509
    %v1526 = vunpack.c.l.b16 %v1510
    %v1527 = vpack.c.b16 %v1524, %v1523
    %v1528 = vpack.c.b16 %v1526, %v1525
    %1531 = vmatprep.subr.bf16.mxu0 0
    %1532 = vmatpush1.bf16.msra.mxu0 %v1527
    %1533 = vmatprep.subr.bf16.mxu0 0
    %1534 = vmatpush1.bf16.msra.mxu0 %v1528
    %1535 = vmatprep.subr.bf16.mxu0 0
    %1536 = vmatpush1.bf16.msra.mxu0 0
    %1537 = vmatprep.subr.bf16.mxu0 0
    %1538 = vmatpush1.bf16.msra.mxu0 0
    %1539 = vmatprep.subr.bf16.mxu0 0
    %1540 = vmatpush1.bf16.msra.mxu0 0
    %1541 = vmatprep.subr.bf16.mxu0 0
    %1542 = vmatpush1.bf16.msra.mxu0 0
    %1543 = vmatprep.subr.bf16.mxu0 0
    %1544 = vmatpush1.bf16.msra.mxu0 0
    %1545 = vmatprep.subr.bf16.mxu0 0
    %1546 = vmatpush1.bf16.msra.mxu0 0
    %1547 = vmatprep.subr.bf16.mxu0 0
    %1548 = vmatpush1.bf16.msra.mxu0 0
    %1549 = vmatprep.subr.bf16.mxu0 0
    %1550 = vmatpush1.bf16.msra.mxu0 0
    %1551 = vmatprep.subr.bf16.mxu0 0
    %1552 = vmatpush1.bf16.msra.mxu0 0
    %1553 = vmatprep.subr.bf16.mxu0 0
    %1554 = vmatpush1.bf16.msra.mxu0 0
    %1555 = vmatprep.subr.bf16.mxu0 0
    %1556 = vmatpush1.bf16.msra.mxu0 0
    %1557 = vmatprep.subr.bf16.mxu0 0
    %1558 = vmatpush1.bf16.msra.mxu0 0
    %1559 = vmatprep.subr.bf16.mxu0 0
    %1560 = vmatpush1.bf16.msra.mxu0 0
    %1561 = vmatprep.subr.bf16.mxu0 0
    %1562 = vmatpush1.bf16.msra.mxu0 0
    %1563 = vmatprep.mubr.bf16.mxu0 0
    %1564 = vmatmul.mubr.bf16.gmra.mrb[0].mxu0 %v107
    %v1565 = vpop.f32.mrb[0].mxu0
    %v1566 = vadd.f32 %v1517, %v1565
    %v1567 = vpop.f32.mrb[0].mxu0
    %v1568 = vpop.f32.mrb[0].mxu0
    %v1569 = vadd.f32 %v1517, %v1568
    %v1570 = vpop.f32.mrb[0].mxu0
    %1571 = vdwg.mxu0
    %s1572 = scalar_lea.vmem %s5, 48
    %v1573 = vld [vmem:[%s1572] sm:$0xf]
    %v1574 = vld [vmem:[%s1572 + $0x4] sm:$0xf]
    %v1575 = vld [vmem:[%s1572 + $0x8] sm:$0xf]
    %v1576 = vld [vmem:[%s1572 + $0xc] sm:$0xf]
    %s1577 = scalar_lea.vmem %s6, 3
    %v1578 = vld [vmem:[%s1577] sm:$0x1]
    %v1580 = vlaneseq
    %v1581 = vshrl.u32 %v1580, 7
    %v1582 = vsub.s32 0, %v1581
    %v1583 = vrot.slane %v1578, %v1582
    %v1589 = vunpack.c.l.b16 %v1573
    %v1590 = vunpack.c.l.b16 %v1574
    %v1591 = vunpack.c.l.b16 %v1575
    %v1592 = vunpack.c.l.b16 %v1576
    %v1593 = vpack.c.b16 %v1590, %v1589
    %v1594 = vpack.c.b16 %v1592, %v1591
    %1597 = vmatprep.subr.bf16.mxu0 0
    %1598 = vmatpush1.bf16.msra.mxu0 %v1593
    %1599 = vmatprep.subr.bf16.mxu0 0
    %1600 = vmatpush1.bf16.msra.mxu0 %v1594
    %1601 = vmatprep.subr.bf16.mxu0 0
    %1602 = vmatpush1.bf16.msra.mxu0 0
    %1603 = vmatprep.subr.bf16.mxu0 0
    %1604 = vmatpush1.bf16.msra.mxu0 0
    %1605 = vmatprep.subr.bf16.mxu0 0
    %1606 = vmatpush1.bf16.msra.mxu0 0
    %1607 = vmatprep.subr.bf16.mxu0 0
    %1608 = vmatpush1.bf16.msra.mxu0 0
    %1609 = vmatprep.subr.bf16.mxu0 0
    %1610 = vmatpush1.bf16.msra.mxu0 0
    %1611 = vmatprep.subr.bf16.mxu0 0
    %1612 = vmatpush1.bf16.msra.mxu0 0
    %1613 = vmatprep.subr.bf16.mxu0 0
    %1614 = vmatpush1.bf16.msra.mxu0 0
    %1615 = vmatprep.subr.bf16.mxu0 0
    %1616 = vmatpush1.bf16.msra.mxu0 0
    %1617 = vmatprep.subr.bf16.mxu0 0
    %1618 = vmatpush1.bf16.msra.mxu0 0
    %1619 = vmatprep.subr.bf16.mxu0 0
    %1620 = vmatpush1.bf16.msra.mxu0 0
    %1621 = vmatprep.subr.bf16.mxu0 0
    %1622 = vmatpush1.bf16.msra.mxu0 0
    %1623 = vmatprep.subr.bf16.mxu0 0
    %1624 = vmatpush1.bf16.msra.mxu0 0
    %1625 = vmatprep.subr.bf16.mxu0 0
    %1626 = vmatpush1.bf16.msra.mxu0 0
    %1627 = vmatprep.subr.bf16.mxu0 0
    %1628 = vmatpush1.bf16.msra.mxu0 0
    %1629 = vmatprep.mubr.bf16.mxu0 0
    %1630 = vmatmul.mubr.bf16.gmra.mrb[0].mxu0 %v174
    %v1631 = vpop.f32.mrb[0].mxu0
    %v1632 = vadd.f32 %v1583, %v1631
    %v1633 = vpop.f32.mrb[0].mxu0
    %v1634 = vpop.f32.mrb[0].mxu0
    %v1635 = vadd.f32 %v1583, %v1634
    %v1636 = vpop.f32.mrb[0].mxu0
    %1637 = vmatprep.mubr.bf16.mxu0 0
    %1638 = vmatmul.mubr.bf16.gmra.mrb[0].mxu0 %v177
    %v1639 = vpop.f32.mrb[0].mxu0
    %v1640 = vadd.f32 %v1583, %v1639
    %v1641 = vpop.f32.mrb[0].mxu0
    %v1642 = vpop.f32.mrb[0].mxu0
    %v1643 = vadd.f32 %v1583, %v1642
    %v1644 = vpop.f32.mrb[0].mxu0
    %1645 = vdwg.mxu0
    %s1646 = scalar_lea.vmem %s7, 48
    %v1647 = vld [vmem:[%s1646] sm:$0xf]
    %v1648 = vld [vmem:[%s1646 + $0x4] sm:$0xf]
    %v1649 = vld [vmem:[%s1646 + $0x8] sm:$0xf]
    %v1650 = vld [vmem:[%s1646 + $0xc] sm:$0xf]
    %s1651 = scalar_lea.vmem %s8, 3
    %v1652 = vld [vmem:[%s1651] sm:$0x1]
    %v1654 = vlaneseq
    %v1655 = vshrl.u32 %v1654, 7
    %v1656 = vsub.s32 0, %v1655
    %v1657 = vrot.slane %v1652, %v1656
    %v1663 = vunpack.c.l.b16 %v1647
    %v1664 = vunpack.c.l.b16 %v1648
    %v1665 = vunpack.c.l.b16 %v1649
    %v1666 = vunpack.c.l.b16 %v1650
    %v1667 = vpack.c.b16 %v1664, %v1663
    %v1668 = vpack.c.b16 %v1666, %v1665
    %1671 = vmatprep.subr.bf16.mxu0 0
    %1672 = vmatpush1.bf16.msra.mxu0 %v1667
    %1673 = vmatprep.subr.bf16.mxu0 0
    %1674 = vmatpush1.bf16.msra.mxu0 %v1668
    %1675 = vmatprep.subr.bf16.mxu0 0
    %1676 = vmatpush1.bf16.msra.mxu0 0
    %1677 = vmatprep.subr.bf16.mxu0 0
    %1678 = vmatpush1.bf16.msra.mxu0 0
    %1679 = vmatprep.subr.bf16.mxu0 0
    %1680 = vmatpush1.bf16.msra.mxu0 0
    %1681 = vmatprep.subr.bf16.mxu0 0
    %1682 = vmatpush1.bf16.msra.mxu0 0
    %1683 = vmatprep.subr.bf16.mxu0 0
    %1684 = vmatpush1.bf16.msra.mxu0 0
    %1685 = vmatprep.subr.bf16.mxu0 0
    %1686 = vmatpush1.bf16.msra.mxu0 0
    %1687 = vmatprep.subr.bf16.mxu0 0
    %1688 = vmatpush1.bf16.msra.mxu0 0
    %1689 = vmatprep.subr.bf16.mxu0 0
    %1690 = vmatpush1.bf16.msra.mxu0 0
    %1691 = vmatprep.subr.bf16.mxu0 0
    %1692 = vmatpush1.bf16.msra.mxu0 0
    %1693 = vmatprep.subr.bf16.mxu0 0
    %1694 = vmatpush1.bf16.msra.mxu0 0
    %1695 = vmatprep.subr.bf16.mxu0 0
    %1696 = vmatpush1.bf16.msra.mxu0 0
    %1697 = vmatprep.subr.bf16.mxu0 0
    %1698 = vmatpush1.bf16.msra.mxu0 0
    %1699 = vmatprep.subr.bf16.mxu0 0
    %1700 = vmatpush1.bf16.msra.mxu0 0
    %1701 = vmatprep.subr.bf16.mxu0 0
    %1702 = vmatpush1.bf16.msra.mxu0 0
    %1703 = vmatprep.mubr.bf16.mxu0 0
    %1704 = vmatmul.mubr.bf16.gmra.mrb[0].mxu0 %v174
    %v1705 = vpop.f32.mrb[0].mxu0
    %v1706 = vadd.f32 %v1657, %v1705
    %v1707 = vpop.f32.mrb[0].mxu0
    %v1708 = vpop.f32.mrb[0].mxu0
    %v1709 = vadd.f32 %v1657, %v1708
    %v1710 = vpop.f32.mrb[0].mxu0
    %1711 = vmatprep.mubr.bf16.mxu0 0
    %1712 = vmatmul.mubr.bf16.gmra.mrb[0].mxu0 %v177
    %v1713 = vpop.f32.mrb[0].mxu0
    %v1714 = vadd.f32 %v1657, %v1713
    %v1715 = vpop.f32.mrb[0].mxu0
    %v1716 = vpop.f32.mrb[0].mxu0
    %v1717 = vadd.f32 %v1657, %v1716
    %v1718 = vpop.f32.mrb[0].mxu0
    %1719 = vdwg.mxu0
    %v1720 = vpack.c.bf16 %v1566, %v1566
    %v1721 = vpack.c.bf16 %v1569, %v1569
    %v1722 = vpack.c.bf16 %v1635, %v1632
    %v1723 = vpack.c.bf16 %v1643, %v1640
    %v1725 = vsel %vm304, %v1720, 0
    %v1728 = vsel %vm304, %v1722, 0
    %1730 = vmatprep.subr.bf16.mxu0 0
    %1731 = vmatpush1.bf16.xpose.msra.mxu0 %v1728
    %1732 = vmatprep.subr.bf16.mxu0 0
    %1733 = vmatpush1.bf16.xpose.msra.mxu0 0
    %1734 = vmatprep.subr.bf16.mxu0 0
    %1735 = vmatpush1.bf16.xpose.msra.mxu0 0
    %1736 = vmatprep.subr.bf16.mxu0 0
    %1737 = vmatpush1.bf16.xpose.msra.mxu0 0
    %1738 = vmatprep.subr.bf16.mxu0 0
    %1739 = vmatpush1.bf16.xpose.msra.mxu0 0
    %1740 = vmatprep.subr.bf16.mxu0 0
    %1741 = vmatpush1.bf16.xpose.msra.mxu0 0
    %1742 = vmatprep.subr.bf16.mxu0 0
    %1743 = vmatpush1.bf16.xpose.msra.mxu0 0
    %1744 = vmatprep.subr.bf16.mxu0 0
    %1745 = vmatpush1.bf16.xpose.msra.mxu0 0
    %1746 = vmatprep.subr.bf16.mxu0 0
    %1747 = vmatpush1.bf16.xpose.msra.mxu0 0
    %1748 = vmatprep.subr.bf16.mxu0 0
    %1749 = vmatpush1.bf16.xpose.msra.mxu0 0
    %1750 = vmatprep.subr.bf16.mxu0 0
    %1751 = vmatpush1.bf16.xpose.msra.mxu0 0
    %1752 = vmatprep.subr.bf16.mxu0 0
    %1753 = vmatpush1.bf16.xpose.msra.mxu0 0
    %1754 = vmatprep.subr.bf16.mxu0 0
    %1755 = vmatpush1.bf16.xpose.msra.mxu0 0
    %1756 = vmatprep.subr.bf16.mxu0 0
    %1757 = vmatpush1.bf16.xpose.msra.mxu0 0
    %1758 = vmatprep.subr.bf16.mxu0 0
    %1759 = vmatpush1.bf16.xpose.msra.mxu0 0
    %1760 = vmatprep.subr.bf16.mxu0 0
    %1761 = vmatpush1.bf16.xpose.msra.mxu0 0
    %1762 = vmatprep.mubr.bf16.mxu0 0
    %1763 = vmatmul.mubr.bf16.gmra.mrb[0].mxu0 %v1725
    %v1764 = vpop.f32.mrb[0].mxu0
    %v1765 = vadd.f32 0.0, %v1764
    %v1766 = vpop.f32.mrb[0].mxu0
    %v1767 = vpop.f32.mrb[0].mxu0
    %v1768 = vpop.f32.mrb[0].mxu0
    %1769 = vdwg.mxu0
    %v1771 = vsel %vm304, %v1721, 0
    %v1774 = vsel %vm304, %v1723, 0
    %1776 = vmatprep.subr.bf16.mxu0 0
    %1777 = vmatpush1.bf16.xpose.msra.mxu0 %v1774
    %1778 = vmatprep.subr.bf16.mxu0 0
    %1779 = vmatpush1.bf16.xpose.msra.mxu0 0
    %1780 = vmatprep.subr.bf16.mxu0 0
    %1781 = vmatpush1.bf16.xpose.msra.mxu0 0
    %1782 = vmatprep.subr.bf16.mxu0 0
    %1783 = vmatpush1.bf16.xpose.msra.mxu0 0
    %1784 = vmatprep.subr.bf16.mxu0 0
    %1785 = vmatpush1.bf16.xpose.msra.mxu0 0
    %1786 = vmatprep.subr.bf16.mxu0 0
    %1787 = vmatpush1.bf16.xpose.msra.mxu0 0
    %1788 = vmatprep.subr.bf16.mxu0 0
    %1789 = vmatpush1.bf16.xpose.msra.mxu0 0
    %1790 = vmatprep.subr.bf16.mxu0 0
    %1791 = vmatpush1.bf16.xpose.msra.mxu0 0
    %1792 = vmatprep.subr.bf16.mxu0 0
    %1793 = vmatpush1.bf16.xpose.msra.mxu0 0
    %1794 = vmatprep.subr.bf16.mxu0 0
    %1795 = vmatpush1.bf16.xpose.msra.mxu0 0
    %1796 = vmatprep.subr.bf16.mxu0 0
    %1797 = vmatpush1.bf16.xpose.msra.mxu0 0
    %1798 = vmatprep.subr.bf16.mxu0 0
    %1799 = vmatpush1.bf16.xpose.msra.mxu0 0
    %1800 = vmatprep.subr.bf16.mxu0 0
    %1801 = vmatpush1.bf16.xpose.msra.mxu0 0
    %1802 = vmatprep.subr.bf16.mxu0 0
    %1803 = vmatpush1.bf16.xpose.msra.mxu0 0
    %1804 = vmatprep.subr.bf16.mxu0 0
    %1805 = vmatpush1.bf16.xpose.msra.mxu0 0
    %1806 = vmatprep.subr.bf16.mxu0 0
    %1807 = vmatpush1.bf16.xpose.msra.mxu0 0
    %1808 = vmatprep.mubr.bf16.mxu0 0
    %1809 = vmatmul.mubr.bf16.gmra.mrb[0].mxu0 %v1771
    %v1810 = vpop.f32.mrb[0].mxu0
    %v1811 = vadd.f32 0.0, %v1810
    %v1812 = vpop.f32.mrb[0].mxu0
    %v1813 = vpop.f32.mrb[0].mxu0
    %v1814 = vpop.f32.mrb[0].mxu0
    %1815 = vdwg.mxu0
    %v1816 = vsel %vm397, %v1765, -inf
    %1817 = vmax.xlane.f32.xlu0 %v1816
    %v1818 = vpop.xlane.xlu0 %1817
    %v1819 = vsel %vm397, %v1811, -inf
    %1820 = vmax.xlane.f32.xlu0 %v1819
    %v1821 = vpop.xlane.xlu0 %1820
    %v1822 = vsub.f32 %v1765, %v1818
    %v1823 = vsub.f32 %v1811, %v1821
    %v1824 = vmul.f32 %v1822, 1.442695
    %v1825 = vpow.pop %v1824
    %v1826 = vmul.f32 %v1823, 1.442695
    %v1827 = vpow.pop %v1826
    %v1828 = vsel %vm397, %v1825, 0.0
    %1829 = vadd.xlane.f32.xlu0 %v1828
    %v1830 = vpop.xlane.xlu0 %1829
    %v1831 = vsel %vm397, %v1827, 0.0
    %1832 = vadd.xlane.f32.xlu0 %v1831
    %v1833 = vpop.xlane.xlu0 %1832
    %v1834 = vpack.c.bf16 %v1825, %v1825
    %v1835 = vpack.c.bf16 %v1827, %v1827
    %v1836 = vpack.c.bf16 %v1709, %v1706
    %v1837 = vpack.c.bf16 %v1717, %v1714
    %v1839 = vsel %vm397, %v1834, 0
    %1841 = vmatprep.subr.bf16.mxu0 0
    %1842 = vmatpush1.bf16.msra.mxu0 %v1836
    %1843 = vmatprep.subr.bf16.mxu0 0
    %1844 = vmatpush1.bf16.msra.mxu0 0
    %1845 = vmatprep.subr.bf16.mxu0 0
    %1846 = vmatpush1.bf16.msra.mxu0 0
    %1847 = vmatprep.subr.bf16.mxu0 0
    %1848 = vmatpush1.bf16.msra.mxu0 0
    %1849 = vmatprep.subr.bf16.mxu0 0
    %1850 = vmatpush1.bf16.msra.mxu0 0
    %1851 = vmatprep.subr.bf16.mxu0 0
    %1852 = vmatpush1.bf16.msra.mxu0 0
    %1853 = vmatprep.subr.bf16.mxu0 0
    %1854 = vmatpush1.bf16.msra.mxu0 0
    %1855 = vmatprep.subr.bf16.mxu0 0
    %1856 = vmatpush1.bf16.msra.mxu0 0
    %1857 = vmatprep.subr.bf16.mxu0 0
    %1858 = vmatpush1.bf16.msra.mxu0 0
    %1859 = vmatprep.subr.bf16.mxu0 0
    %1860 = vmatpush1.bf16.msra.mxu0 0
    %1861 = vmatprep.subr.bf16.mxu0 0
    %1862 = vmatpush1.bf16.msra.mxu0 0
    %1863 = vmatprep.subr.bf16.mxu0 0
    %1864 = vmatpush1.bf16.msra.mxu0 0
    %1865 = vmatprep.subr.bf16.mxu0 0
    %1866 = vmatpush1.bf16.msra.mxu0 0
    %1867 = vmatprep.subr.bf16.mxu0 0
    %1868 = vmatpush1.bf16.msra.mxu0 0
    %1869 = vmatprep.subr.bf16.mxu0 0
    %1870 = vmatpush1.bf16.msra.mxu0 0
    %1871 = vmatprep.subr.bf16.mxu0 0
    %1872 = vmatpush1.bf16.msra.mxu0 0
    %1873 = vmatprep.mubr.bf16.mxu0 0
    %1874 = vmatmul.mubr.bf16.gmra.mrb[0].mxu0 %v1839
    %v1875 = vpop.f32.mrb[0].mxu0
    %v1876 = vadd.f32 0.0, %v1875
    %v1877 = vpop.f32.mrb[0].mxu0
    %v1878 = vpop.f32.mrb[0].mxu0
    %v1879 = vpop.f32.mrb[0].mxu0
    %1880 = vdwg.mxu0
    %v1882 = vsel %vm397, %v1835, 0
    %1884 = vmatprep.subr.bf16.mxu0 0
    %1885 = vmatpush1.bf16.msra.mxu0 %v1837
    %1886 = vmatprep.subr.bf16.mxu0 0
    %1887 = vmatpush1.bf16.msra.mxu0 0
    %1888 = vmatprep.subr.bf16.mxu0 0
    %1889 = vmatpush1.bf16.msra.mxu0 0
    %1890 = vmatprep.subr.bf16.mxu0 0
    %1891 = vmatpush1.bf16.msra.mxu0 0
    %1892 = vmatprep.subr.bf16.mxu0 0
    %1893 = vmatpush1.bf16.msra.mxu0 0
    %1894 = vmatprep.subr.bf16.mxu0 0
    %1895 = vmatpush1.bf16.msra.mxu0 0
    %1896 = vmatprep.subr.bf16.mxu0 0
    %1897 = vmatpush1.bf16.msra.mxu0 0
    %1898 = vmatprep.subr.bf16.mxu0 0
    %1899 = vmatpush1.bf16.msra.mxu0 0
    %1900 = vmatprep.subr.bf16.mxu0 0
    %1901 = vmatpush1.bf16.msra.mxu0 0
    %1902 = vmatprep.subr.bf16.mxu0 0
    %1903 = vmatpush1.bf16.msra.mxu0 0
    %1904 = vmatprep.subr.bf16.mxu0 0
    %1905 = vmatpush1.bf16.msra.mxu0 0
    %1906 = vmatprep.subr.bf16.mxu0 0
    %1907 = vmatpush1.bf16.msra.mxu0 0
    %1908 = vmatprep.subr.bf16.mxu0 0
    %1909 = vmatpush1.bf16.msra.mxu0 0
    %1910 = vmatprep.subr.bf16.mxu0 0
    %1911 = vmatpush1.bf16.msra.mxu0 0
    %1912 = vmatprep.subr.bf16.mxu0 0
    %1913 = vmatpush1.bf16.msra.mxu0 0
    %1914 = vmatprep.subr.bf16.mxu0 0
    %1915 = vmatpush1.bf16.msra.mxu0 0
    %1916 = vmatprep.mubr.bf16.mxu0 0
    %1917 = vmatmul.mubr.bf16.gmra.mrb[0].mxu0 %v1882
    %v1918 = vpop.f32.mrb[0].mxu0
    %v1919 = vadd.f32 0.0, %v1918
    %v1920 = vpop.f32.mrb[0].mxu0
    %v1921 = vpop.f32.mrb[0].mxu0
    %v1922 = vpop.f32.mrb[0].mxu0
    %1923 = vdwg.mxu0
    %v1924 = vrcp.pop %v1830
    %v1925 = vrcp.pop %v1833
    %v1926 = vmul.f32 %v1876, %v1924
    %v1927 = vmul.f32 %v1919, %v1925
    %v1928 = vpack.c.bf16 %v1927, %v1926
    %s1929 = scalar_lea.vmem %s9, 12
    %v1930 = vld [vmem:[%s1929] sm:$0xf]
    %v1932 = vsel %vm304, %v1928, 0
    %v1935 = vsel %vm940, %v1930, 0
    %1937 = vmatprep.subr.bf16.mxu0 0
    %1938 = vmatpush1.bf16.msra.mxu0 %v1935
    %1939 = vmatprep.subr.bf16.mxu0 0
    %1940 = vmatpush1.bf16.msra.mxu0 0
    %1941 = vmatprep.subr.bf16.mxu0 0
    %1942 = vmatpush1.bf16.msra.mxu0 0
    %1943 = vmatprep.subr.bf16.mxu0 0
    %1944 = vmatpush1.bf16.msra.mxu0 0
    %1945 = vmatprep.subr.bf16.mxu0 0
    %1946 = vmatpush1.bf16.msra.mxu0 0
    %1947 = vmatprep.subr.bf16.mxu0 0
    %1948 = vmatpush1.bf16.msra.mxu0 0
    %1949 = vmatprep.subr.bf16.mxu0 0
    %1950 = vmatpush1.bf16.msra.mxu0 0
    %1951 = vmatprep.subr.bf16.mxu0 0
    %1952 = vmatpush1.bf16.msra.mxu0 0
    %1953 = vmatprep.subr.bf16.mxu0 0
    %1954 = vmatpush1.bf16.msra.mxu0 0
    %1955 = vmatprep.subr.bf16.mxu0 0
    %1956 = vmatpush1.bf16.msra.mxu0 0
    %1957 = vmatprep.subr.bf16.mxu0 0
    %1958 = vmatpush1.bf16.msra.mxu0 0
    %1959 = vmatprep.subr.bf16.mxu0 0
    %1960 = vmatpush1.bf16.msra.mxu0 0
    %1961 = vmatprep.subr.bf16.mxu0 0
    %1962 = vmatpush1.bf16.msra.mxu0 0
    %1963 = vmatprep.subr.bf16.mxu0 0
    %1964 = vmatpush1.bf16.msra.mxu0 0
    %1965 = vmatprep.subr.bf16.mxu0 0
    %1966 = vmatpush1.bf16.msra.mxu0 0
    %1967 = vmatprep.subr.bf16.mxu0 0
    %1968 = vmatpush1.bf16.msra.mxu0 0
    %1969 = vmatprep.mubr.bf16.mxu0 0
    %1970 = vmatmul.mubr.bf16.gmra.mrb[0].mxu0 %v1932
    %v1971 = vpop.f32.mrb[0].mxu0
    %v1972 = vadd.f32 0.0, %v1971
    %v1973 = vpop.f32.mrb[0].mxu0
    %v1974 = vpop.f32.mrb[0].mxu0
    %v1975 = vadd.f32 0.0, %v1974
    %v1976 = vpop.f32.mrb[0].mxu0
    %1977 = vdwg.mxu0
    %v1978 = vadd.f32 %v1504, %v1972
    %v1979 = vadd.f32 %v1505, %v1975
    %v1980 = vld [vmem:[%s10] sm:$0x1]
    %v1982 = vlaneseq
    %v1983 = vshrl.u32 %v1982, 7
    %v1984 = vsub.s32 0, %v1983
    %v1985 = vrot.slane %v1980, %v1984
    %v1987 = vadd.f32 %v1978, %v1985
    %v1988 = vadd.f32 %v1979, %v1985
    %s1989 = sld [smem:[#allocation2]]
    %s1990 = sld [smem:[#allocation2 + $0x1]]
    %v1991 = vstv %s1989
    %v1992 = vmul.f32 %v1991, %v71
    %v1993 = vmul.f32 %v1991, %v72
    %v1994 = vstv %s1990
    %v1995 = vmul.f32 %v1994, %v1987
    %v1996 = vmul.f32 %v1994, %v1988
    %v1997 = vadd.f32 %v1992, %v1995
    %v1998 = vadd.f32 %v1993, %v1996
    %v1999 = vsel %vm105, %v1997, 0.0
    %2000 = vadd.xlane.f32.xlu0 %v1999
    %v2001 = vpop.xlane.xlu0 %2000
    %v2002 = vsel %vm105, %v1998, 0.0
    %2003 = vadd.xlane.f32.xlu0 %v2002
    %v2004 = vpop.xlane.xlu0 %2003
    %v2005 = vrcp.pop 32.0
    %v2006 = vmul.f32 %v2001, %v2005
    %v2007 = vmul.f32 %v2004, %v2005
    %v2008 = vmul.f32 %v1997, %v1997
    %v2009 = vmul.f32 %v1998, %v1998
    %v2010 = vsel %vm105, %v2008, 0.0
    %2011 = vadd.xlane.f32.xlu0 %v2010
    %v2012 = vpop.xlane.xlu0 %2011
    %v2013 = vsel %vm105, %v2009, 0.0
    %2014 = vadd.xlane.f32.xlu0 %v2013
    %v2015 = vpop.xlane.xlu0 %2014
    %v2016 = vmul.f32 %v2012, %v2005
    %v2017 = vmul.f32 %v2015, %v2005
    %v2018 = vmul.f32 %v2006, %v2006
    %v2019 = vmul.f32 %v2007, %v2007
    %v2020 = vsub.f32 %v2016, %v2018
    %v2021 = vsub.f32 %v2017, %v2019
    %v2022 = vsub.f32 %v1997, %v2006
    %v2023 = vsub.f32 %v1998, %v2007
    %v2024 = vadd.f32 %v2020, 1e-12
    %v2025 = vadd.f32 %v2021, 1e-12
    %v2026 = vrsqrt.pop %v2024
    %v2027 = vrsqrt.pop %v2025
    %v2028 = vmul.f32 %v2022, %v2026
    %v2029 = vmul.f32 %v2023, %v2027
    %v2031 = vlaneseq
    %v2032 = vshrl.u32 %v2031, 7
    %v2033 = vsub.s32 0, %v2032
    %v2034 = vrot.slane %v77, %v2033
    %v2036 = vmul.f32 %v2028, %v2034
    %v2037 = vmul.f32 %v2029, %v2034
    %v2039 = vlaneseq
    %v2040 = vshrl.u32 %v2039, 7
    %v2041 = vsub.s32 0, %v2040
    %v2042 = vrot.slane %v78, %v2041
    %v2044 = vadd.f32 %v2036, %v2042
    %v2045 = vadd.f32 %v2037, %v2042
    %v2046 = vpack.c.bf16 %v2045, %v2044
    %v2047 = vld [vmem:[%s11] sm:$0xf]
    %v2048 = vld [vmem:[%s11 + $0x4] sm:$0xf]
    %v2049 = vld [vmem:[%s11 + $0x8] sm:$0xf]
    %v2050 = vld [vmem:[%s11 + $0xc] sm:$0xf]
    %v2051 = vld [vmem:[%s12] sm:$0x1]
    %v2053 = vlaneseq
    %v2054 = vshrl.u32 %v2053, 7
    %v2055 = vsub.s32 0, %v2054
    %v2056 = vrot.slane %v2051, %v2055
    %v2062 = vunpack.c.l.b16 %v2047
    %v2063 = vunpack.c.l.b16 %v2048
    %v2064 = vunpack.c.l.b16 %v2049
    %v2065 = vunpack.c.l.b16 %v2050
    %v2066 = vpack.c.b16 %v2063, %v2062
    %v2067 = vpack.c.b16 %v2065, %v2064
    %v2071 = vsel %vm105, %v2046, 0
    %2073 = vmatprep.subr.bf16.mxu0 0
    %2074 = vmatpush1.bf16.msra.mxu0 %v2066
    %2075 = vmatprep.subr.bf16.mxu0 0
    %2076 = vmatpush1.bf16.msra.mxu0 %v2067
    %2077 = vmatprep.subr.bf16.mxu0 0
    %2078 = vmatpush1.bf16.msra.mxu0 0
    %2079 = vmatprep.subr.bf16.mxu0 0
    %2080 = vmatpush1.bf16.msra.mxu0 0
    %2081 = vmatprep.subr.bf16.mxu0 0
    %2082 = vmatpush1.bf16.msra.mxu0 0
    %2083 = vmatprep.subr.bf16.mxu0 0
    %2084 = vmatpush1.bf16.msra.mxu0 0
    %2085 = vmatprep.subr.bf16.mxu0 0
    %2086 = vmatpush1.bf16.msra.mxu0 0
    %2087 = vmatprep.subr.bf16.mxu0 0
    %2088 = vmatpush1.bf16.msra.mxu0 0
    %2089 = vmatprep.subr.bf16.mxu0 0
    %2090 = vmatpush1.bf16.msra.mxu0 0
    %2091 = vmatprep.subr.bf16.mxu0 0
    %2092 = vmatpush1.bf16.msra.mxu0 0
    %2093 = vmatprep.subr.bf16.mxu0 0
    %2094 = vmatpush1.bf16.msra.mxu0 0
    %2095 = vmatprep.subr.bf16.mxu0 0
    %2096 = vmatpush1.bf16.msra.mxu0 0
    %2097 = vmatprep.subr.bf16.mxu0 0
    %2098 = vmatpush1.bf16.msra.mxu0 0
    %2099 = vmatprep.subr.bf16.mxu0 0
    %2100 = vmatpush1.bf16.msra.mxu0 0
    %2101 = vmatprep.subr.bf16.mxu0 0
    %2102 = vmatpush1.bf16.msra.mxu0 0
    %2103 = vmatprep.subr.bf16.mxu0 0
    %2104 = vmatpush1.bf16.msra.mxu0 0
    %2105 = vmatprep.mubr.bf16.mxu0 0
    %2106 = vmatmul.mubr.bf16.gmra.mrb[0].mxu0 %v2071
    %v2107 = vpop.f32.mrb[0].mxu0
    %v2108 = vadd.f32 %v2056, %v2107
    %v2109 = vpop.f32.mrb[0].mxu0
    %v2110 = vpop.f32.mrb[0].mxu0
    %v2111 = vadd.f32 %v2056, %v2110
    %v2112 = vpop.f32.mrb[0].mxu0
    %2113 = vdwg.mxu0
    %v2114 = vmul.f32 %v2108, %v2108
    %v2115 = vmul.f32 %v2111, %v2111
    %v2116 = vmul.f32 %v2108, %v2114
    %v2117 = vmul.f32 %v2111, %v2115
    %v2118 = vmul.f32 %v2116, 0.044715
    %v2119 = vmul.f32 %v2117, 0.044715
    %v2120 = vadd.f32 %v2108, %v2118
    %v2121 = vadd.f32 %v2111, %v2119
    %v2122 = vmul.f32 %v2120, 0.7978846
    %v2123 = vmul.f32 %v2121, 0.7978846
    %v2124 = vtanh.pop %v2122
    %v2125 = vtanh.pop %v2123
    %v2126 = vadd.f32 %v2124, 1.0
    %v2127 = vadd.f32 %v2125, 1.0
    %v2128 = vmul.f32 %v2126, 0.5
    %v2129 = vmul.f32 %v2127, 0.5
    %v2130 = vmul.f32 %v2108, %v2128
    %v2131 = vmul.f32 %v2111, %v2129
    %v2132 = vpack.c.bf16 %v2131, %v2130
    %v2133 = vld [vmem:[%s13] sm:$0xf]
    %v2134 = vld [vmem:[%s13 + $0x4] sm:$0xf]
    %v2135 = vld [vmem:[%s13 + $0x8] sm:$0xf]
    %v2136 = vld [vmem:[%s13 + $0xc] sm:$0xf]
    %v2137 = vld [vmem:[%s13 + $0x10] sm:$0xf]
    %v2138 = vld [vmem:[%s13 + $0x14] sm:$0xf]
    %v2139 = vld [vmem:[%s13 + $0x18] sm:$0xf]
    %v2140 = vld [vmem:[%s13 + $0x1c] sm:$0xf]
    %v2141 = vld [vmem:[%s13 + $0x20] sm:$0xf]
    %v2142 = vld [vmem:[%s13 + $0x24] sm:$0xf]
    %v2143 = vld [vmem:[%s13 + $0x28] sm:$0xf]
    %v2144 = vld [vmem:[%s13 + $0x2c] sm:$0xf]
    %v2145 = vld [vmem:[%s13 + $0x30] sm:$0xf]
    %v2146 = vld [vmem:[%s13 + $0x34] sm:$0xf]
    %v2147 = vld [vmem:[%s13 + $0x38] sm:$0xf]
    %v2148 = vld [vmem:[%s13 + $0x3c] sm:$0xf]
    %v2149 = vld [vmem:[%s14] sm:$0x1]
    %v2151 = vlaneseq
    %v2152 = vshrl.u32 %v2151, 7
    %v2153 = vsub.s32 0, %v2152
    %v2154 = vrot.slane %v2149, %v2153
    %v2172 = vunpack.c.l.b16 %v2133
    %v2173 = vunpack.c.l.b16 %v2134
    %v2174 = vunpack.c.l.b16 %v2135
    %v2175 = vunpack.c.l.b16 %v2136
    %v2176 = vunpack.c.l.b16 %v2137
    %v2177 = vunpack.c.l.b16 %v2138
    %v2178 = vunpack.c.l.b16 %v2139
    %v2179 = vunpack.c.l.b16 %v2140
    %v2180 = vunpack.c.l.b16 %v2141
    %v2181 = vunpack.c.l.b16 %v2142
    %v2182 = vunpack.c.l.b16 %v2143
    %v2183 = vunpack.c.l.b16 %v2144
    %v2184 = vunpack.c.l.b16 %v2145
    %v2185 = vunpack.c.l.b16 %v2146
    %v2186 = vunpack.c.l.b16 %v2147
    %v2187 = vunpack.c.l.b16 %v2148
    %v2188 = vpack.c.b16 %v2173, %v2172
    %v2189 = vpack.c.b16 %v2175, %v2174
    %v2190 = vpack.c.b16 %v2177, %v2176
    %v2191 = vpack.c.b16 %v2179, %v2178
    %v2192 = vpack.c.b16 %v2181, %v2180
    %v2193 = vpack.c.b16 %v2183, %v2182
    %v2194 = vpack.c.b16 %v2185, %v2184
    %v2195 = vpack.c.b16 %v2187, %v2186
    %2204 = vmatprep.subr.bf16.mxu0 0
    %2205 = vmatpush1.bf16.msra.mxu0 %v2188
    %2206 = vmatprep.subr.bf16.mxu0 0
    %2207 = vmatpush1.bf16.msra.mxu0 %v2189
    %2208 = vmatprep.subr.bf16.mxu0 0
    %2209 = vmatpush1.bf16.msra.mxu0 %v2190
    %2210 = vmatprep.subr.bf16.mxu0 0
    %2211 = vmatpush1.bf16.msra.mxu0 %v2191
    %2212 = vmatprep.subr.bf16.mxu0 0
    %2213 = vmatpush1.bf16.msra.mxu0 %v2192
    %2214 = vmatprep.subr.bf16.mxu0 0
    %2215 = vmatpush1.bf16.msra.mxu0 %v2193
    %2216 = vmatprep.subr.bf16.mxu0 0
    %2217 = vmatpush1.bf16.msra.mxu0 %v2194
    %2218 = vmatprep.subr.bf16.mxu0 0
    %2219 = vmatpush1.bf16.msra.mxu0 %v2195
    %2220 = vmatprep.subr.bf16.mxu0 0
    %2221 = vmatpush1.bf16.msra.mxu0 0
    %2222 = vmatprep.subr.bf16.mxu0 0
    %2223 = vmatpush1.bf16.msra.mxu0 0
    %2224 = vmatprep.subr.bf16.mxu0 0
    %2225 = vmatpush1.bf16.msra.mxu0 0
    %2226 = vmatprep.subr.bf16.mxu0 0
    %2227 = vmatpush1.bf16.msra.mxu0 0
    %2228 = vmatprep.subr.bf16.mxu0 0
    %2229 = vmatpush1.bf16.msra.mxu0 0
    %2230 = vmatprep.subr.bf16.mxu0 0
    %2231 = vmatpush1.bf16.msra.mxu0 0
    %2232 = vmatprep.subr.bf16.mxu0 0
    %2233 = vmatpush1.bf16.msra.mxu0 0
    %2234 = vmatprep.subr.bf16.mxu0 0
    %2235 = vmatpush1.bf16.msra.mxu0 0
    %2236 = vmatprep.mubr.bf16.mxu0 0
    %2237 = vmatmul.mubr.bf16.gmra.mrb[0].mxu0 %v2132
    %v2238 = vpop.f32.mrb[0].mxu0
    %v2239 = vadd.f32 %v2154, %v2238
    %v2240 = vpop.f32.mrb[0].mxu0
    %v2241 = vpop.f32.mrb[0].mxu0
    %v2242 = vadd.f32 %v2154, %v2241
    %v2243 = vpop.f32.mrb[0].mxu0
    %2244 = vdwg.mxu0
    %s2245 = sld [smem:[#allocation2 + $0x2]]
    %s2246 = sld [smem:[#allocation2 + $0x3]]
    %v2247 = vstv %s2245
    %v2248 = vmul.f32 %v2247, %v2044
    %v2249 = vmul.f32 %v2247, %v2045
    %v2250 = vstv %s2246
    %v2251 = vmul.f32 %v2250, %v2239
    %v2252 = vmul.f32 %v2250, %v2242
    %v2253 = vadd.f32 %v2248, %v2251
    %v2254 = vadd.f32 %v2249, %v2252
    %v2255 = vsel %vm105, %v2253, 0.0
    %2256 = vadd.xlane.f32.xlu0 %v2255
    %v2257 = vpop.xlane.xlu0 %2256
    %v2258 = vsel %vm105, %v2254, 0.0
    %2259 = vadd.xlane.f32.xlu0 %v2258
    %v2260 = vpop.xlane.xlu0 %2259
    %v2261 = vmul.f32 %v2257, %v2005
    %v2262 = vmul.f32 %v2260, %v2005
    %v2263 = vmul.f32 %v2253, %v2253
    %v2264 = vmul.f32 %v2254, %v2254
    %v2265 = vsel %vm105, %v2263, 0.0
    %2266 = vadd.xlane.f32.xlu0 %v2265
    %v2267 = vpop.xlane.xlu0 %2266
    %v2268 = vsel %vm105, %v2264, 0.0
    %2269 = vadd.xlane.f32.xlu0 %v2268
    %v2270 = vpop.xlane.xlu0 %2269
    %v2271 = vmul.f32 %v2267, %v2005
    %v2272 = vmul.f32 %v2270, %v2005
    %v2273 = vmul.f32 %v2261, %v2261
    %v2274 = vmul.f32 %v2262, %v2262
    %v2275 = vsub.f32 %v2271, %v2273
    %v2276 = vsub.f32 %v2272, %v2274
    %v2277 = vsub.f32 %v2253, %v2261
    %v2278 = vsub.f32 %v2254, %v2262
    %v2279 = vadd.f32 %v2275, 1e-12
    %v2280 = vadd.f32 %v2276, 1e-12
    %v2281 = vrsqrt.pop %v2279
    %v2282 = vrsqrt.pop %v2280
    %v2283 = vmul.f32 %v2277, %v2281
    %v2284 = vmul.f32 %v2278, %v2282
    %v2285 = vmul.f32 %v2283, %v2034
    %v2286 = vmul.f32 %v2284, %v2034
    %v2287 = vadd.f32 %v2285, %v2042
    %v2288 = vadd.f32 %v2286, %v2042
    %v2289 = vpack.c.bf16 %v2288, %v2287
    %s2290 = scalar_lea.vmem %s3, 64
    %v2291 = vld [vmem:[%s2290] sm:$0xf]
    %v2292 = vld [vmem:[%s2290 + $0x4] sm:$0xf]
    %v2293 = vld [vmem:[%s2290 + $0x8] sm:$0xf]
    %v2294 = vld [vmem:[%s2290 + $0xc] sm:$0xf]
    %s2295 = scalar_lea.vmem %s4, 4
    %v2296 = vld [vmem:[%s2295] sm:$0x1]
    %v2298 = vlaneseq
    %v2299 = vshrl.u32 %v2298, 7
    %v2300 = vsub.s32 0, %v2299
    %v2301 = vrot.slane %v2296, %v2300
    %v2307 = vunpack.c.l.b16 %v2291
    %v2308 = vunpack.c.l.b16 %v2292
    %v2309 = vunpack.c.l.b16 %v2293
    %v2310 = vunpack.c.l.b16 %v2294
    %v2311 = vpack.c.b16 %v2308, %v2307
    %v2312 = vpack.c.b16 %v2310, %v2309
    %v2316 = vsel %vm105, %v2289, 0
    %2318 = vmatprep.subr.bf16.mxu0 0
    %2319 = vmatpush1.bf16.msra.mxu0 %v2311
    %2320 = vmatprep.subr.bf16.mxu0 0
    %2321 = vmatpush1.bf16.msra.mxu0 %v2312
    %2322 = vmatprep.subr.bf16.mxu0 0
    %2323 = vmatpush1.bf16.msra.mxu0 0
    %2324 = vmatprep.subr.bf16.mxu0 0
    %2325 = vmatpush1.bf16.msra.mxu0 0
    %2326 = vmatprep.subr.bf16.mxu0 0
    %2327 = vmatpush1.bf16.msra.mxu0 0
    %2328 = vmatprep.subr.bf16.mxu0 0
    %2329 = vmatpush1.bf16.msra.mxu0 0
    %2330 = vmatprep.subr.bf16.mxu0 0
    %2331 = vmatpush1.bf16.msra.mxu0 0
    %2332 = vmatprep.subr.bf16.mxu0 0
    %2333 = vmatpush1.bf16.msra.mxu0 0
    %2334 = vmatprep.subr.bf16.mxu0 0
    %2335 = vmatpush1.bf16.msra.mxu0 0
    %2336 = vmatprep.subr.bf16.mxu0 0
    %2337 = vmatpush1.bf16.msra.mxu0 0
    %2338 = vmatprep.subr.bf16.mxu0 0
    %2339 = vmatpush1.bf16.msra.mxu0 0
    %2340 = vmatprep.subr.bf16.mxu0 0
    %2341 = vmatpush1.bf16.msra.mxu0 0
    %2342 = vmatprep.subr.bf16.mxu0 0
    %2343 = vmatpush1.bf16.msra.mxu0 0
    %2344 = vmatprep.subr.bf16.mxu0 0
    %2345 = vmatpush1.bf16.msra.mxu0 0
    %2346 = vmatprep.subr.bf16.mxu0 0
    %2347 = vmatpush1.bf16.msra.mxu0 0
    %2348 = vmatprep.subr.bf16.mxu0 0
    %2349 = vmatpush1.bf16.msra.mxu0 0
    %2350 = vmatprep.mubr.bf16.mxu0 0
    %2351 = vmatmul.mubr.bf16.gmra.mrb[0].mxu0 %v2316
    %v2352 = vpop.f32.mrb[0].mxu0
    %v2353 = vadd.f32 %v2301, %v2352
    %v2354 = vpop.f32.mrb[0].mxu0
    %v2355 = vpop.f32.mrb[0].mxu0
    %v2356 = vadd.f32 %v2301, %v2355
    %v2357 = vpop.f32.mrb[0].mxu0
    %2358 = vdwg.mxu0
    %s2359 = scalar_lea.vmem %s5, 64
    %v2360 = vld [vmem:[%s2359] sm:$0xf]
    %v2361 = vld [vmem:[%s2359 + $0x4] sm:$0xf]
    %v2362 = vld [vmem:[%s2359 + $0x8] sm:$0xf]
    %v2363 = vld [vmem:[%s2359 + $0xc] sm:$0xf]
    %s2364 = scalar_lea.vmem %s6, 4
    %v2365 = vld [vmem:[%s2364] sm:$0x1]
    %v2367 = vlaneseq
    %v2368 = vshrl.u32 %v2367, 7
    %v2369 = vsub.s32 0, %v2368
    %v2370 = vrot.slane %v2365, %v2369
    %v2376 = vunpack.c.l.b16 %v2360
    %v2377 = vunpack.c.l.b16 %v2361
    %v2378 = vunpack.c.l.b16 %v2362
    %v2379 = vunpack.c.l.b16 %v2363
    %v2380 = vpack.c.b16 %v2377, %v2376
    %v2381 = vpack.c.b16 %v2379, %v2378
    %2384 = vmatprep.subr.bf16.mxu0 0
    %2385 = vmatpush1.bf16.msra.mxu0 %v2380
    %2386 = vmatprep.subr.bf16.mxu0 0
    %2387 = vmatpush1.bf16.msra.mxu0 %v2381
    %2388 = vmatprep.subr.bf16.mxu0 0
    %2389 = vmatpush1.bf16.msra.mxu0 0
    %2390 = vmatprep.subr.bf16.mxu0 0
    %2391 = vmatpush1.bf16.msra.mxu0 0
    %2392 = vmatprep.subr.bf16.mxu0 0
    %2393 = vmatpush1.bf16.msra.mxu0 0
    %2394 = vmatprep.subr.bf16.mxu0 0
    %2395 = vmatpush1.bf16.msra.mxu0 0
    %2396 = vmatprep.subr.bf16.mxu0 0
    %2397 = vmatpush1.bf16.msra.mxu0 0
    %2398 = vmatprep.subr.bf16.mxu0 0
    %2399 = vmatpush1.bf16.msra.mxu0 0
    %2400 = vmatprep.subr.bf16.mxu0 0
    %2401 = vmatpush1.bf16.msra.mxu0 0
    %2402 = vmatprep.subr.bf16.mxu0 0
    %2403 = vmatpush1.bf16.msra.mxu0 0
    %2404 = vmatprep.subr.bf16.mxu0 0
    %2405 = vmatpush1.bf16.msra.mxu0 0
    %2406 = vmatprep.subr.bf16.mxu0 0
    %2407 = vmatpush1.bf16.msra.mxu0 0
    %2408 = vmatprep.subr.bf16.mxu0 0
    %2409 = vmatpush1.bf16.msra.mxu0 0
    %2410 = vmatprep.subr.bf16.mxu0 0
    %2411 = vmatpush1.bf16.msra.mxu0 0
    %2412 = vmatprep.subr.bf16.mxu0 0
    %2413 = vmatpush1.bf16.msra.mxu0 0
    %2414 = vmatprep.subr.bf16.mxu0 0
    %2415 = vmatpush1.bf16.msra.mxu0 0
    %2416 = vmatprep.mubr.bf16.mxu0 0
    %2417 = vmatmul.mubr.bf16.gmra.mrb[0].mxu0 %v2316
    %v2418 = vpop.f32.mrb[0].mxu0
    %v2419 = vadd.f32 %v2370, %v2418
    %v2420 = vpop.f32.mrb[0].mxu0
    %v2421 = vpop.f32.mrb[0].mxu0
    %v2422 = vadd.f32 %v2370, %v2421
    %v2423 = vpop.f32.mrb[0].mxu0
    %2424 = vdwg.mxu0
    %s2425 = scalar_lea.vmem %s7, 64
    %v2426 = vld [vmem:[%s2425] sm:$0xf]
    %v2427 = vld [vmem:[%s2425 + $0x4] sm:$0xf]
    %v2428 = vld [vmem:[%s2425 + $0x8] sm:$0xf]
    %v2429 = vld [vmem:[%s2425 + $0xc] sm:$0xf]
    %s2430 = scalar_lea.vmem %s8, 4
    %v2431 = vld [vmem:[%s2430] sm:$0x1]
    %v2433 = vlaneseq
    %v2434 = vshrl.u32 %v2433, 7
    %v2435 = vsub.s32 0, %v2434
    %v2436 = vrot.slane %v2431, %v2435
    %v2442 = vunpack.c.l.b16 %v2426
    %v2443 = vunpack.c.l.b16 %v2427
    %v2444 = vunpack.c.l.b16 %v2428
    %v2445 = vunpack.c.l.b16 %v2429
    %v2446 = vpack.c.b16 %v2443, %v2442
    %v2447 = vpack.c.b16 %v2445, %v2444
    %2450 = vmatprep.subr.bf16.mxu0 0
    %2451 = vmatpush1.bf16.msra.mxu0 %v2446
    %2452 = vmatprep.subr.bf16.mxu0 0
    %2453 = vmatpush1.bf16.msra.mxu0 %v2447
    %2454 = vmatprep.subr.bf16.mxu0 0
    %2455 = vmatpush1.bf16.msra.mxu0 0
    %2456 = vmatprep.subr.bf16.mxu0 0
    %2457 = vmatpush1.bf16.msra.mxu0 0
    %2458 = vmatprep.subr.bf16.mxu0 0
    %2459 = vmatpush1.bf16.msra.mxu0 0
    %2460 = vmatprep.subr.bf16.mxu0 0
    %2461 = vmatpush1.bf16.msra.mxu0 0
    %2462 = vmatprep.subr.bf16.mxu0 0
    %2463 = vmatpush1.bf16.msra.mxu0 0
    %2464 = vmatprep.subr.bf16.mxu0 0
    %2465 = vmatpush1.bf16.msra.mxu0 0
    %2466 = vmatprep.subr.bf16.mxu0 0
    %2467 = vmatpush1.bf16.msra.mxu0 0
    %2468 = vmatprep.subr.bf16.mxu0 0
    %2469 = vmatpush1.bf16.msra.mxu0 0
    %2470 = vmatprep.subr.bf16.mxu0 0
    %2471 = vmatpush1.bf16.msra.mxu0 0
    %2472 = vmatprep.subr.bf16.mxu0 0
    %2473 = vmatpush1.bf16.msra.mxu0 0
    %2474 = vmatprep.subr.bf16.mxu0 0
    %2475 = vmatpush1.bf16.msra.mxu0 0
    %2476 = vmatprep.subr.bf16.mxu0 0
    %2477 = vmatpush1.bf16.msra.mxu0 0
    %2478 = vmatprep.subr.bf16.mxu0 0
    %2479 = vmatpush1.bf16.msra.mxu0 0
    %2480 = vmatprep.subr.bf16.mxu0 0
    %2481 = vmatpush1.bf16.msra.mxu0 0
    %2482 = vmatprep.mubr.bf16.mxu0 0
    %2483 = vmatmul.mubr.bf16.gmra.mrb[0].mxu0 %v2316
    %v2484 = vpop.f32.mrb[0].mxu0
    %v2485 = vadd.f32 %v2436, %v2484
    %v2486 = vpop.f32.mrb[0].mxu0
    %v2487 = vpop.f32.mrb[0].mxu0
    %v2488 = vadd.f32 %v2436, %v2487
    %v2489 = vpop.f32.mrb[0].mxu0
    %2490 = vdwg.mxu0
    %v2491 = vpack.c.bf16 %v2353, %v2353
    %v2492 = vpack.c.bf16 %v2356, %v2356
    %v2493 = vpack.c.bf16 %v2419, %v2419
    %v2494 = vpack.c.bf16 %v2422, %v2422
    %v2496 = vsel %vm304, %v2491, 0
    %v2499 = vsel %vm304, %v2493, 0
    %2501 = vmatprep.subr.bf16.mxu0 0
    %2502 = vmatpush1.bf16.xpose.msra.mxu0 %v2499
    %2503 = vmatprep.subr.bf16.mxu0 0
    %2504 = vmatpush1.bf16.xpose.msra.mxu0 0
    %2505 = vmatprep.subr.bf16.mxu0 0
    %2506 = vmatpush1.bf16.xpose.msra.mxu0 0
    %2507 = vmatprep.subr.bf16.mxu0 0
    %2508 = vmatpush1.bf16.xpose.msra.mxu0 0
    %2509 = vmatprep.subr.bf16.mxu0 0
    %2510 = vmatpush1.bf16.xpose.msra.mxu0 0
    %2511 = vmatprep.subr.bf16.mxu0 0
    %2512 = vmatpush1.bf16.xpose.msra.mxu0 0
    %2513 = vmatprep.subr.bf16.mxu0 0
    %2514 = vmatpush1.bf16.xpose.msra.mxu0 0
    %2515 = vmatprep.subr.bf16.mxu0 0
    %2516 = vmatpush1.bf16.xpose.msra.mxu0 0
    %2517 = vmatprep.subr.bf16.mxu0 0
    %2518 = vmatpush1.bf16.xpose.msra.mxu0 0
    %2519 = vmatprep.subr.bf16.mxu0 0
    %2520 = vmatpush1.bf16.xpose.msra.mxu0 0
    %2521 = vmatprep.subr.bf16.mxu0 0
    %2522 = vmatpush1.bf16.xpose.msra.mxu0 0
    %2523 = vmatprep.subr.bf16.mxu0 0
    %2524 = vmatpush1.bf16.xpose.msra.mxu0 0
    %2525 = vmatprep.subr.bf16.mxu0 0
    %2526 = vmatpush1.bf16.xpose.msra.mxu0 0
    %2527 = vmatprep.subr.bf16.mxu0 0
    %2528 = vmatpush1.bf16.xpose.msra.mxu0 0
    %2529 = vmatprep.subr.bf16.mxu0 0
    %2530 = vmatpush1.bf16.xpose.msra.mxu0 0
    %2531 = vmatprep.subr.bf16.mxu0 0
    %2532 = vmatpush1.bf16.xpose.msra.mxu0 0
    %2533 = vmatprep.mubr.bf16.mxu0 0
    %2534 = vmatmul.mubr.bf16.gmra.mrb[0].mxu0 %v2496
    %v2535 = vpop.f32.mrb[0].mxu0
    %v2536 = vadd.f32 0.0, %v2535
    %v2537 = vpop.f32.mrb[0].mxu0
    %v2538 = vpop.f32.mrb[0].mxu0
    %v2539 = vpop.f32.mrb[0].mxu0
    %2540 = vdwg.mxu0
    %v2542 = vsel %vm304, %v2492, 0
    %v2545 = vsel %vm304, %v2494, 0
    %2547 = vmatprep.subr.bf16.mxu0 0
    %2548 = vmatpush1.bf16.xpose.msra.mxu0 %v2545
    %2549 = vmatprep.subr.bf16.mxu0 0
    %2550 = vmatpush1.bf16.xpose.msra.mxu0 0
    %2551 = vmatprep.subr.bf16.mxu0 0
    %2552 = vmatpush1.bf16.xpose.msra.mxu0 0
    %2553 = vmatprep.subr.bf16.mxu0 0
    %2554 = vmatpush1.bf16.xpose.msra.mxu0 0
    %2555 = vmatprep.subr.bf16.mxu0 0
    %2556 = vmatpush1.bf16.xpose.msra.mxu0 0
    %2557 = vmatprep.subr.bf16.mxu0 0
    %2558 = vmatpush1.bf16.xpose.msra.mxu0 0
    %2559 = vmatprep.subr.bf16.mxu0 0
    %2560 = vmatpush1.bf16.xpose.msra.mxu0 0
    %2561 = vmatprep.subr.bf16.mxu0 0
    %2562 = vmatpush1.bf16.xpose.msra.mxu0 0
    %2563 = vmatprep.subr.bf16.mxu0 0
    %2564 = vmatpush1.bf16.xpose.msra.mxu0 0
    %2565 = vmatprep.subr.bf16.mxu0 0
    %2566 = vmatpush1.bf16.xpose.msra.mxu0 0
    %2567 = vmatprep.subr.bf16.mxu0 0
    %2568 = vmatpush1.bf16.xpose.msra.mxu0 0
    %2569 = vmatprep.subr.bf16.mxu0 0
    %2570 = vmatpush1.bf16.xpose.msra.mxu0 0
    %2571 = vmatprep.subr.bf16.mxu0 0
    %2572 = vmatpush1.bf16.xpose.msra.mxu0 0
    %2573 = vmatprep.subr.bf16.mxu0 0
    %2574 = vmatpush1.bf16.xpose.msra.mxu0 0
    %2575 = vmatprep.subr.bf16.mxu0 0
    %2576 = vmatpush1.bf16.xpose.msra.mxu0 0
    %2577 = vmatprep.subr.bf16.mxu0 0
    %2578 = vmatpush1.bf16.xpose.msra.mxu0 0
    %2579 = vmatprep.mubr.bf16.mxu0 0
    %2580 = vmatmul.mubr.bf16.gmra.mrb[0].mxu0 %v2542
    %v2581 = vpop.f32.mrb[0].mxu0
    %v2582 = vadd.f32 0.0, %v2581
    %v2583 = vpop.f32.mrb[0].mxu0
    %v2584 = vpop.f32.mrb[0].mxu0
    %v2585 = vpop.f32.mrb[0].mxu0
    %2586 = vdwg.mxu0
    %v2587 = vsel %vm304, %v2536, -inf
    %2588 = vmax.xlane.f32.xlu0 %v2587
    %v2589 = vpop.xlane.xlu0 %2588
    %v2590 = vsel %vm304, %v2582, -inf
    %2591 = vmax.xlane.f32.xlu0 %v2590
    %v2592 = vpop.xlane.xlu0 %2591
    %v2593 = vsub.f32 %v2536, %v2589
    %v2594 = vsub.f32 %v2582, %v2592
    %v2595 = vmul.f32 %v2593, 1.442695
    %v2596 = vpow.pop %v2595
    %v2597 = vmul.f32 %v2594, 1.442695
    %v2598 = vpow.pop %v2597
    %v2599 = vsel %vm304, %v2596, 0.0
    %2600 = vadd.xlane.f32.xlu0 %v2599
    %v2601 = vpop.xlane.xlu0 %2600
    %v2602 = vsel %vm304, %v2598, 0.0
    %2603 = vadd.xlane.f32.xlu0 %v2602
    %v2604 = vpop.xlane.xlu0 %2603
    %v2605 = vpack.c.bf16 %v2596, %v2596
    %v2606 = vpack.c.bf16 %v2598, %v2598
    %v2607 = vpack.c.bf16 %v2485, %v2485
    %v2608 = vpack.c.bf16 %v2488, %v2488
    %v2610 = vsel %vm304, %v2605, 0
    %v2613 = vsel %vm940, %v2607, 0
    %2615 = vmatprep.subr.bf16.mxu0 0
    %2616 = vmatpush1.bf16.msra.mxu0 %v2613
    %2617 = vmatprep.subr.bf16.mxu0 0
    %2618 = vmatpush1.bf16.msra.mxu0 0
    %2619 = vmatprep.subr.bf16.mxu0 0
    %2620 = vmatpush1.bf16.msra.mxu0 0
    %2621 = vmatprep.subr.bf16.mxu0 0
    %2622 = vmatpush1.bf16.msra.mxu0 0
    %2623 = vmatprep.subr.bf16.mxu0 0
    %2624 = vmatpush1.bf16.msra.mxu0 0
    %2625 = vmatprep.subr.bf16.mxu0 0
    %2626 = vmatpush1.bf16.msra.mxu0 0
    %2627 = vmatprep.subr.bf16.mxu0 0
    %2628 = vmatpush1.bf16.msra.mxu0 0
    %2629 = vmatprep.subr.bf16.mxu0 0
    %2630 = vmatpush1.bf16.msra.mxu0 0
    %2631 = vmatprep.subr.bf16.mxu0 0
    %2632 = vmatpush1.bf16.msra.mxu0 0
    %2633 = vmatprep.subr.bf16.mxu0 0
    %2634 = vmatpush1.bf16.msra.mxu0 0
    %2635 = vmatprep.subr.bf16.mxu0 0
    %2636 = vmatpush1.bf16.msra.mxu0 0
    %2637 = vmatprep.subr.bf16.mxu0 0
    %2638 = vmatpush1.bf16.msra.mxu0 0
    %2639 = vmatprep.subr.bf16.mxu0 0
    %2640 = vmatpush1.bf16.msra.mxu0 0
    %2641 = vmatprep.subr.bf16.mxu0 0
    %2642 = vmatpush1.bf16.msra.mxu0 0
    %2643 = vmatprep.subr.bf16.mxu0 0
    %2644 = vmatpush1.bf16.msra.mxu0 0
    %2645 = vmatprep.subr.bf16.mxu0 0
    %2646 = vmatpush1.bf16.msra.mxu0 0
    %2647 = vmatprep.mubr.bf16.mxu0 0
    %2648 = vmatmul.mubr.bf16.gmra.mrb[0].mxu0 %v2610
    %v2649 = vpop.f32.mrb[0].mxu0
    %v2650 = vadd.f32 0.0, %v2649
    %v2651 = vpop.f32.mrb[0].mxu0
    %v2652 = vpop.f32.mrb[0].mxu0
    %v2653 = vpop.f32.mrb[0].mxu0
    %2654 = vdwg.mxu0
    %v2656 = vsel %vm304, %v2606, 0
    %v2659 = vsel %vm940, %v2608, 0
    %2661 = vmatprep.subr.bf16.mxu0 0
    %2662 = vmatpush1.bf16.msra.mxu0 %v2659
    %2663 = vmatprep.subr.bf16.mxu0 0
    %2664 = vmatpush1.bf16.msra.mxu0 0
    %2665 = vmatprep.subr.bf16.mxu0 0
    %2666 = vmatpush1.bf16.msra.mxu0 0
    %2667 = vmatprep.subr.bf16.mxu0 0
    %2668 = vmatpush1.bf16.msra.mxu0 0
    %2669 = vmatprep.subr.bf16.mxu0 0
    %2670 = vmatpush1.bf16.msra.mxu0 0
    %2671 = vmatprep.subr.bf16.mxu0 0
    %2672 = vmatpush1.bf16.msra.mxu0 0
    %2673 = vmatprep.subr.bf16.mxu0 0
    %2674 = vmatpush1.bf16.msra.mxu0 0
    %2675 = vmatprep.subr.bf16.mxu0 0
    %2676 = vmatpush1.bf16.msra.mxu0 0
    %2677 = vmatprep.subr.bf16.mxu0 0
    %2678 = vmatpush1.bf16.msra.mxu0 0
    %2679 = vmatprep.subr.bf16.mxu0 0
    %2680 = vmatpush1.bf16.msra.mxu0 0
    %2681 = vmatprep.subr.bf16.mxu0 0
    %2682 = vmatpush1.bf16.msra.mxu0 0
    %2683 = vmatprep.subr.bf16.mxu0 0
    %2684 = vmatpush1.bf16.msra.mxu0 0
    %2685 = vmatprep.subr.bf16.mxu0 0
    %2686 = vmatpush1.bf16.msra.mxu0 0
    %2687 = vmatprep.subr.bf16.mxu0 0
    %2688 = vmatpush1.bf16.msra.mxu0 0
    %2689 = vmatprep.subr.bf16.mxu0 0
    %2690 = vmatpush1.bf16.msra.mxu0 0
    %2691 = vmatprep.subr.bf16.mxu0 0
    %2692 = vmatpush1.bf16.msra.mxu0 0
    %2693 = vmatprep.mubr.bf16.mxu0 0
    %2694 = vmatmul.mubr.bf16.gmra.mrb[0].mxu0 %v2656
    %v2695 = vpop.f32.mrb[0].mxu0
    %v2696 = vadd.f32 0.0, %v2695
    %v2697 = vpop.f32.mrb[0].mxu0
    %v2698 = vpop.f32.mrb[0].mxu0
    %v2699 = vpop.f32.mrb[0].mxu0
    %2700 = vdwg.mxu0
    %v2701 = vrcp.pop %v2601
    %v2702 = vrcp.pop %v2604
    %v2703 = vmul.f32 %v2650, %v2701
    %v2704 = vmul.f32 %v2696, %v2702
    %v2705 = vpack.c.bf16 %v2704, %v2703
    %s2706 = scalar_lea.vmem %s9, 16
    %v2707 = vld [vmem:[%s2706] sm:$0xf]
    %s2708 = scalar_lea.vmem %s3, 80
    %v2709 = vld [vmem:[%s2708] sm:$0xf]
    %v2710 = vld [vmem:[%s2708 + $0x4] sm:$0xf]
    %v2711 = vld [vmem:[%s2708 + $0x8] sm:$0xf]
    %v2712 = vld [vmem:[%s2708 + $0xc] sm:$0xf]
    %s2713 = scalar_lea.vmem %s4, 5
    %v2714 = vld [vmem:[%s2713] sm:$0x1]
    %v2716 = vlaneseq
    %v2717 = vshrl.u32 %v2716, 7
    %v2718 = vsub.s32 0, %v2717
    %v2719 = vrot.slane %v2714, %v2718
    %v2725 = vunpack.c.l.b16 %v2709
    %v2726 = vunpack.c.l.b16 %v2710
    %v2727 = vunpack.c.l.b16 %v2711
    %v2728 = vunpack.c.l.b16 %v2712
    %v2729 = vpack.c.b16 %v2726, %v2725
    %v2730 = vpack.c.b16 %v2728, %v2727
    %2733 = vmatprep.subr.bf16.mxu0 0
    %2734 = vmatpush1.bf16.msra.mxu0 %v2729
    %2735 = vmatprep.subr.bf16.mxu0 0
    %2736 = vmatpush1.bf16.msra.mxu0 %v2730
    %2737 = vmatprep.subr.bf16.mxu0 0
    %2738 = vmatpush1.bf16.msra.mxu0 0
    %2739 = vmatprep.subr.bf16.mxu0 0
    %2740 = vmatpush1.bf16.msra.mxu0 0
    %2741 = vmatprep.subr.bf16.mxu0 0
    %2742 = vmatpush1.bf16.msra.mxu0 0
    %2743 = vmatprep.subr.bf16.mxu0 0
    %2744 = vmatpush1.bf16.msra.mxu0 0
    %2745 = vmatprep.subr.bf16.mxu0 0
    %2746 = vmatpush1.bf16.msra.mxu0 0
    %2747 = vmatprep.subr.bf16.mxu0 0
    %2748 = vmatpush1.bf16.msra.mxu0 0
    %2749 = vmatprep.subr.bf16.mxu0 0
    %2750 = vmatpush1.bf16.msra.mxu0 0
    %2751 = vmatprep.subr.bf16.mxu0 0
    %2752 = vmatpush1.bf16.msra.mxu0 0
    %2753 = vmatprep.subr.bf16.mxu0 0
    %2754 = vmatpush1.bf16.msra.mxu0 0
    %2755 = vmatprep.subr.bf16.mxu0 0
    %2756 = vmatpush1.bf16.msra.mxu0 0
    %2757 = vmatprep.subr.bf16.mxu0 0
    %2758 = vmatpush1.bf16.msra.mxu0 0
    %2759 = vmatprep.subr.bf16.mxu0 0
    %2760 = vmatpush1.bf16.msra.mxu0 0
    %2761 = vmatprep.subr.bf16.mxu0 0
    %2762 = vmatpush1.bf16.msra.mxu0 0
    %2763 = vmatprep.subr.bf16.mxu0 0
    %2764 = vmatpush1.bf16.msra.mxu0 0
    %2765 = vmatprep.mubr.bf16.mxu0 0
    %2766 = vmatmul.mubr.bf16.gmra.mrb[0].mxu0 %v2316
    %v2767 = vpop.f32.mrb[0].mxu0
    %v2768 = vadd.f32 %v2719, %v2767
    %v2769 = vpop.f32.mrb[0].mxu0
    %v2770 = vpop.f32.mrb[0].mxu0
    %v2771 = vadd.f32 %v2719, %v2770
    %v2772 = vpop.f32.mrb[0].mxu0
    %2773 = vdwg.mxu0
    %s2774 = scalar_lea.vmem %s5, 80
    %v2775 = vld [vmem:[%s2774] sm:$0xf]
    %v2776 = vld [vmem:[%s2774 + $0x4] sm:$0xf]
    %v2777 = vld [vmem:[%s2774 + $0x8] sm:$0xf]
    %v2778 = vld [vmem:[%s2774 + $0xc] sm:$0xf]
    %s2779 = scalar_lea.vmem %s6, 5
    %v2780 = vld [vmem:[%s2779] sm:$0x1]
    %v2782 = vlaneseq
    %v2783 = vshrl.u32 %v2782, 7
    %v2784 = vsub.s32 0, %v2783
    %v2785 = vrot.slane %v2780, %v2784
    %v2791 = vunpack.c.l.b16 %v2775
    %v2792 = vunpack.c.l.b16 %v2776
    %v2793 = vunpack.c.l.b16 %v2777
    %v2794 = vunpack.c.l.b16 %v2778
    %v2795 = vpack.c.b16 %v2792, %v2791
    %v2796 = vpack.c.b16 %v2794, %v2793
    %2799 = vmatprep.subr.bf16.mxu0 0
    %2800 = vmatpush1.bf16.msra.mxu0 %v2795
    %2801 = vmatprep.subr.bf16.mxu0 0
    %2802 = vmatpush1.bf16.msra.mxu0 %v2796
    %2803 = vmatprep.subr.bf16.mxu0 0
    %2804 = vmatpush1.bf16.msra.mxu0 0
    %2805 = vmatprep.subr.bf16.mxu0 0
    %2806 = vmatpush1.bf16.msra.mxu0 0
    %2807 = vmatprep.subr.bf16.mxu0 0
    %2808 = vmatpush1.bf16.msra.mxu0 0
    %2809 = vmatprep.subr.bf16.mxu0 0
    %2810 = vmatpush1.bf16.msra.mxu0 0
    %2811 = vmatprep.subr.bf16.mxu0 0
    %2812 = vmatpush1.bf16.msra.mxu0 0
    %2813 = vmatprep.subr.bf16.mxu0 0
    %2814 = vmatpush1.bf16.msra.mxu0 0
    %2815 = vmatprep.subr.bf16.mxu0 0
    %2816 = vmatpush1.bf16.msra.mxu0 0
    %2817 = vmatprep.subr.bf16.mxu0 0
    %2818 = vmatpush1.bf16.msra.mxu0 0
    %2819 = vmatprep.subr.bf16.mxu0 0
    %2820 = vmatpush1.bf16.msra.mxu0 0
    %2821 = vmatprep.subr.bf16.mxu0 0
    %2822 = vmatpush1.bf16.msra.mxu0 0
    %2823 = vmatprep.subr.bf16.mxu0 0
    %2824 = vmatpush1.bf16.msra.mxu0 0
    %2825 = vmatprep.subr.bf16.mxu0 0
    %2826 = vmatpush1.bf16.msra.mxu0 0
    %2827 = vmatprep.subr.bf16.mxu0 0
    %2828 = vmatpush1.bf16.msra.mxu0 0
    %2829 = vmatprep.subr.bf16.mxu0 0
    %2830 = vmatpush1.bf16.msra.mxu0 0
    %2831 = vmatprep.mubr.bf16.mxu0 0
    %2832 = vmatmul.mubr.bf16.gmra.mrb[0].mxu0 %v2316
    %v2833 = vpop.f32.mrb[0].mxu0
    %v2834 = vadd.f32 %v2785, %v2833
    %v2835 = vpop.f32.mrb[0].mxu0
    %v2836 = vpop.f32.mrb[0].mxu0
    %v2837 = vadd.f32 %v2785, %v2836
    %v2838 = vpop.f32.mrb[0].mxu0
    %2839 = vdwg.mxu0
    %s2840 = scalar_lea.vmem %s7, 80
    %v2841 = vld [vmem:[%s2840] sm:$0xf]
    %v2842 = vld [vmem:[%s2840 + $0x4] sm:$0xf]
    %v2843 = vld [vmem:[%s2840 + $0x8] sm:$0xf]
    %v2844 = vld [vmem:[%s2840 + $0xc] sm:$0xf]
    %s2845 = scalar_lea.vmem %s8, 5
    %v2846 = vld [vmem:[%s2845] sm:$0x1]
    %v2848 = vlaneseq
    %v2849 = vshrl.u32 %v2848, 7
    %v2850 = vsub.s32 0, %v2849
    %v2851 = vrot.slane %v2846, %v2850
    %v2857 = vunpack.c.l.b16 %v2841
    %v2858 = vunpack.c.l.b16 %v2842
    %v2859 = vunpack.c.l.b16 %v2843
    %v2860 = vunpack.c.l.b16 %v2844
    %v2861 = vpack.c.b16 %v2858, %v2857
    %v2862 = vpack.c.b16 %v2860, %v2859
    %2865 = vmatprep.subr.bf16.mxu0 0
    %2866 = vmatpush1.bf16.msra.mxu0 %v2861
    %2867 = vmatprep.subr.bf16.mxu0 0
    %2868 = vmatpush1.bf16.msra.mxu0 %v2862
    %2869 = vmatprep.subr.bf16.mxu0 0
    %2870 = vmatpush1.bf16.msra.mxu0 0
    %2871 = vmatprep.subr.bf16.mxu0 0
    %2872 = vmatpush1.bf16.msra.mxu0 0
    %2873 = vmatprep.subr.bf16.mxu0 0
    %2874 = vmatpush1.bf16.msra.mxu0 0
    %2875 = vmatprep.subr.bf16.mxu0 0
    %2876 = vmatpush1.bf16.msra.mxu0 0
    %2877 = vmatprep.subr.bf16.mxu0 0
    %2878 = vmatpush1.bf16.msra.mxu0 0
    %2879 = vmatprep.subr.bf16.mxu0 0
    %2880 = vmatpush1.bf16.msra.mxu0 0
    %2881 = vmatprep.subr.bf16.mxu0 0
    %2882 = vmatpush1.bf16.msra.mxu0 0
    %2883 = vmatprep.subr.bf16.mxu0 0
    %2884 = vmatpush1.bf16.msra.mxu0 0
    %2885 = vmatprep.subr.bf16.mxu0 0
    %2886 = vmatpush1.bf16.msra.mxu0 0
    %2887 = vmatprep.subr.bf16.mxu0 0
    %2888 = vmatpush1.bf16.msra.mxu0 0
    %2889 = vmatprep.subr.bf16.mxu0 0
    %2890 = vmatpush1.bf16.msra.mxu0 0
    %2891 = vmatprep.subr.bf16.mxu0 0
    %2892 = vmatpush1.bf16.msra.mxu0 0
    %2893 = vmatprep.subr.bf16.mxu0 0
    %2894 = vmatpush1.bf16.msra.mxu0 0
    %2895 = vmatprep.subr.bf16.mxu0 0
    %2896 = vmatpush1.bf16.msra.mxu0 0
    %2897 = vmatprep.mubr.bf16.mxu0 0
    %2898 = vmatmul.mubr.bf16.gmra.mrb[0].mxu0 %v2316
    %v2899 = vpop.f32.mrb[0].mxu0
    %v2900 = vadd.f32 %v2851, %v2899
    %v2901 = vpop.f32.mrb[0].mxu0
    %v2902 = vpop.f32.mrb[0].mxu0
    %v2903 = vadd.f32 %v2851, %v2902
    %v2904 = vpop.f32.mrb[0].mxu0
    %2905 = vdwg.mxu0
    %v2906 = vpack.c.bf16 %v2768, %v2768
    %v2907 = vpack.c.bf16 %v2771, %v2771
    %v2908 = vpack.c.bf16 %v2834, %v2834
    %v2909 = vpack.c.bf16 %v2837, %v2837
    %v2911 = vsel %vm304, %v2906, 0
    %v2914 = vsel %vm304, %v2908, 0
    %2916 = vmatprep.subr.bf16.mxu0 0
    %2917 = vmatpush1.bf16.xpose.msra.mxu0 %v2914
    %2918 = vmatprep.subr.bf16.mxu0 0
    %2919 = vmatpush1.bf16.xpose.msra.mxu0 0
    %2920 = vmatprep.subr.bf16.mxu0 0
    %2921 = vmatpush1.bf16.xpose.msra.mxu0 0
    %2922 = vmatprep.subr.bf16.mxu0 0
    %2923 = vmatpush1.bf16.xpose.msra.mxu0 0
    %2924 = vmatprep.subr.bf16.mxu0 0
    %2925 = vmatpush1.bf16.xpose.msra.mxu0 0
    %2926 = vmatprep.subr.bf16.mxu0 0
    %2927 = vmatpush1.bf16.xpose.msra.mxu0 0
    %2928 = vmatprep.subr.bf16.mxu0 0
    %2929 = vmatpush1.bf16.xpose.msra.mxu0 0
    %2930 = vmatprep.subr.bf16.mxu0 0
    %2931 = vmatpush1.bf16.xpose.msra.mxu0 0
    %2932 = vmatprep.subr.bf16.mxu0 0
    %2933 = vmatpush1.bf16.xpose.msra.mxu0 0
    %2934 = vmatprep.subr.bf16.mxu0 0
    %2935 = vmatpush1.bf16.xpose.msra.mxu0 0
    %2936 = vmatprep.subr.bf16.mxu0 0
    %2937 = vmatpush1.bf16.xpose.msra.mxu0 0
    %2938 = vmatprep.subr.bf16.mxu0 0
    %2939 = vmatpush1.bf16.xpose.msra.mxu0 0
    %2940 = vmatprep.subr.bf16.mxu0 0
    %2941 = vmatpush1.bf16.xpose.msra.mxu0 0
    %2942 = vmatprep.subr.bf16.mxu0 0
    %2943 = vmatpush1.bf16.xpose.msra.mxu0 0
    %2944 = vmatprep.subr.bf16.mxu0 0
    %2945 = vmatpush1.bf16.xpose.msra.mxu0 0
    %2946 = vmatprep.subr.bf16.mxu0 0
    %2947 = vmatpush1.bf16.xpose.msra.mxu0 0
    %2948 = vmatprep.mubr.bf16.mxu0 0
    %2949 = vmatmul.mubr.bf16.gmra.mrb[0].mxu0 %v2911
    %v2950 = vpop.f32.mrb[0].mxu0
    %v2951 = vadd.f32 0.0, %v2950
    %v2952 = vpop.f32.mrb[0].mxu0
    %v2953 = vpop.f32.mrb[0].mxu0
    %v2954 = vpop.f32.mrb[0].mxu0
    %2955 = vdwg.mxu0
    %v2957 = vsel %vm304, %v2907, 0
    %v2960 = vsel %vm304, %v2909, 0
    %2962 = vmatprep.subr.bf16.mxu0 0
    %2963 = vmatpush1.bf16.xpose.msra.mxu0 %v2960
    %2964 = vmatprep.subr.bf16.mxu0 0
    %2965 = vmatpush1.bf16.xpose.msra.mxu0 0
    %2966 = vmatprep.subr.bf16.mxu0 0
    %2967 = vmatpush1.bf16.xpose.msra.mxu0 0
    %2968 = vmatprep.subr.bf16.mxu0 0
    %2969 = vmatpush1.bf16.xpose.msra.mxu0 0
    %2970 = vmatprep.subr.bf16.mxu0 0
    %2971 = vmatpush1.bf16.xpose.msra.mxu0 0
    %2972 = vmatprep.subr.bf16.mxu0 0
    %2973 = vmatpush1.bf16.xpose.msra.mxu0 0
    %2974 = vmatprep.subr.bf16.mxu0 0
    %2975 = vmatpush1.bf16.xpose.msra.mxu0 0
    %2976 = vmatprep.subr.bf16.mxu0 0
    %2977 = vmatpush1.bf16.xpose.msra.mxu0 0
    %2978 = vmatprep.subr.bf16.mxu0 0
    %2979 = vmatpush1.bf16.xpose.msra.mxu0 0
    %2980 = vmatprep.subr.bf16.mxu0 0
    %2981 = vmatpush1.bf16.xpose.msra.mxu0 0
    %2982 = vmatprep.subr.bf16.mxu0 0
    %2983 = vmatpush1.bf16.xpose.msra.mxu0 0
    %2984 = vmatprep.subr.bf16.mxu0 0
    %2985 = vmatpush1.bf16.xpose.msra.mxu0 0
    %2986 = vmatprep.subr.bf16.mxu0 0
    %2987 = vmatpush1.bf16.xpose.msra.mxu0 0
    %2988 = vmatprep.subr.bf16.mxu0 0
    %2989 = vmatpush1.bf16.xpose.msra.mxu0 0
    %2990 = vmatprep.subr.bf16.mxu0 0
    %2991 = vmatpush1.bf16.xpose.msra.mxu0 0
    %2992 = vmatprep.subr.bf16.mxu0 0
    %2993 = vmatpush1.bf16.xpose.msra.mxu0 0
    %2994 = vmatprep.mubr.bf16.mxu0 0
    %2995 = vmatmul.mubr.bf16.gmra.mrb[0].mxu0 %v2957
    %v2996 = vpop.f32.mrb[0].mxu0
    %v2997 = vadd.f32 0.0, %v2996
    %v2998 = vpop.f32.mrb[0].mxu0
    %v2999 = vpop.f32.mrb[0].mxu0
    %v3000 = vpop.f32.mrb[0].mxu0
    %3001 = vdwg.mxu0
    %v3002 = vsel %vm304, %v2951, -inf
    %3003 = vmax.xlane.f32.xlu0 %v3002
    %v3004 = vpop.xlane.xlu0 %3003
    %v3005 = vsel %vm304, %v2997, -inf
    %3006 = vmax.xlane.f32.xlu0 %v3005
    %v3007 = vpop.xlane.xlu0 %3006
    %v3008 = vsub.f32 %v2951, %v3004
    %v3009 = vsub.f32 %v2997, %v3007
    %v3010 = vmul.f32 %v3008, 1.442695
    %v3011 = vpow.pop %v3010
    %v3012 = vmul.f32 %v3009, 1.442695
    %v3013 = vpow.pop %v3012
    %v3014 = vsel %vm304, %v3011, 0.0
    %3015 = vadd.xlane.f32.xlu0 %v3014
    %v3016 = vpop.xlane.xlu0 %3015
    %v3017 = vsel %vm304, %v3013, 0.0
    %3018 = vadd.xlane.f32.xlu0 %v3017
    %v3019 = vpop.xlane.xlu0 %3018
    %v3020 = vpack.c.bf16 %v3011, %v3011
    %v3021 = vpack.c.bf16 %v3013, %v3013
    %v3022 = vpack.c.bf16 %v2900, %v2900
    %v3023 = vpack.c.bf16 %v2903, %v2903
    %v3025 = vsel %vm304, %v3020, 0
    %v3028 = vsel %vm940, %v3022, 0
    %3030 = vmatprep.subr.bf16.mxu0 0
    %3031 = vmatpush1.bf16.msra.mxu0 %v3028
    %3032 = vmatprep.subr.bf16.mxu0 0
    %3033 = vmatpush1.bf16.msra.mxu0 0
    %3034 = vmatprep.subr.bf16.mxu0 0
    %3035 = vmatpush1.bf16.msra.mxu0 0
    %3036 = vmatprep.subr.bf16.mxu0 0
    %3037 = vmatpush1.bf16.msra.mxu0 0
    %3038 = vmatprep.subr.bf16.mxu0 0
    %3039 = vmatpush1.bf16.msra.mxu0 0
    %3040 = vmatprep.subr.bf16.mxu0 0
    %3041 = vmatpush1.bf16.msra.mxu0 0
    %3042 = vmatprep.subr.bf16.mxu0 0
    %3043 = vmatpush1.bf16.msra.mxu0 0
    %3044 = vmatprep.subr.bf16.mxu0 0
    %3045 = vmatpush1.bf16.msra.mxu0 0
    %3046 = vmatprep.subr.bf16.mxu0 0
    %3047 = vmatpush1.bf16.msra.mxu0 0
    %3048 = vmatprep.subr.bf16.mxu0 0
    %3049 = vmatpush1.bf16.msra.mxu0 0
    %3050 = vmatprep.subr.bf16.mxu0 0
    %3051 = vmatpush1.bf16.msra.mxu0 0
    %3052 = vmatprep.subr.bf16.mxu0 0
    %3053 = vmatpush1.bf16.msra.mxu0 0
    %3054 = vmatprep.subr.bf16.mxu0 0
    %3055 = vmatpush1.bf16.msra.mxu0 0
    %3056 = vmatprep.subr.bf16.mxu0 0
    %3057 = vmatpush1.bf16.msra.mxu0 0
    %3058 = vmatprep.subr.bf16.mxu0 0
    %3059 = vmatpush1.bf16.msra.mxu0 0
    %3060 = vmatprep.subr.bf16.mxu0 0
    %3061 = vmatpush1.bf16.msra.mxu0 0
    %3062 = vmatprep.mubr.bf16.mxu0 0
    %3063 = vmatmul.mubr.bf16.gmra.mrb[0].mxu0 %v3025
    %v3064 = vpop.f32.mrb[0].mxu0
    %v3065 = vadd.f32 0.0, %v3064
    %v3066 = vpop.f32.mrb[0].mxu0
    %v3067 = vpop.f32.mrb[0].mxu0
    %v3068 = vpop.f32.mrb[0].mxu0
    %3069 = vdwg.mxu0
    %v3071 = vsel %vm304, %v3021, 0
    %v3074 = vsel %vm940, %v3023, 0
    %3076 = vmatprep.subr.bf16.mxu0 0
    %3077 = vmatpush1.bf16.msra.mxu0 %v3074
    %3078 = vmatprep.subr.bf16.mxu0 0
    %3079 = vmatpush1.bf16.msra.mxu0 0
    %3080 = vmatprep.subr.bf16.mxu0 0
    %3081 = vmatpush1.bf16.msra.mxu0 0
    %3082 = vmatprep.subr.bf16.mxu0 0
    %3083 = vmatpush1.bf16.msra.mxu0 0
    %3084 = vmatprep.subr.bf16.mxu0 0
    %3085 = vmatpush1.bf16.msra.mxu0 0
    %3086 = vmatprep.subr.bf16.mxu0 0
    %3087 = vmatpush1.bf16.msra.mxu0 0
    %3088 = vmatprep.subr.bf16.mxu0 0
    %3089 = vmatpush1.bf16.msra.mxu0 0
    %3090 = vmatprep.subr.bf16.mxu0 0
    %3091 = vmatpush1.bf16.msra.mxu0 0
    %3092 = vmatprep.subr.bf16.mxu0 0
    %3093 = vmatpush1.bf16.msra.mxu0 0
    %3094 = vmatprep.subr.bf16.mxu0 0
    %3095 = vmatpush1.bf16.msra.mxu0 0
    %3096 = vmatprep.subr.bf16.mxu0 0
    %3097 = vmatpush1.bf16.msra.mxu0 0
    %3098 = vmatprep.subr.bf16.mxu0 0
    %3099 = vmatpush1.bf16.msra.mxu0 0
    %3100 = vmatprep.subr.bf16.mxu0 0
    %3101 = vmatpush1.bf16.msra.mxu0 0
    %3102 = vmatprep.subr.bf16.mxu0 0
    %3103 = vmatpush1.bf16.msra.mxu0 0
    %3104 = vmatprep.subr.bf16.mxu0 0
    %3105 = vmatpush1.bf16.msra.mxu0 0
    %3106 = vmatprep.subr.bf16.mxu0 0
    %3107 = vmatpush1.bf16.msra.mxu0 0
    %3108 = vmatprep.mubr.bf16.mxu0 0
    %3109 = vmatmul.mubr.bf16.gmra.mrb[0].mxu0 %v3071
    %v3110 = vpop.f32.mrb[0].mxu0
    %v3111 = vadd.f32 0.0, %v3110
    %v3112 = vpop.f32.mrb[0].mxu0
    %v3113 = vpop.f32.mrb[0].mxu0
    %v3114 = vpop.f32.mrb[0].mxu0
    %3115 = vdwg.mxu0
    %v3116 = vrcp.pop %v3016
    %v3117 = vrcp.pop %v3019
    %v3118 = vmul.f32 %v3065, %v3116
    %v3119 = vmul.f32 %v3111, %v3117
    %v3120 = vpack.c.bf16 %v3119, %v3118
    %s3121 = scalar_lea.vmem %s9, 20
    %v3122 = vld [vmem:[%s3121] sm:$0xf]
    %v3124 = vsel %vm304, %v3120, 0
    %v3127 = vsel %vm940, %v3122, 0
    %3129 = vmatprep.subr.bf16.mxu0 0
    %3130 = vmatpush1.bf16.msra.mxu0 %v3127
    %3131 = vmatprep.subr.bf16.mxu0 0
    %3132 = vmatpush1.bf16.msra.mxu0 0
    %3133 = vmatprep.subr.bf16.mxu0 0
    %3134 = vmatpush1.bf16.msra.mxu0 0
    %3135 = vmatprep.subr.bf16.mxu0 0
    %3136 = vmatpush1.bf16.msra.mxu0 0
    %3137 = vmatprep.subr.bf16.mxu0 0
    %3138 = vmatpush1.bf16.msra.mxu0 0
    %3139 = vmatprep.subr.bf16.mxu0 0
    %3140 = vmatpush1.bf16.msra.mxu0 0
    %3141 = vmatprep.subr.bf16.mxu0 0
    %3142 = vmatpush1.bf16.msra.mxu0 0
    %3143 = vmatprep.subr.bf16.mxu0 0
    %3144 = vmatpush1.bf16.msra.mxu0 0
    %3145 = vmatprep.subr.bf16.mxu0 0
    %3146 = vmatpush1.bf16.msra.mxu0 0
    %3147 = vmatprep.subr.bf16.mxu0 0
    %3148 = vmatpush1.bf16.msra.mxu0 0
    %3149 = vmatprep.subr.bf16.mxu0 0
    %3150 = vmatpush1.bf16.msra.mxu0 0
    %3151 = vmatprep.subr.bf16.mxu0 0
    %3152 = vmatpush1.bf16.msra.mxu0 0
    %3153 = vmatprep.subr.bf16.mxu0 0
    %3154 = vmatpush1.bf16.msra.mxu0 0
    %3155 = vmatprep.subr.bf16.mxu0 0
    %3156 = vmatpush1.bf16.msra.mxu0 0
    %3157 = vmatprep.subr.bf16.mxu0 0
    %3158 = vmatpush1.bf16.msra.mxu0 0
    %3159 = vmatprep.subr.bf16.mxu0 0
    %3160 = vmatpush1.bf16.msra.mxu0 0
    %3161 = vmatprep.mubr.bf16.mxu0 0
    %3162 = vmatmul.mubr.bf16.gmra.mrb[0].mxu0 %v3124
    %v3163 = vpop.f32.mrb[0].mxu0
    %v3164 = vadd.f32 0.0, %v3163
    %v3165 = vpop.f32.mrb[0].mxu0
    %v3166 = vpop.f32.mrb[0].mxu0
    %v3167 = vadd.f32 0.0, %v3166
    %v3168 = vpop.f32.mrb[0].mxu0
    %3169 = vdwg.mxu0
    %v3171 = vsel %vm304, %v2705, 0
    %v3174 = vsel %vm940, %v2707, 0
    %3176 = vmatprep.subr.bf16.mxu0 0
    %3177 = vmatpush1.bf16.msra.mxu0 %v3174
    %3178 = vmatprep.subr.bf16.mxu0 0
    %3179 = vmatpush1.bf16.msra.mxu0 0
    %3180 = vmatprep.subr.bf16.mxu0 0
    %3181 = vmatpush1.bf16.msra.mxu0 0
    %3182 = vmatprep.subr.bf16.mxu0 0
    %3183 = vmatpush1.bf16.msra.mxu0 0
    %3184 = vmatprep.subr.bf16.mxu0 0
    %3185 = vmatpush1.bf16.msra.mxu0 0
    %3186 = vmatprep.subr.bf16.mxu0 0
    %3187 = vmatpush1.bf16.msra.mxu0 0
    %3188 = vmatprep.subr.bf16.mxu0 0
    %3189 = vmatpush1.bf16.msra.mxu0 0
    %3190 = vmatprep.subr.bf16.mxu0 0
    %3191 = vmatpush1.bf16.msra.mxu0 0
    %3192 = vmatprep.subr.bf16.mxu0 0
    %3193 = vmatpush1.bf16.msra.mxu0 0
    %3194 = vmatprep.subr.bf16.mxu0 0
    %3195 = vmatpush1.bf16.msra.mxu0 0
    %3196 = vmatprep.subr.bf16.mxu0 0
    %3197 = vmatpush1.bf16.msra.mxu0 0
    %3198 = vmatprep.subr.bf16.mxu0 0
    %3199 = vmatpush1.bf16.msra.mxu0 0
    %3200 = vmatprep.subr.bf16.mxu0 0
    %3201 = vmatpush1.bf16.msra.mxu0 0
    %3202 = vmatprep.subr.bf16.mxu0 0
    %3203 = vmatpush1.bf16.msra.mxu0 0
    %3204 = vmatprep.subr.bf16.mxu0 0
    %3205 = vmatpush1.bf16.msra.mxu0 0
    %3206 = vmatprep.subr.bf16.mxu0 0
    %3207 = vmatpush1.bf16.msra.mxu0 0
    %3208 = vmatprep.mubr.bf16.mxu0 0
    %3209 = vmatmul.mubr.bf16.gmra.mrb[0].mxu0 %v3171
    %v3210 = vpop.f32.mrb[0].mxu0
    %v3211 = vadd.f32 %v3164, %v3210
    %v3212 = vpop.f32.mrb[0].mxu0
    %v3213 = vpop.f32.mrb[0].mxu0
    %v3214 = vadd.f32 %v3167, %v3213
    %v3215 = vpop.f32.mrb[0].mxu0
    %3216 = vdwg.mxu0
    %s3217 = scalar_lea.vmem %s3, 96
    %v3218 = vld [vmem:[%s3217] sm:$0xf]
    %v3219 = vld [vmem:[%s3217 + $0x4] sm:$0xf]
    %v3220 = vld [vmem:[%s3217 + $0x8] sm:$0xf]
    %v3221 = vld [vmem:[%s3217 + $0xc] sm:$0xf]
    %s3222 = scalar_lea.vmem %s4, 6
    %v3223 = vld [vmem:[%s3222] sm:$0x1]
    %v3225 = vlaneseq
    %v3226 = vshrl.u32 %v3225, 7
    %v3227 = vsub.s32 0, %v3226
    %v3228 = vrot.slane %v3223, %v3227
    %v3234 = vunpack.c.l.b16 %v3218
    %v3235 = vunpack.c.l.b16 %v3219
    %v3236 = vunpack.c.l.b16 %v3220
    %v3237 = vunpack.c.l.b16 %v3221
    %v3238 = vpack.c.b16 %v3235, %v3234
    %v3239 = vpack.c.b16 %v3237, %v3236
    %3242 = vmatprep.subr.bf16.mxu0 0
    %3243 = vmatpush1.bf16.msra.mxu0 %v3238
    %3244 = vmatprep.subr.bf16.mxu0 0
    %3245 = vmatpush1.bf16.msra.mxu0 %v3239
    %3246 = vmatprep.subr.bf16.mxu0 0
    %3247 = vmatpush1.bf16.msra.mxu0 0
    %3248 = vmatprep.subr.bf16.mxu0 0
    %3249 = vmatpush1.bf16.msra.mxu0 0
    %3250 = vmatprep.subr.bf16.mxu0 0
    %3251 = vmatpush1.bf16.msra.mxu0 0
    %3252 = vmatprep.subr.bf16.mxu0 0
    %3253 = vmatpush1.bf16.msra.mxu0 0
    %3254 = vmatprep.subr.bf16.mxu0 0
    %3255 = vmatpush1.bf16.msra.mxu0 0
    %3256 = vmatprep.subr.bf16.mxu0 0
    %3257 = vmatpush1.bf16.msra.mxu0 0
    %3258 = vmatprep.subr.bf16.mxu0 0
    %3259 = vmatpush1.bf16.msra.mxu0 0
    %3260 = vmatprep.subr.bf16.mxu0 0
    %3261 = vmatpush1.bf16.msra.mxu0 0
    %3262 = vmatprep.subr.bf16.mxu0 0
    %3263 = vmatpush1.bf16.msra.mxu0 0
    %3264 = vmatprep.subr.bf16.mxu0 0
    %3265 = vmatpush1.bf16.msra.mxu0 0
    %3266 = vmatprep.subr.bf16.mxu0 0
    %3267 = vmatpush1.bf16.msra.mxu0 0
    %3268 = vmatprep.subr.bf16.mxu0 0
    %3269 = vmatpush1.bf16.msra.mxu0 0
    %3270 = vmatprep.subr.bf16.mxu0 0
    %3271 = vmatpush1.bf16.msra.mxu0 0
    %3272 = vmatprep.subr.bf16.mxu0 0
    %3273 = vmatpush1.bf16.msra.mxu0 0
    %3274 = vmatprep.mubr.bf16.mxu0 0
    %3275 = vmatmul.mubr.bf16.gmra.mrb[0].mxu0 %v2316
    %v3276 = vpop.f32.mrb[0].mxu0
    %v3277 = vadd.f32 %v3228, %v3276
    %v3278 = vpop.f32.mrb[0].mxu0
    %v3279 = vpop.f32.mrb[0].mxu0
    %v3280 = vadd.f32 %v3228, %v3279
    %v3281 = vpop.f32.mrb[0].mxu0
    %3282 = vdwg.mxu0
    %s3283 = scalar_lea.vmem %s5, 96
    %v3284 = vld [vmem:[%s3283] sm:$0xf]
    %v3285 = vld [vmem:[%s3283 + $0x4] sm:$0xf]
    %v3286 = vld [vmem:[%s3283 + $0x8] sm:$0xf]
    %v3287 = vld [vmem:[%s3283 + $0xc] sm:$0xf]
    %s3288 = scalar_lea.vmem %s6, 6
    %v3289 = vld [vmem:[%s3288] sm:$0x1]
    %v3291 = vlaneseq
    %v3292 = vshrl.u32 %v3291, 7
    %v3293 = vsub.s32 0, %v3292
    %v3294 = vrot.slane %v3289, %v3293
    %v3300 = vunpack.c.l.b16 %v3284
    %v3301 = vunpack.c.l.b16 %v3285
    %v3302 = vunpack.c.l.b16 %v3286
    %v3303 = vunpack.c.l.b16 %v3287
    %v3304 = vpack.c.b16 %v3301, %v3300
    %v3305 = vpack.c.b16 %v3303, %v3302
    %3308 = vmatprep.subr.bf16.mxu0 0
    %3309 = vmatpush1.bf16.msra.mxu0 %v3304
    %3310 = vmatprep.subr.bf16.mxu0 0
    %3311 = vmatpush1.bf16.msra.mxu0 %v3305
    %3312 = vmatprep.subr.bf16.mxu0 0
    %3313 = vmatpush1.bf16.msra.mxu0 0
    %3314 = vmatprep.subr.bf16.mxu0 0
    %3315 = vmatpush1.bf16.msra.mxu0 0
    %3316 = vmatprep.subr.bf16.mxu0 0
    %3317 = vmatpush1.bf16.msra.mxu0 0
    %3318 = vmatprep.subr.bf16.mxu0 0
    %3319 = vmatpush1.bf16.msra.mxu0 0
    %3320 = vmatprep.subr.bf16.mxu0 0
    %3321 = vmatpush1.bf16.msra.mxu0 0
    %3322 = vmatprep.subr.bf16.mxu0 0
    %3323 = vmatpush1.bf16.msra.mxu0 0
    %3324 = vmatprep.subr.bf16.mxu0 0
    %3325 = vmatpush1.bf16.msra.mxu0 0
    %3326 = vmatprep.subr.bf16.mxu0 0
    %3327 = vmatpush1.bf16.msra.mxu0 0
    %3328 = vmatprep.subr.bf16.mxu0 0
    %3329 = vmatpush1.bf16.msra.mxu0 0
    %3330 = vmatprep.subr.bf16.mxu0 0
    %3331 = vmatpush1.bf16.msra.mxu0 0
    %3332 = vmatprep.subr.bf16.mxu0 0
    %3333 = vmatpush1.bf16.msra.mxu0 0
    %3334 = vmatprep.subr.bf16.mxu0 0
    %3335 = vmatpush1.bf16.msra.mxu0 0
    %3336 = vmatprep.subr.bf16.mxu0 0
    %3337 = vmatpush1.bf16.msra.mxu0 0
    %3338 = vmatprep.subr.bf16.mxu0 0
    %3339 = vmatpush1.bf16.msra.mxu0 0
    %3340 = vmatprep.mubr.bf16.mxu0 0
    %3341 = vmatmul.mubr.bf16.gmra.mrb[0].mxu0 %v2316
    %v3342 = vpop.f32.mrb[0].mxu0
    %v3343 = vadd.f32 %v3294, %v3342
    %v3344 = vpop.f32.mrb[0].mxu0
    %v3345 = vpop.f32.mrb[0].mxu0
    %v3346 = vadd.f32 %v3294, %v3345
    %v3347 = vpop.f32.mrb[0].mxu0
    %3348 = vdwg.mxu0
    %s3349 = scalar_lea.vmem %s7, 96
    %v3350 = vld [vmem:[%s3349] sm:$0xf]
    %v3351 = vld [vmem:[%s3349 + $0x4] sm:$0xf]
    %v3352 = vld [vmem:[%s3349 + $0x8] sm:$0xf]
    %v3353 = vld [vmem:[%s3349 + $0xc] sm:$0xf]
    %s3354 = scalar_lea.vmem %s8, 6
    %v3355 = vld [vmem:[%s3354] sm:$0x1]
    %v3357 = vlaneseq
    %v3358 = vshrl.u32 %v3357, 7
    %v3359 = vsub.s32 0, %v3358
    %v3360 = vrot.slane %v3355, %v3359
    %v3366 = vunpack.c.l.b16 %v3350
    %v3367 = vunpack.c.l.b16 %v3351
    %v3368 = vunpack.c.l.b16 %v3352
    %v3369 = vunpack.c.l.b16 %v3353
    %v3370 = vpack.c.b16 %v3367, %v3366
    %v3371 = vpack.c.b16 %v3369, %v3368
    %3374 = vmatprep.subr.bf16.mxu0 0
    %3375 = vmatpush1.bf16.msra.mxu0 %v3370
    %3376 = vmatprep.subr.bf16.mxu0 0
    %3377 = vmatpush1.bf16.msra.mxu0 %v3371
    %3378 = vmatprep.subr.bf16.mxu0 0
    %3379 = vmatpush1.bf16.msra.mxu0 0
    %3380 = vmatprep.subr.bf16.mxu0 0
    %3381 = vmatpush1.bf16.msra.mxu0 0
    %3382 = vmatprep.subr.bf16.mxu0 0
    %3383 = vmatpush1.bf16.msra.mxu0 0
    %3384 = vmatprep.subr.bf16.mxu0 0
    %3385 = vmatpush1.bf16.msra.mxu0 0
    %3386 = vmatprep.subr.bf16.mxu0 0
    %3387 = vmatpush1.bf16.msra.mxu0 0
    %3388 = vmatprep.subr.bf16.mxu0 0
    %3389 = vmatpush1.bf16.msra.mxu0 0
    %3390 = vmatprep.subr.bf16.mxu0 0
    %3391 = vmatpush1.bf16.msra.mxu0 0
    %3392 = vmatprep.subr.bf16.mxu0 0
    %3393 = vmatpush1.bf16.msra.mxu0 0
    %3394 = vmatprep.subr.bf16.mxu0 0
    %3395 = vmatpush1.bf16.msra.mxu0 0
    %3396 = vmatprep.subr.bf16.mxu0 0
    %3397 = vmatpush1.bf16.msra.mxu0 0
    %3398 = vmatprep.subr.bf16.mxu0 0
    %3399 = vmatpush1.bf16.msra.mxu0 0
    %3400 = vmatprep.subr.bf16.mxu0 0
    %3401 = vmatpush1.bf16.msra.mxu0 0
    %3402 = vmatprep.subr.bf16.mxu0 0
    %3403 = vmatpush1.bf16.msra.mxu0 0
    %3404 = vmatprep.subr.bf16.mxu0 0
    %3405 = vmatpush1.bf16.msra.mxu0 0
    %3406 = vmatprep.mubr.bf16.mxu0 0
    %3407 = vmatmul.mubr.bf16.gmra.mrb[0].mxu0 %v2316
    %v3408 = vpop.f32.mrb[0].mxu0
    %v3409 = vadd.f32 %v3360, %v3408
    %v3410 = vpop.f32.mrb[0].mxu0
    %v3411 = vpop.f32.mrb[0].mxu0
    %v3412 = vadd.f32 %v3360, %v3411
    %v3413 = vpop.f32.mrb[0].mxu0
    %3414 = vdwg.mxu0
    %v3415 = vpack.c.bf16 %v3277, %v3277
    %v3416 = vpack.c.bf16 %v3280, %v3280
    %v3417 = vpack.c.bf16 %v3343, %v3343
    %v3418 = vpack.c.bf16 %v3346, %v3346
    %v3420 = vsel %vm304, %v3415, 0
    %v3423 = vsel %vm304, %v3417, 0
    %3425 = vmatprep.subr.bf16.mxu0 0
    %3426 = vmatpush1.bf16.xpose.msra.mxu0 %v3423
    %3427 = vmatprep.subr.bf16.mxu0 0
    %3428 = vmatpush1.bf16.xpose.msra.mxu0 0
    %3429 = vmatprep.subr.bf16.mxu0 0
    %3430 = vmatpush1.bf16.xpose.msra.mxu0 0
    %3431 = vmatprep.subr.bf16.mxu0 0
    %3432 = vmatpush1.bf16.xpose.msra.mxu0 0
    %3433 = vmatprep.subr.bf16.mxu0 0
    %3434 = vmatpush1.bf16.xpose.msra.mxu0 0
    %3435 = vmatprep.subr.bf16.mxu0 0
    %3436 = vmatpush1.bf16.xpose.msra.mxu0 0
    %3437 = vmatprep.subr.bf16.mxu0 0
    %3438 = vmatpush1.bf16.xpose.msra.mxu0 0
    %3439 = vmatprep.subr.bf16.mxu0 0
    %3440 = vmatpush1.bf16.xpose.msra.mxu0 0
    %3441 = vmatprep.subr.bf16.mxu0 0
    %3442 = vmatpush1.bf16.xpose.msra.mxu0 0
    %3443 = vmatprep.subr.bf16.mxu0 0
    %3444 = vmatpush1.bf16.xpose.msra.mxu0 0
    %3445 = vmatprep.subr.bf16.mxu0 0
    %3446 = vmatpush1.bf16.xpose.msra.mxu0 0
    %3447 = vmatprep.subr.bf16.mxu0 0
    %3448 = vmatpush1.bf16.xpose.msra.mxu0 0
    %3449 = vmatprep.subr.bf16.mxu0 0
    %3450 = vmatpush1.bf16.xpose.msra.mxu0 0
    %3451 = vmatprep.subr.bf16.mxu0 0
    %3452 = vmatpush1.bf16.xpose.msra.mxu0 0
    %3453 = vmatprep.subr.bf16.mxu0 0
    %3454 = vmatpush1.bf16.xpose.msra.mxu0 0
    %3455 = vmatprep.subr.bf16.mxu0 0
    %3456 = vmatpush1.bf16.xpose.msra.mxu0 0
    %3457 = vmatprep.mubr.bf16.mxu0 0
    %3458 = vmatmul.mubr.bf16.gmra.mrb[0].mxu0 %v3420
    %v3459 = vpop.f32.mrb[0].mxu0
    %v3460 = vadd.f32 0.0, %v3459
    %v3461 = vpop.f32.mrb[0].mxu0
    %v3462 = vpop.f32.mrb[0].mxu0
    %v3463 = vpop.f32.mrb[0].mxu0
    %3464 = vdwg.mxu0
    %v3466 = vsel %vm304, %v3416, 0
    %v3469 = vsel %vm304, %v3418, 0
    %3471 = vmatprep.subr.bf16.mxu0 0
    %3472 = vmatpush1.bf16.xpose.msra.mxu0 %v3469
    %3473 = vmatprep.subr.bf16.mxu0 0
    %3474 = vmatpush1.bf16.xpose.msra.mxu0 0
    %3475 = vmatprep.subr.bf16.mxu0 0
    %3476 = vmatpush1.bf16.xpose.msra.mxu0 0
    %3477 = vmatprep.subr.bf16.mxu0 0
    %3478 = vmatpush1.bf16.xpose.msra.mxu0 0
    %3479 = vmatprep.subr.bf16.mxu0 0
    %3480 = vmatpush1.bf16.xpose.msra.mxu0 0
    %3481 = vmatprep.subr.bf16.mxu0 0
    %3482 = vmatpush1.bf16.xpose.msra.mxu0 0
    %3483 = vmatprep.subr.bf16.mxu0 0
    %3484 = vmatpush1.bf16.xpose.msra.mxu0 0
    %3485 = vmatprep.subr.bf16.mxu0 0
    %3486 = vmatpush1.bf16.xpose.msra.mxu0 0
    %3487 = vmatprep.subr.bf16.mxu0 0
    %3488 = vmatpush1.bf16.xpose.msra.mxu0 0
    %3489 = vmatprep.subr.bf16.mxu0 0
    %3490 = vmatpush1.bf16.xpose.msra.mxu0 0
    %3491 = vmatprep.subr.bf16.mxu0 0
    %3492 = vmatpush1.bf16.xpose.msra.mxu0 0
    %3493 = vmatprep.subr.bf16.mxu0 0
    %3494 = vmatpush1.bf16.xpose.msra.mxu0 0
    %3495 = vmatprep.subr.bf16.mxu0 0
    %3496 = vmatpush1.bf16.xpose.msra.mxu0 0
    %3497 = vmatprep.subr.bf16.mxu0 0
    %3498 = vmatpush1.bf16.xpose.msra.mxu0 0
    %3499 = vmatprep.subr.bf16.mxu0 0
    %3500 = vmatpush1.bf16.xpose.msra.mxu0 0
    %3501 = vmatprep.subr.bf16.mxu0 0
    %3502 = vmatpush1.bf16.xpose.msra.mxu0 0
    %3503 = vmatprep.mubr.bf16.mxu0 0
    %3504 = vmatmul.mubr.bf16.gmra.mrb[0].mxu0 %v3466
    %v3505 = vpop.f32.mrb[0].mxu0
    %v3506 = vadd.f32 0.0, %v3505
    %v3507 = vpop.f32.mrb[0].mxu0
    %v3508 = vpop.f32.mrb[0].mxu0
    %v3509 = vpop.f32.mrb[0].mxu0
    %3510 = vdwg.mxu0
    %v3511 = vsel %vm304, %v3460, -inf
    %3512 = vmax.xlane.f32.xlu0 %v3511
    %v3513 = vpop.xlane.xlu0 %3512
    %v3514 = vsel %vm304, %v3506, -inf
    %3515 = vmax.xlane.f32.xlu0 %v3514
    %v3516 = vpop.xlane.xlu0 %3515
    %v3517 = vsub.f32 %v3460, %v3513
    %v3518 = vsub.f32 %v3506, %v3516
    %v3519 = vmul.f32 %v3517, 1.442695
    %v3520 = vpow.pop %v3519
    %v3521 = vmul.f32 %v3518, 1.442695
    %v3522 = vpow.pop %v3521
    %v3523 = vsel %vm304, %v3520, 0.0
    %3524 = vadd.xlane.f32.xlu0 %v3523
    %v3525 = vpop.xlane.xlu0 %3524
    %v3526 = vsel %vm304, %v3522, 0.0
    %3527 = vadd.xlane.f32.xlu0 %v3526
    %v3528 = vpop.xlane.xlu0 %3527
    %v3529 = vpack.c.bf16 %v3520, %v3520
    %v3530 = vpack.c.bf16 %v3522, %v3522
    %v3531 = vpack.c.bf16 %v3409, %v3409
    %v3532 = vpack.c.bf16 %v3412, %v3412
    %v3534 = vsel %vm304, %v3529, 0
    %v3537 = vsel %vm940, %v3531, 0
    %3539 = vmatprep.subr.bf16.mxu0 0
    %3540 = vmatpush1.bf16.msra.mxu0 %v3537
    %3541 = vmatprep.subr.bf16.mxu0 0
    %3542 = vmatpush1.bf16.msra.mxu0 0
    %3543 = vmatprep.subr.bf16.mxu0 0
    %3544 = vmatpush1.bf16.msra.mxu0 0
    %3545 = vmatprep.subr.bf16.mxu0 0
    %3546 = vmatpush1.bf16.msra.mxu0 0
    %3547 = vmatprep.subr.bf16.mxu0 0
    %3548 = vmatpush1.bf16.msra.mxu0 0
    %3549 = vmatprep.subr.bf16.mxu0 0
    %3550 = vmatpush1.bf16.msra.mxu0 0
    %3551 = vmatprep.subr.bf16.mxu0 0
    %3552 = vmatpush1.bf16.msra.mxu0 0
    %3553 = vmatprep.subr.bf16.mxu0 0
    %3554 = vmatpush1.bf16.msra.mxu0 0
    %3555 = vmatprep.subr.bf16.mxu0 0
    %3556 = vmatpush1.bf16.msra.mxu0 0
    %3557 = vmatprep.subr.bf16.mxu0 0
    %3558 = vmatpush1.bf16.msra.mxu0 0
    %3559 = vmatprep.subr.bf16.mxu0 0
    %3560 = vmatpush1.bf16.msra.mxu0 0
    %3561 = vmatprep.subr.bf16.mxu0 0
    %3562 = vmatpush1.bf16.msra.mxu0 0
    %3563 = vmatprep.subr.bf16.mxu0 0
    %3564 = vmatpush1.bf16.msra.mxu0 0
    %3565 = vmatprep.subr.bf16.mxu0 0
    %3566 = vmatpush1.bf16.msra.mxu0 0
    %3567 = vmatprep.subr.bf16.mxu0 0
    %3568 = vmatpush1.bf16.msra.mxu0 0
    %3569 = vmatprep.subr.bf16.mxu0 0
    %3570 = vmatpush1.bf16.msra.mxu0 0
    %3571 = vmatprep.mubr.bf16.mxu0 0
    %3572 = vmatmul.mubr.bf16.gmra.mrb[0].mxu0 %v3534
    %v3573 = vpop.f32.mrb[0].mxu0
    %v3574 = vadd.f32 0.0, %v3573
    %v3575 = vpop.f32.mrb[0].mxu0
    %v3576 = vpop.f32.mrb[0].mxu0
    %v3577 = vpop.f32.mrb[0].mxu0
    %3578 = vdwg.mxu0
    %v3580 = vsel %vm304, %v3530, 0
    %v3583 = vsel %vm940, %v3532, 0
    %3585 = vmatprep.subr.bf16.mxu0 0
    %3586 = vmatpush1.bf16.msra.mxu0 %v3583
    %3587 = vmatprep.subr.bf16.mxu0 0
    %3588 = vmatpush1.bf16.msra.mxu0 0
    %3589 = vmatprep.subr.bf16.mxu0 0
    %3590 = vmatpush1.bf16.msra.mxu0 0
    %3591 = vmatprep.subr.bf16.mxu0 0
    %3592 = vmatpush1.bf16.msra.mxu0 0
    %3593 = vmatprep.subr.bf16.mxu0 0
    %3594 = vmatpush1.bf16.msra.mxu0 0
    %3595 = vmatprep.subr.bf16.mxu0 0
    %3596 = vmatpush1.bf16.msra.mxu0 0
    %3597 = vmatprep.subr.bf16.mxu0 0
    %3598 = vmatpush1.bf16.msra.mxu0 0
    %3599 = vmatprep.subr.bf16.mxu0 0
    %3600 = vmatpush1.bf16.msra.mxu0 0
    %3601 = vmatprep.subr.bf16.mxu0 0
    %3602 = vmatpush1.bf16.msra.mxu0 0
    %3603 = vmatprep.subr.bf16.mxu0 0
    %3604 = vmatpush1.bf16.msra.mxu0 0
    %3605 = vmatprep.subr.bf16.mxu0 0
    %3606 = vmatpush1.bf16.msra.mxu0 0
    %3607 = vmatprep.subr.bf16.mxu0 0
    %3608 = vmatpush1.bf16.msra.mxu0 0
    %3609 = vmatprep.subr.bf16.mxu0 0
    %3610 = vmatpush1.bf16.msra.mxu0 0
    %3611 = vmatprep.subr.bf16.mxu0 0
    %3612 = vmatpush1.bf16.msra.mxu0 0
    %3613 = vmatprep.subr.bf16.mxu0 0
    %3614 = vmatpush1.bf16.msra.mxu0 0
    %3615 = vmatprep.subr.bf16.mxu0 0
    %3616 = vmatpush1.bf16.msra.mxu0 0
    %3617 = vmatprep.mubr.bf16.mxu0 0
    %3618 = vmatmul.mubr.bf16.gmra.mrb[0].mxu0 %v3580
    %v3619 = vpop.f32.mrb[0].mxu0
    %v3620 = vadd.f32 0.0, %v3619
    %v3621 = vpop.f32.mrb[0].mxu0
    %v3622 = vpop.f32.mrb[0].mxu0
    %v3623 = vpop.f32.mrb[0].mxu0
    %3624 = vdwg.mxu0
    %v3625 = vrcp.pop %v3525
    %v3626 = vrcp.pop %v3528
    %v3627 = vmul.f32 %v3574, %v3625
    %v3628 = vmul.f32 %v3620, %v3626
    %v3629 = vpack.c.bf16 %v3628, %v3627
    %s3630 = scalar_lea.vmem %s9, 24
    %v3631 = vld [vmem:[%s3630] sm:$0xf]
    %v3633 = vsel %vm304, %v3629, 0
    %v3636 = vsel %vm940, %v3631, 0
    %3638 = vmatprep.subr.bf16.mxu0 0
    %3639 = vmatpush1.bf16.msra.mxu0 %v3636
    %3640 = vmatprep.subr.bf16.mxu0 0
    %3641 = vmatpush1.bf16.msra.mxu0 0
    %3642 = vmatprep.subr.bf16.mxu0 0
    %3643 = vmatpush1.bf16.msra.mxu0 0
    %3644 = vmatprep.subr.bf16.mxu0 0
    %3645 = vmatpush1.bf16.msra.mxu0 0
    %3646 = vmatprep.subr.bf16.mxu0 0
    %3647 = vmatpush1.bf16.msra.mxu0 0
    %3648 = vmatprep.subr.bf16.mxu0 0
    %3649 = vmatpush1.bf16.msra.mxu0 0
    %3650 = vmatprep.subr.bf16.mxu0 0
    %3651 = vmatpush1.bf16.msra.mxu0 0
    %3652 = vmatprep.subr.bf16.mxu0 0
    %3653 = vmatpush1.bf16.msra.mxu0 0
    %3654 = vmatprep.subr.bf16.mxu0 0
    %3655 = vmatpush1.bf16.msra.mxu0 0
    %3656 = vmatprep.subr.bf16.mxu0 0
    %3657 = vmatpush1.bf16.msra.mxu0 0
    %3658 = vmatprep.subr.bf16.mxu0 0
    %3659 = vmatpush1.bf16.msra.mxu0 0
    %3660 = vmatprep.subr.bf16.mxu0 0
    %3661 = vmatpush1.bf16.msra.mxu0 0
    %3662 = vmatprep.subr.bf16.mxu0 0
    %3663 = vmatpush1.bf16.msra.mxu0 0
    %3664 = vmatprep.subr.bf16.mxu0 0
    %3665 = vmatpush1.bf16.msra.mxu0 0
    %3666 = vmatprep.subr.bf16.mxu0 0
    %3667 = vmatpush1.bf16.msra.mxu0 0
    %3668 = vmatprep.subr.bf16.mxu0 0
    %3669 = vmatpush1.bf16.msra.mxu0 0
    %3670 = vmatprep.mubr.bf16.mxu0 0
    %3671 = vmatmul.mubr.bf16.gmra.mrb[0].mxu0 %v3633
    %v3672 = vpop.f32.mrb[0].mxu0
    %v3673 = vadd.f32 0.0, %v3672
    %v3674 = vpop.f32.mrb[0].mxu0
    %v3675 = vpop.f32.mrb[0].mxu0
    %v3676 = vadd.f32 0.0, %v3675
    %v3677 = vpop.f32.mrb[0].mxu0
    %3678 = vdwg.mxu0
    %v3679 = vadd.f32 %v3211, %v3673
    %v3680 = vadd.f32 %v3214, %v3676
    %s3681 = scalar_lea.vmem %s3, 112
    %v3682 = vld [vmem:[%s3681] sm:$0xf]
    %v3683 = vld [vmem:[%s3681 + $0x4] sm:$0xf]
    %v3684 = vld [vmem:[%s3681 + $0x8] sm:$0xf]
    %v3685 = vld [vmem:[%s3681 + $0xc] sm:$0xf]
    %s3686 = scalar_lea.vmem %s4, 7
    %v3687 = vld [vmem:[%s3686] sm:$0x1]
    %v3689 = vlaneseq
    %v3690 = vshrl.u32 %v3689, 7
    %v3691 = vsub.s32 0, %v3690
    %v3692 = vrot.slane %v3687, %v3691
    %v3698 = vunpack.c.l.b16 %v3682
    %v3699 = vunpack.c.l.b16 %v3683
    %v3700 = vunpack.c.l.b16 %v3684
    %v3701 = vunpack.c.l.b16 %v3685
    %v3702 = vpack.c.b16 %v3699, %v3698
    %v3703 = vpack.c.b16 %v3701, %v3700
    %3706 = vmatprep.subr.bf16.mxu0 0
    %3707 = vmatpush1.bf16.msra.mxu0 %v3702
    %3708 = vmatprep.subr.bf16.mxu0 0
    %3709 = vmatpush1.bf16.msra.mxu0 %v3703
    %3710 = vmatprep.subr.bf16.mxu0 0
    %3711 = vmatpush1.bf16.msra.mxu0 0
    %3712 = vmatprep.subr.bf16.mxu0 0
    %3713 = vmatpush1.bf16.msra.mxu0 0
    %3714 = vmatprep.subr.bf16.mxu0 0
    %3715 = vmatpush1.bf16.msra.mxu0 0
    %3716 = vmatprep.subr.bf16.mxu0 0
    %3717 = vmatpush1.bf16.msra.mxu0 0
    %3718 = vmatprep.subr.bf16.mxu0 0
    %3719 = vmatpush1.bf16.msra.mxu0 0
    %3720 = vmatprep.subr.bf16.mxu0 0
    %3721 = vmatpush1.bf16.msra.mxu0 0
    %3722 = vmatprep.subr.bf16.mxu0 0
    %3723 = vmatpush1.bf16.msra.mxu0 0
    %3724 = vmatprep.subr.bf16.mxu0 0
    %3725 = vmatpush1.bf16.msra.mxu0 0
    %3726 = vmatprep.subr.bf16.mxu0 0
    %3727 = vmatpush1.bf16.msra.mxu0 0
    %3728 = vmatprep.subr.bf16.mxu0 0
    %3729 = vmatpush1.bf16.msra.mxu0 0
    %3730 = vmatprep.subr.bf16.mxu0 0
    %3731 = vmatpush1.bf16.msra.mxu0 0
    %3732 = vmatprep.subr.bf16.mxu0 0
    %3733 = vmatpush1.bf16.msra.mxu0 0
    %3734 = vmatprep.subr.bf16.mxu0 0
    %3735 = vmatpush1.bf16.msra.mxu0 0
    %3736 = vmatprep.subr.bf16.mxu0 0
    %3737 = vmatpush1.bf16.msra.mxu0 0
    %3738 = vmatprep.mubr.bf16.mxu0 0
    %3739 = vmatmul.mubr.bf16.gmra.mrb[0].mxu0 %v2316
    %v3740 = vpop.f32.mrb[0].mxu0
    %v3741 = vadd.f32 %v3692, %v3740
    %v3742 = vpop.f32.mrb[0].mxu0
    %v3743 = vpop.f32.mrb[0].mxu0
    %v3744 = vadd.f32 %v3692, %v3743
    %v3745 = vpop.f32.mrb[0].mxu0
    %3746 = vdwg.mxu0
    %s3747 = scalar_lea.vmem %s5, 112
    %v3748 = vld [vmem:[%s3747] sm:$0xf]
    %v3749 = vld [vmem:[%s3747 + $0x4] sm:$0xf]
    %v3750 = vld [vmem:[%s3747 + $0x8] sm:$0xf]
    %v3751 = vld [vmem:[%s3747 + $0xc] sm:$0xf]
    %s3752 = scalar_lea.vmem %s6, 7
    %v3753 = vld [vmem:[%s3752] sm:$0x1]
    %v3755 = vlaneseq
    %v3756 = vshrl.u32 %v3755, 7
    %v3757 = vsub.s32 0, %v3756
    %v3758 = vrot.slane %v3753, %v3757
    %v3764 = vunpack.c.l.b16 %v3748
    %v3765 = vunpack.c.l.b16 %v3749
    %v3766 = vunpack.c.l.b16 %v3750
    %v3767 = vunpack.c.l.b16 %v3751
    %v3768 = vpack.c.b16 %v3765, %v3764
    %v3769 = vpack.c.b16 %v3767, %v3766
    %3772 = vmatprep.subr.bf16.mxu0 0
    %3773 = vmatpush1.bf16.msra.mxu0 %v3768
    %3774 = vmatprep.subr.bf16.mxu0 0
    %3775 = vmatpush1.bf16.msra.mxu0 %v3769
    %3776 = vmatprep.subr.bf16.mxu0 0
    %3777 = vmatpush1.bf16.msra.mxu0 0
    %3778 = vmatprep.subr.bf16.mxu0 0
    %3779 = vmatpush1.bf16.msra.mxu0 0
    %3780 = vmatprep.subr.bf16.mxu0 0
    %3781 = vmatpush1.bf16.msra.mxu0 0
    %3782 = vmatprep.subr.bf16.mxu0 0
    %3783 = vmatpush1.bf16.msra.mxu0 0
    %3784 = vmatprep.subr.bf16.mxu0 0
    %3785 = vmatpush1.bf16.msra.mxu0 0
    %3786 = vmatprep.subr.bf16.mxu0 0
    %3787 = vmatpush1.bf16.msra.mxu0 0
    %3788 = vmatprep.subr.bf16.mxu0 0
    %3789 = vmatpush1.bf16.msra.mxu0 0
    %3790 = vmatprep.subr.bf16.mxu0 0
    %3791 = vmatpush1.bf16.msra.mxu0 0
    %3792 = vmatprep.subr.bf16.mxu0 0
    %3793 = vmatpush1.bf16.msra.mxu0 0
    %3794 = vmatprep.subr.bf16.mxu0 0
    %3795 = vmatpush1.bf16.msra.mxu0 0
    %3796 = vmatprep.subr.bf16.mxu0 0
    %3797 = vmatpush1.bf16.msra.mxu0 0
    %3798 = vmatprep.subr.bf16.mxu0 0
    %3799 = vmatpush1.bf16.msra.mxu0 0
    %3800 = vmatprep.subr.bf16.mxu0 0
    %3801 = vmatpush1.bf16.msra.mxu0 0
    %3802 = vmatprep.subr.bf16.mxu0 0
    %3803 = vmatpush1.bf16.msra.mxu0 0
    %3804 = vmatprep.mubr.bf16.mxu0 0
    %3805 = vmatmul.mubr.bf16.gmra.mrb[0].mxu0 %v2316
    %v3806 = vpop.f32.mrb[0].mxu0
    %v3807 = vadd.f32 %v3758, %v3806
    %v3808 = vpop.f32.mrb[0].mxu0
    %v3809 = vpop.f32.mrb[0].mxu0
    %v3810 = vadd.f32 %v3758, %v3809
    %v3811 = vpop.f32.mrb[0].mxu0
    %3812 = vdwg.mxu0
    %s3813 = scalar_lea.vmem %s7, 112
    %v3814 = vld [vmem:[%s3813] sm:$0xf]
    %v3815 = vld [vmem:[%s3813 + $0x4] sm:$0xf]
    %v3816 = vld [vmem:[%s3813 + $0x8] sm:$0xf]
    %v3817 = vld [vmem:[%s3813 + $0xc] sm:$0xf]
    %s3818 = scalar_lea.vmem %s8, 7
    %v3819 = vld [vmem:[%s3818] sm:$0x1]
    %v3821 = vlaneseq
    %v3822 = vshrl.u32 %v3821, 7
    %v3823 = vsub.s32 0, %v3822
    %v3824 = vrot.slane %v3819, %v3823
    %v3830 = vunpack.c.l.b16 %v3814
    %v3831 = vunpack.c.l.b16 %v3815
    %v3832 = vunpack.c.l.b16 %v3816
    %v3833 = vunpack.c.l.b16 %v3817
    %v3834 = vpack.c.b16 %v3831, %v3830
    %v3835 = vpack.c.b16 %v3833, %v3832
    %3838 = vmatprep.subr.bf16.mxu0 0
    %3839 = vmatpush1.bf16.msra.mxu0 %v3834
    %3840 = vmatprep.subr.bf16.mxu0 0
    %3841 = vmatpush1.bf16.msra.mxu0 %v3835
    %3842 = vmatprep.subr.bf16.mxu0 0
    %3843 = vmatpush1.bf16.msra.mxu0 0
    %3844 = vmatprep.subr.bf16.mxu0 0
    %3845 = vmatpush1.bf16.msra.mxu0 0
    %3846 = vmatprep.subr.bf16.mxu0 0
    %3847 = vmatpush1.bf16.msra.mxu0 0
    %3848 = vmatprep.subr.bf16.mxu0 0
    %3849 = vmatpush1.bf16.msra.mxu0 0
    %3850 = vmatprep.subr.bf16.mxu0 0
    %3851 = vmatpush1.bf16.msra.mxu0 0
    %3852 = vmatprep.subr.bf16.mxu0 0
    %3853 = vmatpush1.bf16.msra.mxu0 0
    %3854 = vmatprep.subr.bf16.mxu0 0
    %3855 = vmatpush1.bf16.msra.mxu0 0
    %3856 = vmatprep.subr.bf16.mxu0 0
    %3857 = vmatpush1.bf16.msra.mxu0 0
    %3858 = vmatprep.subr.bf16.mxu0 0
    %3859 = vmatpush1.bf16.msra.mxu0 0
    %3860 = vmatprep.subr.bf16.mxu0 0
    %3861 = vmatpush1.bf16.msra.mxu0 0
    %3862 = vmatprep.subr.bf16.mxu0 0
    %3863 = vmatpush1.bf16.msra.mxu0 0
    %3864 = vmatprep.subr.bf16.mxu0 0
    %3865 = vmatpush1.bf16.msra.mxu0 0
    %3866 = vmatprep.subr.bf16.mxu0 0
    %3867 = vmatpush1.bf16.msra.mxu0 0
    %3868 = vmatprep.subr.bf16.mxu0 0
    %3869 = vmatpush1.bf16.msra.mxu0 0
    %3870 = vmatprep.mubr.bf16.mxu0 0
    %3871 = vmatmul.mubr.bf16.gmra.mrb[0].mxu0 %v2316
    %v3872 = vpop.f32.mrb[0].mxu0
    %v3873 = vadd.f32 %v3824, %v3872
    %v3874 = vpop.f32.mrb[0].mxu0
    %v3875 = vpop.f32.mrb[0].mxu0
    %v3876 = vadd.f32 %v3824, %v3875
    %v3877 = vpop.f32.mrb[0].mxu0
    %3878 = vdwg.mxu0
    %v3879 = vpack.c.bf16 %v3741, %v3741
    %v3880 = vpack.c.bf16 %v3744, %v3744
    %v3881 = vpack.c.bf16 %v3807, %v3807
    %v3882 = vpack.c.bf16 %v3810, %v3810
    %v3884 = vsel %vm304, %v3879, 0
    %v3887 = vsel %vm304, %v3881, 0
    %3889 = vmatprep.subr.bf16.mxu0 0
    %3890 = vmatpush1.bf16.xpose.msra.mxu0 %v3887
    %3891 = vmatprep.subr.bf16.mxu0 0
    %3892 = vmatpush1.bf16.xpose.msra.mxu0 0
    %3893 = vmatprep.subr.bf16.mxu0 0
    %3894 = vmatpush1.bf16.xpose.msra.mxu0 0
    %3895 = vmatprep.subr.bf16.mxu0 0
    %3896 = vmatpush1.bf16.xpose.msra.mxu0 0
    %3897 = vmatprep.subr.bf16.mxu0 0
    %3898 = vmatpush1.bf16.xpose.msra.mxu0 0
    %3899 = vmatprep.subr.bf16.mxu0 0
    %3900 = vmatpush1.bf16.xpose.msra.mxu0 0
    %3901 = vmatprep.subr.bf16.mxu0 0
    %3902 = vmatpush1.bf16.xpose.msra.mxu0 0
    %3903 = vmatprep.subr.bf16.mxu0 0
    %3904 = vmatpush1.bf16.xpose.msra.mxu0 0
    %3905 = vmatprep.subr.bf16.mxu0 0
    %3906 = vmatpush1.bf16.xpose.msra.mxu0 0
    %3907 = vmatprep.subr.bf16.mxu0 0
    %3908 = vmatpush1.bf16.xpose.msra.mxu0 0
    %3909 = vmatprep.subr.bf16.mxu0 0
    %3910 = vmatpush1.bf16.xpose.msra.mxu0 0
    %3911 = vmatprep.subr.bf16.mxu0 0
    %3912 = vmatpush1.bf16.xpose.msra.mxu0 0
    %3913 = vmatprep.subr.bf16.mxu0 0
    %3914 = vmatpush1.bf16.xpose.msra.mxu0 0
    %3915 = vmatprep.subr.bf16.mxu0 0
    %3916 = vmatpush1.bf16.xpose.msra.mxu0 0
    %3917 = vmatprep.subr.bf16.mxu0 0
    %3918 = vmatpush1.bf16.xpose.msra.mxu0 0
    %3919 = vmatprep.subr.bf16.mxu0 0
    %3920 = vmatpush1.bf16.xpose.msra.mxu0 0
    %3921 = vmatprep.mubr.bf16.mxu0 0
    %3922 = vmatmul.mubr.bf16.gmra.mrb[0].mxu0 %v3884
    %v3923 = vpop.f32.mrb[0].mxu0
    %v3924 = vadd.f32 0.0, %v3923
    %v3925 = vpop.f32.mrb[0].mxu0
    %v3926 = vpop.f32.mrb[0].mxu0
    %v3927 = vpop.f32.mrb[0].mxu0
    %3928 = vdwg.mxu0
    %v3930 = vsel %vm304, %v3880, 0
    %v3933 = vsel %vm304, %v3882, 0
    %3935 = vmatprep.subr.bf16.mxu0 0
    %3936 = vmatpush1.bf16.xpose.msra.mxu0 %v3933
    %3937 = vmatprep.subr.bf16.mxu0 0
    %3938 = vmatpush1.bf16.xpose.msra.mxu0 0
    %3939 = vmatprep.subr.bf16.mxu0 0
    %3940 = vmatpush1.bf16.xpose.msra.mxu0 0
    %3941 = vmatprep.subr.bf16.mxu0 0
    %3942 = vmatpush1.bf16.xpose.msra.mxu0 0
    %3943 = vmatprep.subr.bf16.mxu0 0
    %3944 = vmatpush1.bf16.xpose.msra.mxu0 0
    %3945 = vmatprep.subr.bf16.mxu0 0
    %3946 = vmatpush1.bf16.xpose.msra.mxu0 0
    %3947 = vmatprep.subr.bf16.mxu0 0
    %3948 = vmatpush1.bf16.xpose.msra.mxu0 0
    %3949 = vmatprep.subr.bf16.mxu0 0
    %3950 = vmatpush1.bf16.xpose.msra.mxu0 0
    %3951 = vmatprep.subr.bf16.mxu0 0
    %3952 = vmatpush1.bf16.xpose.msra.mxu0 0
    %3953 = vmatprep.subr.bf16.mxu0 0
    %3954 = vmatpush1.bf16.xpose.msra.mxu0 0
    %3955 = vmatprep.subr.bf16.mxu0 0
    %3956 = vmatpush1.bf16.xpose.msra.mxu0 0
    %3957 = vmatprep.subr.bf16.mxu0 0
    %3958 = vmatpush1.bf16.xpose.msra.mxu0 0
    %3959 = vmatprep.subr.bf16.mxu0 0
    %3960 = vmatpush1.bf16.xpose.msra.mxu0 0
    %3961 = vmatprep.subr.bf16.mxu0 0
    %3962 = vmatpush1.bf16.xpose.msra.mxu0 0
    %3963 = vmatprep.subr.bf16.mxu0 0
    %3964 = vmatpush1.bf16.xpose.msra.mxu0 0
    %3965 = vmatprep.subr.bf16.mxu0 0
    %3966 = vmatpush1.bf16.xpose.msra.mxu0 0
    %3967 = vmatprep.mubr.bf16.mxu0 0
    %3968 = vmatmul.mubr.bf16.gmra.mrb[0].mxu0 %v3930
    %v3969 = vpop.f32.mrb[0].mxu0
    %v3970 = vadd.f32 0.0, %v3969
    %v3971 = vpop.f32.mrb[0].mxu0
    %v3972 = vpop.f32.mrb[0].mxu0
    %v3973 = vpop.f32.mrb[0].mxu0
    %3974 = vdwg.mxu0
    %v3975 = vsel %vm304, %v3924, -inf
    %3976 = vmax.xlane.f32.xlu0 %v3975
    %v3977 = vpop.xlane.xlu0 %3976
    %v3978 = vsel %vm304, %v3970, -inf
    %3979 = vmax.xlane.f32.xlu0 %v3978
    %v3980 = vpop.xlane.xlu0 %3979
    %v3981 = vsub.f32 %v3924, %v3977
    %v3982 = vsub.f32 %v3970, %v3980
    %v3983 = vmul.f32 %v3981, 1.442695
    %v3984 = vpow.pop %v3983
    %v3985 = vmul.f32 %v3982, 1.442695
    %v3986 = vpow.pop %v3985
    %v3987 = vsel %vm304, %v3984, 0.0
    %3988 = vadd.xlane.f32.xlu0 %v3987
    %v3989 = vpop.xlane.xlu0 %3988
    %v3990 = vsel %vm304, %v3986, 0.0
    %3991 = vadd.xlane.f32.xlu0 %v3990
    %v3992 = vpop.xlane.xlu0 %3991
    %v3993 = vpack.c.bf16 %v3984, %v3984
    %v3994 = vpack.c.bf16 %v3986, %v3986
    %v3995 = vpack.c.bf16 %v3873, %v3873
    %v3996 = vpack.c.bf16 %v3876, %v3876
    %v3998 = vsel %vm304, %v3993, 0
    %v4001 = vsel %vm940, %v3995, 0
    %4003 = vmatprep.subr.bf16.mxu0 0
    %4004 = vmatpush1.bf16.msra.mxu0 %v4001
    %4005 = vmatprep.subr.bf16.mxu0 0
    %4006 = vmatpush1.bf16.msra.mxu0 0
    %4007 = vmatprep.subr.bf16.mxu0 0
    %4008 = vmatpush1.bf16.msra.mxu0 0
    %4009 = vmatprep.subr.bf16.mxu0 0
    %4010 = vmatpush1.bf16.msra.mxu0 0
    %4011 = vmatprep.subr.bf16.mxu0 0
    %4012 = vmatpush1.bf16.msra.mxu0 0
    %4013 = vmatprep.subr.bf16.mxu0 0
    %4014 = vmatpush1.bf16.msra.mxu0 0
    %4015 = vmatprep.subr.bf16.mxu0 0
    %4016 = vmatpush1.bf16.msra.mxu0 0
    %4017 = vmatprep.subr.bf16.mxu0 0
    %4018 = vmatpush1.bf16.msra.mxu0 0
    %4019 = vmatprep.subr.bf16.mxu0 0
    %4020 = vmatpush1.bf16.msra.mxu0 0
    %4021 = vmatprep.subr.bf16.mxu0 0
    %4022 = vmatpush1.bf16.msra.mxu0 0
    %4023 = vmatprep.subr.bf16.mxu0 0
    %4024 = vmatpush1.bf16.msra.mxu0 0
    %4025 = vmatprep.subr.bf16.mxu0 0
    %4026 = vmatpush1.bf16.msra.mxu0 0
    %4027 = vmatprep.subr.bf16.mxu0 0
    %4028 = vmatpush1.bf16.msra.mxu0 0
    %4029 = vmatprep.subr.bf16.mxu0 0
    %4030 = vmatpush1.bf16.msra.mxu0 0
    %4031 = vmatprep.subr.bf16.mxu0 0
    %4032 = vmatpush1.bf16.msra.mxu0 0
    %4033 = vmatprep.subr.bf16.mxu0 0
    %4034 = vmatpush1.bf16.msra.mxu0 0
    %4035 = vmatprep.mubr.bf16.mxu0 0
    %4036 = vmatmul.mubr.bf16.gmra.mrb[0].mxu0 %v3998
    %v4037 = vpop.f32.mrb[0].mxu0
    %v4038 = vadd.f32 0.0, %v4037
    %v4039 = vpop.f32.mrb[0].mxu0
    %v4040 = vpop.f32.mrb[0].mxu0
    %v4041 = vpop.f32.mrb[0].mxu0
    %4042 = vdwg.mxu0
    %v4044 = vsel %vm304, %v3994, 0
    %v4047 = vsel %vm940, %v3996, 0
    %4049 = vmatprep.subr.bf16.mxu0 0
    %4050 = vmatpush1.bf16.msra.mxu0 %v4047
    %4051 = vmatprep.subr.bf16.mxu0 0
    %4052 = vmatpush1.bf16.msra.mxu0 0
    %4053 = vmatprep.subr.bf16.mxu0 0
    %4054 = vmatpush1.bf16.msra.mxu0 0
    %4055 = vmatprep.subr.bf16.mxu0 0
    %4056 = vmatpush1.bf16.msra.mxu0 0
    %4057 = vmatprep.subr.bf16.mxu0 0
    %4058 = vmatpush1.bf16.msra.mxu0 0
    %4059 = vmatprep.subr.bf16.mxu0 0
    %4060 = vmatpush1.bf16.msra.mxu0 0
    %4061 = vmatprep.subr.bf16.mxu0 0
    %4062 = vmatpush1.bf16.msra.mxu0 0
    %4063 = vmatprep.subr.bf16.mxu0 0
    %4064 = vmatpush1.bf16.msra.mxu0 0
    %4065 = vmatprep.subr.bf16.mxu0 0
    %4066 = vmatpush1.bf16.msra.mxu0 0
    %4067 = vmatprep.subr.bf16.mxu0 0
    %4068 = vmatpush1.bf16.msra.mxu0 0
    %4069 = vmatprep.subr.bf16.mxu0 0
    %4070 = vmatpush1.bf16.msra.mxu0 0
    %4071 = vmatprep.subr.bf16.mxu0 0
    %4072 = vmatpush1.bf16.msra.mxu0 0
    %4073 = vmatprep.subr.bf16.mxu0 0
    %4074 = vmatpush1.bf16.msra.mxu0 0
    %4075 = vmatprep.subr.bf16.mxu0 0
    %4076 = vmatpush1.bf16.msra.mxu0 0
    %4077 = vmatprep.subr.bf16.mxu0 0
    %4078 = vmatpush1.bf16.msra.mxu0 0
    %4079 = vmatprep.subr.bf16.mxu0 0
    %4080 = vmatpush1.bf16.msra.mxu0 0
    %4081 = vmatprep.mubr.bf16.mxu0 0
    %4082 = vmatmul.mubr.bf16.gmra.mrb[0].mxu0 %v4044
    %v4083 = vpop.f32.mrb[0].mxu0
    %v4084 = vadd.f32 0.0, %v4083
    %v4085 = vpop.f32.mrb[0].mxu0
    %v4086 = vpop.f32.mrb[0].mxu0
    %v4087 = vpop.f32.mrb[0].mxu0
    %4088 = vdwg.mxu0
    %v4089 = vrcp.pop %v3989
    %v4090 = vrcp.pop %v3992
    %v4091 = vmul.f32 %v4038, %v4089
    %v4092 = vmul.f32 %v4084, %v4090
    %v4093 = vpack.c.bf16 %v4092, %v4091
    %s4094 = scalar_lea.vmem %s9, 28
    %v4095 = vld [vmem:[%s4094] sm:$0xf]
    %v4097 = vsel %vm304, %v4093, 0
    %v4100 = vsel %vm940, %v4095, 0
    %4102 = vmatprep.subr.bf16.mxu0 0
    %4103 = vmatpush1.bf16.msra.mxu0 %v4100
    %4104 = vmatprep.subr.bf16.mxu0 0
    %4105 = vmatpush1.bf16.msra.mxu0 0
    %4106 = vmatprep.subr.bf16.mxu0 0
    %4107 = vmatpush1.bf16.msra.mxu0 0
    %4108 = vmatprep.subr.bf16.mxu0 0
    %4109 = vmatpush1.bf16.msra.mxu0 0
    %4110 = vmatprep.subr.bf16.mxu0 0
    %4111 = vmatpush1.bf16.msra.mxu0 0
    %4112 = vmatprep.subr.bf16.mxu0 0
    %4113 = vmatpush1.bf16.msra.mxu0 0
    %4114 = vmatprep.subr.bf16.mxu0 0
    %4115 = vmatpush1.bf16.msra.mxu0 0
    %4116 = vmatprep.subr.bf16.mxu0 0
    %4117 = vmatpush1.bf16.msra.mxu0 0
    %4118 = vmatprep.subr.bf16.mxu0 0
    %4119 = vmatpush1.bf16.msra.mxu0 0
    %4120 = vmatprep.subr.bf16.mxu0 0
    %4121 = vmatpush1.bf16.msra.mxu0 0
    %4122 = vmatprep.subr.bf16.mxu0 0
    %4123 = vmatpush1.bf16.msra.mxu0 0
    %4124 = vmatprep.subr.bf16.mxu0 0
    %4125 = vmatpush1.bf16.msra.mxu0 0
    %4126 = vmatprep.subr.bf16.mxu0 0
    %4127 = vmatpush1.bf16.msra.mxu0 0
    %4128 = vmatprep.subr.bf16.mxu0 0
    %4129 = vmatpush1.bf16.msra.mxu0 0
    %4130 = vmatprep.subr.bf16.mxu0 0
    %4131 = vmatpush1.bf16.msra.mxu0 0
    %4132 = vmatprep.subr.bf16.mxu0 0
    %4133 = vmatpush1.bf16.msra.mxu0 0
    %4134 = vmatprep.mubr.bf16.mxu0 0
    %4135 = vmatmul.mubr.bf16.gmra.mrb[0].mxu0 %v4097
    %v4136 = vpop.f32.mrb[0].mxu0
    %v4137 = vadd.f32 0.0, %v4136
    %v4138 = vpop.f32.mrb[0].mxu0
    %v4139 = vpop.f32.mrb[0].mxu0
    %v4140 = vadd.f32 0.0, %v4139
    %v4141 = vpop.f32.mrb[0].mxu0
    %4142 = vdwg.mxu0
    %v4143 = vadd.f32 %v3679, %v4137
    %v4144 = vadd.f32 %v3680, %v4140
    %s4145 = scalar_lea.vmem %s10, 1
    %v4146 = vld [vmem:[%s4145] sm:$0x1]
    %v4148 = vlaneseq
    %v4149 = vshrl.u32 %v4148, 7
    %v4150 = vsub.s32 0, %v4149
    %v4151 = vrot.slane %v4146, %v4150
    %v4153 = vadd.f32 %v4143, %v4151
    %v4154 = vadd.f32 %v4144, %v4151
    %s4155 = sld [smem:[#allocation2 + $0x4]]
    %s4156 = sld [smem:[#allocation2 + $0x5]]
    %v4157 = vstv %s4155
    %v4158 = vmul.f32 %v4157, %v2287
    %v4159 = vmul.f32 %v4157, %v2288
    %v4160 = vstv %s4156
    %v4161 = vmul.f32 %v4160, %v4153
    %v4162 = vmul.f32 %v4160, %v4154
    %v4163 = vadd.f32 %v4158, %v4161
    %v4164 = vadd.f32 %v4159, %v4162
    %v4165 = vsel %vm105, %v4163, 0.0
    %4166 = vadd.xlane.f32.xlu0 %v4165
    %v4167 = vpop.xlane.xlu0 %4166
    %v4168 = vsel %vm105, %v4164, 0.0
    %4169 = vadd.xlane.f32.xlu0 %v4168
    %v4170 = vpop.xlane.xlu0 %4169
    %v4171 = vmul.f32 %v4167, %v2005
    %v4172 = vmul.f32 %v4170, %v2005
    %v4173 = vmul.f32 %v4163, %v4163
    %v4174 = vmul.f32 %v4164, %v4164
    %v4175 = vsel %vm105, %v4173, 0.0
    %4176 = vadd.xlane.f32.xlu0 %v4175
    %v4177 = vpop.xlane.xlu0 %4176
    %v4178 = vsel %vm105, %v4174, 0.0
    %4179 = vadd.xlane.f32.xlu0 %v4178
    %v4180 = vpop.xlane.xlu0 %4179
    %v4181 = vmul.f32 %v4177, %v2005
    %v4182 = vmul.f32 %v4180, %v2005
    %v4183 = vmul.f32 %v4171, %v4171
    %v4184 = vmul.f32 %v4172, %v4172
    %v4185 = vsub.f32 %v4181, %v4183
    %v4186 = vsub.f32 %v4182, %v4184
    %v4187 = vsub.f32 %v4163, %v4171
    %v4188 = vsub.f32 %v4164, %v4172
    %v4189 = vadd.f32 %v4185, 1e-12
    %v4190 = vadd.f32 %v4186, 1e-12
    %v4191 = vrsqrt.pop %v4189
    %v4192 = vrsqrt.pop %v4190
    %v4193 = vmul.f32 %v4187, %v4191
    %v4194 = vmul.f32 %v4188, %v4192
    %v4195 = vmul.f32 %v4193, %v2034
    %v4196 = vmul.f32 %v4194, %v2034
    %v4197 = vadd.f32 %v4195, %v2042
    %v4198 = vadd.f32 %v4196, %v2042
    %v4199 = vpack.c.bf16 %v4198, %v4197
    %s4200 = scalar_lea.vmem %s11, 16
    %v4201 = vld [vmem:[%s4200] sm:$0xf]
    %v4202 = vld [vmem:[%s4200 + $0x4] sm:$0xf]
    %v4203 = vld [vmem:[%s4200 + $0x8] sm:$0xf]
    %v4204 = vld [vmem:[%s4200 + $0xc] sm:$0xf]
    %s4205 = scalar_lea.vmem %s12, 1
    %v4206 = vld [vmem:[%s4205] sm:$0x1]
    %v4208 = vlaneseq
    %v4209 = vshrl.u32 %v4208, 7
    %v4210 = vsub.s32 0, %v4209
    %v4211 = vrot.slane %v4206, %v4210
    %v4217 = vunpack.c.l.b16 %v4201
    %v4218 = vunpack.c.l.b16 %v4202
    %v4219 = vunpack.c.l.b16 %v4203
    %v4220 = vunpack.c.l.b16 %v4204
    %v4221 = vpack.c.b16 %v4218, %v4217
    %v4222 = vpack.c.b16 %v4220, %v4219
    %v4226 = vsel %vm105, %v4199, 0
    %4228 = vmatprep.subr.bf16.mxu0 0
    %4229 = vmatpush1.bf16.msra.mxu0 %v4221
    %4230 = vmatprep.subr.bf16.mxu0 0
    %4231 = vmatpush1.bf16.msra.mxu0 %v4222
    %4232 = vmatprep.subr.bf16.mxu0 0
    %4233 = vmatpush1.bf16.msra.mxu0 0
    %4234 = vmatprep.subr.bf16.mxu0 0
    %4235 = vmatpush1.bf16.msra.mxu0 0
    %4236 = vmatprep.subr.bf16.mxu0 0
    %4237 = vmatpush1.bf16.msra.mxu0 0
    %4238 = vmatprep.subr.bf16.mxu0 0
    %4239 = vmatpush1.bf16.msra.mxu0 0
    %4240 = vmatprep.subr.bf16.mxu0 0
    %4241 = vmatpush1.bf16.msra.mxu0 0
    %4242 = vmatprep.subr.bf16.mxu0 0
    %4243 = vmatpush1.bf16.msra.mxu0 0
    %4244 = vmatprep.subr.bf16.mxu0 0
    %4245 = vmatpush1.bf16.msra.mxu0 0
    %4246 = vmatprep.subr.bf16.mxu0 0
    %4247 = vmatpush1.bf16.msra.mxu0 0
    %4248 = vmatprep.subr.bf16.mxu0 0
    %4249 = vmatpush1.bf16.msra.mxu0 0
    %4250 = vmatprep.subr.bf16.mxu0 0
    %4251 = vmatpush1.bf16.msra.mxu0 0
    %4252 = vmatprep.subr.bf16.mxu0 0
    %4253 = vmatpush1.bf16.msra.mxu0 0
    %4254 = vmatprep.subr.bf16.mxu0 0
    %4255 = vmatpush1.bf16.msra.mxu0 0
    %4256 = vmatprep.subr.bf16.mxu0 0
    %4257 = vmatpush1.bf16.msra.mxu0 0
    %4258 = vmatprep.subr.bf16.mxu0 0
    %4259 = vmatpush1.bf16.msra.mxu0 0
    %4260 = vmatprep.mubr.bf16.mxu0 0
    %4261 = vmatmul.mubr.bf16.gmra.mrb[0].mxu0 %v4226
    %v4262 = vpop.f32.mrb[0].mxu0
    %v4263 = vadd.f32 %v4211, %v4262
    %v4264 = vpop.f32.mrb[0].mxu0
    %v4265 = vpop.f32.mrb[0].mxu0
    %v4266 = vadd.f32 %v4211, %v4265
    %v4267 = vpop.f32.mrb[0].mxu0
    %4268 = vdwg.mxu0
    %v4269 = vmul.f32 %v4263, %v4263
    %v4270 = vmul.f32 %v4266, %v4266
    %v4271 = vmul.f32 %v4263, %v4269
    %v4272 = vmul.f32 %v4266, %v4270
    %v4273 = vmul.f32 %v4271, 0.044715
    %v4274 = vmul.f32 %v4272, 0.044715
    %v4275 = vadd.f32 %v4263, %v4273
    %v4276 = vadd.f32 %v4266, %v4274
    %v4277 = vmul.f32 %v4275, 0.7978846
    %v4278 = vmul.f32 %v4276, 0.7978846
    %v4279 = vtanh.pop %v4277
    %v4280 = vtanh.pop %v4278
    %v4281 = vadd.f32 %v4279, 1.0
    %v4282 = vadd.f32 %v4280, 1.0
    %v4283 = vmul.f32 %v4281, 0.5
    %v4284 = vmul.f32 %v4282, 0.5
    %v4285 = vmul.f32 %v4263, %v4283
    %v4286 = vmul.f32 %v4266, %v4284
    %v4287 = vpack.c.bf16 %v4286, %v4285
    %s4288 = scalar_lea.vmem %s13, 64
    %v4289 = vld [vmem:[%s4288] sm:$0xf]
    %v4290 = vld [vmem:[%s4288 + $0x4] sm:$0xf]
    %v4291 = vld [vmem:[%s4288 + $0x8] sm:$0xf]
    %v4292 = vld [vmem:[%s4288 + $0xc] sm:$0xf]
    %v4293 = vld [vmem:[%s4288 + $0x10] sm:$0xf]
    %v4294 = vld [vmem:[%s4288 + $0x14] sm:$0xf]
    %v4295 = vld [vmem:[%s4288 + $0x18] sm:$0xf]
    %v4296 = vld [vmem:[%s4288 + $0x1c] sm:$0xf]
    %v4297 = vld [vmem:[%s4288 + $0x20] sm:$0xf]
    %v4298 = vld [vmem:[%s4288 + $0x24] sm:$0xf]
    %v4299 = vld [vmem:[%s4288 + $0x28] sm:$0xf]
    %v4300 = vld [vmem:[%s4288 + $0x2c] sm:$0xf]
    %v4301 = vld [vmem:[%s4288 + $0x30] sm:$0xf]
    %v4302 = vld [vmem:[%s4288 + $0x34] sm:$0xf]
    %v4303 = vld [vmem:[%s4288 + $0x38] sm:$0xf]
    %v4304 = vld [vmem:[%s4288 + $0x3c] sm:$0xf]
    %s4305 = scalar_lea.vmem %s14, 1
    %v4306 = vld [vmem:[%s4305] sm:$0x1]
    %v4308 = vlaneseq
    %v4309 = vshrl.u32 %v4308, 7
    %v4310 = vsub.s32 0, %v4309
    %v4311 = vrot.slane %v4306, %v4310
    %v4329 = vunpack.c.l.b16 %v4289
    %v4330 = vunpack.c.l.b16 %v4290
    %v4331 = vunpack.c.l.b16 %v4291
    %v4332 = vunpack.c.l.b16 %v4292
    %v4333 = vunpack.c.l.b16 %v4293
    %v4334 = vunpack.c.l.b16 %v4294
    %v4335 = vunpack.c.l.b16 %v4295
    %v4336 = vunpack.c.l.b16 %v4296
    %v4337 = vunpack.c.l.b16 %v4297
    %v4338 = vunpack.c.l.b16 %v4298
    %v4339 = vunpack.c.l.b16 %v4299
    %v4340 = vunpack.c.l.b16 %v4300
    %v4341 = vunpack.c.l.b16 %v4301
    %v4342 = vunpack.c.l.b16 %v4302
    %v4343 = vunpack.c.l.b16 %v4303
    %v4344 = vunpack.c.l.b16 %v4304
    %v4345 = vpack.c.b16 %v4330, %v4329
    %v4346 = vpack.c.b16 %v4332, %v4331
    %v4347 = vpack.c.b16 %v4334, %v4333
    %v4348 = vpack.c.b16 %v4336, %v4335
    %v4349 = vpack.c.b16 %v4338, %v4337
    %v4350 = vpack.c.b16 %v4340, %v4339
    %v4351 = vpack.c.b16 %v4342, %v4341
    %v4352 = vpack.c.b16 %v4344, %v4343
    %4361 = vmatprep.subr.bf16.mxu0 0
    %4362 = vmatpush1.bf16.msra.mxu0 %v4345
    %4363 = vmatprep.subr.bf16.mxu0 0
    %4364 = vmatpush1.bf16.msra.mxu0 %v4346
    %4365 = vmatprep.subr.bf16.mxu0 0
    %4366 = vmatpush1.bf16.msra.mxu0 %v4347
    %4367 = vmatprep.subr.bf16.mxu0 0
    %4368 = vmatpush1.bf16.msra.mxu0 %v4348
    %4369 = vmatprep.subr.bf16.mxu0 0
    %4370 = vmatpush1.bf16.msra.mxu0 %v4349
    %4371 = vmatprep.subr.bf16.mxu0 0
    %4372 = vmatpush1.bf16.msra.mxu0 %v4350
    %4373 = vmatprep.subr.bf16.mxu0 0
    %4374 = vmatpush1.bf16.msra.mxu0 %v4351
    %4375 = vmatprep.subr.bf16.mxu0 0
    %4376 = vmatpush1.bf16.msra.mxu0 %v4352
    %4377 = vmatprep.subr.bf16.mxu0 0
    %4378 = vmatpush1.bf16.msra.mxu0 0
    %4379 = vmatprep.subr.bf16.mxu0 0
    %4380 = vmatpush1.bf16.msra.mxu0 0
    %4381 = vmatprep.subr.bf16.mxu0 0
    %4382 = vmatpush1.bf16.msra.mxu0 0
    %4383 = vmatprep.subr.bf16.mxu0 0
    %4384 = vmatpush1.bf16.msra.mxu0 0
    %4385 = vmatprep.subr.bf16.mxu0 0
    %4386 = vmatpush1.bf16.msra.mxu0 0
    %4387 = vmatprep.subr.bf16.mxu0 0
    %4388 = vmatpush1.bf16.msra.mxu0 0
    %4389 = vmatprep.subr.bf16.mxu0 0
    %4390 = vmatpush1.bf16.msra.mxu0 0
    %4391 = vmatprep.subr.bf16.mxu0 0
    %4392 = vmatpush1.bf16.msra.mxu0 0
    %4393 = vmatprep.mubr.bf16.mxu0 0
    %4394 = vmatmul.mubr.bf16.gmra.mrb[0].mxu0 %v4287
    %v4395 = vpop.f32.mrb[0].mxu0
    %v4396 = vadd.f32 %v4311, %v4395
    %v4397 = vpop.f32.mrb[0].mxu0
    %v4398 = vpop.f32.mrb[0].mxu0
    %v4399 = vadd.f32 %v4311, %v4398
    %v4400 = vpop.f32.mrb[0].mxu0
    %4401 = vdwg.mxu0
    %s4402 = sld [smem:[#allocation2 + $0x6]]
    %s4403 = sld [smem:[#allocation2 + $0x7]]
    %v4404 = vstv %s4402
    %v4405 = vmul.f32 %v4404, %v4197
    %v4406 = vmul.f32 %v4404, %v4198
    %v4407 = vstv %s4403
    %v4408 = vmul.f32 %v4407, %v4396
    %v4409 = vmul.f32 %v4407, %v4399
    %v4410 = vadd.f32 %v4405, %v4408
    %v4411 = vadd.f32 %v4406, %v4409
    %v4412 = vsel %vm105, %v4410, 0.0
    %4413 = vadd.xlane.f32.xlu0 %v4412
    %v4414 = vpop.xlane.xlu0 %4413
    %v4415 = vsel %vm105, %v4411, 0.0
    %4416 = vadd.xlane.f32.xlu0 %v4415
    %v4417 = vpop.xlane.xlu0 %4416
    %v4418 = vmul.f32 %v4414, %v2005
    %v4419 = vmul.f32 %v4417, %v2005
    %v4420 = vmul.f32 %v4410, %v4410
    %v4421 = vmul.f32 %v4411, %v4411
    %v4422 = vsel %vm105, %v4420, 0.0
    %4423 = vadd.xlane.f32.xlu0 %v4422
    %v4424 = vpop.xlane.xlu0 %4423
    %v4425 = vsel %vm105, %v4421, 0.0
    %4426 = vadd.xlane.f32.xlu0 %v4425
    %v4427 = vpop.xlane.xlu0 %4426
    %v4428 = vmul.f32 %v4424, %v2005
    %v4429 = vmul.f32 %v4427, %v2005
    %v4430 = vmul.f32 %v4418, %v4418
    %v4431 = vmul.f32 %v4419, %v4419
    %v4432 = vsub.f32 %v4428, %v4430
    %v4433 = vsub.f32 %v4429, %v4431
    %v4434 = vsub.f32 %v4410, %v4418
    %v4435 = vsub.f32 %v4411, %v4419
    %v4436 = vadd.f32 %v4432, 1e-12
    %v4437 = vadd.f32 %v4433, 1e-12
    %v4438 = vrsqrt.pop %v4436
    %v4439 = vrsqrt.pop %v4437
    %v4440 = vmul.f32 %v4434, %v4438
    %v4441 = vmul.f32 %v4435, %v4439
    %v4442 = vmul.f32 %v4440, %v2034
    %v4443 = vmul.f32 %v4441, %v2034
    %v4444 = vadd.f32 %v4442, %v2042
    %v4445 = vadd.f32 %v4443, %v2042
    %s4446 = scalar_lea.vmem %s15, 1
    %v4447 = vld [vmem:[%s4446] sm:$0x1]
    %s4448 = scalar_lea.vmem %s16, 1
    %v4449 = vld [vmem:[%s4448] sm:$0x1]
    %v4450 = vpack.c.bf16 %v4445, %v4444
    %s4451 = scalar_lea.vmem %s3, 128
    %v4452 = vld [vmem:[%s4451] sm:$0xf]
    %v4453 = vld [vmem:[%s4451 + $0x4] sm:$0xf]
    %v4454 = vld [vmem:[%s4451 + $0x8] sm:$0xf]
    %v4455 = vld [vmem:[%s4451 + $0xc] sm:$0xf]
    %s4456 = scalar_lea.vmem %s4, 8
    %v4457 = vld [vmem:[%s4456] sm:$0x1]
    %v4459 = vlaneseq
    %v4460 = vshrl.u32 %v4459, 7
    %v4461 = vsub.s32 0, %v4460
    %v4462 = vrot.slane %v4457, %v4461
    %v4468 = vunpack.c.l.b16 %v4452
    %v4469 = vunpack.c.l.b16 %v4453
    %v4470 = vunpack.c.l.b16 %v4454
    %v4471 = vunpack.c.l.b16 %v4455
    %v4472 = vpack.c.b16 %v4469, %v4468
    %v4473 = vpack.c.b16 %v4471, %v4470
    %v4477 = vsel %vm105, %v4450, 0
    %4479 = vmatprep.subr.bf16.mxu0 0
    %4480 = vmatpush1.bf16.msra.mxu0 %v4472
    %4481 = vmatprep.subr.bf16.mxu0 0
    %4482 = vmatpush1.bf16.msra.mxu0 %v4473
    %4483 = vmatprep.subr.bf16.mxu0 0
    %4484 = vmatpush1.bf16.msra.mxu0 0
    %4485 = vmatprep.subr.bf16.mxu0 0
    %4486 = vmatpush1.bf16.msra.mxu0 0
    %4487 = vmatprep.subr.bf16.mxu0 0
    %4488 = vmatpush1.bf16.msra.mxu0 0
    %4489 = vmatprep.subr.bf16.mxu0 0
    %4490 = vmatpush1.bf16.msra.mxu0 0
    %4491 = vmatprep.subr.bf16.mxu0 0
    %4492 = vmatpush1.bf16.msra.mxu0 0
    %4493 = vmatprep.subr.bf16.mxu0 0
    %4494 = vmatpush1.bf16.msra.mxu0 0
    %4495 = vmatprep.subr.bf16.mxu0 0
    %4496 = vmatpush1.bf16.msra.mxu0 0
    %4497 = vmatprep.subr.bf16.mxu0 0
    %4498 = vmatpush1.bf16.msra.mxu0 0
    %4499 = vmatprep.subr.bf16.mxu0 0
    %4500 = vmatpush1.bf16.msra.mxu0 0
    %4501 = vmatprep.subr.bf16.mxu0 0
    %4502 = vmatpush1.bf16.msra.mxu0 0
    %4503 = vmatprep.subr.bf16.mxu0 0
    %4504 = vmatpush1.bf16.msra.mxu0 0
    %4505 = vmatprep.subr.bf16.mxu0 0
    %4506 = vmatpush1.bf16.msra.mxu0 0
    %4507 = vmatprep.subr.bf16.mxu0 0
    %4508 = vmatpush1.bf16.msra.mxu0 0
    %4509 = vmatprep.subr.bf16.mxu0 0
    %4510 = vmatpush1.bf16.msra.mxu0 0
    %4511 = vmatprep.mubr.bf16.mxu0 0
    %4512 = vmatmul.mubr.bf16.gmra.mrb[0].mxu0 %v4477
    %v4513 = vpop.f32.mrb[0].mxu0
    %v4514 = vadd.f32 %v4462, %v4513
    %v4515 = vpop.f32.mrb[0].mxu0
    %v4516 = vpop.f32.mrb[0].mxu0
    %v4517 = vadd.f32 %v4462, %v4516
    %v4518 = vpop.f32.mrb[0].mxu0
    %4519 = vdwg.mxu0
    %s4520 = scalar_lea.vmem %s5, 128
    %v4521 = vld [vmem:[%s4520] sm:$0xf]
    %v4522 = vld [vmem:[%s4520 + $0x4] sm:$0xf]
    %v4523 = vld [vmem:[%s4520 + $0x8] sm:$0xf]
    %v4524 = vld [vmem:[%s4520 + $0xc] sm:$0xf]
    %s4525 = scalar_lea.vmem %s6, 8
    %v4526 = vld [vmem:[%s4525] sm:$0x1]
    %v4528 = vlaneseq
    %v4529 = vshrl.u32 %v4528, 7
    %v4530 = vsub.s32 0, %v4529
    %v4531 = vrot.slane %v4526, %v4530
    %v4537 = vunpack.c.l.b16 %v4521
    %v4538 = vunpack.c.l.b16 %v4522
    %v4539 = vunpack.c.l.b16 %v4523
    %v4540 = vunpack.c.l.b16 %v4524
    %v4541 = vpack.c.b16 %v4538, %v4537
    %v4542 = vpack.c.b16 %v4540, %v4539
    %4545 = vmatprep.subr.bf16.mxu0 0
    %4546 = vmatpush1.bf16.msra.mxu0 %v4541
    %4547 = vmatprep.subr.bf16.mxu0 0
    %4548 = vmatpush1.bf16.msra.mxu0 %v4542
    %4549 = vmatprep.subr.bf16.mxu0 0
    %4550 = vmatpush1.bf16.msra.mxu0 0
    %4551 = vmatprep.subr.bf16.mxu0 0
    %4552 = vmatpush1.bf16.msra.mxu0 0
    %4553 = vmatprep.subr.bf16.mxu0 0
    %4554 = vmatpush1.bf16.msra.mxu0 0
    %4555 = vmatprep.subr.bf16.mxu0 0
    %4556 = vmatpush1.bf16.msra.mxu0 0
    %4557 = vmatprep.subr.bf16.mxu0 0
    %4558 = vmatpush1.bf16.msra.mxu0 0
    %4559 = vmatprep.subr.bf16.mxu0 0
    %4560 = vmatpush1.bf16.msra.mxu0 0
    %4561 = vmatprep.subr.bf16.mxu0 0
    %4562 = vmatpush1.bf16.msra.mxu0 0
    %4563 = vmatprep.subr.bf16.mxu0 0
    %4564 = vmatpush1.bf16.msra.mxu0 0
    %4565 = vmatprep.subr.bf16.mxu0 0
    %4566 = vmatpush1.bf16.msra.mxu0 0
    %4567 = vmatprep.subr.bf16.mxu0 0
    %4568 = vmatpush1.bf16.msra.mxu0 0
    %4569 = vmatprep.subr.bf16.mxu0 0
    %4570 = vmatpush1.bf16.msra.mxu0 0
    %4571 = vmatprep.subr.bf16.mxu0 0
    %4572 = vmatpush1.bf16.msra.mxu0 0
    %4573 = vmatprep.subr.bf16.mxu0 0
    %4574 = vmatpush1.bf16.msra.mxu0 0
    %4575 = vmatprep.subr.bf16.mxu0 0
    %4576 = vmatpush1.bf16.msra.mxu0 0
    %4577 = vmatprep.mubr.bf16.mxu0 0
    %4578 = vmatmul.mubr.bf16.gmra.mrb[0].mxu0 %v174
    %v4579 = vpop.f32.mrb[0].mxu0
    %v4580 = vadd.f32 %v4531, %v4579
    %v4581 = vpop.f32.mrb[0].mxu0
    %v4582 = vpop.f32.mrb[0].mxu0
    %v4583 = vadd.f32 %v4531, %v4582
    %v4584 = vpop.f32.mrb[0].mxu0
    %4585 = vmatprep.mubr.bf16.mxu0 0
    %4586 = vmatmul.mubr.bf16.gmra.mrb[0].mxu0 %v177
    %v4587 = vpop.f32.mrb[0].mxu0
    %v4588 = vadd.f32 %v4531, %v4587
    %v4589 = vpop.f32.mrb[0].mxu0
    %v4590 = vpop.f32.mrb[0].mxu0
    %v4591 = vadd.f32 %v4531, %v4590
    %v4592 = vpop.f32.mrb[0].mxu0
    %4593 = vdwg.mxu0
    %s4594 = scalar_lea.vmem %s7, 128
    %v4595 = vld [vmem:[%s4594] sm:$0xf]
    %v4596 = vld [vmem:[%s4594 + $0x4] sm:$0xf]
    %v4597 = vld [vmem:[%s4594 + $0x8] sm:$0xf]
    %v4598 = vld [vmem:[%s4594 + $0xc] sm:$0xf]
    %s4599 = scalar_lea.vmem %s8, 8
    %v4600 = vld [vmem:[%s4599] sm:$0x1]
    %v4602 = vlaneseq
    %v4603 = vshrl.u32 %v4602, 7
    %v4604 = vsub.s32 0, %v4603
    %v4605 = vrot.slane %v4600, %v4604
    %v4611 = vunpack.c.l.b16 %v4595
    %v4612 = vunpack.c.l.b16 %v4596
    %v4613 = vunpack.c.l.b16 %v4597
    %v4614 = vunpack.c.l.b16 %v4598
    %v4615 = vpack.c.b16 %v4612, %v4611
    %v4616 = vpack.c.b16 %v4614, %v4613
    %4619 = vmatprep.subr.bf16.mxu0 0
    %4620 = vmatpush1.bf16.msra.mxu0 %v4615
    %4621 = vmatprep.subr.bf16.mxu0 0
    %4622 = vmatpush1.bf16.msra.mxu0 %v4616
    %4623 = vmatprep.subr.bf16.mxu0 0
    %4624 = vmatpush1.bf16.msra.mxu0 0
    %4625 = vmatprep.subr.bf16.mxu0 0
    %4626 = vmatpush1.bf16.msra.mxu0 0
    %4627 = vmatprep.subr.bf16.mxu0 0
    %4628 = vmatpush1.bf16.msra.mxu0 0
    %4629 = vmatprep.subr.bf16.mxu0 0
    %4630 = vmatpush1.bf16.msra.mxu0 0
    %4631 = vmatprep.subr.bf16.mxu0 0
    %4632 = vmatpush1.bf16.msra.mxu0 0
    %4633 = vmatprep.subr.bf16.mxu0 0
    %4634 = vmatpush1.bf16.msra.mxu0 0
    %4635 = vmatprep.subr.bf16.mxu0 0
    %4636 = vmatpush1.bf16.msra.mxu0 0
    %4637 = vmatprep.subr.bf16.mxu0 0
    %4638 = vmatpush1.bf16.msra.mxu0 0
    %4639 = vmatprep.subr.bf16.mxu0 0
    %4640 = vmatpush1.bf16.msra.mxu0 0
    %4641 = vmatprep.subr.bf16.mxu0 0
    %4642 = vmatpush1.bf16.msra.mxu0 0
    %4643 = vmatprep.subr.bf16.mxu0 0
    %4644 = vmatpush1.bf16.msra.mxu0 0
    %4645 = vmatprep.subr.bf16.mxu0 0
    %4646 = vmatpush1.bf16.msra.mxu0 0
    %4647 = vmatprep.subr.bf16.mxu0 0
    %4648 = vmatpush1.bf16.msra.mxu0 0
    %4649 = vmatprep.subr.bf16.mxu0 0
    %4650 = vmatpush1.bf16.msra.mxu0 0
    %4651 = vmatprep.mubr.bf16.mxu0 0
    %4652 = vmatmul.mubr.bf16.gmra.mrb[0].mxu0 %v174
    %v4653 = vpop.f32.mrb[0].mxu0
    %v4654 = vadd.f32 %v4605, %v4653
    %v4655 = vpop.f32.mrb[0].mxu0
    %v4656 = vpop.f32.mrb[0].mxu0
    %v4657 = vadd.f32 %v4605, %v4656
    %v4658 = vpop.f32.mrb[0].mxu0
    %4659 = vmatprep.mubr.bf16.mxu0 0
    %4660 = vmatmul.mubr.bf16.gmra.mrb[0].mxu0 %v177
    %v4661 = vpop.f32.mrb[0].mxu0
    %v4662 = vadd.f32 %v4605, %v4661
    %v4663 = vpop.f32.mrb[0].mxu0
    %v4664 = vpop.f32.mrb[0].mxu0
    %v4665 = vadd.f32 %v4605, %v4664
    %v4666 = vpop.f32.mrb[0].mxu0
    %4667 = vdwg.mxu0
    %v4668 = vpack.c.bf16 %v4514, %v4514
    %v4669 = vpack.c.bf16 %v4517, %v4517
    %v4670 = vpack.c.bf16 %v4583, %v4580
    %v4671 = vpack.c.bf16 %v4591, %v4588
    %v4673 = vsel %vm304, %v4668, 0
    %v4676 = vsel %vm304, %v4670, 0
    %4678 = vmatprep.subr.bf16.mxu0 0
    %4679 = vmatpush1.bf16.xpose.msra.mxu0 %v4676
    %4680 = vmatprep.subr.bf16.mxu0 0
    %4681 = vmatpush1.bf16.xpose.msra.mxu0 0
    %4682 = vmatprep.subr.bf16.mxu0 0
    %4683 = vmatpush1.bf16.xpose.msra.mxu0 0
    %4684 = vmatprep.subr.bf16.mxu0 0
    %4685 = vmatpush1.bf16.xpose.msra.mxu0 0
    %4686 = vmatprep.subr.bf16.mxu0 0
    %4687 = vmatpush1.bf16.xpose.msra.mxu0 0
    %4688 = vmatprep.subr.bf16.mxu0 0
    %4689 = vmatpush1.bf16.xpose.msra.mxu0 0
    %4690 = vmatprep.subr.bf16.mxu0 0
    %4691 = vmatpush1.bf16.xpose.msra.mxu0 0
    %4692 = vmatprep.subr.bf16.mxu0 0
    %4693 = vmatpush1.bf16.xpose.msra.mxu0 0
    %4694 = vmatprep.subr.bf16.mxu0 0
    %4695 = vmatpush1.bf16.xpose.msra.mxu0 0
    %4696 = vmatprep.subr.bf16.mxu0 0
    %4697 = vmatpush1.bf16.xpose.msra.mxu0 0
    %4698 = vmatprep.subr.bf16.mxu0 0
    %4699 = vmatpush1.bf16.xpose.msra.mxu0 0
    %4700 = vmatprep.subr.bf16.mxu0 0
    %4701 = vmatpush1.bf16.xpose.msra.mxu0 0
    %4702 = vmatprep.subr.bf16.mxu0 0
    %4703 = vmatpush1.bf16.xpose.msra.mxu0 0
    %4704 = vmatprep.subr.bf16.mxu0 0
    %4705 = vmatpush1.bf16.xpose.msra.mxu0 0
    %4706 = vmatprep.subr.bf16.mxu0 0
    %4707 = vmatpush1.bf16.xpose.msra.mxu0 0
    %4708 = vmatprep.subr.bf16.mxu0 0
    %4709 = vmatpush1.bf16.xpose.msra.mxu0 0
    %4710 = vmatprep.mubr.bf16.mxu0 0
    %4711 = vmatmul.mubr.bf16.gmra.mrb[0].mxu0 %v4673
    %v4712 = vpop.f32.mrb[0].mxu0
    %v4713 = vadd.f32 0.0, %v4712
    %v4714 = vpop.f32.mrb[0].mxu0
    %v4715 = vpop.f32.mrb[0].mxu0
    %v4716 = vpop.f32.mrb[0].mxu0
    %4717 = vdwg.mxu0
    %v4719 = vsel %vm304, %v4669, 0
    %v4722 = vsel %vm304, %v4671, 0
    %4724 = vmatprep.subr.bf16.mxu0 0
    %4725 = vmatpush1.bf16.xpose.msra.mxu0 %v4722
    %4726 = vmatprep.subr.bf16.mxu0 0
    %4727 = vmatpush1.bf16.xpose.msra.mxu0 0
    %4728 = vmatprep.subr.bf16.mxu0 0
    %4729 = vmatpush1.bf16.xpose.msra.mxu0 0
    %4730 = vmatprep.subr.bf16.mxu0 0
    %4731 = vmatpush1.bf16.xpose.msra.mxu0 0
    %4732 = vmatprep.subr.bf16.mxu0 0
    %4733 = vmatpush1.bf16.xpose.msra.mxu0 0
    %4734 = vmatprep.subr.bf16.mxu0 0
    %4735 = vmatpush1.bf16.xpose.msra.mxu0 0
    %4736 = vmatprep.subr.bf16.mxu0 0
    %4737 = vmatpush1.bf16.xpose.msra.mxu0 0
    %4738 = vmatprep.subr.bf16.mxu0 0
    %4739 = vmatpush1.bf16.xpose.msra.mxu0 0
    %4740 = vmatprep.subr.bf16.mxu0 0
    %4741 = vmatpush1.bf16.xpose.msra.mxu0 0
    %4742 = vmatprep.subr.bf16.mxu0 0
    %4743 = vmatpush1.bf16.xpose.msra.mxu0 0
    %4744 = vmatprep.subr.bf16.mxu0 0
    %4745 = vmatpush1.bf16.xpose.msra.mxu0 0
    %4746 = vmatprep.subr.bf16.mxu0 0
    %4747 = vmatpush1.bf16.xpose.msra.mxu0 0
    %4748 = vmatprep.subr.bf16.mxu0 0
    %4749 = vmatpush1.bf16.xpose.msra.mxu0 0
    %4750 = vmatprep.subr.bf16.mxu0 0
    %4751 = vmatpush1.bf16.xpose.msra.mxu0 0
    %4752 = vmatprep.subr.bf16.mxu0 0
    %4753 = vmatpush1.bf16.xpose.msra.mxu0 0
    %4754 = vmatprep.subr.bf16.mxu0 0
    %4755 = vmatpush1.bf16.xpose.msra.mxu0 0
    %4756 = vmatprep.mubr.bf16.mxu0 0
    %4757 = vmatmul.mubr.bf16.gmra.mrb[0].mxu0 %v4719
    %v4758 = vpop.f32.mrb[0].mxu0
    %v4759 = vadd.f32 0.0, %v4758
    %v4760 = vpop.f32.mrb[0].mxu0
    %v4761 = vpop.f32.mrb[0].mxu0
    %v4762 = vpop.f32.mrb[0].mxu0
    %4763 = vdwg.mxu0
    %v4764 = vsel %vm397, %v4713, -inf
    %4765 = vmax.xlane.f32.xlu0 %v4764
    %v4766 = vpop.xlane.xlu0 %4765
    %v4767 = vsel %vm397, %v4759, -inf
    %4768 = vmax.xlane.f32.xlu0 %v4767
    %v4769 = vpop.xlane.xlu0 %4768
    %v4770 = vsub.f32 %v4713, %v4766
    %v4771 = vsub.f32 %v4759, %v4769
    %v4772 = vmul.f32 %v4770, 1.442695
    %v4773 = vpow.pop %v4772
    %v4774 = vmul.f32 %v4771, 1.442695
    %v4775 = vpow.pop %v4774
    %v4776 = vsel %vm397, %v4773, 0.0
    %4777 = vadd.xlane.f32.xlu0 %v4776
    %v4778 = vpop.xlane.xlu0 %4777
    %v4779 = vsel %vm397, %v4775, 0.0
    %4780 = vadd.xlane.f32.xlu0 %v4779
    %v4781 = vpop.xlane.xlu0 %4780
    %v4782 = vpack.c.bf16 %v4773, %v4773
    %v4783 = vpack.c.bf16 %v4775, %v4775
    %v4784 = vpack.c.bf16 %v4657, %v4654
    %v4785 = vpack.c.bf16 %v4665, %v4662
    %v4787 = vsel %vm397, %v4782, 0
    %4789 = vmatprep.subr.bf16.mxu0 0
    %4790 = vmatpush1.bf16.msra.mxu0 %v4784
    %4791 = vmatprep.subr.bf16.mxu0 0
    %4792 = vmatpush1.bf16.msra.mxu0 0
    %4793 = vmatprep.subr.bf16.mxu0 0
    %4794 = vmatpush1.bf16.msra.mxu0 0
    %4795 = vmatprep.subr.bf16.mxu0 0
    %4796 = vmatpush1.bf16.msra.mxu0 0
    %4797 = vmatprep.subr.bf16.mxu0 0
    %4798 = vmatpush1.bf16.msra.mxu0 0
    %4799 = vmatprep.subr.bf16.mxu0 0
    %4800 = vmatpush1.bf16.msra.mxu0 0
    %4801 = vmatprep.subr.bf16.mxu0 0
    %4802 = vmatpush1.bf16.msra.mxu0 0
    %4803 = vmatprep.subr.bf16.mxu0 0
    %4804 = vmatpush1.bf16.msra.mxu0 0
    %4805 = vmatprep.subr.bf16.mxu0 0
    %4806 = vmatpush1.bf16.msra.mxu0 0
    %4807 = vmatprep.subr.bf16.mxu0 0
    %4808 = vmatpush1.bf16.msra.mxu0 0
    %4809 = vmatprep.subr.bf16.mxu0 0
    %4810 = vmatpush1.bf16.msra.mxu0 0
    %4811 = vmatprep.subr.bf16.mxu0 0
    %4812 = vmatpush1.bf16.msra.mxu0 0
    %4813 = vmatprep.subr.bf16.mxu0 0
    %4814 = vmatpush1.bf16.msra.mxu0 0
    %4815 = vmatprep.subr.bf16.mxu0 0
    %4816 = vmatpush1.bf16.msra.mxu0 0
    %4817 = vmatprep.subr.bf16.mxu0 0
    %4818 = vmatpush1.bf16.msra.mxu0 0
    %4819 = vmatprep.subr.bf16.mxu0 0
    %4820 = vmatpush1.bf16.msra.mxu0 0
    %4821 = vmatprep.mubr.bf16.mxu0 0
    %4822 = vmatmul.mubr.bf16.gmra.mrb[0].mxu0 %v4787
    %v4823 = vpop.f32.mrb[0].mxu0
    %v4824 = vadd.f32 0.0, %v4823
    %v4825 = vpop.f32.mrb[0].mxu0
    %v4826 = vpop.f32.mrb[0].mxu0
    %v4827 = vpop.f32.mrb[0].mxu0
    %4828 = vdwg.mxu0
    %v4830 = vsel %vm397, %v4783, 0
    %4832 = vmatprep.subr.bf16.mxu0 0
    %4833 = vmatpush1.bf16.msra.mxu0 %v4785
    %4834 = vmatprep.subr.bf16.mxu0 0
    %4835 = vmatpush1.bf16.msra.mxu0 0
    %4836 = vmatprep.subr.bf16.mxu0 0
    %4837 = vmatpush1.bf16.msra.mxu0 0
    %4838 = vmatprep.subr.bf16.mxu0 0
    %4839 = vmatpush1.bf16.msra.mxu0 0
    %4840 = vmatprep.subr.bf16.mxu0 0
    %4841 = vmatpush1.bf16.msra.mxu0 0
    %4842 = vmatprep.subr.bf16.mxu0 0
    %4843 = vmatpush1.bf16.msra.mxu0 0
    %4844 = vmatprep.subr.bf16.mxu0 0
    %4845 = vmatpush1.bf16.msra.mxu0 0
    %4846 = vmatprep.subr.bf16.mxu0 0
    %4847 = vmatpush1.bf16.msra.mxu0 0
    %4848 = vmatprep.subr.bf16.mxu0 0
    %4849 = vmatpush1.bf16.msra.mxu0 0
    %4850 = vmatprep.subr.bf16.mxu0 0
    %4851 = vmatpush1.bf16.msra.mxu0 0
    %4852 = vmatprep.subr.bf16.mxu0 0
    %4853 = vmatpush1.bf16.msra.mxu0 0
    %4854 = vmatprep.subr.bf16.mxu0 0
    %4855 = vmatpush1.bf16.msra.mxu0 0
    %4856 = vmatprep.subr.bf16.mxu0 0
    %4857 = vmatpush1.bf16.msra.mxu0 0
    %4858 = vmatprep.subr.bf16.mxu0 0
    %4859 = vmatpush1.bf16.msra.mxu0 0
    %4860 = vmatprep.subr.bf16.mxu0 0
    %4861 = vmatpush1.bf16.msra.mxu0 0
    %4862 = vmatprep.subr.bf16.mxu0 0
    %4863 = vmatpush1.bf16.msra.mxu0 0
    %4864 = vmatprep.mubr.bf16.mxu0 0
    %4865 = vmatmul.mubr.bf16.gmra.mrb[0].mxu0 %v4830
    %v4866 = vpop.f32.mrb[0].mxu0
    %v4867 = vadd.f32 0.0, %v4866
    %v4868 = vpop.f32.mrb[0].mxu0
    %v4869 = vpop.f32.mrb[0].mxu0
    %v4870 = vpop.f32.mrb[0].mxu0
    %4871 = vdwg.mxu0
    %v4872 = vrcp.pop %v4778
    %v4873 = vrcp.pop %v4781
    %v4874 = vmul.f32 %v4824, %v4872
    %v4875 = vmul.f32 %v4867, %v4873
    %v4876 = vpack.c.bf16 %v4875, %v4874
    %s4877 = scalar_lea.vmem %s9, 32
    %v4878 = vld [vmem:[%s4877] sm:$0xf]
    %s4879 = scalar_lea.vmem %s3, 144
    %v4880 = vld [vmem:[%s4879] sm:$0xf]
    %v4881 = vld [vmem:[%s4879 + $0x4] sm:$0xf]
    %v4882 = vld [vmem:[%s4879 + $0x8] sm:$0xf]
    %v4883 = vld [vmem:[%s4879 + $0xc] sm:$0xf]
    %s4884 = scalar_lea.vmem %s4, 9
    %v4885 = vld [vmem:[%s4884] sm:$0x1]
    %v4887 = vlaneseq
    %v4888 = vshrl.u32 %v4887, 7
    %v4889 = vsub.s32 0, %v4888
    %v4890 = vrot.slane %v4885, %v4889
    %v4896 = vunpack.c.l.b16 %v4880
    %v4897 = vunpack.c.l.b16 %v4881
    %v4898 = vunpack.c.l.b16 %v4882
    %v4899 = vunpack.c.l.b16 %v4883
    %v4900 = vpack.c.b16 %v4897, %v4896
    %v4901 = vpack.c.b16 %v4899, %v4898
    %4904 = vmatprep.subr.bf16.mxu0 0
    %4905 = vmatpush1.bf16.msra.mxu0 %v4900
    %4906 = vmatprep.subr.bf16.mxu0 0
    %4907 = vmatpush1.bf16.msra.mxu0 %v4901
    %4908 = vmatprep.subr.bf16.mxu0 0
    %4909 = vmatpush1.bf16.msra.mxu0 0
    %4910 = vmatprep.subr.bf16.mxu0 0
    %4911 = vmatpush1.bf16.msra.mxu0 0
    %4912 = vmatprep.subr.bf16.mxu0 0
    %4913 = vmatpush1.bf16.msra.mxu0 0
    %4914 = vmatprep.subr.bf16.mxu0 0
    %4915 = vmatpush1.bf16.msra.mxu0 0
    %4916 = vmatprep.subr.bf16.mxu0 0
    %4917 = vmatpush1.bf16.msra.mxu0 0
    %4918 = vmatprep.subr.bf16.mxu0 0
    %4919 = vmatpush1.bf16.msra.mxu0 0
    %4920 = vmatprep.subr.bf16.mxu0 0
    %4921 = vmatpush1.bf16.msra.mxu0 0
    %4922 = vmatprep.subr.bf16.mxu0 0
    %4923 = vmatpush1.bf16.msra.mxu0 0
    %4924 = vmatprep.subr.bf16.mxu0 0
    %4925 = vmatpush1.bf16.msra.mxu0 0
    %4926 = vmatprep.subr.bf16.mxu0 0
    %4927 = vmatpush1.bf16.msra.mxu0 0
    %4928 = vmatprep.subr.bf16.mxu0 0
    %4929 = vmatpush1.bf16.msra.mxu0 0
    %4930 = vmatprep.subr.bf16.mxu0 0
    %4931 = vmatpush1.bf16.msra.mxu0 0
    %4932 = vmatprep.subr.bf16.mxu0 0
    %4933 = vmatpush1.bf16.msra.mxu0 0
    %4934 = vmatprep.subr.bf16.mxu0 0
    %4935 = vmatpush1.bf16.msra.mxu0 0
    %4936 = vmatprep.mubr.bf16.mxu0 0
    %4937 = vmatmul.mubr.bf16.gmra.mrb[0].mxu0 %v4477
    %v4938 = vpop.f32.mrb[0].mxu0
    %v4939 = vadd.f32 %v4890, %v4938
    %v4940 = vpop.f32.mrb[0].mxu0
    %v4941 = vpop.f32.mrb[0].mxu0
    %v4942 = vadd.f32 %v4890, %v4941
    %v4943 = vpop.f32.mrb[0].mxu0
    %4944 = vdwg.mxu0
    %s4945 = scalar_lea.vmem %s5, 144
    %v4946 = vld [vmem:[%s4945] sm:$0xf]
    %v4947 = vld [vmem:[%s4945 + $0x4] sm:$0xf]
    %v4948 = vld [vmem:[%s4945 + $0x8] sm:$0xf]
    %v4949 = vld [vmem:[%s4945 + $0xc] sm:$0xf]
    %s4950 = scalar_lea.vmem %s6, 9
    %v4951 = vld [vmem:[%s4950] sm:$0x1]
    %v4953 = vlaneseq
    %v4954 = vshrl.u32 %v4953, 7
    %v4955 = vsub.s32 0, %v4954
    %v4956 = vrot.slane %v4951, %v4955
    %v4962 = vunpack.c.l.b16 %v4946
    %v4963 = vunpack.c.l.b16 %v4947
    %v4964 = vunpack.c.l.b16 %v4948
    %v4965 = vunpack.c.l.b16 %v4949
    %v4966 = vpack.c.b16 %v4963, %v4962
    %v4967 = vpack.c.b16 %v4965, %v4964
    %4970 = vmatprep.subr.bf16.mxu0 0
    %4971 = vmatpush1.bf16.msra.mxu0 %v4966
    %4972 = vmatprep.subr.bf16.mxu0 0
    %4973 = vmatpush1.bf16.msra.mxu0 %v4967
    %4974 = vmatprep.subr.bf16.mxu0 0
    %4975 = vmatpush1.bf16.msra.mxu0 0
    %4976 = vmatprep.subr.bf16.mxu0 0
    %4977 = vmatpush1.bf16.msra.mxu0 0
    %4978 = vmatprep.subr.bf16.mxu0 0
    %4979 = vmatpush1.bf16.msra.mxu0 0
    %4980 = vmatprep.subr.bf16.mxu0 0
    %4981 = vmatpush1.bf16.msra.mxu0 0
    %4982 = vmatprep.subr.bf16.mxu0 0
    %4983 = vmatpush1.bf16.msra.mxu0 0
    %4984 = vmatprep.subr.bf16.mxu0 0
    %4985 = vmatpush1.bf16.msra.mxu0 0
    %4986 = vmatprep.subr.bf16.mxu0 0
    %4987 = vmatpush1.bf16.msra.mxu0 0
    %4988 = vmatprep.subr.bf16.mxu0 0
    %4989 = vmatpush1.bf16.msra.mxu0 0
    %4990 = vmatprep.subr.bf16.mxu0 0
    %4991 = vmatpush1.bf16.msra.mxu0 0
    %4992 = vmatprep.subr.bf16.mxu0 0
    %4993 = vmatpush1.bf16.msra.mxu0 0
    %4994 = vmatprep.subr.bf16.mxu0 0
    %4995 = vmatpush1.bf16.msra.mxu0 0
    %4996 = vmatprep.subr.bf16.mxu0 0
    %4997 = vmatpush1.bf16.msra.mxu0 0
    %4998 = vmatprep.subr.bf16.mxu0 0
    %4999 = vmatpush1.bf16.msra.mxu0 0
    %5000 = vmatprep.subr.bf16.mxu0 0
    %5001 = vmatpush1.bf16.msra.mxu0 0
    %5002 = vmatprep.mubr.bf16.mxu0 0
    %5003 = vmatmul.mubr.bf16.gmra.mrb[0].mxu0 %v174
    %v5004 = vpop.f32.mrb[0].mxu0
    %v5005 = vadd.f32 %v4956, %v5004
    %v5006 = vpop.f32.mrb[0].mxu0
    %v5007 = vpop.f32.mrb[0].mxu0
    %v5008 = vadd.f32 %v4956, %v5007
    %v5009 = vpop.f32.mrb[0].mxu0
    %5010 = vmatprep.mubr.bf16.mxu0 0
    %5011 = vmatmul.mubr.bf16.gmra.mrb[0].mxu0 %v177
    %v5012 = vpop.f32.mrb[0].mxu0
    %v5013 = vadd.f32 %v4956, %v5012
    %v5014 = vpop.f32.mrb[0].mxu0
    %v5015 = vpop.f32.mrb[0].mxu0
    %v5016 = vadd.f32 %v4956, %v5015
    %v5017 = vpop.f32.mrb[0].mxu0
    %5018 = vdwg.mxu0
    %s5019 = scalar_lea.vmem %s7, 144
    %v5020 = vld [vmem:[%s5019] sm:$0xf]
    %v5021 = vld [vmem:[%s5019 + $0x4] sm:$0xf]
    %v5022 = vld [vmem:[%s5019 + $0x8] sm:$0xf]
    %v5023 = vld [vmem:[%s5019 + $0xc] sm:$0xf]
    %s5024 = scalar_lea.vmem %s8, 9
    %v5025 = vld [vmem:[%s5024] sm:$0x1]
    %v5027 = vlaneseq
    %v5028 = vshrl.u32 %v5027, 7
    %v5029 = vsub.s32 0, %v5028
    %v5030 = vrot.slane %v5025, %v5029
    %v5036 = vunpack.c.l.b16 %v5020
    %v5037 = vunpack.c.l.b16 %v5021
    %v5038 = vunpack.c.l.b16 %v5022
    %v5039 = vunpack.c.l.b16 %v5023
    %v5040 = vpack.c.b16 %v5037, %v5036
    %v5041 = vpack.c.b16 %v5039, %v5038
    %5044 = vmatprep.subr.bf16.mxu0 0
    %5045 = vmatpush1.bf16.msra.mxu0 %v5040
    %5046 = vmatprep.subr.bf16.mxu0 0
    %5047 = vmatpush1.bf16.msra.mxu0 %v5041
    %5048 = vmatprep.subr.bf16.mxu0 0
    %5049 = vmatpush1.bf16.msra.mxu0 0
    %5050 = vmatprep.subr.bf16.mxu0 0
    %5051 = vmatpush1.bf16.msra.mxu0 0
    %5052 = vmatprep.subr.bf16.mxu0 0
    %5053 = vmatpush1.bf16.msra.mxu0 0
    %5054 = vmatprep.subr.bf16.mxu0 0
    %5055 = vmatpush1.bf16.msra.mxu0 0
    %5056 = vmatprep.subr.bf16.mxu0 0
    %5057 = vmatpush1.bf16.msra.mxu0 0
    %5058 = vmatprep.subr.bf16.mxu0 0
    %5059 = vmatpush1.bf16.msra.mxu0 0
    %5060 = vmatprep.subr.bf16.mxu0 0
    %5061 = vmatpush1.bf16.msra.mxu0 0
    %5062 = vmatprep.subr.bf16.mxu0 0
    %5063 = vmatpush1.bf16.msra.mxu0 0
    %5064 = vmatprep.subr.bf16.mxu0 0
    %5065 = vmatpush1.bf16.msra.mxu0 0
    %5066 = vmatprep.subr.bf16.mxu0 0
    %5067 = vmatpush1.bf16.msra.mxu0 0
    %5068 = vmatprep.subr.bf16.mxu0 0
    %5069 = vmatpush1.bf16.msra.mxu0 0
    %5070 = vmatprep.subr.bf16.mxu0 0
    %5071 = vmatpush1.bf16.msra.mxu0 0
    %5072 = vmatprep.subr.bf16.mxu0 0
    %5073 = vmatpush1.bf16.msra.mxu0 0
    %5074 = vmatprep.subr.bf16.mxu0 0
    %5075 = vmatpush1.bf16.msra.mxu0 0
    %5076 = vmatprep.mubr.bf16.mxu0 0
    %5077 = vmatmul.mubr.bf16.gmra.mrb[0].mxu0 %v174
    %v5078 = vpop.f32.mrb[0].mxu0
    %v5079 = vadd.f32 %v5030, %v5078
    %v5080 = vpop.f32.mrb[0].mxu0
    %v5081 = vpop.f32.mrb[0].mxu0
    %v5082 = vadd.f32 %v5030, %v5081
    %v5083 = vpop.f32.mrb[0].mxu0
    %5084 = vmatprep.mubr.bf16.mxu0 0
    %5085 = vmatmul.mubr.bf16.gmra.mrb[0].mxu0 %v177
    %v5086 = vpop.f32.mrb[0].mxu0
    %v5087 = vadd.f32 %v5030, %v5086
    %v5088 = vpop.f32.mrb[0].mxu0
    %v5089 = vpop.f32.mrb[0].mxu0
    %v5090 = vadd.f32 %v5030, %v5089
    %v5091 = vpop.f32.mrb[0].mxu0
    %5092 = vdwg.mxu0
    %v5093 = vpack.c.bf16 %v4939, %v4939
    %v5094 = vpack.c.bf16 %v4942, %v4942
    %v5095 = vpack.c.bf16 %v5008, %v5005
    %v5096 = vpack.c.bf16 %v5016, %v5013
    %v5098 = vsel %vm304, %v5093, 0
    %v5101 = vsel %vm304, %v5095, 0
    %5103 = vmatprep.subr.bf16.mxu0 0
    %5104 = vmatpush1.bf16.xpose.msra.mxu0 %v5101
    %5105 = vmatprep.subr.bf16.mxu0 0
    %5106 = vmatpush1.bf16.xpose.msra.mxu0 0
    %5107 = vmatprep.subr.bf16.mxu0 0
    %5108 = vmatpush1.bf16.xpose.msra.mxu0 0
    %5109 = vmatprep.subr.bf16.mxu0 0
    %5110 = vmatpush1.bf16.xpose.msra.mxu0 0
    %5111 = vmatprep.subr.bf16.mxu0 0
    %5112 = vmatpush1.bf16.xpose.msra.mxu0 0
    %5113 = vmatprep.subr.bf16.mxu0 0
    %5114 = vmatpush1.bf16.xpose.msra.mxu0 0
    %5115 = vmatprep.subr.bf16.mxu0 0
    %5116 = vmatpush1.bf16.xpose.msra.mxu0 0
    %5117 = vmatprep.subr.bf16.mxu0 0
    %5118 = vmatpush1.bf16.xpose.msra.mxu0 0
    %5119 = vmatprep.subr.bf16.mxu0 0
    %5120 = vmatpush1.bf16.xpose.msra.mxu0 0
    %5121 = vmatprep.subr.bf16.mxu0 0
    %5122 = vmatpush1.bf16.xpose.msra.mxu0 0
    %5123 = vmatprep.subr.bf16.mxu0 0
    %5124 = vmatpush1.bf16.xpose.msra.mxu0 0
    %5125 = vmatprep.subr.bf16.mxu0 0
    %5126 = vmatpush1.bf16.xpose.msra.mxu0 0
    %5127 = vmatprep.subr.bf16.mxu0 0
    %5128 = vmatpush1.bf16.xpose.msra.mxu0 0
    %5129 = vmatprep.subr.bf16.mxu0 0
    %5130 = vmatpush1.bf16.xpose.msra.mxu0 0
    %5131 = vmatprep.subr.bf16.mxu0 0
    %5132 = vmatpush1.bf16.xpose.msra.mxu0 0
    %5133 = vmatprep.subr.bf16.mxu0 0
    %5134 = vmatpush1.bf16.xpose.msra.mxu0 0
    %5135 = vmatprep.mubr.bf16.mxu0 0
    %5136 = vmatmul.mubr.bf16.gmra.mrb[0].mxu0 %v5098
    %v5137 = vpop.f32.mrb[0].mxu0
    %v5138 = vadd.f32 0.0, %v5137
    %v5139 = vpop.f32.mrb[0].mxu0
    %v5140 = vpop.f32.mrb[0].mxu0
    %v5141 = vpop.f32.mrb[0].mxu0
    %5142 = vdwg.mxu0
    %v5144 = vsel %vm304, %v5094, 0
    %v5147 = vsel %vm304, %v5096, 0
    %5149 = vmatprep.subr.bf16.mxu0 0
    %5150 = vmatpush1.bf16.xpose.msra.mxu0 %v5147
    %5151 = vmatprep.subr.bf16.mxu0 0
    %5152 = vmatpush1.bf16.xpose.msra.mxu0 0
    %5153 = vmatprep.subr.bf16.mxu0 0
    %5154 = vmatpush1.bf16.xpose.msra.mxu0 0
    %5155 = vmatprep.subr.bf16.mxu0 0
    %5156 = vmatpush1.bf16.xpose.msra.mxu0 0
    %5157 = vmatprep.subr.bf16.mxu0 0
    %5158 = vmatpush1.bf16.xpose.msra.mxu0 0
    %5159 = vmatprep.subr.bf16.mxu0 0
    %5160 = vmatpush1.bf16.xpose.msra.mxu0 0
    %5161 = vmatprep.subr.bf16.mxu0 0
    %5162 = vmatpush1.bf16.xpose.msra.mxu0 0
    %5163 = vmatprep.subr.bf16.mxu0 0
    %5164 = vmatpush1.bf16.xpose.msra.mxu0 0
    %5165 = vmatprep.subr.bf16.mxu0 0
    %5166 = vmatpush1.bf16.xpose.msra.mxu0 0
    %5167 = vmatprep.subr.bf16.mxu0 0
    %5168 = vmatpush1.bf16.xpose.msra.mxu0 0
    %5169 = vmatprep.subr.bf16.mxu0 0
    %5170 = vmatpush1.bf16.xpose.msra.mxu0 0
    %5171 = vmatprep.subr.bf16.mxu0 0
    %5172 = vmatpush1.bf16.xpose.msra.mxu0 0
    %5173 = vmatprep.subr.bf16.mxu0 0
    %5174 = vmatpush1.bf16.xpose.msra.mxu0 0
    %5175 = vmatprep.subr.bf16.mxu0 0
    %5176 = vmatpush1.bf16.xpose.msra.mxu0 0
    %5177 = vmatprep.subr.bf16.mxu0 0
    %5178 = vmatpush1.bf16.xpose.msra.mxu0 0
    %5179 = vmatprep.subr.bf16.mxu0 0
    %5180 = vmatpush1.bf16.xpose.msra.mxu0 0
    %5181 = vmatprep.mubr.bf16.mxu0 0
    %5182 = vmatmul.mubr.bf16.gmra.mrb[0].mxu0 %v5144
    %v5183 = vpop.f32.mrb[0].mxu0
    %v5184 = vadd.f32 0.0, %v5183
    %v5185 = vpop.f32.mrb[0].mxu0
    %v5186 = vpop.f32.mrb[0].mxu0
    %v5187 = vpop.f32.mrb[0].mxu0
    %5188 = vdwg.mxu0
    %v5189 = vsel %vm397, %v5138, -inf
    %5190 = vmax.xlane.f32.xlu0 %v5189
    %v5191 = vpop.xlane.xlu0 %5190
    %v5192 = vsel %vm397, %v5184, -inf
    %5193 = vmax.xlane.f32.xlu0 %v5192
    %v5194 = vpop.xlane.xlu0 %5193
    %v5195 = vsub.f32 %v5138, %v5191
    %v5196 = vsub.f32 %v5184, %v5194
    %v5197 = vmul.f32 %v5195, 1.442695
    %v5198 = vpow.pop %v5197
    %v5199 = vmul.f32 %v5196, 1.442695
    %v5200 = vpow.pop %v5199
    %v5201 = vsel %vm397, %v5198, 0.0
    %5202 = vadd.xlane.f32.xlu0 %v5201
    %v5203 = vpop.xlane.xlu0 %5202
    %v5204 = vsel %vm397, %v5200, 0.0
    %5205 = vadd.xlane.f32.xlu0 %v5204
    %v5206 = vpop.xlane.xlu0 %5205
    %v5207 = vpack.c.bf16 %v5198, %v5198
    %v5208 = vpack.c.bf16 %v5200, %v5200
    %v5209 = vpack.c.bf16 %v5082, %v5079
    %v5210 = vpack.c.bf16 %v5090, %v5087
    %v5212 = vsel %vm397, %v5207, 0
    %5214 = vmatprep.subr.bf16.mxu0 0
    %5215 = vmatpush1.bf16.msra.mxu0 %v5209
    %5216 = vmatprep.subr.bf16.mxu0 0
    %5217 = vmatpush1.bf16.msra.mxu0 0
    %5218 = vmatprep.subr.bf16.mxu0 0
    %5219 = vmatpush1.bf16.msra.mxu0 0
    %5220 = vmatprep.subr.bf16.mxu0 0
    %5221 = vmatpush1.bf16.msra.mxu0 0
    %5222 = vmatprep.subr.bf16.mxu0 0
    %5223 = vmatpush1.bf16.msra.mxu0 0
    %5224 = vmatprep.subr.bf16.mxu0 0
    %5225 = vmatpush1.bf16.msra.mxu0 0
    %5226 = vmatprep.subr.bf16.mxu0 0
    %5227 = vmatpush1.bf16.msra.mxu0 0
    %5228 = vmatprep.subr.bf16.mxu0 0
    %5229 = vmatpush1.bf16.msra.mxu0 0
    %5230 = vmatprep.subr.bf16.mxu0 0
    %5231 = vmatpush1.bf16.msra.mxu0 0
    %5232 = vmatprep.subr.bf16.mxu0 0
    %5233 = vmatpush1.bf16.msra.mxu0 0
    %5234 = vmatprep.subr.bf16.mxu0 0
    %5235 = vmatpush1.bf16.msra.mxu0 0
    %5236 = vmatprep.subr.bf16.mxu0 0
    %5237 = vmatpush1.bf16.msra.mxu0 0
    %5238 = vmatprep.subr.bf16.mxu0 0
    %5239 = vmatpush1.bf16.msra.mxu0 0
    %5240 = vmatprep.subr.bf16.mxu0 0
    %5241 = vmatpush1.bf16.msra.mxu0 0
    %5242 = vmatprep.subr.bf16.mxu0 0
    %5243 = vmatpush1.bf16.msra.mxu0 0
    %5244 = vmatprep.subr.bf16.mxu0 0
    %5245 = vmatpush1.bf16.msra.mxu0 0
    %5246 = vmatprep.mubr.bf16.mxu0 0
    %5247 = vmatmul.mubr.bf16.gmra.mrb[0].mxu0 %v5212
    %v5248 = vpop.f32.mrb[0].mxu0
    %v5249 = vadd.f32 0.0, %v5248
    %v5250 = vpop.f32.mrb[0].mxu0
    %v5251 = vpop.f32.mrb[0].mxu0
    %v5252 = vpop.f32.mrb[0].mxu0
    %5253 = vdwg.mxu0
    %v5255 = vsel %vm397, %v5208, 0
    %5257 = vmatprep.subr.bf16.mxu0 0
    %5258 = vmatpush1.bf16.msra.mxu0 %v5210
    %5259 = vmatprep.subr.bf16.mxu0 0
    %5260 = vmatpush1.bf16.msra.mxu0 0
    %5261 = vmatprep.subr.bf16.mxu0 0
    %5262 = vmatpush1.bf16.msra.mxu0 0
    %5263 = vmatprep.subr.bf16.mxu0 0
    %5264 = vmatpush1.bf16.msra.mxu0 0
    %5265 = vmatprep.subr.bf16.mxu0 0
    %5266 = vmatpush1.bf16.msra.mxu0 0
    %5267 = vmatprep.subr.bf16.mxu0 0
    %5268 = vmatpush1.bf16.msra.mxu0 0
    %5269 = vmatprep.subr.bf16.mxu0 0
    %5270 = vmatpush1.bf16.msra.mxu0 0
    %5271 = vmatprep.subr.bf16.mxu0 0
    %5272 = vmatpush1.bf16.msra.mxu0 0
    %5273 = vmatprep.subr.bf16.mxu0 0
    %5274 = vmatpush1.bf16.msra.mxu0 0
    %5275 = vmatprep.subr.bf16.mxu0 0
    %5276 = vmatpush1.bf16.msra.mxu0 0
    %5277 = vmatprep.subr.bf16.mxu0 0
    %5278 = vmatpush1.bf16.msra.mxu0 0
    %5279 = vmatprep.subr.bf16.mxu0 0
    %5280 = vmatpush1.bf16.msra.mxu0 0
    %5281 = vmatprep.subr.bf16.mxu0 0
    %5282 = vmatpush1.bf16.msra.mxu0 0
    %5283 = vmatprep.subr.bf16.mxu0 0
    %5284 = vmatpush1.bf16.msra.mxu0 0
    %5285 = vmatprep.subr.bf16.mxu0 0
    %5286 = vmatpush1.bf16.msra.mxu0 0
    %5287 = vmatprep.subr.bf16.mxu0 0
    %5288 = vmatpush1.bf16.msra.mxu0 0
    %5289 = vmatprep.mubr.bf16.mxu0 0
    %5290 = vmatmul.mubr.bf16.gmra.mrb[0].mxu0 %v5255
    %v5291 = vpop.f32.mrb[0].mxu0
    %v5292 = vadd.f32 0.0, %v5291
    %v5293 = vpop.f32.mrb[0].mxu0
    %v5294 = vpop.f32.mrb[0].mxu0
    %v5295 = vpop.f32.mrb[0].mxu0
    %5296 = vdwg.mxu0
    %v5297 = vrcp.pop %v5203
    %v5298 = vrcp.pop %v5206
    %v5299 = vmul.f32 %v5249, %v5297
    %v5300 = vmul.f32 %v5292, %v5298
    %v5301 = vpack.c.bf16 %v5300, %v5299
    %s5302 = scalar_lea.vmem %s9, 36
    %v5303 = vld [vmem:[%s5302] sm:$0xf]
    %v5305 = vsel %vm304, %v5301, 0
    %v5308 = vsel %vm940, %v5303, 0
    %5310 = vmatprep.subr.bf16.mxu0 0
    %5311 = vmatpush1.bf16.msra.mxu0 %v5308
    %5312 = vmatprep.subr.bf16.mxu0 0
    %5313 = vmatpush1.bf16.msra.mxu0 0
    %5314 = vmatprep.subr.bf16.mxu0 0
    %5315 = vmatpush1.bf16.msra.mxu0 0
    %5316 = vmatprep.subr.bf16.mxu0 0
    %5317 = vmatpush1.bf16.msra.mxu0 0
    %5318 = vmatprep.subr.bf16.mxu0 0
    %5319 = vmatpush1.bf16.msra.mxu0 0
    %5320 = vmatprep.subr.bf16.mxu0 0
    %5321 = vmatpush1.bf16.msra.mxu0 0
    %5322 = vmatprep.subr.bf16.mxu0 0
    %5323 = vmatpush1.bf16.msra.mxu0 0
    %5324 = vmatprep.subr.bf16.mxu0 0
    %5325 = vmatpush1.bf16.msra.mxu0 0
    %5326 = vmatprep.subr.bf16.mxu0 0
    %5327 = vmatpush1.bf16.msra.mxu0 0
    %5328 = vmatprep.subr.bf16.mxu0 0
    %5329 = vmatpush1.bf16.msra.mxu0 0
    %5330 = vmatprep.subr.bf16.mxu0 0
    %5331 = vmatpush1.bf16.msra.mxu0 0
    %5332 = vmatprep.subr.bf16.mxu0 0
    %5333 = vmatpush1.bf16.msra.mxu0 0
    %5334 = vmatprep.subr.bf16.mxu0 0
    %5335 = vmatpush1.bf16.msra.mxu0 0
    %5336 = vmatprep.subr.bf16.mxu0 0
    %5337 = vmatpush1.bf16.msra.mxu0 0
    %5338 = vmatprep.subr.bf16.mxu0 0
    %5339 = vmatpush1.bf16.msra.mxu0 0
    %5340 = vmatprep.subr.bf16.mxu0 0
    %5341 = vmatpush1.bf16.msra.mxu0 0
    %5342 = vmatprep.mubr.bf16.mxu0 0
    %5343 = vmatmul.mubr.bf16.gmra.mrb[0].mxu0 %v5305
    %v5344 = vpop.f32.mrb[0].mxu0
    %v5345 = vadd.f32 0.0, %v5344
    %v5346 = vpop.f32.mrb[0].mxu0
    %v5347 = vpop.f32.mrb[0].mxu0
    %v5348 = vadd.f32 0.0, %v5347
    %v5349 = vpop.f32.mrb[0].mxu0
    %5350 = vdwg.mxu0
    %v5352 = vsel %vm304, %v4876, 0
    %v5355 = vsel %vm940, %v4878, 0
    %5357 = vmatprep.subr.bf16.mxu0 0
    %5358 = vmatpush1.bf16.msra.mxu0 %v5355
    %5359 = vmatprep.subr.bf16.mxu0 0
    %5360 = vmatpush1.bf16.msra.mxu0 0
    %5361 = vmatprep.subr.bf16.mxu0 0
    %5362 = vmatpush1.bf16.msra.mxu0 0
    %5363 = vmatprep.subr.bf16.mxu0 0
    %5364 = vmatpush1.bf16.msra.mxu0 0
    %5365 = vmatprep.subr.bf16.mxu0 0
    %5366 = vmatpush1.bf16.msra.mxu0 0
    %5367 = vmatprep.subr.bf16.mxu0 0
    %5368 = vmatpush1.bf16.msra.mxu0 0
    %5369 = vmatprep.subr.bf16.mxu0 0
    %5370 = vmatpush1.bf16.msra.mxu0 0
    %5371 = vmatprep.subr.bf16.mxu0 0
    %5372 = vmatpush1.bf16.msra.mxu0 0
    %5373 = vmatprep.subr.bf16.mxu0 0
    %5374 = vmatpush1.bf16.msra.mxu0 0
    %5375 = vmatprep.subr.bf16.mxu0 0
    %5376 = vmatpush1.bf16.msra.mxu0 0
    %5377 = vmatprep.subr.bf16.mxu0 0
    %5378 = vmatpush1.bf16.msra.mxu0 0
    %5379 = vmatprep.subr.bf16.mxu0 0
    %5380 = vmatpush1.bf16.msra.mxu0 0
    %5381 = vmatprep.subr.bf16.mxu0 0
    %5382 = vmatpush1.bf16.msra.mxu0 0
    %5383 = vmatprep.subr.bf16.mxu0 0
    %5384 = vmatpush1.bf16.msra.mxu0 0
    %5385 = vmatprep.subr.bf16.mxu0 0
    %5386 = vmatpush1.bf16.msra.mxu0 0
    %5387 = vmatprep.subr.bf16.mxu0 0
    %5388 = vmatpush1.bf16.msra.mxu0 0
    %5389 = vmatprep.mubr.bf16.mxu0 0
    %5390 = vmatmul.mubr.bf16.gmra.mrb[0].mxu0 %v5352
    %v5391 = vpop.f32.mrb[0].mxu0
    %v5392 = vadd.f32 %v5345, %v5391
    %v5393 = vpop.f32.mrb[0].mxu0
    %v5394 = vpop.f32.mrb[0].mxu0
    %v5395 = vadd.f32 %v5348, %v5394
    %v5396 = vpop.f32.mrb[0].mxu0
    %5397 = vdwg.mxu0
    %s5398 = scalar_lea.vmem %s3, 160
    %v5399 = vld [vmem:[%s5398] sm:$0xf]
    %v5400 = vld [vmem:[%s5398 + $0x4] sm:$0xf]
    %v5401 = vld [vmem:[%s5398 + $0x8] sm:$0xf]
    %v5402 = vld [vmem:[%s5398 + $0xc] sm:$0xf]
    %s5403 = scalar_lea.vmem %s4, 10
    %v5404 = vld [vmem:[%s5403] sm:$0x1]
    %v5406 = vlaneseq
    %v5407 = vshrl.u32 %v5406, 7
    %v5408 = vsub.s32 0, %v5407
    %v5409 = vrot.slane %v5404, %v5408
    %v5415 = vunpack.c.l.b16 %v5399
    %v5416 = vunpack.c.l.b16 %v5400
    %v5417 = vunpack.c.l.b16 %v5401
    %v5418 = vunpack.c.l.b16 %v5402
    %v5419 = vpack.c.b16 %v5416, %v5415
    %v5420 = vpack.c.b16 %v5418, %v5417
    %5423 = vmatprep.subr.bf16.mxu0 0
    %5424 = vmatpush1.bf16.msra.mxu0 %v5419
    %5425 = vmatprep.subr.bf16.mxu0 0
    %5426 = vmatpush1.bf16.msra.mxu0 %v5420
    %5427 = vmatprep.subr.bf16.mxu0 0
    %5428 = vmatpush1.bf16.msra.mxu0 0
    %5429 = vmatprep.subr.bf16.mxu0 0
    %5430 = vmatpush1.bf16.msra.mxu0 0
    %5431 = vmatprep.subr.bf16.mxu0 0
    %5432 = vmatpush1.bf16.msra.mxu0 0
    %5433 = vmatprep.subr.bf16.mxu0 0
    %5434 = vmatpush1.bf16.msra.mxu0 0
    %5435 = vmatprep.subr.bf16.mxu0 0
    %5436 = vmatpush1.bf16.msra.mxu0 0
    %5437 = vmatprep.subr.bf16.mxu0 0
    %5438 = vmatpush1.bf16.msra.mxu0 0
    %5439 = vmatprep.subr.bf16.mxu0 0
    %5440 = vmatpush1.bf16.msra.mxu0 0
    %5441 = vmatprep.subr.bf16.mxu0 0
    %5442 = vmatpush1.bf16.msra.mxu0 0
    %5443 = vmatprep.subr.bf16.mxu0 0
    %5444 = vmatpush1.bf16.msra.mxu0 0
    %5445 = vmatprep.subr.bf16.mxu0 0
    %5446 = vmatpush1.bf16.msra.mxu0 0
    %5447 = vmatprep.subr.bf16.mxu0 0
    %5448 = vmatpush1.bf16.msra.mxu0 0
    %5449 = vmatprep.subr.bf16.mxu0 0
    %5450 = vmatpush1.bf16.msra.mxu0 0
    %5451 = vmatprep.subr.bf16.mxu0 0
    %5452 = vmatpush1.bf16.msra.mxu0 0
    %5453 = vmatprep.subr.bf16.mxu0 0
    %5454 = vmatpush1.bf16.msra.mxu0 0
    %5455 = vmatprep.mubr.bf16.mxu0 0
    %5456 = vmatmul.mubr.bf16.gmra.mrb[0].mxu0 %v4477
    %v5457 = vpop.f32.mrb[0].mxu0
    %v5458 = vadd.f32 %v5409, %v5457
    %v5459 = vpop.f32.mrb[0].mxu0
    %v5460 = vpop.f32.mrb[0].mxu0
    %v5461 = vadd.f32 %v5409, %v5460
    %v5462 = vpop.f32.mrb[0].mxu0
    %5463 = vdwg.mxu0
    %s5464 = scalar_lea.vmem %s5, 160
    %v5465 = vld [vmem:[%s5464] sm:$0xf]
    %v5466 = vld [vmem:[%s5464 + $0x4] sm:$0xf]
    %v5467 = vld [vmem:[%s5464 + $0x8] sm:$0xf]
    %v5468 = vld [vmem:[%s5464 + $0xc] sm:$0xf]
    %s5469 = scalar_lea.vmem %s6, 10
    %v5470 = vld [vmem:[%s5469] sm:$0x1]
    %v5472 = vlaneseq
    %v5473 = vshrl.u32 %v5472, 7
    %v5474 = vsub.s32 0, %v5473
    %v5475 = vrot.slane %v5470, %v5474
    %v5481 = vunpack.c.l.b16 %v5465
    %v5482 = vunpack.c.l.b16 %v5466
    %v5483 = vunpack.c.l.b16 %v5467
    %v5484 = vunpack.c.l.b16 %v5468
    %v5485 = vpack.c.b16 %v5482, %v5481
    %v5486 = vpack.c.b16 %v5484, %v5483
    %5489 = vmatprep.subr.bf16.mxu0 0
    %5490 = vmatpush1.bf16.msra.mxu0 %v5485
    %5491 = vmatprep.subr.bf16.mxu0 0
    %5492 = vmatpush1.bf16.msra.mxu0 %v5486
    %5493 = vmatprep.subr.bf16.mxu0 0
    %5494 = vmatpush1.bf16.msra.mxu0 0
    %5495 = vmatprep.subr.bf16.mxu0 0
    %5496 = vmatpush1.bf16.msra.mxu0 0
    %5497 = vmatprep.subr.bf16.mxu0 0
    %5498 = vmatpush1.bf16.msra.mxu0 0
    %5499 = vmatprep.subr.bf16.mxu0 0
    %5500 = vmatpush1.bf16.msra.mxu0 0
    %5501 = vmatprep.subr.bf16.mxu0 0
    %5502 = vmatpush1.bf16.msra.mxu0 0
    %5503 = vmatprep.subr.bf16.mxu0 0
    %5504 = vmatpush1.bf16.msra.mxu0 0
    %5505 = vmatprep.subr.bf16.mxu0 0
    %5506 = vmatpush1.bf16.msra.mxu0 0
    %5507 = vmatprep.subr.bf16.mxu0 0
    %5508 = vmatpush1.bf16.msra.mxu0 0
    %5509 = vmatprep.subr.bf16.mxu0 0
    %5510 = vmatpush1.bf16.msra.mxu0 0
    %5511 = vmatprep.subr.bf16.mxu0 0
    %5512 = vmatpush1.bf16.msra.mxu0 0
    %5513 = vmatprep.subr.bf16.mxu0 0
    %5514 = vmatpush1.bf16.msra.mxu0 0
    %5515 = vmatprep.subr.bf16.mxu0 0
    %5516 = vmatpush1.bf16.msra.mxu0 0
    %5517 = vmatprep.subr.bf16.mxu0 0
    %5518 = vmatpush1.bf16.msra.mxu0 0
    %5519 = vmatprep.subr.bf16.mxu0 0
    %5520 = vmatpush1.bf16.msra.mxu0 0
    %5521 = vmatprep.mubr.bf16.mxu0 0
    %5522 = vmatmul.mubr.bf16.gmra.mrb[0].mxu0 %v174
    %v5523 = vpop.f32.mrb[0].mxu0
    %v5524 = vadd.f32 %v5475, %v5523
    %v5525 = vpop.f32.mrb[0].mxu0
    %v5526 = vpop.f32.mrb[0].mxu0
    %v5527 = vadd.f32 %v5475, %v5526
    %v5528 = vpop.f32.mrb[0].mxu0
    %5529 = vmatprep.mubr.bf16.mxu0 0
    %5530 = vmatmul.mubr.bf16.gmra.mrb[0].mxu0 %v177
    %v5531 = vpop.f32.mrb[0].mxu0
    %v5532 = vadd.f32 %v5475, %v5531
    %v5533 = vpop.f32.mrb[0].mxu0
    %v5534 = vpop.f32.mrb[0].mxu0
    %v5535 = vadd.f32 %v5475, %v5534
    %v5536 = vpop.f32.mrb[0].mxu0
    %5537 = vdwg.mxu0
    %s5538 = scalar_lea.vmem %s7, 160
    %v5539 = vld [vmem:[%s5538] sm:$0xf]
    %v5540 = vld [vmem:[%s5538 + $0x4] sm:$0xf]
    %v5541 = vld [vmem:[%s5538 + $0x8] sm:$0xf]
    %v5542 = vld [vmem:[%s5538 + $0xc] sm:$0xf]
    %s5543 = scalar_lea.vmem %s8, 10
    %v5544 = vld [vmem:[%s5543] sm:$0x1]
    %v5546 = vlaneseq
    %v5547 = vshrl.u32 %v5546, 7
    %v5548 = vsub.s32 0, %v5547
    %v5549 = vrot.slane %v5544, %v5548
    %v5555 = vunpack.c.l.b16 %v5539
    %v5556 = vunpack.c.l.b16 %v5540
    %v5557 = vunpack.c.l.b16 %v5541
    %v5558 = vunpack.c.l.b16 %v5542
    %v5559 = vpack.c.b16 %v5556, %v5555
    %v5560 = vpack.c.b16 %v5558, %v5557
    %5563 = vmatprep.subr.bf16.mxu0 0
    %5564 = vmatpush1.bf16.msra.mxu0 %v5559
    %5565 = vmatprep.subr.bf16.mxu0 0
    %5566 = vmatpush1.bf16.msra.mxu0 %v5560
    %5567 = vmatprep.subr.bf16.mxu0 0
    %5568 = vmatpush1.bf16.msra.mxu0 0
    %5569 = vmatprep.subr.bf16.mxu0 0
    %5570 = vmatpush1.bf16.msra.mxu0 0
    %5571 = vmatprep.subr.bf16.mxu0 0
    %5572 = vmatpush1.bf16.msra.mxu0 0
    %5573 = vmatprep.subr.bf16.mxu0 0
    %5574 = vmatpush1.bf16.msra.mxu0 0
    %5575 = vmatprep.subr.bf16.mxu0 0
    %5576 = vmatpush1.bf16.msra.mxu0 0
    %5577 = vmatprep.subr.bf16.mxu0 0
    %5578 = vmatpush1.bf16.msra.mxu0 0
    %5579 = vmatprep.subr.bf16.mxu0 0
    %5580 = vmatpush1.bf16.msra.mxu0 0
    %5581 = vmatprep.subr.bf16.mxu0 0
    %5582 = vmatpush1.bf16.msra.mxu0 0
    %5583 = vmatprep.subr.bf16.mxu0 0
    %5584 = vmatpush1.bf16.msra.mxu0 0
    %5585 = vmatprep.subr.bf16.mxu0 0
    %5586 = vmatpush1.bf16.msra.mxu0 0
    %5587 = vmatprep.subr.bf16.mxu0 0
    %5588 = vmatpush1.bf16.msra.mxu0 0
    %5589 = vmatprep.subr.bf16.mxu0 0
    %5590 = vmatpush1.bf16.msra.mxu0 0
    %5591 = vmatprep.subr.bf16.mxu0 0
    %5592 = vmatpush1.bf16.msra.mxu0 0
    %5593 = vmatprep.subr.bf16.mxu0 0
    %5594 = vmatpush1.bf16.msra.mxu0 0
    %5595 = vmatprep.mubr.bf16.mxu0 0
    %5596 = vmatmul.mubr.bf16.gmra.mrb[0].mxu0 %v174
    %v5597 = vpop.f32.mrb[0].mxu0
    %v5598 = vadd.f32 %v5549, %v5597
    %v5599 = vpop.f32.mrb[0].mxu0
    %v5600 = vpop.f32.mrb[0].mxu0
    %v5601 = vadd.f32 %v5549, %v5600
    %v5602 = vpop.f32.mrb[0].mxu0
    %5603 = vmatprep.mubr.bf16.mxu0 0
    %5604 = vmatmul.mubr.bf16.gmra.mrb[0].mxu0 %v177
    %v5605 = vpop.f32.mrb[0].mxu0
    %v5606 = vadd.f32 %v5549, %v5605
    %v5607 = vpop.f32.mrb[0].mxu0
    %v5608 = vpop.f32.mrb[0].mxu0
    %v5609 = vadd.f32 %v5549, %v5608
    %v5610 = vpop.f32.mrb[0].mxu0
    %5611 = vdwg.mxu0
    %v5612 = vpack.c.bf16 %v5458, %v5458
    %v5613 = vpack.c.bf16 %v5461, %v5461
    %v5614 = vpack.c.bf16 %v5527, %v5524
    %v5615 = vpack.c.bf16 %v5535, %v5532
    %v5617 = vsel %vm304, %v5612, 0
    %v5620 = vsel %vm304, %v5614, 0
    %5622 = vmatprep.subr.bf16.mxu0 0
    %5623 = vmatpush1.bf16.xpose.msra.mxu0 %v5620
    %5624 = vmatprep.subr.bf16.mxu0 0
    %5625 = vmatpush1.bf16.xpose.msra.mxu0 0
    %5626 = vmatprep.subr.bf16.mxu0 0
    %5627 = vmatpush1.bf16.xpose.msra.mxu0 0
    %5628 = vmatprep.subr.bf16.mxu0 0
    %5629 = vmatpush1.bf16.xpose.msra.mxu0 0
    %5630 = vmatprep.subr.bf16.mxu0 0
    %5631 = vmatpush1.bf16.xpose.msra.mxu0 0
    %5632 = vmatprep.subr.bf16.mxu0 0
    %5633 = vmatpush1.bf16.xpose.msra.mxu0 0
    %5634 = vmatprep.subr.bf16.mxu0 0
    %5635 = vmatpush1.bf16.xpose.msra.mxu0 0
    %5636 = vmatprep.subr.bf16.mxu0 0
    %5637 = vmatpush1.bf16.xpose.msra.mxu0 0
    %5638 = vmatprep.subr.bf16.mxu0 0
    %5639 = vmatpush1.bf16.xpose.msra.mxu0 0
    %5640 = vmatprep.subr.bf16.mxu0 0
    %5641 = vmatpush1.bf16.xpose.msra.mxu0 0
    %5642 = vmatprep.subr.bf16.mxu0 0
    %5643 = vmatpush1.bf16.xpose.msra.mxu0 0
    %5644 = vmatprep.subr.bf16.mxu0 0
    %5645 = vmatpush1.bf16.xpose.msra.mxu0 0
    %5646 = vmatprep.subr.bf16.mxu0 0
    %5647 = vmatpush1.bf16.xpose.msra.mxu0 0
    %5648 = vmatprep.subr.bf16.mxu0 0
    %5649 = vmatpush1.bf16.xpose.msra.mxu0 0
    %5650 = vmatprep.subr.bf16.mxu0 0
    %5651 = vmatpush1.bf16.xpose.msra.mxu0 0
    %5652 = vmatprep.subr.bf16.mxu0 0
    %5653 = vmatpush1.bf16.xpose.msra.mxu0 0
    %5654 = vmatprep.mubr.bf16.mxu0 0
    %5655 = vmatmul.mubr.bf16.gmra.mrb[0].mxu0 %v5617
    %v5656 = vpop.f32.mrb[0].mxu0
    %v5657 = vadd.f32 0.0, %v5656
    %v5658 = vpop.f32.mrb[0].mxu0
    %v5659 = vpop.f32.mrb[0].mxu0
    %v5660 = vpop.f32.mrb[0].mxu0
    %5661 = vdwg.mxu0
    %v5663 = vsel %vm304, %v5613, 0
    %v5666 = vsel %vm304, %v5615, 0
    %5668 = vmatprep.subr.bf16.mxu0 0
    %5669 = vmatpush1.bf16.xpose.msra.mxu0 %v5666
    %5670 = vmatprep.subr.bf16.mxu0 0
    %5671 = vmatpush1.bf16.xpose.msra.mxu0 0
    %5672 = vmatprep.subr.bf16.mxu0 0
    %5673 = vmatpush1.bf16.xpose.msra.mxu0 0
    %5674 = vmatprep.subr.bf16.mxu0 0
    %5675 = vmatpush1.bf16.xpose.msra.mxu0 0
    %5676 = vmatprep.subr.bf16.mxu0 0
    %5677 = vmatpush1.bf16.xpose.msra.mxu0 0
    %5678 = vmatprep.subr.bf16.mxu0 0
    %5679 = vmatpush1.bf16.xpose.msra.mxu0 0
    %5680 = vmatprep.subr.bf16.mxu0 0
    %5681 = vmatpush1.bf16.xpose.msra.mxu0 0
    %5682 = vmatprep.subr.bf16.mxu0 0
    %5683 = vmatpush1.bf16.xpose.msra.mxu0 0
    %5684 = vmatprep.subr.bf16.mxu0 0
    %5685 = vmatpush1.bf16.xpose.msra.mxu0 0
    %5686 = vmatprep.subr.bf16.mxu0 0
    %5687 = vmatpush1.bf16.xpose.msra.mxu0 0
    %5688 = vmatprep.subr.bf16.mxu0 0
    %5689 = vmatpush1.bf16.xpose.msra.mxu0 0
    %5690 = vmatprep.subr.bf16.mxu0 0
    %5691 = vmatpush1.bf16.xpose.msra.mxu0 0
    %5692 = vmatprep.subr.bf16.mxu0 0
    %5693 = vmatpush1.bf16.xpose.msra.mxu0 0
    %5694 = vmatprep.subr.bf16.mxu0 0
    %5695 = vmatpush1.bf16.xpose.msra.mxu0 0
    %5696 = vmatprep.subr.bf16.mxu0 0
    %5697 = vmatpush1.bf16.xpose.msra.mxu0 0
    %5698 = vmatprep.subr.bf16.mxu0 0
    %5699 = vmatpush1.bf16.xpose.msra.mxu0 0
    %5700 = vmatprep.mubr.bf16.mxu0 0
    %5701 = vmatmul.mubr.bf16.gmra.mrb[0].mxu0 %v5663
    %v5702 = vpop.f32.mrb[0].mxu0
    %v5703 = vadd.f32 0.0, %v5702
    %v5704 = vpop.f32.mrb[0].mxu0
    %v5705 = vpop.f32.mrb[0].mxu0
    %v5706 = vpop.f32.mrb[0].mxu0
    %5707 = vdwg.mxu0
    %v5708 = vsel %vm397, %v5657, -inf
    %5709 = vmax.xlane.f32.xlu0 %v5708
    %v5710 = vpop.xlane.xlu0 %5709
    %v5711 = vsel %vm397, %v5703, -inf
    %5712 = vmax.xlane.f32.xlu0 %v5711
    %v5713 = vpop.xlane.xlu0 %5712
    %v5714 = vsub.f32 %v5657, %v5710
    %v5715 = vsub.f32 %v5703, %v5713
    %v5716 = vmul.f32 %v5714, 1.442695
    %v5717 = vpow.pop %v5716
    %v5718 = vmul.f32 %v5715, 1.442695
    %v5719 = vpow.pop %v5718
    %v5720 = vsel %vm397, %v5717, 0.0
    %5721 = vadd.xlane.f32.xlu0 %v5720
    %v5722 = vpop.xlane.xlu0 %5721
    %v5723 = vsel %vm397, %v5719, 0.0
    %5724 = vadd.xlane.f32.xlu0 %v5723
    %v5725 = vpop.xlane.xlu0 %5724
    %v5726 = vpack.c.bf16 %v5717, %v5717
    %v5727 = vpack.c.bf16 %v5719, %v5719
    %v5728 = vpack.c.bf16 %v5601, %v5598
    %v5729 = vpack.c.bf16 %v5609, %v5606
    %v5731 = vsel %vm397, %v5726, 0
    %5733 = vmatprep.subr.bf16.mxu0 0
    %5734 = vmatpush1.bf16.msra.mxu0 %v5728
    %5735 = vmatprep.subr.bf16.mxu0 0
    %5736 = vmatpush1.bf16.msra.mxu0 0
    %5737 = vmatprep.subr.bf16.mxu0 0
    %5738 = vmatpush1.bf16.msra.mxu0 0
    %5739 = vmatprep.subr.bf16.mxu0 0
    %5740 = vmatpush1.bf16.msra.mxu0 0
    %5741 = vmatprep.subr.bf16.mxu0 0
    %5742 = vmatpush1.bf16.msra.mxu0 0
    %5743 = vmatprep.subr.bf16.mxu0 0
    %5744 = vmatpush1.bf16.msra.mxu0 0
    %5745 = vmatprep.subr.bf16.mxu0 0
    %5746 = vmatpush1.bf16.msra.mxu0 0
    %5747 = vmatprep.subr.bf16.mxu0 0
    %5748 = vmatpush1.bf16.msra.mxu0 0
    %5749 = vmatprep.subr.bf16.mxu0 0
    %5750 = vmatpush1.bf16.msra.mxu0 0
    %5751 = vmatprep.subr.bf16.mxu0 0
    %5752 = vmatpush1.bf16.msra.mxu0 0
    %5753 = vmatprep.subr.bf16.mxu0 0
    %5754 = vmatpush1.bf16.msra.mxu0 0
    %5755 = vmatprep.subr.bf16.mxu0 0
    %5756 = vmatpush1.bf16.msra.mxu0 0
    %5757 = vmatprep.subr.bf16.mxu0 0
    %5758 = vmatpush1.bf16.msra.mxu0 0
    %5759 = vmatprep.subr.bf16.mxu0 0
    %5760 = vmatpush1.bf16.msra.mxu0 0
    %5761 = vmatprep.subr.bf16.mxu0 0
    %5762 = vmatpush1.bf16.msra.mxu0 0
    %5763 = vmatprep.subr.bf16.mxu0 0
    %5764 = vmatpush1.bf16.msra.mxu0 0
    %5765 = vmatprep.mubr.bf16.mxu0 0
    %5766 = vmatmul.mubr.bf16.gmra.mrb[0].mxu0 %v5731
    %v5767 = vpop.f32.mrb[0].mxu0
    %v5768 = vadd.f32 0.0, %v5767
    %v5769 = vpop.f32.mrb[0].mxu0
    %v5770 = vpop.f32.mrb[0].mxu0
    %v5771 = vpop.f32.mrb[0].mxu0
    %5772 = vdwg.mxu0
    %v5774 = vsel %vm397, %v5727, 0
    %5776 = vmatprep.subr.bf16.mxu0 0
    %5777 = vmatpush1.bf16.msra.mxu0 %v5729
    %5778 = vmatprep.subr.bf16.mxu0 0
    %5779 = vmatpush1.bf16.msra.mxu0 0
    %5780 = vmatprep.subr.bf16.mxu0 0
    %5781 = vmatpush1.bf16.msra.mxu0 0
    %5782 = vmatprep.subr.bf16.mxu0 0
    %5783 = vmatpush1.bf16.msra.mxu0 0
    %5784 = vmatprep.subr.bf16.mxu0 0
    %5785 = vmatpush1.bf16.msra.mxu0 0
    %5786 = vmatprep.subr.bf16.mxu0 0
    %5787 = vmatpush1.bf16.msra.mxu0 0
    %5788 = vmatprep.subr.bf16.mxu0 0
    %5789 = vmatpush1.bf16.msra.mxu0 0
    %5790 = vmatprep.subr.bf16.mxu0 0
    %5791 = vmatpush1.bf16.msra.mxu0 0
    %5792 = vmatprep.subr.bf16.mxu0 0
    %5793 = vmatpush1.bf16.msra.mxu0 0
    %5794 = vmatprep.subr.bf16.mxu0 0
    %5795 = vmatpush1.bf16.msra.mxu0 0
    %5796 = vmatprep.subr.bf16.mxu0 0
    %5797 = vmatpush1.bf16.msra.mxu0 0
    %5798 = vmatprep.subr.bf16.mxu0 0
    %5799 = vmatpush1.bf16.msra.mxu0 0
    %5800 = vmatprep.subr.bf16.mxu0 0
    %5801 = vmatpush1.bf16.msra.mxu0 0
    %5802 = vmatprep.subr.bf16.mxu0 0
    %5803 = vmatpush1.bf16.msra.mxu0 0
    %5804 = vmatprep.subr.bf16.mxu0 0
    %5805 = vmatpush1.bf16.msra.mxu0 0
    %5806 = vmatprep.subr.bf16.mxu0 0
    %5807 = vmatpush1.bf16.msra.mxu0 0
    %5808 = vmatprep.mubr.bf16.mxu0 0
    %5809 = vmatmul.mubr.bf16.gmra.mrb[0].mxu0 %v5774
    %v5810 = vpop.f32.mrb[0].mxu0
    %v5811 = vadd.f32 0.0, %v5810
    %v5812 = vpop.f32.mrb[0].mxu0
    %v5813 = vpop.f32.mrb[0].mxu0
    %v5814 = vpop.f32.mrb[0].mxu0
    %5815 = vdwg.mxu0
    %v5816 = vrcp.pop %v5722
    %v5817 = vrcp.pop %v5725
    %v5818 = vmul.f32 %v5768, %v5816
    %v5819 = vmul.f32 %v5811, %v5817
    %v5820 = vpack.c.bf16 %v5819, %v5818
    %s5821 = scalar_lea.vmem %s9, 40
    %v5822 = vld [vmem:[%s5821] sm:$0xf]
    %v5824 = vsel %vm304, %v5820, 0
    %v5827 = vsel %vm940, %v5822, 0
    %5829 = vmatprep.subr.bf16.mxu0 0
    %5830 = vmatpush1.bf16.msra.mxu0 %v5827
    %5831 = vmatprep.subr.bf16.mxu0 0
    %5832 = vmatpush1.bf16.msra.mxu0 0
    %5833 = vmatprep.subr.bf16.mxu0 0
    %5834 = vmatpush1.bf16.msra.mxu0 0
    %5835 = vmatprep.subr.bf16.mxu0 0
    %5836 = vmatpush1.bf16.msra.mxu0 0
    %5837 = vmatprep.subr.bf16.mxu0 0
    %5838 = vmatpush1.bf16.msra.mxu0 0
    %5839 = vmatprep.subr.bf16.mxu0 0
    %5840 = vmatpush1.bf16.msra.mxu0 0
    %5841 = vmatprep.subr.bf16.mxu0 0
    %5842 = vmatpush1.bf16.msra.mxu0 0
    %5843 = vmatprep.subr.bf16.mxu0 0
    %5844 = vmatpush1.bf16.msra.mxu0 0
    %5845 = vmatprep.subr.bf16.mxu0 0
    %5846 = vmatpush1.bf16.msra.mxu0 0
    %5847 = vmatprep.subr.bf16.mxu0 0
    %5848 = vmatpush1.bf16.msra.mxu0 0
    %5849 = vmatprep.subr.bf16.mxu0 0
    %5850 = vmatpush1.bf16.msra.mxu0 0
    %5851 = vmatprep.subr.bf16.mxu0 0
    %5852 = vmatpush1.bf16.msra.mxu0 0
    %5853 = vmatprep.subr.bf16.mxu0 0
    %5854 = vmatpush1.bf16.msra.mxu0 0
    %5855 = vmatprep.subr.bf16.mxu0 0
    %5856 = vmatpush1.bf16.msra.mxu0 0
    %5857 = vmatprep.subr.bf16.mxu0 0
    %5858 = vmatpush1.bf16.msra.mxu0 0
    %5859 = vmatprep.subr.bf16.mxu0 0
    %5860 = vmatpush1.bf16.msra.mxu0 0
    %5861 = vmatprep.mubr.bf16.mxu0 0
    %5862 = vmatmul.mubr.bf16.gmra.mrb[0].mxu0 %v5824
    %v5863 = vpop.f32.mrb[0].mxu0
    %v5864 = vadd.f32 0.0, %v5863
    %v5865 = vpop.f32.mrb[0].mxu0
    %v5866 = vpop.f32.mrb[0].mxu0
    %v5867 = vadd.f32 0.0, %v5866
    %v5868 = vpop.f32.mrb[0].mxu0
    %5869 = vdwg.mxu0
    %v5870 = vadd.f32 %v5392, %v5864
    %v5871 = vadd.f32 %v5395, %v5867
    %s5872 = scalar_lea.vmem %s3, 176
    %v5873 = vld [vmem:[%s5872] sm:$0xf]
    %v5874 = vld [vmem:[%s5872 + $0x4] sm:$0xf]
    %v5875 = vld [vmem:[%s5872 + $0x8] sm:$0xf]
    %v5876 = vld [vmem:[%s5872 + $0xc] sm:$0xf]
    %s5877 = scalar_lea.vmem %s4, 11
    %v5878 = vld [vmem:[%s5877] sm:$0x1]
    %v5880 = vlaneseq
    %v5881 = vshrl.u32 %v5880, 7
    %v5882 = vsub.s32 0, %v5881
    %v5883 = vrot.slane %v5878, %v5882
    %v5889 = vunpack.c.l.b16 %v5873
    %v5890 = vunpack.c.l.b16 %v5874
    %v5891 = vunpack.c.l.b16 %v5875
    %v5892 = vunpack.c.l.b16 %v5876
    %v5893 = vpack.c.b16 %v5890, %v5889
    %v5894 = vpack.c.b16 %v5892, %v5891
    %5897 = vmatprep.subr.bf16.mxu0 0
    %5898 = vmatpush1.bf16.msra.mxu0 %v5893
    %5899 = vmatprep.subr.bf16.mxu0 0
    %5900 = vmatpush1.bf16.msra.mxu0 %v5894
    %5901 = vmatprep.subr.bf16.mxu0 0
    %5902 = vmatpush1.bf16.msra.mxu0 0
    %5903 = vmatprep.subr.bf16.mxu0 0
    %5904 = vmatpush1.bf16.msra.mxu0 0
    %5905 = vmatprep.subr.bf16.mxu0 0
    %5906 = vmatpush1.bf16.msra.mxu0 0
    %5907 = vmatprep.subr.bf16.mxu0 0
    %5908 = vmatpush1.bf16.msra.mxu0 0
    %5909 = vmatprep.subr.bf16.mxu0 0
    %5910 = vmatpush1.bf16.msra.mxu0 0
    %5911 = vmatprep.subr.bf16.mxu0 0
    %5912 = vmatpush1.bf16.msra.mxu0 0
    %5913 = vmatprep.subr.bf16.mxu0 0
    %5914 = vmatpush1.bf16.msra.mxu0 0
    %5915 = vmatprep.subr.bf16.mxu0 0
    %5916 = vmatpush1.bf16.msra.mxu0 0
    %5917 = vmatprep.subr.bf16.mxu0 0
    %5918 = vmatpush1.bf16.msra.mxu0 0
    %5919 = vmatprep.subr.bf16.mxu0 0
    %5920 = vmatpush1.bf16.msra.mxu0 0
    %5921 = vmatprep.subr.bf16.mxu0 0
    %5922 = vmatpush1.bf16.msra.mxu0 0
    %5923 = vmatprep.subr.bf16.mxu0 0
    %5924 = vmatpush1.bf16.msra.mxu0 0
    %5925 = vmatprep.subr.bf16.mxu0 0
    %5926 = vmatpush1.bf16.msra.mxu0 0
    %5927 = vmatprep.subr.bf16.mxu0 0
    %5928 = vmatpush1.bf16.msra.mxu0 0
    %5929 = vmatprep.mubr.bf16.mxu0 0
    %5930 = vmatmul.mubr.bf16.gmra.mrb[0].mxu0 %v4477
    %v5931 = vpop.f32.mrb[0].mxu0
    %v5932 = vadd.f32 %v5883, %v5931
    %v5933 = vpop.f32.mrb[0].mxu0
    %v5934 = vpop.f32.mrb[0].mxu0
    %v5935 = vadd.f32 %v5883, %v5934
    %v5936 = vpop.f32.mrb[0].mxu0
    %5937 = vdwg.mxu0
    %s5938 = scalar_lea.vmem %s5, 176
    %v5939 = vld [vmem:[%s5938] sm:$0xf]
    %v5940 = vld [vmem:[%s5938 + $0x4] sm:$0xf]
    %v5941 = vld [vmem:[%s5938 + $0x8] sm:$0xf]
    %v5942 = vld [vmem:[%s5938 + $0xc] sm:$0xf]
    %s5943 = scalar_lea.vmem %s6, 11
    %v5944 = vld [vmem:[%s5943] sm:$0x1]
    %v5946 = vlaneseq
    %v5947 = vshrl.u32 %v5946, 7
    %v5948 = vsub.s32 0, %v5947
    %v5949 = vrot.slane %v5944, %v5948
    %v5955 = vunpack.c.l.b16 %v5939
    %v5956 = vunpack.c.l.b16 %v5940
    %v5957 = vunpack.c.l.b16 %v5941
    %v5958 = vunpack.c.l.b16 %v5942
    %v5959 = vpack.c.b16 %v5956, %v5955
    %v5960 = vpack.c.b16 %v5958, %v5957
    %5963 = vmatprep.subr.bf16.mxu0 0
    %5964 = vmatpush1.bf16.msra.mxu0 %v5959
    %5965 = vmatprep.subr.bf16.mxu0 0
    %5966 = vmatpush1.bf16.msra.mxu0 %v5960
    %5967 = vmatprep.subr.bf16.mxu0 0
    %5968 = vmatpush1.bf16.msra.mxu0 0
    %5969 = vmatprep.subr.bf16.mxu0 0
    %5970 = vmatpush1.bf16.msra.mxu0 0
    %5971 = vmatprep.subr.bf16.mxu0 0
    %5972 = vmatpush1.bf16.msra.mxu0 0
    %5973 = vmatprep.subr.bf16.mxu0 0
    %5974 = vmatpush1.bf16.msra.mxu0 0
    %5975 = vmatprep.subr.bf16.mxu0 0
    %5976 = vmatpush1.bf16.msra.mxu0 0
    %5977 = vmatprep.subr.bf16.mxu0 0
    %5978 = vmatpush1.bf16.msra.mxu0 0
    %5979 = vmatprep.subr.bf16.mxu0 0
    %5980 = vmatpush1.bf16.msra.mxu0 0
    %5981 = vmatprep.subr.bf16.mxu0 0
    %5982 = vmatpush1.bf16.msra.mxu0 0
    %5983 = vmatprep.subr.bf16.mxu0 0
    %5984 = vmatpush1.bf16.msra.mxu0 0
    %5985 = vmatprep.subr.bf16.mxu0 0
    %5986 = vmatpush1.bf16.msra.mxu0 0
    %5987 = vmatprep.subr.bf16.mxu0 0
    %5988 = vmatpush1.bf16.msra.mxu0 0
    %5989 = vmatprep.subr.bf16.mxu0 0
    %5990 = vmatpush1.bf16.msra.mxu0 0
    %5991 = vmatprep.subr.bf16.mxu0 0
    %5992 = vmatpush1.bf16.msra.mxu0 0
    %5993 = vmatprep.subr.bf16.mxu0 0
    %5994 = vmatpush1.bf16.msra.mxu0 0
    %5995 = vmatprep.mubr.bf16.mxu0 0
    %5996 = vmatmul.mubr.bf16.gmra.mrb[0].mxu0 %v174
    %v5997 = vpop.f32.mrb[0].mxu0
    %v5998 = vadd.f32 %v5949, %v5997
    %v5999 = vpop.f32.mrb[0].mxu0
    %v6000 = vpop.f32.mrb[0].mxu0
    %v6001 = vadd.f32 %v5949, %v6000
    %v6002 = vpop.f32.mrb[0].mxu0
    %6003 = vmatprep.mubr.bf16.mxu0 0
    %6004 = vmatmul.mubr.bf16.gmra.mrb[0].mxu0 %v177
    %v6005 = vpop.f32.mrb[0].mxu0
    %v6006 = vadd.f32 %v5949, %v6005
    %v6007 = vpop.f32.mrb[0].mxu0
    %v6008 = vpop.f32.mrb[0].mxu0
    %v6009 = vadd.f32 %v5949, %v6008
    %v6010 = vpop.f32.mrb[0].mxu0
    %6011 = vdwg.mxu0
    %s6012 = scalar_lea.vmem %s7, 176
    %v6013 = vld [vmem:[%s6012] sm:$0xf]
    %v6014 = vld [vmem:[%s6012 + $0x4] sm:$0xf]
    %v6015 = vld [vmem:[%s6012 + $0x8] sm:$0xf]
    %v6016 = vld [vmem:[%s6012 + $0xc] sm:$0xf]
    %s6017 = scalar_lea.vmem %s8, 11
    %v6018 = vld [vmem:[%s6017] sm:$0x1]
    %v6020 = vlaneseq
    %v6021 = vshrl.u32 %v6020, 7
    %v6022 = vsub.s32 0, %v6021
    %v6023 = vrot.slane %v6018, %v6022
    %v6029 = vunpack.c.l.b16 %v6013
    %v6030 = vunpack.c.l.b16 %v6014
    %v6031 = vunpack.c.l.b16 %v6015
    %v6032 = vunpack.c.l.b16 %v6016
    %v6033 = vpack.c.b16 %v6030, %v6029
    %v6034 = vpack.c.b16 %v6032, %v6031
    %6037 = vmatprep.subr.bf16.mxu0 0
    %6038 = vmatpush1.bf16.msra.mxu0 %v6033
    %6039 = vmatprep.subr.bf16.mxu0 0
    %6040 = vmatpush1.bf16.msra.mxu0 %v6034
    %6041 = vmatprep.subr.bf16.mxu0 0
    %6042 = vmatpush1.bf16.msra.mxu0 0
    %6043 = vmatprep.subr.bf16.mxu0 0
    %6044 = vmatpush1.bf16.msra.mxu0 0
    %6045 = vmatprep.subr.bf16.mxu0 0
    %6046 = vmatpush1.bf16.msra.mxu0 0
    %6047 = vmatprep.subr.bf16.mxu0 0
    %6048 = vmatpush1.bf16.msra.mxu0 0
    %6049 = vmatprep.subr.bf16.mxu0 0
    %6050 = vmatpush1.bf16.msra.mxu0 0
    %6051 = vmatprep.subr.bf16.mxu0 0
    %6052 = vmatpush1.bf16.msra.mxu0 0
    %6053 = vmatprep.subr.bf16.mxu0 0
    %6054 = vmatpush1.bf16.msra.mxu0 0
    %6055 = vmatprep.subr.bf16.mxu0 0
    %6056 = vmatpush1.bf16.msra.mxu0 0
    %6057 = vmatprep.subr.bf16.mxu0 0
    %6058 = vmatpush1.bf16.msra.mxu0 0
    %6059 = vmatprep.subr.bf16.mxu0 0
    %6060 = vmatpush1.bf16.msra.mxu0 0
    %6061 = vmatprep.subr.bf16.mxu0 0
    %6062 = vmatpush1.bf16.msra.mxu0 0
    %6063 = vmatprep.subr.bf16.mxu0 0
    %6064 = vmatpush1.bf16.msra.mxu0 0
    %6065 = vmatprep.subr.bf16.mxu0 0
    %6066 = vmatpush1.bf16.msra.mxu0 0
    %6067 = vmatprep.subr.bf16.mxu0 0
    %6068 = vmatpush1.bf16.msra.mxu0 0
    %6069 = vmatprep.mubr.bf16.mxu0 0
    %6070 = vmatmul.mubr.bf16.gmra.mrb[0].mxu0 %v174
    %v6071 = vpop.f32.mrb[0].mxu0
    %v6072 = vadd.f32 %v6023, %v6071
    %v6073 = vpop.f32.mrb[0].mxu0
    %v6074 = vpop.f32.mrb[0].mxu0
    %v6075 = vadd.f32 %v6023, %v6074
    %v6076 = vpop.f32.mrb[0].mxu0
    %6077 = vmatprep.mubr.bf16.mxu0 0
    %6078 = vmatmul.mubr.bf16.gmra.mrb[0].mxu0 %v177
    %v6079 = vpop.f32.mrb[0].mxu0
    %v6080 = vadd.f32 %v6023, %v6079
    %v6081 = vpop.f32.mrb[0].mxu0
    %v6082 = vpop.f32.mrb[0].mxu0
    %v6083 = vadd.f32 %v6023, %v6082
    %v6084 = vpop.f32.mrb[0].mxu0
    %6085 = vdwg.mxu0
    %v6086 = vpack.c.bf16 %v5932, %v5932
    %v6087 = vpack.c.bf16 %v5935, %v5935
    %v6088 = vpack.c.bf16 %v6001, %v5998
    %v6089 = vpack.c.bf16 %v6009, %v6006
    %v6091 = vsel %vm304, %v6086, 0
    %v6094 = vsel %vm304, %v6088, 0
    %6096 = vmatprep.subr.bf16.mxu0 0
    %6097 = vmatpush1.bf16.xpose.msra.mxu0 %v6094
    %6098 = vmatprep.subr.bf16.mxu0 0
    %6099 = vmatpush1.bf16.xpose.msra.mxu0 0
    %6100 = vmatprep.subr.bf16.mxu0 0
    %6101 = vmatpush1.bf16.xpose.msra.mxu0 0
    %6102 = vmatprep.subr.bf16.mxu0 0
    %6103 = vmatpush1.bf16.xpose.msra.mxu0 0
    %6104 = vmatprep.subr.bf16.mxu0 0
    %6105 = vmatpush1.bf16.xpose.msra.mxu0 0
    %6106 = vmatprep.subr.bf16.mxu0 0
    %6107 = vmatpush1.bf16.xpose.msra.mxu0 0
    %6108 = vmatprep.subr.bf16.mxu0 0
    %6109 = vmatpush1.bf16.xpose.msra.mxu0 0
    %6110 = vmatprep.subr.bf16.mxu0 0
    %6111 = vmatpush1.bf16.xpose.msra.mxu0 0
    %6112 = vmatprep.subr.bf16.mxu0 0
    %6113 = vmatpush1.bf16.xpose.msra.mxu0 0
    %6114 = vmatprep.subr.bf16.mxu0 0
    %6115 = vmatpush1.bf16.xpose.msra.mxu0 0
    %6116 = vmatprep.subr.bf16.mxu0 0
    %6117 = vmatpush1.bf16.xpose.msra.mxu0 0
    %6118 = vmatprep.subr.bf16.mxu0 0
    %6119 = vmatpush1.bf16.xpose.msra.mxu0 0
    %6120 = vmatprep.subr.bf16.mxu0 0
    %6121 = vmatpush1.bf16.xpose.msra.mxu0 0
    %6122 = vmatprep.subr.bf16.mxu0 0
    %6123 = vmatpush1.bf16.xpose.msra.mxu0 0
    %6124 = vmatprep.subr.bf16.mxu0 0
    %6125 = vmatpush1.bf16.xpose.msra.mxu0 0
    %6126 = vmatprep.subr.bf16.mxu0 0
    %6127 = vmatpush1.bf16.xpose.msra.mxu0 0
    %6128 = vmatprep.mubr.bf16.mxu0 0
    %6129 = vmatmul.mubr.bf16.gmra.mrb[0].mxu0 %v6091
    %v6130 = vpop.f32.mrb[0].mxu0
    %v6131 = vadd.f32 0.0, %v6130
    %v6132 = vpop.f32.mrb[0].mxu0
    %v6133 = vpop.f32.mrb[0].mxu0
    %v6134 = vpop.f32.mrb[0].mxu0
    %6135 = vdwg.mxu0
    %v6137 = vsel %vm304, %v6087, 0
    %v6140 = vsel %vm304, %v6089, 0
    %6142 = vmatprep.subr.bf16.mxu0 0
    %6143 = vmatpush1.bf16.xpose.msra.mxu0 %v6140
    %6144 = vmatprep.subr.bf16.mxu0 0
    %6145 = vmatpush1.bf16.xpose.msra.mxu0 0
    %6146 = vmatprep.subr.bf16.mxu0 0
    %6147 = vmatpush1.bf16.xpose.msra.mxu0 0
    %6148 = vmatprep.subr.bf16.mxu0 0
    %6149 = vmatpush1.bf16.xpose.msra.mxu0 0
    %6150 = vmatprep.subr.bf16.mxu0 0
    %6151 = vmatpush1.bf16.xpose.msra.mxu0 0
    %6152 = vmatprep.subr.bf16.mxu0 0
    %6153 = vmatpush1.bf16.xpose.msra.mxu0 0
    %6154 = vmatprep.subr.bf16.mxu0 0
    %6155 = vmatpush1.bf16.xpose.msra.mxu0 0
    %6156 = vmatprep.subr.bf16.mxu0 0
    %6157 = vmatpush1.bf16.xpose.msra.mxu0 0
    %6158 = vmatprep.subr.bf16.mxu0 0
    %6159 = vmatpush1.bf16.xpose.msra.mxu0 0
    %6160 = vmatprep.subr.bf16.mxu0 0
    %6161 = vmatpush1.bf16.xpose.msra.mxu0 0
    %6162 = vmatprep.subr.bf16.mxu0 0
    %6163 = vmatpush1.bf16.xpose.msra.mxu0 0
    %6164 = vmatprep.subr.bf16.mxu0 0
    %6165 = vmatpush1.bf16.xpose.msra.mxu0 0
    %6166 = vmatprep.subr.bf16.mxu0 0
    %6167 = vmatpush1.bf16.xpose.msra.mxu0 0
    %6168 = vmatprep.subr.bf16.mxu0 0
    %6169 = vmatpush1.bf16.xpose.msra.mxu0 0
    %6170 = vmatprep.subr.bf16.mxu0 0
    %6171 = vmatpush1.bf16.xpose.msra.mxu0 0
    %6172 = vmatprep.subr.bf16.mxu0 0
    %6173 = vmatpush1.bf16.xpose.msra.mxu0 0
    %6174 = vmatprep.mubr.bf16.mxu0 0
    %6175 = vmatmul.mubr.bf16.gmra.mrb[0].mxu0 %v6137
    %v6176 = vpop.f32.mrb[0].mxu0
    %v6177 = vadd.f32 0.0, %v6176
    %v6178 = vpop.f32.mrb[0].mxu0
    %v6179 = vpop.f32.mrb[0].mxu0
    %v6180 = vpop.f32.mrb[0].mxu0
    %6181 = vdwg.mxu0
    %v6182 = vsel %vm397, %v6131, -inf
    %6183 = vmax.xlane.f32.xlu0 %v6182
    %v6184 = vpop.xlane.xlu0 %6183
    %v6185 = vsel %vm397, %v6177, -inf
    %6186 = vmax.xlane.f32.xlu0 %v6185
    %v6187 = vpop.xlane.xlu0 %6186
    %v6188 = vsub.f32 %v6131, %v6184
    %v6189 = vsub.f32 %v6177, %v6187
    %v6190 = vmul.f32 %v6188, 1.442695
    %v6191 = vpow.pop %v6190
    %v6192 = vmul.f32 %v6189, 1.442695
    %v6193 = vpow.pop %v6192
    %v6194 = vsel %vm397, %v6191, 0.0
    %6195 = vadd.xlane.f32.xlu0 %v6194
    %v6196 = vpop.xlane.xlu0 %6195
    %v6197 = vsel %vm397, %v6193, 0.0
    %6198 = vadd.xlane.f32.xlu0 %v6197
    %v6199 = vpop.xlane.xlu0 %6198
    %v6200 = vpack.c.bf16 %v6191, %v6191
    %v6201 = vpack.c.bf16 %v6193, %v6193
    %v6202 = vpack.c.bf16 %v6075, %v6072
    %v6203 = vpack.c.bf16 %v6083, %v6080
    %v6205 = vsel %vm397, %v6200, 0
    %6207 = vmatprep.subr.bf16.mxu0 0
    %6208 = vmatpush1.bf16.msra.mxu0 %v6202
    %6209 = vmatprep.subr.bf16.mxu0 0
    %6210 = vmatpush1.bf16.msra.mxu0 0
    %6211 = vmatprep.subr.bf16.mxu0 0
    %6212 = vmatpush1.bf16.msra.mxu0 0
    %6213 = vmatprep.subr.bf16.mxu0 0
    %6214 = vmatpush1.bf16.msra.mxu0 0
    %6215 = vmatprep.subr.bf16.mxu0 0
    %6216 = vmatpush1.bf16.msra.mxu0 0
    %6217 = vmatprep.subr.bf16.mxu0 0
    %6218 = vmatpush1.bf16.msra.mxu0 0
    %6219 = vmatprep.subr.bf16.mxu0 0
    %6220 = vmatpush1.bf16.msra.mxu0 0
    %6221 = vmatprep.subr.bf16.mxu0 0
    %6222 = vmatpush1.bf16.msra.mxu0 0
    %6223 = vmatprep.subr.bf16.mxu0 0
    %6224 = vmatpush1.bf16.msra.mxu0 0
    %6225 = vmatprep.subr.bf16.mxu0 0
    %6226 = vmatpush1.bf16.msra.mxu0 0
    %6227 = vmatprep.subr.bf16.mxu0 0
    %6228 = vmatpush1.bf16.msra.mxu0 0
    %6229 = vmatprep.subr.bf16.mxu0 0
    %6230 = vmatpush1.bf16.msra.mxu0 0
    %6231 = vmatprep.subr.bf16.mxu0 0
    %6232 = vmatpush1.bf16.msra.mxu0 0
    %6233 = vmatprep.subr.bf16.mxu0 0
    %6234 = vmatpush1.bf16.msra.mxu0 0
    %6235 = vmatprep.subr.bf16.mxu0 0
    %6236 = vmatpush1.bf16.msra.mxu0 0
    %6237 = vmatprep.subr.bf16.mxu0 0
    %6238 = vmatpush1.bf16.msra.mxu0 0
    %6239 = vmatprep.mubr.bf16.mxu0 0
    %6240 = vmatmul.mubr.bf16.gmra.mrb[0].mxu0 %v6205
    %v6241 = vpop.f32.mrb[0].mxu0
    %v6242 = vadd.f32 0.0, %v6241
    %v6243 = vpop.f32.mrb[0].mxu0
    %v6244 = vpop.f32.mrb[0].mxu0
    %v6245 = vpop.f32.mrb[0].mxu0
    %6246 = vdwg.mxu0
    %v6248 = vsel %vm397, %v6201, 0
    %6250 = vmatprep.subr.bf16.mxu0 0
    %6251 = vmatpush1.bf16.msra.mxu0 %v6203
    %6252 = vmatprep.subr.bf16.mxu0 0
    %6253 = vmatpush1.bf16.msra.mxu0 0
    %6254 = vmatprep.subr.bf16.mxu0 0
    %6255 = vmatpush1.bf16.msra.mxu0 0
    %6256 = vmatprep.subr.bf16.mxu0 0
    %6257 = vmatpush1.bf16.msra.mxu0 0
    %6258 = vmatprep.subr.bf16.mxu0 0
    %6259 = vmatpush1.bf16.msra.mxu0 0
    %6260 = vmatprep.subr.bf16.mxu0 0
    %6261 = vmatpush1.bf16.msra.mxu0 0
    %6262 = vmatprep.subr.bf16.mxu0 0
    %6263 = vmatpush1.bf16.msra.mxu0 0
    %6264 = vmatprep.subr.bf16.mxu0 0
    %6265 = vmatpush1.bf16.msra.mxu0 0
    %6266 = vmatprep.subr.bf16.mxu0 0
    %6267 = vmatpush1.bf16.msra.mxu0 0
    %6268 = vmatprep.subr.bf16.mxu0 0
    %6269 = vmatpush1.bf16.msra.mxu0 0
    %6270 = vmatprep.subr.bf16.mxu0 0
    %6271 = vmatpush1.bf16.msra.mxu0 0
    %6272 = vmatprep.subr.bf16.mxu0 0
    %6273 = vmatpush1.bf16.msra.mxu0 0
    %6274 = vmatprep.subr.bf16.mxu0 0
    %6275 = vmatpush1.bf16.msra.mxu0 0
    %6276 = vmatprep.subr.bf16.mxu0 0
    %6277 = vmatpush1.bf16.msra.mxu0 0
    %6278 = vmatprep.subr.bf16.mxu0 0
    %6279 = vmatpush1.bf16.msra.mxu0 0
    %6280 = vmatprep.subr.bf16.mxu0 0
    %6281 = vmatpush1.bf16.msra.mxu0 0
    %6282 = vmatprep.mubr.bf16.mxu0 0
    %6283 = vmatmul.mubr.bf16.gmra.mrb[0].mxu0 %v6248
    %v6284 = vpop.f32.mrb[0].mxu0
    %v6285 = vadd.f32 0.0, %v6284
    %v6286 = vpop.f32.mrb[0].mxu0
    %v6287 = vpop.f32.mrb[0].mxu0
    %v6288 = vpop.f32.mrb[0].mxu0
    %6289 = vdwg.mxu0
    %v6290 = vrcp.pop %v6196
    %v6291 = vrcp.pop %v6199
    %v6292 = vmul.f32 %v6242, %v6290
    %v6293 = vmul.f32 %v6285, %v6291
    %v6294 = vpack.c.bf16 %v6293, %v6292
    %s6295 = scalar_lea.vmem %s9, 44
    %v6296 = vld [vmem:[%s6295] sm:$0xf]
    %v6298 = vsel %vm304, %v6294, 0
    %v6301 = vsel %vm940, %v6296, 0
    %6303 = vmatprep.subr.bf16.mxu0 0
    %6304 = vmatpush1.bf16.msra.mxu0 %v6301
    %6305 = vmatprep.subr.bf16.mxu0 0
    %6306 = vmatpush1.bf16.msra.mxu0 0
    %6307 = vmatprep.subr.bf16.mxu0 0
    %6308 = vmatpush1.bf16.msra.mxu0 0
    %6309 = vmatprep.subr.bf16.mxu0 0
    %6310 = vmatpush1.bf16.msra.mxu0 0
    %6311 = vmatprep.subr.bf16.mxu0 0
    %6312 = vmatpush1.bf16.msra.mxu0 0
    %6313 = vmatprep.subr.bf16.mxu0 0
    %6314 = vmatpush1.bf16.msra.mxu0 0
    %6315 = vmatprep.subr.bf16.mxu0 0
    %6316 = vmatpush1.bf16.msra.mxu0 0
    %6317 = vmatprep.subr.bf16.mxu0 0
    %6318 = vmatpush1.bf16.msra.mxu0 0
    %6319 = vmatprep.subr.bf16.mxu0 0
    %6320 = vmatpush1.bf16.msra.mxu0 0
    %6321 = vmatprep.subr.bf16.mxu0 0
    %6322 = vmatpush1.bf16.msra.mxu0 0
    %6323 = vmatprep.subr.bf16.mxu0 0
    %6324 = vmatpush1.bf16.msra.mxu0 0
    %6325 = vmatprep.subr.bf16.mxu0 0
    %6326 = vmatpush1.bf16.msra.mxu0 0
    %6327 = vmatprep.subr.bf16.mxu0 0
    %6328 = vmatpush1.bf16.msra.mxu0 0
    %6329 = vmatprep.subr.bf16.mxu0 0
    %6330 = vmatpush1.bf16.msra.mxu0 0
    %6331 = vmatprep.subr.bf16.mxu0 0
    %6332 = vmatpush1.bf16.msra.mxu0 0
    %6333 = vmatprep.subr.bf16.mxu0 0
    %6334 = vmatpush1.bf16.msra.mxu0 0
    %6335 = vmatprep.mubr.bf16.mxu0 0
    %6336 = vmatmul.mubr.bf16.gmra.mrb[0].mxu0 %v6298
    %v6337 = vpop.f32.mrb[0].mxu0
    %v6338 = vadd.f32 0.0, %v6337
    %v6339 = vpop.f32.mrb[0].mxu0
    %v6340 = vpop.f32.mrb[0].mxu0
    %v6341 = vadd.f32 0.0, %v6340
    %v6342 = vpop.f32.mrb[0].mxu0
    %6343 = vdwg.mxu0
    %v6344 = vadd.f32 %v5870, %v6338
    %v6345 = vadd.f32 %v5871, %v6341
    %s6346 = scalar_lea.vmem %s10, 2
    %v6347 = vld [vmem:[%s6346] sm:$0x1]
    %v6349 = vlaneseq
    %v6350 = vshrl.u32 %v6349, 7
    %v6351 = vsub.s32 0, %v6350
    %v6352 = vrot.slane %v6347, %v6351
    %v6354 = vadd.f32 %v6344, %v6352
    %v6355 = vadd.f32 %v6345, %v6352
    %s6356 = sld [smem:[#allocation2 + $0x8]]
    %s6357 = sld [smem:[#allocation2 + $0x9]]
    %v6358 = vstv %s6356
    %v6359 = vmul.f32 %v6358, %v4444
    %v6360 = vmul.f32 %v6358, %v4445
    %v6361 = vstv %s6357
    %v6362 = vmul.f32 %v6361, %v6354
    %v6363 = vmul.f32 %v6361, %v6355
    %v6364 = vadd.f32 %v6359, %v6362
    %v6365 = vadd.f32 %v6360, %v6363
    %v6366 = vsel %vm105, %v6364, 0.0
    %6367 = vadd.xlane.f32.xlu0 %v6366
    %v6368 = vpop.xlane.xlu0 %6367
    %v6369 = vsel %vm105, %v6365, 0.0
    %6370 = vadd.xlane.f32.xlu0 %v6369
    %v6371 = vpop.xlane.xlu0 %6370
    %v6372 = vmul.f32 %v6368, %v2005
    %v6373 = vmul.f32 %v6371, %v2005
    %v6374 = vmul.f32 %v6364, %v6364
    %v6375 = vmul.f32 %v6365, %v6365
    %v6376 = vsel %vm105, %v6374, 0.0
    %6377 = vadd.xlane.f32.xlu0 %v6376
    %v6378 = vpop.xlane.xlu0 %6377
    %v6379 = vsel %vm105, %v6375, 0.0
    %6380 = vadd.xlane.f32.xlu0 %v6379
    %v6381 = vpop.xlane.xlu0 %6380
    %v6382 = vmul.f32 %v6378, %v2005
    %v6383 = vmul.f32 %v6381, %v2005
    %v6384 = vmul.f32 %v6372, %v6372
    %v6385 = vmul.f32 %v6373, %v6373
    %v6386 = vsub.f32 %v6382, %v6384
    %v6387 = vsub.f32 %v6383, %v6385
    %v6388 = vsub.f32 %v6364, %v6372
    %v6389 = vsub.f32 %v6365, %v6373
    %v6390 = vadd.f32 %v6386, 1e-12
    %v6391 = vadd.f32 %v6387, 1e-12
    %v6392 = vrsqrt.pop %v6390
    %v6393 = vrsqrt.pop %v6391
    %v6394 = vmul.f32 %v6388, %v6392
    %v6395 = vmul.f32 %v6389, %v6393
    %v6397 = vlaneseq
    %v6398 = vshrl.u32 %v6397, 7
    %v6399 = vsub.s32 0, %v6398
    %v6400 = vrot.slane %v4447, %v6399
    %v6402 = vmul.f32 %v6394, %v6400
    %v6403 = vmul.f32 %v6395, %v6400
    %v6405 = vlaneseq
    %v6406 = vshrl.u32 %v6405, 7
    %v6407 = vsub.s32 0, %v6406
    %v6408 = vrot.slane %v4449, %v6407
    %v6410 = vadd.f32 %v6402, %v6408
    %v6411 = vadd.f32 %v6403, %v6408
    %v6412 = vpack.c.bf16 %v6411, %v6410
    %s6413 = scalar_lea.vmem %s11, 32
    %v6414 = vld [vmem:[%s6413] sm:$0xf]
    %v6415 = vld [vmem:[%s6413 + $0x4] sm:$0xf]
    %v6416 = vld [vmem:[%s6413 + $0x8] sm:$0xf]
    %v6417 = vld [vmem:[%s6413 + $0xc] sm:$0xf]
    %s6418 = scalar_lea.vmem %s12, 2
    %v6419 = vld [vmem:[%s6418] sm:$0x1]
    %v6421 = vlaneseq
    %v6422 = vshrl.u32 %v6421, 7
    %v6423 = vsub.s32 0, %v6422
    %v6424 = vrot.slane %v6419, %v6423
    %v6430 = vunpack.c.l.b16 %v6414
    %v6431 = vunpack.c.l.b16 %v6415
    %v6432 = vunpack.c.l.b16 %v6416
    %v6433 = vunpack.c.l.b16 %v6417
    %v6434 = vpack.c.b16 %v6431, %v6430
    %v6435 = vpack.c.b16 %v6433, %v6432
    %v6439 = vsel %vm105, %v6412, 0
    %6441 = vmatprep.subr.bf16.mxu0 0
    %6442 = vmatpush1.bf16.msra.mxu0 %v6434
    %6443 = vmatprep.subr.bf16.mxu0 0
    %6444 = vmatpush1.bf16.msra.mxu0 %v6435
    %6445 = vmatprep.subr.bf16.mxu0 0
    %6446 = vmatpush1.bf16.msra.mxu0 0
    %6447 = vmatprep.subr.bf16.mxu0 0
    %6448 = vmatpush1.bf16.msra.mxu0 0
    %6449 = vmatprep.subr.bf16.mxu0 0
    %6450 = vmatpush1.bf16.msra.mxu0 0
    %6451 = vmatprep.subr.bf16.mxu0 0
    %6452 = vmatpush1.bf16.msra.mxu0 0
    %6453 = vmatprep.subr.bf16.mxu0 0
    %6454 = vmatpush1.bf16.msra.mxu0 0
    %6455 = vmatprep.subr.bf16.mxu0 0
    %6456 = vmatpush1.bf16.msra.mxu0 0
    %6457 = vmatprep.subr.bf16.mxu0 0
    %6458 = vmatpush1.bf16.msra.mxu0 0
    %6459 = vmatprep.subr.bf16.mxu0 0
    %6460 = vmatpush1.bf16.msra.mxu0 0
    %6461 = vmatprep.subr.bf16.mxu0 0
    %6462 = vmatpush1.bf16.msra.mxu0 0
    %6463 = vmatprep.subr.bf16.mxu0 0
    %6464 = vmatpush1.bf16.msra.mxu0 0
    %6465 = vmatprep.subr.bf16.mxu0 0
    %6466 = vmatpush1.bf16.msra.mxu0 0
    %6467 = vmatprep.subr.bf16.mxu0 0
    %6468 = vmatpush1.bf16.msra.mxu0 0
    %6469 = vmatprep.subr.bf16.mxu0 0
    %6470 = vmatpush1.bf16.msra.mxu0 0
    %6471 = vmatprep.subr.bf16.mxu0 0
    %6472 = vmatpush1.bf16.msra.mxu0 0
    %6473 = vmatprep.mubr.bf16.mxu0 0
    %6474 = vmatmul.mubr.bf16.gmra.mrb[0].mxu0 %v6439
    %v6475 = vpop.f32.mrb[0].mxu0
    %v6476 = vadd.f32 %v6424, %v6475
    %v6477 = vpop.f32.mrb[0].mxu0
    %v6478 = vpop.f32.mrb[0].mxu0
    %v6479 = vadd.f32 %v6424, %v6478
    %v6480 = vpop.f32.mrb[0].mxu0
    %6481 = vdwg.mxu0
    %v6482 = vmul.f32 %v6476, %v6476
    %v6483 = vmul.f32 %v6479, %v6479
    %v6484 = vmul.f32 %v6476, %v6482
    %v6485 = vmul.f32 %v6479, %v6483
    %v6486 = vmul.f32 %v6484, 0.044715
    %v6487 = vmul.f32 %v6485, 0.044715
    %v6488 = vadd.f32 %v6476, %v6486
    %v6489 = vadd.f32 %v6479, %v6487
    %v6490 = vmul.f32 %v6488, 0.7978846
    %v6491 = vmul.f32 %v6489, 0.7978846
    %v6492 = vtanh.pop %v6490
    %v6493 = vtanh.pop %v6491
    %v6494 = vadd.f32 %v6492, 1.0
    %v6495 = vadd.f32 %v6493, 1.0
    %v6496 = vmul.f32 %v6494, 0.5
    %v6497 = vmul.f32 %v6495, 0.5
    %v6498 = vmul.f32 %v6476, %v6496
    %v6499 = vmul.f32 %v6479, %v6497
    %v6500 = vpack.c.bf16 %v6499, %v6498
    %s6501 = scalar_lea.vmem %s13, 128
    %v6502 = vld [vmem:[%s6501] sm:$0xf]
    %v6503 = vld [vmem:[%s6501 + $0x4] sm:$0xf]
    %v6504 = vld [vmem:[%s6501 + $0x8] sm:$0xf]
    %v6505 = vld [vmem:[%s6501 + $0xc] sm:$0xf]
    %v6506 = vld [vmem:[%s6501 + $0x10] sm:$0xf]
    %v6507 = vld [vmem:[%s6501 + $0x14] sm:$0xf]
    %v6508 = vld [vmem:[%s6501 + $0x18] sm:$0xf]
    %v6509 = vld [vmem:[%s6501 + $0x1c] sm:$0xf]
    %v6510 = vld [vmem:[%s6501 + $0x20] sm:$0xf]
    %v6511 = vld [vmem:[%s6501 + $0x24] sm:$0xf]
    %v6512 = vld [vmem:[%s6501 + $0x28] sm:$0xf]
    %v6513 = vld [vmem:[%s6501 + $0x2c] sm:$0xf]
    %v6514 = vld [vmem:[%s6501 + $0x30] sm:$0xf]
    %v6515 = vld [vmem:[%s6501 + $0x34] sm:$0xf]
    %v6516 = vld [vmem:[%s6501 + $0x38] sm:$0xf]
    %v6517 = vld [vmem:[%s6501 + $0x3c] sm:$0xf]
    %s6518 = scalar_lea.vmem %s14, 2
    %v6519 = vld [vmem:[%s6518] sm:$0x1]
    %v6521 = vlaneseq
    %v6522 = vshrl.u32 %v6521, 7
    %v6523 = vsub.s32 0, %v6522
    %v6524 = vrot.slane %v6519, %v6523
    %v6542 = vunpack.c.l.b16 %v6502
    %v6543 = vunpack.c.l.b16 %v6503
    %v6544 = vunpack.c.l.b16 %v6504
    %v6545 = vunpack.c.l.b16 %v6505
    %v6546 = vunpack.c.l.b16 %v6506
    %v6547 = vunpack.c.l.b16 %v6507
    %v6548 = vunpack.c.l.b16 %v6508
    %v6549 = vunpack.c.l.b16 %v6509
    %v6550 = vunpack.c.l.b16 %v6510
    %v6551 = vunpack.c.l.b16 %v6511
    %v6552 = vunpack.c.l.b16 %v6512
    %v6553 = vunpack.c.l.b16 %v6513
    %v6554 = vunpack.c.l.b16 %v6514
    %v6555 = vunpack.c.l.b16 %v6515
    %v6556 = vunpack.c.l.b16 %v6516
    %v6557 = vunpack.c.l.b16 %v6517
    %v6558 = vpack.c.b16 %v6543, %v6542
    %v6559 = vpack.c.b16 %v6545, %v6544
    %v6560 = vpack.c.b16 %v6547, %v6546
    %v6561 = vpack.c.b16 %v6549, %v6548
    %v6562 = vpack.c.b16 %v6551, %v6550
    %v6563 = vpack.c.b16 %v6553, %v6552
    %v6564 = vpack.c.b16 %v6555, %v6554
    %v6565 = vpack.c.b16 %v6557, %v6556
    %6574 = vmatprep.subr.bf16.mxu0 0
    %6575 = vmatpush1.bf16.msra.mxu0 %v6558
    %6576 = vmatprep.subr.bf16.mxu0 0
    %6577 = vmatpush1.bf16.msra.mxu0 %v6559
    %6578 = vmatprep.subr.bf16.mxu0 0
    %6579 = vmatpush1.bf16.msra.mxu0 %v6560
    %6580 = vmatprep.subr.bf16.mxu0 0
    %6581 = vmatpush1.bf16.msra.mxu0 %v6561
    %6582 = vmatprep.subr.bf16.mxu0 0
    %6583 = vmatpush1.bf16.msra.mxu0 %v6562
    %6584 = vmatprep.subr.bf16.mxu0 0
    %6585 = vmatpush1.bf16.msra.mxu0 %v6563
    %6586 = vmatprep.subr.bf16.mxu0 0
    %6587 = vmatpush1.bf16.msra.mxu0 %v6564
    %6588 = vmatprep.subr.bf16.mxu0 0
    %6589 = vmatpush1.bf16.msra.mxu0 %v6565
    %6590 = vmatprep.subr.bf16.mxu0 0
    %6591 = vmatpush1.bf16.msra.mxu0 0
    %6592 = vmatprep.subr.bf16.mxu0 0
    %6593 = vmatpush1.bf16.msra.mxu0 0
    %6594 = vmatprep.subr.bf16.mxu0 0
    %6595 = vmatpush1.bf16.msra.mxu0 0
    %6596 = vmatprep.subr.bf16.mxu0 0
    %6597 = vmatpush1.bf16.msra.mxu0 0
    %6598 = vmatprep.subr.bf16.mxu0 0
    %6599 = vmatpush1.bf16.msra.mxu0 0
    %6600 = vmatprep.subr.bf16.mxu0 0
    %6601 = vmatpush1.bf16.msra.mxu0 0
    %6602 = vmatprep.subr.bf16.mxu0 0
    %6603 = vmatpush1.bf16.msra.mxu0 0
    %6604 = vmatprep.subr.bf16.mxu0 0
    %6605 = vmatpush1.bf16.msra.mxu0 0
    %6606 = vmatprep.mubr.bf16.mxu0 0
    %6607 = vmatmul.mubr.bf16.gmra.mrb[0].mxu0 %v6500
    %v6608 = vpop.f32.mrb[0].mxu0
    %v6609 = vadd.f32 %v6524, %v6608
    %v6610 = vpop.f32.mrb[0].mxu0
    %v6611 = vpop.f32.mrb[0].mxu0
    %v6612 = vadd.f32 %v6524, %v6611
    %v6613 = vpop.f32.mrb[0].mxu0
    %6614 = vdwg.mxu0
    %s6615 = sld [smem:[#allocation2 + $0xa]]
    %s6616 = sld [smem:[#allocation2 + $0xb]]
    %v6617 = vstv %s6615
    %v6618 = vmul.f32 %v6617, %v6410
    %v6619 = vmul.f32 %v6617, %v6411
    %v6620 = vstv %s6616
    %v6621 = vmul.f32 %v6620, %v6609
    %v6622 = vmul.f32 %v6620, %v6612
    %v6623 = vadd.f32 %v6618, %v6621
    %v6624 = vadd.f32 %v6619, %v6622
    %v6625 = vsel %vm105, %v6623, 0.0
    %6626 = vadd.xlane.f32.xlu0 %v6625
    %v6627 = vpop.xlane.xlu0 %6626
    %v6628 = vsel %vm105, %v6624, 0.0
    %6629 = vadd.xlane.f32.xlu0 %v6628
    %v6630 = vpop.xlane.xlu0 %6629
    %v6631 = vmul.f32 %v6627, %v2005
    %v6632 = vmul.f32 %v6630, %v2005
    %v6633 = vmul.f32 %v6623, %v6623
    %v6634 = vmul.f32 %v6624, %v6624
    %v6635 = vsel %vm105, %v6633, 0.0
    %6636 = vadd.xlane.f32.xlu0 %v6635
    %v6637 = vpop.xlane.xlu0 %6636
    %v6638 = vsel %vm105, %v6634, 0.0
    %6639 = vadd.xlane.f32.xlu0 %v6638
    %v6640 = vpop.xlane.xlu0 %6639
    %v6641 = vmul.f32 %v6637, %v2005
    %v6642 = vmul.f32 %v6640, %v2005
    %v6643 = vmul.f32 %v6631, %v6631
    %v6644 = vmul.f32 %v6632, %v6632
    %v6645 = vsub.f32 %v6641, %v6643
    %v6646 = vsub.f32 %v6642, %v6644
    %v6647 = vsub.f32 %v6623, %v6631
    %v6648 = vsub.f32 %v6624, %v6632
    %v6649 = vadd.f32 %v6645, 1e-12
    %v6650 = vadd.f32 %v6646, 1e-12
    %v6651 = vrsqrt.pop %v6649
    %v6652 = vrsqrt.pop %v6650
    %v6653 = vmul.f32 %v6647, %v6651
    %v6654 = vmul.f32 %v6648, %v6652
    %v6655 = vmul.f32 %v6653, %v6400
    %v6656 = vmul.f32 %v6654, %v6400
    %v6657 = vadd.f32 %v6655, %v6408
    %v6658 = vadd.f32 %v6656, %v6408
    %v6659 = vpack.c.bf16 %v6658, %v6657
    %s6660 = scalar_lea.vmem %s3, 192
    %v6661 = vld [vmem:[%s6660] sm:$0xf]
    %v6662 = vld [vmem:[%s6660 + $0x4] sm:$0xf]
    %v6663 = vld [vmem:[%s6660 + $0x8] sm:$0xf]
    %v6664 = vld [vmem:[%s6660 + $0xc] sm:$0xf]
    %s6665 = scalar_lea.vmem %s4, 12
    %v6666 = vld [vmem:[%s6665] sm:$0x1]
    %v6668 = vlaneseq
    %v6669 = vshrl.u32 %v6668, 7
    %v6670 = vsub.s32 0, %v6669
    %v6671 = vrot.slane %v6666, %v6670
    %v6677 = vunpack.c.l.b16 %v6661
    %v6678 = vunpack.c.l.b16 %v6662
    %v6679 = vunpack.c.l.b16 %v6663
    %v6680 = vunpack.c.l.b16 %v6664
    %v6681 = vpack.c.b16 %v6678, %v6677
    %v6682 = vpack.c.b16 %v6680, %v6679
    %v6686 = vsel %vm105, %v6659, 0
    %6688 = vmatprep.subr.bf16.mxu0 0
    %6689 = vmatpush1.bf16.msra.mxu0 %v6681
    %6690 = vmatprep.subr.bf16.mxu0 0
    %6691 = vmatpush1.bf16.msra.mxu0 %v6682
    %6692 = vmatprep.subr.bf16.mxu0 0
    %6693 = vmatpush1.bf16.msra.mxu0 0
    %6694 = vmatprep.subr.bf16.mxu0 0
    %6695 = vmatpush1.bf16.msra.mxu0 0
    %6696 = vmatprep.subr.bf16.mxu0 0
    %6697 = vmatpush1.bf16.msra.mxu0 0
    %6698 = vmatprep.subr.bf16.mxu0 0
    %6699 = vmatpush1.bf16.msra.mxu0 0
    %6700 = vmatprep.subr.bf16.mxu0 0
    %6701 = vmatpush1.bf16.msra.mxu0 0
    %6702 = vmatprep.subr.bf16.mxu0 0
    %6703 = vmatpush1.bf16.msra.mxu0 0
    %6704 = vmatprep.subr.bf16.mxu0 0
    %6705 = vmatpush1.bf16.msra.mxu0 0
    %6706 = vmatprep.subr.bf16.mxu0 0
    %6707 = vmatpush1.bf16.msra.mxu0 0
    %6708 = vmatprep.subr.bf16.mxu0 0
    %6709 = vmatpush1.bf16.msra.mxu0 0
    %6710 = vmatprep.subr.bf16.mxu0 0
    %6711 = vmatpush1.bf16.msra.mxu0 0
    %6712 = vmatprep.subr.bf16.mxu0 0
    %6713 = vmatpush1.bf16.msra.mxu0 0
    %6714 = vmatprep.subr.bf16.mxu0 0
    %6715 = vmatpush1.bf16.msra.mxu0 0
    %6716 = vmatprep.subr.bf16.mxu0 0
    %6717 = vmatpush1.bf16.msra.mxu0 0
    %6718 = vmatprep.subr.bf16.mxu0 0
    %6719 = vmatpush1.bf16.msra.mxu0 0
    %6720 = vmatprep.mubr.bf16.mxu0 0
    %6721 = vmatmul.mubr.bf16.gmra.mrb[0].mxu0 %v6686
    %v6722 = vpop.f32.mrb[0].mxu0
    %v6723 = vadd.f32 %v6671, %v6722
    %v6724 = vpop.f32.mrb[0].mxu0
    %v6725 = vpop.f32.mrb[0].mxu0
    %v6726 = vadd.f32 %v6671, %v6725
    %v6727 = vpop.f32.mrb[0].mxu0
    %6728 = vdwg.mxu0
    %s6729 = scalar_lea.vmem %s5, 192
    %v6730 = vld [vmem:[%s6729] sm:$0xf]
    %v6731 = vld [vmem:[%s6729 + $0x4] sm:$0xf]
    %v6732 = vld [vmem:[%s6729 + $0x8] sm:$0xf]
    %v6733 = vld [vmem:[%s6729 + $0xc] sm:$0xf]
    %s6734 = scalar_lea.vmem %s6, 12
    %v6735 = vld [vmem:[%s6734] sm:$0x1]
    %v6737 = vlaneseq
    %v6738 = vshrl.u32 %v6737, 7
    %v6739 = vsub.s32 0, %v6738
    %v6740 = vrot.slane %v6735, %v6739
    %v6746 = vunpack.c.l.b16 %v6730
    %v6747 = vunpack.c.l.b16 %v6731
    %v6748 = vunpack.c.l.b16 %v6732
    %v6749 = vunpack.c.l.b16 %v6733
    %v6750 = vpack.c.b16 %v6747, %v6746
    %v6751 = vpack.c.b16 %v6749, %v6748
    %6754 = vmatprep.subr.bf16.mxu0 0
    %6755 = vmatpush1.bf16.msra.mxu0 %v6750
    %6756 = vmatprep.subr.bf16.mxu0 0
    %6757 = vmatpush1.bf16.msra.mxu0 %v6751
    %6758 = vmatprep.subr.bf16.mxu0 0
    %6759 = vmatpush1.bf16.msra.mxu0 0
    %6760 = vmatprep.subr.bf16.mxu0 0
    %6761 = vmatpush1.bf16.msra.mxu0 0
    %6762 = vmatprep.subr.bf16.mxu0 0
    %6763 = vmatpush1.bf16.msra.mxu0 0
    %6764 = vmatprep.subr.bf16.mxu0 0
    %6765 = vmatpush1.bf16.msra.mxu0 0
    %6766 = vmatprep.subr.bf16.mxu0 0
    %6767 = vmatpush1.bf16.msra.mxu0 0
    %6768 = vmatprep.subr.bf16.mxu0 0
    %6769 = vmatpush1.bf16.msra.mxu0 0
    %6770 = vmatprep.subr.bf16.mxu0 0
    %6771 = vmatpush1.bf16.msra.mxu0 0
    %6772 = vmatprep.subr.bf16.mxu0 0
    %6773 = vmatpush1.bf16.msra.mxu0 0
    %6774 = vmatprep.subr.bf16.mxu0 0
    %6775 = vmatpush1.bf16.msra.mxu0 0
    %6776 = vmatprep.subr.bf16.mxu0 0
    %6777 = vmatpush1.bf16.msra.mxu0 0
    %6778 = vmatprep.subr.bf16.mxu0 0
    %6779 = vmatpush1.bf16.msra.mxu0 0
    %6780 = vmatprep.subr.bf16.mxu0 0
    %6781 = vmatpush1.bf16.msra.mxu0 0
    %6782 = vmatprep.subr.bf16.mxu0 0
    %6783 = vmatpush1.bf16.msra.mxu0 0
    %6784 = vmatprep.subr.bf16.mxu0 0
    %6785 = vmatpush1.bf16.msra.mxu0 0
    %6786 = vmatprep.mubr.bf16.mxu0 0
    %6787 = vmatmul.mubr.bf16.gmra.mrb[0].mxu0 %v6686
    %v6788 = vpop.f32.mrb[0].mxu0
    %v6789 = vadd.f32 %v6740, %v6788
    %v6790 = vpop.f32.mrb[0].mxu0
    %v6791 = vpop.f32.mrb[0].mxu0
    %v6792 = vadd.f32 %v6740, %v6791
    %v6793 = vpop.f32.mrb[0].mxu0
    %6794 = vdwg.mxu0
    %s6795 = scalar_lea.vmem %s7, 192
    %v6796 = vld [vmem:[%s6795] sm:$0xf]
    %v6797 = vld [vmem:[%s6795 + $0x4] sm:$0xf]
    %v6798 = vld [vmem:[%s6795 + $0x8] sm:$0xf]
    %v6799 = vld [vmem:[%s6795 + $0xc] sm:$0xf]
    %s6800 = scalar_lea.vmem %s8, 12
    %v6801 = vld [vmem:[%s6800] sm:$0x1]
    %v6803 = vlaneseq
    %v6804 = vshrl.u32 %v6803, 7
    %v6805 = vsub.s32 0, %v6804
    %v6806 = vrot.slane %v6801, %v6805
    %v6812 = vunpack.c.l.b16 %v6796
    %v6813 = vunpack.c.l.b16 %v6797
    %v6814 = vunpack.c.l.b16 %v6798
    %v6815 = vunpack.c.l.b16 %v6799
    %v6816 = vpack.c.b16 %v6813, %v6812
    %v6817 = vpack.c.b16 %v6815, %v6814
    %6820 = vmatprep.subr.bf16.mxu0 0
    %6821 = vmatpush1.bf16.msra.mxu0 %v6816
    %6822 = vmatprep.subr.bf16.mxu0 0
    %6823 = vmatpush1.bf16.msra.mxu0 %v6817
    %6824 = vmatprep.subr.bf16.mxu0 0
    %6825 = vmatpush1.bf16.msra.mxu0 0
    %6826 = vmatprep.subr.bf16.mxu0 0
    %6827 = vmatpush1.bf16.msra.mxu0 0
    %6828 = vmatprep.subr.bf16.mxu0 0
    %6829 = vmatpush1.bf16.msra.mxu0 0
    %6830 = vmatprep.subr.bf16.mxu0 0
    %6831 = vmatpush1.bf16.msra.mxu0 0
    %6832 = vmatprep.subr.bf16.mxu0 0
    %6833 = vmatpush1.bf16.msra.mxu0 0
    %6834 = vmatprep.subr.bf16.mxu0 0
    %6835 = vmatpush1.bf16.msra.mxu0 0
    %6836 = vmatprep.subr.bf16.mxu0 0
    %6837 = vmatpush1.bf16.msra.mxu0 0
    %6838 = vmatprep.subr.bf16.mxu0 0
    %6839 = vmatpush1.bf16.msra.mxu0 0
    %6840 = vmatprep.subr.bf16.mxu0 0
    %6841 = vmatpush1.bf16.msra.mxu0 0
    %6842 = vmatprep.subr.bf16.mxu0 0
    %6843 = vmatpush1.bf16.msra.mxu0 0
    %6844 = vmatprep.subr.bf16.mxu0 0
    %6845 = vmatpush1.bf16.msra.mxu0 0
    %6846 = vmatprep.subr.bf16.mxu0 0
    %6847 = vmatpush1.bf16.msra.mxu0 0
    %6848 = vmatprep.subr.bf16.mxu0 0
    %6849 = vmatpush1.bf16.msra.mxu0 0
    %6850 = vmatprep.subr.bf16.mxu0 0
    %6851 = vmatpush1.bf16.msra.mxu0 0
    %6852 = vmatprep.mubr.bf16.mxu0 0
    %6853 = vmatmul.mubr.bf16.gmra.mrb[0].mxu0 %v6686
    %v6854 = vpop.f32.mrb[0].mxu0
    %v6855 = vadd.f32 %v6806, %v6854
    %v6856 = vpop.f32.mrb[0].mxu0
    %v6857 = vpop.f32.mrb[0].mxu0
    %v6858 = vadd.f32 %v6806, %v6857
    %v6859 = vpop.f32.mrb[0].mxu0
    %6860 = vdwg.mxu0
    %v6861 = vpack.c.bf16 %v6723, %v6723
    %v6862 = vpack.c.bf16 %v6726, %v6726
    %v6863 = vpack.c.bf16 %v6789, %v6789
    %v6864 = vpack.c.bf16 %v6792, %v6792
    %v6866 = vsel %vm304, %v6861, 0
    %v6869 = vsel %vm304, %v6863, 0
    %6871 = vmatprep.subr.bf16.mxu0 0
    %6872 = vmatpush1.bf16.xpose.msra.mxu0 %v6869
    %6873 = vmatprep.subr.bf16.mxu0 0
    %6874 = vmatpush1.bf16.xpose.msra.mxu0 0
    %6875 = vmatprep.subr.bf16.mxu0 0
    %6876 = vmatpush1.bf16.xpose.msra.mxu0 0
    %6877 = vmatprep.subr.bf16.mxu0 0
    %6878 = vmatpush1.bf16.xpose.msra.mxu0 0
    %6879 = vmatprep.subr.bf16.mxu0 0
    %6880 = vmatpush1.bf16.xpose.msra.mxu0 0
    %6881 = vmatprep.subr.bf16.mxu0 0
    %6882 = vmatpush1.bf16.xpose.msra.mxu0 0
    %6883 = vmatprep.subr.bf16.mxu0 0
    %6884 = vmatpush1.bf16.xpose.msra.mxu0 0
    %6885 = vmatprep.subr.bf16.mxu0 0
    %6886 = vmatpush1.bf16.xpose.msra.mxu0 0
    %6887 = vmatprep.subr.bf16.mxu0 0
    %6888 = vmatpush1.bf16.xpose.msra.mxu0 0
    %6889 = vmatprep.subr.bf16.mxu0 0
    %6890 = vmatpush1.bf16.xpose.msra.mxu0 0
    %6891 = vmatprep.subr.bf16.mxu0 0
    %6892 = vmatpush1.bf16.xpose.msra.mxu0 0
    %6893 = vmatprep.subr.bf16.mxu0 0
    %6894 = vmatpush1.bf16.xpose.msra.mxu0 0
    %6895 = vmatprep.subr.bf16.mxu0 0
    %6896 = vmatpush1.bf16.xpose.msra.mxu0 0
    %6897 = vmatprep.subr.bf16.mxu0 0
    %6898 = vmatpush1.bf16.xpose.msra.mxu0 0
    %6899 = vmatprep.subr.bf16.mxu0 0
    %6900 = vmatpush1.bf16.xpose.msra.mxu0 0
    %6901 = vmatprep.subr.bf16.mxu0 0
    %6902 = vmatpush1.bf16.xpose.msra.mxu0 0
    %6903 = vmatprep.mubr.bf16.mxu0 0
    %6904 = vmatmul.mubr.bf16.gmra.mrb[0].mxu0 %v6866
    %v6905 = vpop.f32.mrb[0].mxu0
    %v6906 = vadd.f32 0.0, %v6905
    %v6907 = vpop.f32.mrb[0].mxu0
    %v6908 = vpop.f32.mrb[0].mxu0
    %v6909 = vpop.f32.mrb[0].mxu0
    %6910 = vdwg.mxu0
    %v6912 = vsel %vm304, %v6862, 0
    %v6915 = vsel %vm304, %v6864, 0
    %6917 = vmatprep.subr.bf16.mxu0 0
    %6918 = vmatpush1.bf16.xpose.msra.mxu0 %v6915
    %6919 = vmatprep.subr.bf16.mxu0 0
    %6920 = vmatpush1.bf16.xpose.msra.mxu0 0
    %6921 = vmatprep.subr.bf16.mxu0 0
    %6922 = vmatpush1.bf16.xpose.msra.mxu0 0
    %6923 = vmatprep.subr.bf16.mxu0 0
    %6924 = vmatpush1.bf16.xpose.msra.mxu0 0
    %6925 = vmatprep.subr.bf16.mxu0 0
    %6926 = vmatpush1.bf16.xpose.msra.mxu0 0
    %6927 = vmatprep.subr.bf16.mxu0 0
    %6928 = vmatpush1.bf16.xpose.msra.mxu0 0
    %6929 = vmatprep.subr.bf16.mxu0 0
    %6930 = vmatpush1.bf16.xpose.msra.mxu0 0
    %6931 = vmatprep.subr.bf16.mxu0 0
    %6932 = vmatpush1.bf16.xpose.msra.mxu0 0
    %6933 = vmatprep.subr.bf16.mxu0 0
    %6934 = vmatpush1.bf16.xpose.msra.mxu0 0
    %6935 = vmatprep.subr.bf16.mxu0 0
    %6936 = vmatpush1.bf16.xpose.msra.mxu0 0
    %6937 = vmatprep.subr.bf16.mxu0 0
    %6938 = vmatpush1.bf16.xpose.msra.mxu0 0
    %6939 = vmatprep.subr.bf16.mxu0 0
    %6940 = vmatpush1.bf16.xpose.msra.mxu0 0
    %6941 = vmatprep.subr.bf16.mxu0 0
    %6942 = vmatpush1.bf16.xpose.msra.mxu0 0
    %6943 = vmatprep.subr.bf16.mxu0 0
    %6944 = vmatpush1.bf16.xpose.msra.mxu0 0
    %6945 = vmatprep.subr.bf16.mxu0 0
    %6946 = vmatpush1.bf16.xpose.msra.mxu0 0
    %6947 = vmatprep.subr.bf16.mxu0 0
    %6948 = vmatpush1.bf16.xpose.msra.mxu0 0
    %6949 = vmatprep.mubr.bf16.mxu0 0
    %6950 = vmatmul.mubr.bf16.gmra.mrb[0].mxu0 %v6912
    %v6951 = vpop.f32.mrb[0].mxu0
    %v6952 = vadd.f32 0.0, %v6951
    %v6953 = vpop.f32.mrb[0].mxu0
    %v6954 = vpop.f32.mrb[0].mxu0
    %v6955 = vpop.f32.mrb[0].mxu0
    %6956 = vdwg.mxu0
    %v6957 = vsel %vm304, %v6906, -inf
    %6958 = vmax.xlane.f32.xlu0 %v6957
    %v6959 = vpop.xlane.xlu0 %6958
    %v6960 = vsel %vm304, %v6952, -inf
    %6961 = vmax.xlane.f32.xlu0 %v6960
    %v6962 = vpop.xlane.xlu0 %6961
    %v6963 = vsub.f32 %v6906, %v6959
    %v6964 = vsub.f32 %v6952, %v6962
    %v6965 = vmul.f32 %v6963, 1.442695
    %v6966 = vpow.pop %v6965
    %v6967 = vmul.f32 %v6964, 1.442695
    %v6968 = vpow.pop %v6967
    %v6969 = vsel %vm304, %v6966, 0.0
    %6970 = vadd.xlane.f32.xlu0 %v6969
    %v6971 = vpop.xlane.xlu0 %6970
    %v6972 = vsel %vm304, %v6968, 0.0
    %6973 = vadd.xlane.f32.xlu0 %v6972
    %v6974 = vpop.xlane.xlu0 %6973
    %v6975 = vpack.c.bf16 %v6966, %v6966
    %v6976 = vpack.c.bf16 %v6968, %v6968
    %v6977 = vpack.c.bf16 %v6855, %v6855
    %v6978 = vpack.c.bf16 %v6858, %v6858
    %v6980 = vsel %vm304, %v6975, 0
    %v6983 = vsel %vm940, %v6977, 0
    %6985 = vmatprep.subr.bf16.mxu0 0
    %6986 = vmatpush1.bf16.msra.mxu0 %v6983
    %6987 = vmatprep.subr.bf16.mxu0 0
    %6988 = vmatpush1.bf16.msra.mxu0 0
    %6989 = vmatprep.subr.bf16.mxu0 0
    %6990 = vmatpush1.bf16.msra.mxu0 0
    %6991 = vmatprep.subr.bf16.mxu0 0
    %6992 = vmatpush1.bf16.msra.mxu0 0
    %6993 = vmatprep.subr.bf16.mxu0 0
    %6994 = vmatpush1.bf16.msra.mxu0 0
    %6995 = vmatprep.subr.bf16.mxu0 0
    %6996 = vmatpush1.bf16.msra.mxu0 0
    %6997 = vmatprep.subr.bf16.mxu0 0
    %6998 = vmatpush1.bf16.msra.mxu0 0
    %6999 = vmatprep.subr.bf16.mxu0 0
    %7000 = vmatpush1.bf16.msra.mxu0 0
    %7001 = vmatprep.subr.bf16.mxu0 0
    %7002 = vmatpush1.bf16.msra.mxu0 0
    %7003 = vmatprep.subr.bf16.mxu0 0
    %7004 = vmatpush1.bf16.msra.mxu0 0
    %7005 = vmatprep.subr.bf16.mxu0 0
    %7006 = vmatpush1.bf16.msra.mxu0 0
    %7007 = vmatprep.subr.bf16.mxu0 0
    %7008 = vmatpush1.bf16.msra.mxu0 0
    %7009 = vmatprep.subr.bf16.mxu0 0
    %7010 = vmatpush1.bf16.msra.mxu0 0
    %7011 = vmatprep.subr.bf16.mxu0 0
    %7012 = vmatpush1.bf16.msra.mxu0 0
    %7013 = vmatprep.subr.bf16.mxu0 0
    %7014 = vmatpush1.bf16.msra.mxu0 0
    %7015 = vmatprep.subr.bf16.mxu0 0
    %7016 = vmatpush1.bf16.msra.mxu0 0
    %7017 = vmatprep.mubr.bf16.mxu0 0
    %7018 = vmatmul.mubr.bf16.gmra.mrb[0].mxu0 %v6980
    %v7019 = vpop.f32.mrb[0].mxu0
    %v7020 = vadd.f32 0.0, %v7019
    %v7021 = vpop.f32.mrb[0].mxu0
    %v7022 = vpop.f32.mrb[0].mxu0
    %v7023 = vpop.f32.mrb[0].mxu0
    %7024 = vdwg.mxu0
    %v7026 = vsel %vm304, %v6976, 0
    %v7029 = vsel %vm940, %v6978, 0
    %7031 = vmatprep.subr.bf16.mxu0 0
    %7032 = vmatpush1.bf16.msra.mxu0 %v7029
    %7033 = vmatprep.subr.bf16.mxu0 0
    %7034 = vmatpush1.bf16.msra.mxu0 0
    %7035 = vmatprep.subr.bf16.mxu0 0
    %7036 = vmatpush1.bf16.msra.mxu0 0
    %7037 = vmatprep.subr.bf16.mxu0 0
    %7038 = vmatpush1.bf16.msra.mxu0 0
    %7039 = vmatprep.subr.bf16.mxu0 0
    %7040 = vmatpush1.bf16.msra.mxu0 0
    %7041 = vmatprep.subr.bf16.mxu0 0
    %7042 = vmatpush1.bf16.msra.mxu0 0
    %7043 = vmatprep.subr.bf16.mxu0 0
    %7044 = vmatpush1.bf16.msra.mxu0 0
    %7045 = vmatprep.subr.bf16.mxu0 0
    %7046 = vmatpush1.bf16.msra.mxu0 0
    %7047 = vmatprep.subr.bf16.mxu0 0
    %7048 = vmatpush1.bf16.msra.mxu0 0
    %7049 = vmatprep.subr.bf16.mxu0 0
    %7050 = vmatpush1.bf16.msra.mxu0 0
    %7051 = vmatprep.subr.bf16.mxu0 0
    %7052 = vmatpush1.bf16.msra.mxu0 0
    %7053 = vmatprep.subr.bf16.mxu0 0
    %7054 = vmatpush1.bf16.msra.mxu0 0
    %7055 = vmatprep.subr.bf16.mxu0 0
    %7056 = vmatpush1.bf16.msra.mxu0 0
    %7057 = vmatprep.subr.bf16.mxu0 0
    %7058 = vmatpush1.bf16.msra.mxu0 0
    %7059 = vmatprep.subr.bf16.mxu0 0
    %7060 = vmatpush1.bf16.msra.mxu0 0
    %7061 = vmatprep.subr.bf16.mxu0 0
    %7062 = vmatpush1.bf16.msra.mxu0 0
    %7063 = vmatprep.mubr.bf16.mxu0 0
    %7064 = vmatmul.mubr.bf16.gmra.mrb[0].mxu0 %v7026
    %v7065 = vpop.f32.mrb[0].mxu0
    %v7066 = vadd.f32 0.0, %v7065
    %v7067 = vpop.f32.mrb[0].mxu0
    %v7068 = vpop.f32.mrb[0].mxu0
    %v7069 = vpop.f32.mrb[0].mxu0
    %7070 = vdwg.mxu0
    %v7071 = vrcp.pop %v6971
    %v7072 = vrcp.pop %v6974
    %v7073 = vmul.f32 %v7020, %v7071
    %v7074 = vmul.f32 %v7066, %v7072
    %v7075 = vpack.c.bf16 %v7074, %v7073
    %s7076 = scalar_lea.vmem %s9, 48
    %v7077 = vld [vmem:[%s7076] sm:$0xf]
    %s7078 = scalar_lea.vmem %s3, 208
    %v7079 = vld [vmem:[%s7078] sm:$0xf]
    %v7080 = vld [vmem:[%s7078 + $0x4] sm:$0xf]
    %v7081 = vld [vmem:[%s7078 + $0x8] sm:$0xf]
    %v7082 = vld [vmem:[%s7078 + $0xc] sm:$0xf]
    %s7083 = scalar_lea.vmem %s4, 13
    %v7084 = vld [vmem:[%s7083] sm:$0x1]
    %v7086 = vlaneseq
    %v7087 = vshrl.u32 %v7086, 7
    %v7088 = vsub.s32 0, %v7087
    %v7089 = vrot.slane %v7084, %v7088
    %v7095 = vunpack.c.l.b16 %v7079
    %v7096 = vunpack.c.l.b16 %v7080
    %v7097 = vunpack.c.l.b16 %v7081
    %v7098 = vunpack.c.l.b16 %v7082
    %v7099 = vpack.c.b16 %v7096, %v7095
    %v7100 = vpack.c.b16 %v7098, %v7097
    %7103 = vmatprep.subr.bf16.mxu0 0
    %7104 = vmatpush1.bf16.msra.mxu0 %v7099
    %7105 = vmatprep.subr.bf16.mxu0 0
    %7106 = vmatpush1.bf16.msra.mxu0 %v7100
    %7107 = vmatprep.subr.bf16.mxu0 0
    %7108 = vmatpush1.bf16.msra.mxu0 0
    %7109 = vmatprep.subr.bf16.mxu0 0
    %7110 = vmatpush1.bf16.msra.mxu0 0
    %7111 = vmatprep.subr.bf16.mxu0 0
    %7112 = vmatpush1.bf16.msra.mxu0 0
    %7113 = vmatprep.subr.bf16.mxu0 0
    %7114 = vmatpush1.bf16.msra.mxu0 0
    %7115 = vmatprep.subr.bf16.mxu0 0
    %7116 = vmatpush1.bf16.msra.mxu0 0
    %7117 = vmatprep.subr.bf16.mxu0 0
    %7118 = vmatpush1.bf16.msra.mxu0 0
    %7119 = vmatprep.subr.bf16.mxu0 0
    %7120 = vmatpush1.bf16.msra.mxu0 0
    %7121 = vmatprep.subr.bf16.mxu0 0
    %7122 = vmatpush1.bf16.msra.mxu0 0
    %7123 = vmatprep.subr.bf16.mxu0 0
    %7124 = vmatpush1.bf16.msra.mxu0 0
    %7125 = vmatprep.subr.bf16.mxu0 0
    %7126 = vmatpush1.bf16.msra.mxu0 0
    %7127 = vmatprep.subr.bf16.mxu0 0
    %7128 = vmatpush1.bf16.msra.mxu0 0
    %7129 = vmatprep.subr.bf16.mxu0 0
    %7130 = vmatpush1.bf16.msra.mxu0 0
    %7131 = vmatprep.subr.bf16.mxu0 0
    %7132 = vmatpush1.bf16.msra.mxu0 0
    %7133 = vmatprep.subr.bf16.mxu0 0
    %7134 = vmatpush1.bf16.msra.mxu0 0
    %7135 = vmatprep.mubr.bf16.mxu0 0
    %7136 = vmatmul.mubr.bf16.gmra.mrb[0].mxu0 %v6686
    %v7137 = vpop.f32.mrb[0].mxu0
    %v7138 = vadd.f32 %v7089, %v7137
    %v7139 = vpop.f32.mrb[0].mxu0
    %v7140 = vpop.f32.mrb[0].mxu0
    %v7141 = vadd.f32 %v7089, %v7140
    %v7142 = vpop.f32.mrb[0].mxu0
    %7143 = vdwg.mxu0
    %s7144 = scalar_lea.vmem %s5, 208
    %v7145 = vld [vmem:[%s7144] sm:$0xf]
    %v7146 = vld [vmem:[%s7144 + $0x4] sm:$0xf]
    %v7147 = vld [vmem:[%s7144 + $0x8] sm:$0xf]
    %v7148 = vld [vmem:[%s7144 + $0xc] sm:$0xf]
    %s7149 = scalar_lea.vmem %s6, 13
    %v7150 = vld [vmem:[%s7149] sm:$0x1]
    %v7152 = vlaneseq
    %v7153 = vshrl.u32 %v7152, 7
    %v7154 = vsub.s32 0, %v7153
    %v7155 = vrot.slane %v7150, %v7154
    %v7161 = vunpack.c.l.b16 %v7145
    %v7162 = vunpack.c.l.b16 %v7146
    %v7163 = vunpack.c.l.b16 %v7147
    %v7164 = vunpack.c.l.b16 %v7148
    %v7165 = vpack.c.b16 %v7162, %v7161
    %v7166 = vpack.c.b16 %v7164, %v7163
    %7169 = vmatprep.subr.bf16.mxu0 0
    %7170 = vmatpush1.bf16.msra.mxu0 %v7165
    %7171 = vmatprep.subr.bf16.mxu0 0
    %7172 = vmatpush1.bf16.msra.mxu0 %v7166
    %7173 = vmatprep.subr.bf16.mxu0 0
    %7174 = vmatpush1.bf16.msra.mxu0 0
    %7175 = vmatprep.subr.bf16.mxu0 0
    %7176 = vmatpush1.bf16.msra.mxu0 0
    %7177 = vmatprep.subr.bf16.mxu0 0
    %7178 = vmatpush1.bf16.msra.mxu0 0
    %7179 = vmatprep.subr.bf16.mxu0 0
    %7180 = vmatpush1.bf16.msra.mxu0 0
    %7181 = vmatprep.subr.bf16.mxu0 0
    %7182 = vmatpush1.bf16.msra.mxu0 0
    %7183 = vmatprep.subr.bf16.mxu0 0
    %7184 = vmatpush1.bf16.msra.mxu0 0
    %7185 = vmatprep.subr.bf16.mxu0 0
    %7186 = vmatpush1.bf16.msra.mxu0 0
    %7187 = vmatprep.subr.bf16.mxu0 0
    %7188 = vmatpush1.bf16.msra.mxu0 0
    %7189 = vmatprep.subr.bf16.mxu0 0
    %7190 = vmatpush1.bf16.msra.mxu0 0
    %7191 = vmatprep.subr.bf16.mxu0 0
    %7192 = vmatpush1.bf16.msra.mxu0 0
    %7193 = vmatprep.subr.bf16.mxu0 0
    %7194 = vmatpush1.bf16.msra.mxu0 0
    %7195 = vmatprep.subr.bf16.mxu0 0
    %7196 = vmatpush1.bf16.msra.mxu0 0
    %7197 = vmatprep.subr.bf16.mxu0 0
    %7198 = vmatpush1.bf16.msra.mxu0 0
    %7199 = vmatprep.subr.bf16.mxu0 0
    %7200 = vmatpush1.bf16.msra.mxu0 0
    %7201 = vmatprep.mubr.bf16.mxu0 0
    %7202 = vmatmul.mubr.bf16.gmra.mrb[0].mxu0 %v6686
    %v7203 = vpop.f32.mrb[0].mxu0
    %v7204 = vadd.f32 %v7155, %v7203
    %v7205 = vpop.f32.mrb[0].mxu0
    %v7206 = vpop.f32.mrb[0].mxu0
    %v7207 = vadd.f32 %v7155, %v7206
    %v7208 = vpop.f32.mrb[0].mxu0
    %7209 = vdwg.mxu0
    %s7210 = scalar_lea.vmem %s7, 208
    %v7211 = vld [vmem:[%s7210] sm:$0xf]
    %v7212 = vld [vmem:[%s7210 + $0x4] sm:$0xf]
    %v7213 = vld [vmem:[%s7210 + $0x8] sm:$0xf]
    %v7214 = vld [vmem:[%s7210 + $0xc] sm:$0xf]
    %s7215 = scalar_lea.vmem %s8, 13
    %v7216 = vld [vmem:[%s7215] sm:$0x1]
    %v7218 = vlaneseq
    %v7219 = vshrl.u32 %v7218, 7
    %v7220 = vsub.s32 0, %v7219
    %v7221 = vrot.slane %v7216, %v7220
    %v7227 = vunpack.c.l.b16 %v7211
    %v7228 = vunpack.c.l.b16 %v7212
    %v7229 = vunpack.c.l.b16 %v7213
    %v7230 = vunpack.c.l.b16 %v7214
    %v7231 = vpack.c.b16 %v7228, %v7227
    %v7232 = vpack.c.b16 %v7230, %v7229
    %7235 = vmatprep.subr.bf16.mxu0 0
    %7236 = vmatpush1.bf16.msra.mxu0 %v7231
    %7237 = vmatprep.subr.bf16.mxu0 0
    %7238 = vmatpush1.bf16.msra.mxu0 %v7232
    %7239 = vmatprep.subr.bf16.mxu0 0
    %7240 = vmatpush1.bf16.msra.mxu0 0
    %7241 = vmatprep.subr.bf16.mxu0 0
    %7242 = vmatpush1.bf16.msra.mxu0 0
    %7243 = vmatprep.subr.bf16.mxu0 0
    %7244 = vmatpush1.bf16.msra.mxu0 0
    %7245 = vmatprep.subr.bf16.mxu0 0
    %7246 = vmatpush1.bf16.msra.mxu0 0
    %7247 = vmatprep.subr.bf16.mxu0 0
    %7248 = vmatpush1.bf16.msra.mxu0 0
    %7249 = vmatprep.subr.bf16.mxu0 0
    %7250 = vmatpush1.bf16.msra.mxu0 0
    %7251 = vmatprep.subr.bf16.mxu0 0
    %7252 = vmatpush1.bf16.msra.mxu0 0
    %7253 = vmatprep.subr.bf16.mxu0 0
    %7254 = vmatpush1.bf16.msra.mxu0 0
    %7255 = vmatprep.subr.bf16.mxu0 0
    %7256 = vmatpush1.bf16.msra.mxu0 0
    %7257 = vmatprep.subr.bf16.mxu0 0
    %7258 = vmatpush1.bf16.msra.mxu0 0
    %7259 = vmatprep.subr.bf16.mxu0 0
    %7260 = vmatpush1.bf16.msra.mxu0 0
    %7261 = vmatprep.subr.bf16.mxu0 0
    %7262 = vmatpush1.bf16.msra.mxu0 0
    %7263 = vmatprep.subr.bf16.mxu0 0
    %7264 = vmatpush1.bf16.msra.mxu0 0
    %7265 = vmatprep.subr.bf16.mxu0 0
    %7266 = vmatpush1.bf16.msra.mxu0 0
    %7267 = vmatprep.mubr.bf16.mxu0 0
    %7268 = vmatmul.mubr.bf16.gmra.mrb[0].mxu0 %v6686
    %v7269 = vpop.f32.mrb[0].mxu0
    %v7270 = vadd.f32 %v7221, %v7269
    %v7271 = vpop.f32.mrb[0].mxu0
    %v7272 = vpop.f32.mrb[0].mxu0
    %v7273 = vadd.f32 %v7221, %v7272
    %v7274 = vpop.f32.mrb[0].mxu0
    %7275 = vdwg.mxu0
    %v7276 = vpack.c.bf16 %v7138, %v7138
    %v7277 = vpack.c.bf16 %v7141, %v7141
    %v7278 = vpack.c.bf16 %v7204, %v7204
    %v7279 = vpack.c.bf16 %v7207, %v7207
    %v7281 = vsel %vm304, %v7276, 0
    %v7284 = vsel %vm304, %v7278, 0
    %7286 = vmatprep.subr.bf16.mxu0 0
    %7287 = vmatpush1.bf16.xpose.msra.mxu0 %v7284
    %7288 = vmatprep.subr.bf16.mxu0 0
    %7289 = vmatpush1.bf16.xpose.msra.mxu0 0
    %7290 = vmatprep.subr.bf16.mxu0 0
    %7291 = vmatpush1.bf16.xpose.msra.mxu0 0
    %7292 = vmatprep.subr.bf16.mxu0 0
    %7293 = vmatpush1.bf16.xpose.msra.mxu0 0
    %7294 = vmatprep.subr.bf16.mxu0 0
    %7295 = vmatpush1.bf16.xpose.msra.mxu0 0
    %7296 = vmatprep.subr.bf16.mxu0 0
    %7297 = vmatpush1.bf16.xpose.msra.mxu0 0
    %7298 = vmatprep.subr.bf16.mxu0 0
    %7299 = vmatpush1.bf16.xpose.msra.mxu0 0
    %7300 = vmatprep.subr.bf16.mxu0 0
    %7301 = vmatpush1.bf16.xpose.msra.mxu0 0
    %7302 = vmatprep.subr.bf16.mxu0 0
    %7303 = vmatpush1.bf16.xpose.msra.mxu0 0
    %7304 = vmatprep.subr.bf16.mxu0 0
    %7305 = vmatpush1.bf16.xpose.msra.mxu0 0
    %7306 = vmatprep.subr.bf16.mxu0 0
    %7307 = vmatpush1.bf16.xpose.msra.mxu0 0
    %7308 = vmatprep.subr.bf16.mxu0 0
    %7309 = vmatpush1.bf16.xpose.msra.mxu0 0
    %7310 = vmatprep.subr.bf16.mxu0 0
    %7311 = vmatpush1.bf16.xpose.msra.mxu0 0
    %7312 = vmatprep.subr.bf16.mxu0 0
    %7313 = vmatpush1.bf16.xpose.msra.mxu0 0
    %7314 = vmatprep.subr.bf16.mxu0 0
    %7315 = vmatpush1.bf16.xpose.msra.mxu0 0
    %7316 = vmatprep.subr.bf16.mxu0 0
    %7317 = vmatpush1.bf16.xpose.msra.mxu0 0
    %7318 = vmatprep.mubr.bf16.mxu0 0
    %7319 = vmatmul.mubr.bf16.gmra.mrb[0].mxu0 %v7281
    %v7320 = vpop.f32.mrb[0].mxu0
    %v7321 = vadd.f32 0.0, %v7320
    %v7322 = vpop.f32.mrb[0].mxu0
    %v7323 = vpop.f32.mrb[0].mxu0
    %v7324 = vpop.f32.mrb[0].mxu0
    %7325 = vdwg.mxu0
    %v7327 = vsel %vm304, %v7277, 0
    %v7330 = vsel %vm304, %v7279, 0
    %7332 = vmatprep.subr.bf16.mxu0 0
    %7333 = vmatpush1.bf16.xpose.msra.mxu0 %v7330
    %7334 = vmatprep.subr.bf16.mxu0 0
    %7335 = vmatpush1.bf16.xpose.msra.mxu0 0
    %7336 = vmatprep.subr.bf16.mxu0 0
    %7337 = vmatpush1.bf16.xpose.msra.mxu0 0
    %7338 = vmatprep.subr.bf16.mxu0 0
    %7339 = vmatpush1.bf16.xpose.msra.mxu0 0
    %7340 = vmatprep.subr.bf16.mxu0 0
    %7341 = vmatpush1.bf16.xpose.msra.mxu0 0
    %7342 = vmatprep.subr.bf16.mxu0 0
    %7343 = vmatpush1.bf16.xpose.msra.mxu0 0
    %7344 = vmatprep.subr.bf16.mxu0 0
    %7345 = vmatpush1.bf16.xpose.msra.mxu0 0
    %7346 = vmatprep.subr.bf16.mxu0 0
    %7347 = vmatpush1.bf16.xpose.msra.mxu0 0
    %7348 = vmatprep.subr.bf16.mxu0 0
    %7349 = vmatpush1.bf16.xpose.msra.mxu0 0
    %7350 = vmatprep.subr.bf16.mxu0 0
    %7351 = vmatpush1.bf16.xpose.msra.mxu0 0
    %7352 = vmatprep.subr.bf16.mxu0 0
    %7353 = vmatpush1.bf16.xpose.msra.mxu0 0
    %7354 = vmatprep.subr.bf16.mxu0 0
    %7355 = vmatpush1.bf16.xpose.msra.mxu0 0
    %7356 = vmatprep.subr.bf16.mxu0 0
    %7357 = vmatpush1.bf16.xpose.msra.mxu0 0
    %7358 = vmatprep.subr.bf16.mxu0 0
    %7359 = vmatpush1.bf16.xpose.msra.mxu0 0
    %7360 = vmatprep.subr.bf16.mxu0 0
    %7361 = vmatpush1.bf16.xpose.msra.mxu0 0
    %7362 = vmatprep.subr.bf16.mxu0 0
    %7363 = vmatpush1.bf16.xpose.msra.mxu0 0
    %7364 = vmatprep.mubr.bf16.mxu0 0
    %7365 = vmatmul.mubr.bf16.gmra.mrb[0].mxu0 %v7327
    %v7366 = vpop.f32.mrb[0].mxu0
    %v7367 = vadd.f32 0.0, %v7366
    %v7368 = vpop.f32.mrb[0].mxu0
    %v7369 = vpop.f32.mrb[0].mxu0
    %v7370 = vpop.f32.mrb[0].mxu0
    %7371 = vdwg.mxu0
    %v7372 = vsel %vm304, %v7321, -inf
    %7373 = vmax.xlane.f32.xlu0 %v7372
    %v7374 = vpop.xlane.xlu0 %7373
    %v7375 = vsel %vm304, %v7367, -inf
    %7376 = vmax.xlane.f32.xlu0 %v7375
    %v7377 = vpop.xlane.xlu0 %7376
    %v7378 = vsub.f32 %v7321, %v7374
    %v7379 = vsub.f32 %v7367, %v7377
    %v7380 = vmul.f32 %v7378, 1.442695
    %v7381 = vpow.pop %v7380
    %v7382 = vmul.f32 %v7379, 1.442695
    %v7383 = vpow.pop %v7382
    %v7384 = vsel %vm304, %v7381, 0.0
    %7385 = vadd.xlane.f32.xlu0 %v7384
    %v7386 = vpop.xlane.xlu0 %7385
    %v7387 = vsel %vm304, %v7383, 0.0
    %7388 = vadd.xlane.f32.xlu0 %v7387
    %v7389 = vpop.xlane.xlu0 %7388
    %v7390 = vpack.c.bf16 %v7381, %v7381
    %v7391 = vpack.c.bf16 %v7383, %v7383
    %v7392 = vpack.c.bf16 %v7270, %v7270
    %v7393 = vpack.c.bf16 %v7273, %v7273
    %v7395 = vsel %vm304, %v7390, 0
    %v7398 = vsel %vm940, %v7392, 0
    %7400 = vmatprep.subr.bf16.mxu0 0
    %7401 = vmatpush1.bf16.msra.mxu0 %v7398
    %7402 = vmatprep.subr.bf16.mxu0 0
    %7403 = vmatpush1.bf16.msra.mxu0 0
    %7404 = vmatprep.subr.bf16.mxu0 0
    %7405 = vmatpush1.bf16.msra.mxu0 0
    %7406 = vmatprep.subr.bf16.mxu0 0
    %7407 = vmatpush1.bf16.msra.mxu0 0
    %7408 = vmatprep.subr.bf16.mxu0 0
    %7409 = vmatpush1.bf16.msra.mxu0 0
    %7410 = vmatprep.subr.bf16.mxu0 0
    %7411 = vmatpush1.bf16.msra.mxu0 0
    %7412 = vmatprep.subr.bf16.mxu0 0
    %7413 = vmatpush1.bf16.msra.mxu0 0
    %7414 = vmatprep.subr.bf16.mxu0 0
    %7415 = vmatpush1.bf16.msra.mxu0 0
    %7416 = vmatprep.subr.bf16.mxu0 0
    %7417 = vmatpush1.bf16.msra.mxu0 0
    %7418 = vmatprep.subr.bf16.mxu0 0
    %7419 = vmatpush1.bf16.msra.mxu0 0
    %7420 = vmatprep.subr.bf16.mxu0 0
    %7421 = vmatpush1.bf16.msra.mxu0 0
    %7422 = vmatprep.subr.bf16.mxu0 0
    %7423 = vmatpush1.bf16.msra.mxu0 0
    %7424 = vmatprep.subr.bf16.mxu0 0
    %7425 = vmatpush1.bf16.msra.mxu0 0
    %7426 = vmatprep.subr.bf16.mxu0 0
    %7427 = vmatpush1.bf16.msra.mxu0 0
    %7428 = vmatprep.subr.bf16.mxu0 0
    %7429 = vmatpush1.bf16.msra.mxu0 0
    %7430 = vmatprep.subr.bf16.mxu0 0
    %7431 = vmatpush1.bf16.msra.mxu0 0
    %7432 = vmatprep.mubr.bf16.mxu0 0
    %7433 = vmatmul.mubr.bf16.gmra.mrb[0].mxu0 %v7395
    %v7434 = vpop.f32.mrb[0].mxu0
    %v7435 = vadd.f32 0.0, %v7434
    %v7436 = vpop.f32.mrb[0].mxu0
    %v7437 = vpop.f32.mrb[0].mxu0
    %v7438 = vpop.f32.mrb[0].mxu0
    %7439 = vdwg.mxu0
    %v7441 = vsel %vm304, %v7391, 0
    %v7444 = vsel %vm940, %v7393, 0
    %7446 = vmatprep.subr.bf16.mxu0 0
    %7447 = vmatpush1.bf16.msra.mxu0 %v7444
    %7448 = vmatprep.subr.bf16.mxu0 0
    %7449 = vmatpush1.bf16.msra.mxu0 0
    %7450 = vmatprep.subr.bf16.mxu0 0
    %7451 = vmatpush1.bf16.msra.mxu0 0
    %7452 = vmatprep.subr.bf16.mxu0 0
    %7453 = vmatpush1.bf16.msra.mxu0 0
    %7454 = vmatprep.subr.bf16.mxu0 0
    %7455 = vmatpush1.bf16.msra.mxu0 0
    %7456 = vmatprep.subr.bf16.mxu0 0
    %7457 = vmatpush1.bf16.msra.mxu0 0
    %7458 = vmatprep.subr.bf16.mxu0 0
    %7459 = vmatpush1.bf16.msra.mxu0 0
    %7460 = vmatprep.subr.bf16.mxu0 0
    %7461 = vmatpush1.bf16.msra.mxu0 0
    %7462 = vmatprep.subr.bf16.mxu0 0
    %7463 = vmatpush1.bf16.msra.mxu0 0
    %7464 = vmatprep.subr.bf16.mxu0 0
    %7465 = vmatpush1.bf16.msra.mxu0 0
    %7466 = vmatprep.subr.bf16.mxu0 0
    %7467 = vmatpush1.bf16.msra.mxu0 0
    %7468 = vmatprep.subr.bf16.mxu0 0
    %7469 = vmatpush1.bf16.msra.mxu0 0
    %7470 = vmatprep.subr.bf16.mxu0 0
    %7471 = vmatpush1.bf16.msra.mxu0 0
    %7472 = vmatprep.subr.bf16.mxu0 0
    %7473 = vmatpush1.bf16.msra.mxu0 0
    %7474 = vmatprep.subr.bf16.mxu0 0
    %7475 = vmatpush1.bf16.msra.mxu0 0
    %7476 = vmatprep.subr.bf16.mxu0 0
    %7477 = vmatpush1.bf16.msra.mxu0 0
    %7478 = vmatprep.mubr.bf16.mxu0 0
    %7479 = vmatmul.mubr.bf16.gmra.mrb[0].mxu0 %v7441
    %v7480 = vpop.f32.mrb[0].mxu0
    %v7481 = vadd.f32 0.0, %v7480
    %v7482 = vpop.f32.mrb[0].mxu0
    %v7483 = vpop.f32.mrb[0].mxu0
    %v7484 = vpop.f32.mrb[0].mxu0
    %7485 = vdwg.mxu0
    %v7486 = vrcp.pop %v7386
    %v7487 = vrcp.pop %v7389
    %v7488 = vmul.f32 %v7435, %v7486
    %v7489 = vmul.f32 %v7481, %v7487
    %v7490 = vpack.c.bf16 %v7489, %v7488
    %s7491 = scalar_lea.vmem %s9, 52
    %v7492 = vld [vmem:[%s7491] sm:$0xf]
    %v7494 = vsel %vm304, %v7490, 0
    %v7497 = vsel %vm940, %v7492, 0
    %7499 = vmatprep.subr.bf16.mxu0 0
    %7500 = vmatpush1.bf16.msra.mxu0 %v7497
    %7501 = vmatprep.subr.bf16.mxu0 0
    %7502 = vmatpush1.bf16.msra.mxu0 0
    %7503 = vmatprep.subr.bf16.mxu0 0
    %7504 = vmatpush1.bf16.msra.mxu0 0
    %7505 = vmatprep.subr.bf16.mxu0 0
    %7506 = vmatpush1.bf16.msra.mxu0 0
    %7507 = vmatprep.subr.bf16.mxu0 0
    %7508 = vmatpush1.bf16.msra.mxu0 0
    %7509 = vmatprep.subr.bf16.mxu0 0
    %7510 = vmatpush1.bf16.msra.mxu0 0
    %7511 = vmatprep.subr.bf16.mxu0 0
    %7512 = vmatpush1.bf16.msra.mxu0 0
    %7513 = vmatprep.subr.bf16.mxu0 0
    %7514 = vmatpush1.bf16.msra.mxu0 0
    %7515 = vmatprep.subr.bf16.mxu0 0
    %7516 = vmatpush1.bf16.msra.mxu0 0
    %7517 = vmatprep.subr.bf16.mxu0 0
    %7518 = vmatpush1.bf16.msra.mxu0 0
    %7519 = vmatprep.subr.bf16.mxu0 0
    %7520 = vmatpush1.bf16.msra.mxu0 0
    %7521 = vmatprep.subr.bf16.mxu0 0
    %7522 = vmatpush1.bf16.msra.mxu0 0
    %7523 = vmatprep.subr.bf16.mxu0 0
    %7524 = vmatpush1.bf16.msra.mxu0 0
    %7525 = vmatprep.subr.bf16.mxu0 0
    %7526 = vmatpush1.bf16.msra.mxu0 0
    %7527 = vmatprep.subr.bf16.mxu0 0
    %7528 = vmatpush1.bf16.msra.mxu0 0
    %7529 = vmatprep.subr.bf16.mxu0 0
    %7530 = vmatpush1.bf16.msra.mxu0 0
    %7531 = vmatprep.mubr.bf16.mxu0 0
    %7532 = vmatmul.mubr.bf16.gmra.mrb[0].mxu0 %v7494
    %v7533 = vpop.f32.mrb[0].mxu0
    %v7534 = vadd.f32 0.0, %v7533
    %v7535 = vpop.f32.mrb[0].mxu0
    %v7536 = vpop.f32.mrb[0].mxu0
    %v7537 = vadd.f32 0.0, %v7536
    %v7538 = vpop.f32.mrb[0].mxu0
    %7539 = vdwg.mxu0
    %v7541 = vsel %vm304, %v7075, 0
    %v7544 = vsel %vm940, %v7077, 0
    %7546 = vmatprep.subr.bf16.mxu0 0
    %7547 = vmatpush1.bf16.msra.mxu0 %v7544
    %7548 = vmatprep.subr.bf16.mxu0 0
    %7549 = vmatpush1.bf16.msra.mxu0 0
    %7550 = vmatprep.subr.bf16.mxu0 0
    %7551 = vmatpush1.bf16.msra.mxu0 0
    %7552 = vmatprep.subr.bf16.mxu0 0
    %7553 = vmatpush1.bf16.msra.mxu0 0
    %7554 = vmatprep.subr.bf16.mxu0 0
    %7555 = vmatpush1.bf16.msra.mxu0 0
    %7556 = vmatprep.subr.bf16.mxu0 0
    %7557 = vmatpush1.bf16.msra.mxu0 0
    %7558 = vmatprep.subr.bf16.mxu0 0
    %7559 = vmatpush1.bf16.msra.mxu0 0
    %7560 = vmatprep.subr.bf16.mxu0 0
    %7561 = vmatpush1.bf16.msra.mxu0 0
    %7562 = vmatprep.subr.bf16.mxu0 0
    %7563 = vmatpush1.bf16.msra.mxu0 0
    %7564 = vmatprep.subr.bf16.mxu0 0
    %7565 = vmatpush1.bf16.msra.mxu0 0
    %7566 = vmatprep.subr.bf16.mxu0 0
    %7567 = vmatpush1.bf16.msra.mxu0 0
    %7568 = vmatprep.subr.bf16.mxu0 0
    %7569 = vmatpush1.bf16.msra.mxu0 0
    %7570 = vmatprep.subr.bf16.mxu0 0
    %7571 = vmatpush1.bf16.msra.mxu0 0
    %7572 = vmatprep.subr.bf16.mxu0 0
    %7573 = vmatpush1.bf16.msra.mxu0 0
    %7574 = vmatprep.subr.bf16.mxu0 0
    %7575 = vmatpush1.bf16.msra.mxu0 0
    %7576 = vmatprep.subr.bf16.mxu0 0
    %7577 = vmatpush1.bf16.msra.mxu0 0
    %7578 = vmatprep.mubr.bf16.mxu0 0
    %7579 = vmatmul.mubr.bf16.gmra.mrb[0].mxu0 %v7541
    %v7580 = vpop.f32.mrb[0].mxu0
    %v7581 = vadd.f32 %v7534, %v7580
    %v7582 = vpop.f32.mrb[0].mxu0
    %v7583 = vpop.f32.mrb[0].mxu0
    %v7584 = vadd.f32 %v7537, %v7583
    %v7585 = vpop.f32.mrb[0].mxu0
    %7586 = vdwg.mxu0
    %s7587 = scalar_lea.vmem %s3, 224
    %v7588 = vld [vmem:[%s7587] sm:$0xf]
    %v7589 = vld [vmem:[%s7587 + $0x4] sm:$0xf]
    %v7590 = vld [vmem:[%s7587 + $0x8] sm:$0xf]
    %v7591 = vld [vmem:[%s7587 + $0xc] sm:$0xf]
    %s7592 = scalar_lea.vmem %s4, 14
    %v7593 = vld [vmem:[%s7592] sm:$0x1]
    %v7595 = vlaneseq
    %v7596 = vshrl.u32 %v7595, 7
    %v7597 = vsub.s32 0, %v7596
    %v7598 = vrot.slane %v7593, %v7597
    %v7604 = vunpack.c.l.b16 %v7588
    %v7605 = vunpack.c.l.b16 %v7589
    %v7606 = vunpack.c.l.b16 %v7590
    %v7607 = vunpack.c.l.b16 %v7591
    %v7608 = vpack.c.b16 %v7605, %v7604
    %v7609 = vpack.c.b16 %v7607, %v7606
    %7612 = vmatprep.subr.bf16.mxu0 0
    %7613 = vmatpush1.bf16.msra.mxu0 %v7608
    %7614 = vmatprep.subr.bf16.mxu0 0
    %7615 = vmatpush1.bf16.msra.mxu0 %v7609
    %7616 = vmatprep.subr.bf16.mxu0 0
    %7617 = vmatpush1.bf16.msra.mxu0 0
    %7618 = vmatprep.subr.bf16.mxu0 0
    %7619 = vmatpush1.bf16.msra.mxu0 0
    %7620 = vmatprep.subr.bf16.mxu0 0
    %7621 = vmatpush1.bf16.msra.mxu0 0
    %7622 = vmatprep.subr.bf16.mxu0 0
    %7623 = vmatpush1.bf16.msra.mxu0 0
    %7624 = vmatprep.subr.bf16.mxu0 0
    %7625 = vmatpush1.bf16.msra.mxu0 0
    %7626 = vmatprep.subr.bf16.mxu0 0
    %7627 = vmatpush1.bf16.msra.mxu0 0
    %7628 = vmatprep.subr.bf16.mxu0 0
    %7629 = vmatpush1.bf16.msra.mxu0 0
    %7630 = vmatprep.subr.bf16.mxu0 0
    %7631 = vmatpush1.bf16.msra.mxu0 0
    %7632 = vmatprep.subr.bf16.mxu0 0
    %7633 = vmatpush1.bf16.msra.mxu0 0
    %7634 = vmatprep.subr.bf16.mxu0 0
    %7635 = vmatpush1.bf16.msra.mxu0 0
    %7636 = vmatprep.subr.bf16.mxu0 0
    %7637 = vmatpush1.bf16.msra.mxu0 0
    %7638 = vmatprep.subr.bf16.mxu0 0
    %7639 = vmatpush1.bf16.msra.mxu0 0
    %7640 = vmatprep.subr.bf16.mxu0 0
    %7641 = vmatpush1.bf16.msra.mxu0 0
    %7642 = vmatprep.subr.bf16.mxu0 0
    %7643 = vmatpush1.bf16.msra.mxu0 0
    %7644 = vmatprep.mubr.bf16.mxu0 0
    %7645 = vmatmul.mubr.bf16.gmra.mrb[0].mxu0 %v6686
    %v7646 = vpop.f32.mrb[0].mxu0
    %v7647 = vadd.f32 %v7598, %v7646
    %v7648 = vpop.f32.mrb[0].mxu0
    %v7649 = vpop.f32.mrb[0].mxu0
    %v7650 = vadd.f32 %v7598, %v7649
    %v7651 = vpop.f32.mrb[0].mxu0
    %7652 = vdwg.mxu0
    %s7653 = scalar_lea.vmem %s5, 224
    %v7654 = vld [vmem:[%s7653] sm:$0xf]
    %v7655 = vld [vmem:[%s7653 + $0x4] sm:$0xf]
    %v7656 = vld [vmem:[%s7653 + $0x8] sm:$0xf]
    %v7657 = vld [vmem:[%s7653 + $0xc] sm:$0xf]
    %s7658 = scalar_lea.vmem %s6, 14
    %v7659 = vld [vmem:[%s7658] sm:$0x1]
    %v7661 = vlaneseq
    %v7662 = vshrl.u32 %v7661, 7
    %v7663 = vsub.s32 0, %v7662
    %v7664 = vrot.slane %v7659, %v7663
    %v7670 = vunpack.c.l.b16 %v7654
    %v7671 = vunpack.c.l.b16 %v7655
    %v7672 = vunpack.c.l.b16 %v7656
    %v7673 = vunpack.c.l.b16 %v7657
    %v7674 = vpack.c.b16 %v7671, %v7670
    %v7675 = vpack.c.b16 %v7673, %v7672
    %7678 = vmatprep.subr.bf16.mxu0 0
    %7679 = vmatpush1.bf16.msra.mxu0 %v7674
    %7680 = vmatprep.subr.bf16.mxu0 0
    %7681 = vmatpush1.bf16.msra.mxu0 %v7675
    %7682 = vmatprep.subr.bf16.mxu0 0
    %7683 = vmatpush1.bf16.msra.mxu0 0
    %7684 = vmatprep.subr.bf16.mxu0 0
    %7685 = vmatpush1.bf16.msra.mxu0 0
    %7686 = vmatprep.subr.bf16.mxu0 0
    %7687 = vmatpush1.bf16.msra.mxu0 0
    %7688 = vmatprep.subr.bf16.mxu0 0
    %7689 = vmatpush1.bf16.msra.mxu0 0
    %7690 = vmatprep.subr.bf16.mxu0 0
    %7691 = vmatpush1.bf16.msra.mxu0 0
    %7692 = vmatprep.subr.bf16.mxu0 0
    %7693 = vmatpush1.bf16.msra.mxu0 0
    %7694 = vmatprep.subr.bf16.mxu0 0
    %7695 = vmatpush1.bf16.msra.mxu0 0
    %7696 = vmatprep.subr.bf16.mxu0 0
    %7697 = vmatpush1.bf16.msra.mxu0 0
    %7698 = vmatprep.subr.bf16.mxu0 0
    %7699 = vmatpush1.bf16.msra.mxu0 0
    %7700 = vmatprep.subr.bf16.mxu0 0
    %7701 = vmatpush1.bf16.msra.mxu0 0
    %7702 = vmatprep.subr.bf16.mxu0 0
    %7703 = vmatpush1.bf16.msra.mxu0 0
    %7704 = vmatprep.subr.bf16.mxu0 0
    %7705 = vmatpush1.bf16.msra.mxu0 0
    %7706 = vmatprep.subr.bf16.mxu0 0
    %7707 = vmatpush1.bf16.msra.mxu0 0
    %7708 = vmatprep.subr.bf16.mxu0 0
    %7709 = vmatpush1.bf16.msra.mxu0 0
    %7710 = vmatprep.mubr.bf16.mxu0 0
    %7711 = vmatmul.mubr.bf16.gmra.mrb[0].mxu0 %v6686
    %v7712 = vpop.f32.mrb[0].mxu0
    %v7713 = vadd.f32 %v7664, %v7712
    %v7714 = vpop.f32.mrb[0].mxu0
    %v7715 = vpop.f32.mrb[0].mxu0
    %v7716 = vadd.f32 %v7664, %v7715
    %v7717 = vpop.f32.mrb[0].mxu0
    %7718 = vdwg.mxu0
    %s7719 = scalar_lea.vmem %s7, 224
    %v7720 = vld [vmem:[%s7719] sm:$0xf]
    %v7721 = vld [vmem:[%s7719 + $0x4] sm:$0xf]
    %v7722 = vld [vmem:[%s7719 + $0x8] sm:$0xf]
    %v7723 = vld [vmem:[%s7719 + $0xc] sm:$0xf]
    %s7724 = scalar_lea.vmem %s8, 14
    %v7725 = vld [vmem:[%s7724] sm:$0x1]
    %v7727 = vlaneseq
    %v7728 = vshrl.u32 %v7727, 7
    %v7729 = vsub.s32 0, %v7728
    %v7730 = vrot.slane %v7725, %v7729
    %v7736 = vunpack.c.l.b16 %v7720
    %v7737 = vunpack.c.l.b16 %v7721
    %v7738 = vunpack.c.l.b16 %v7722
    %v7739 = vunpack.c.l.b16 %v7723
    %v7740 = vpack.c.b16 %v7737, %v7736
    %v7741 = vpack.c.b16 %v7739, %v7738
    %7744 = vmatprep.subr.bf16.mxu0 0
    %7745 = vmatpush1.bf16.msra.mxu0 %v7740
    %7746 = vmatprep.subr.bf16.mxu0 0
    %7747 = vmatpush1.bf16.msra.mxu0 %v7741
    %7748 = vmatprep.subr.bf16.mxu0 0
    %7749 = vmatpush1.bf16.msra.mxu0 0
    %7750 = vmatprep.subr.bf16.mxu0 0
    %7751 = vmatpush1.bf16.msra.mxu0 0
    %7752 = vmatprep.subr.bf16.mxu0 0
    %7753 = vmatpush1.bf16.msra.mxu0 0
    %7754 = vmatprep.subr.bf16.mxu0 0
    %7755 = vmatpush1.bf16.msra.mxu0 0
    %7756 = vmatprep.subr.bf16.mxu0 0
    %7757 = vmatpush1.bf16.msra.mxu0 0
    %7758 = vmatprep.subr.bf16.mxu0 0
    %7759 = vmatpush1.bf16.msra.mxu0 0
    %7760 = vmatprep.subr.bf16.mxu0 0
    %7761 = vmatpush1.bf16.msra.mxu0 0
    %7762 = vmatprep.subr.bf16.mxu0 0
    %7763 = vmatpush1.bf16.msra.mxu0 0
    %7764 = vmatprep.subr.bf16.mxu0 0
    %7765 = vmatpush1.bf16.msra.mxu0 0
    %7766 = vmatprep.subr.bf16.mxu0 0
    %7767 = vmatpush1.bf16.msra.mxu0 0
    %7768 = vmatprep.subr.bf16.mxu0 0
    %7769 = vmatpush1.bf16.msra.mxu0 0
    %7770 = vmatprep.subr.bf16.mxu0 0
    %7771 = vmatpush1.bf16.msra.mxu0 0
    %7772 = vmatprep.subr.bf16.mxu0 0
    %7773 = vmatpush1.bf16.msra.mxu0 0
    %7774 = vmatprep.subr.bf16.mxu0 0
    %7775 = vmatpush1.bf16.msra.mxu0 0
    %7776 = vmatprep.mubr.bf16.mxu0 0
    %7777 = vmatmul.mubr.bf16.gmra.mrb[0].mxu0 %v6686
    %v7778 = vpop.f32.mrb[0].mxu0
    %v7779 = vadd.f32 %v7730, %v7778
    %v7780 = vpop.f32.mrb[0].mxu0
    %v7781 = vpop.f32.mrb[0].mxu0
    %v7782 = vadd.f32 %v7730, %v7781
    %v7783 = vpop.f32.mrb[0].mxu0
    %7784 = vdwg.mxu0
    %v7785 = vpack.c.bf16 %v7647, %v7647
    %v7786 = vpack.c.bf16 %v7650, %v7650
    %v7787 = vpack.c.bf16 %v7713, %v7713
    %v7788 = vpack.c.bf16 %v7716, %v7716
    %v7790 = vsel %vm304, %v7785, 0
    %v7793 = vsel %vm304, %v7787, 0
    %7795 = vmatprep.subr.bf16.mxu0 0
    %7796 = vmatpush1.bf16.xpose.msra.mxu0 %v7793
    %7797 = vmatprep.subr.bf16.mxu0 0
    %7798 = vmatpush1.bf16.xpose.msra.mxu0 0
    %7799 = vmatprep.subr.bf16.mxu0 0
    %7800 = vmatpush1.bf16.xpose.msra.mxu0 0
    %7801 = vmatprep.subr.bf16.mxu0 0
    %7802 = vmatpush1.bf16.xpose.msra.mxu0 0
    %7803 = vmatprep.subr.bf16.mxu0 0
    %7804 = vmatpush1.bf16.xpose.msra.mxu0 0
    %7805 = vmatprep.subr.bf16.mxu0 0
    %7806 = vmatpush1.bf16.xpose.msra.mxu0 0
    %7807 = vmatprep.subr.bf16.mxu0 0
    %7808 = vmatpush1.bf16.xpose.msra.mxu0 0
    %7809 = vmatprep.subr.bf16.mxu0 0
    %7810 = vmatpush1.bf16.xpose.msra.mxu0 0
    %7811 = vmatprep.subr.bf16.mxu0 0
    %7812 = vmatpush1.bf16.xpose.msra.mxu0 0
    %7813 = vmatprep.subr.bf16.mxu0 0
    %7814 = vmatpush1.bf16.xpose.msra.mxu0 0
    %7815 = vmatprep.subr.bf16.mxu0 0
    %7816 = vmatpush1.bf16.xpose.msra.mxu0 0
    %7817 = vmatprep.subr.bf16.mxu0 0
    %7818 = vmatpush1.bf16.xpose.msra.mxu0 0
    %7819 = vmatprep.subr.bf16.mxu0 0
    %7820 = vmatpush1.bf16.xpose.msra.mxu0 0
    %7821 = vmatprep.subr.bf16.mxu0 0
    %7822 = vmatpush1.bf16.xpose.msra.mxu0 0
    %7823 = vmatprep.subr.bf16.mxu0 0
    %7824 = vmatpush1.bf16.xpose.msra.mxu0 0
    %7825 = vmatprep.subr.bf16.mxu0 0
    %7826 = vmatpush1.bf16.xpose.msra.mxu0 0
    %7827 = vmatprep.mubr.bf16.mxu0 0
    %7828 = vmatmul.mubr.bf16.gmra.mrb[0].mxu0 %v7790
    %v7829 = vpop.f32.mrb[0].mxu0
    %v7830 = vadd.f32 0.0, %v7829
    %v7831 = vpop.f32.mrb[0].mxu0
    %v7832 = vpop.f32.mrb[0].mxu0
    %v7833 = vpop.f32.mrb[0].mxu0
    %7834 = vdwg.mxu0
    %v7836 = vsel %vm304, %v7786, 0
    %v7839 = vsel %vm304, %v7788, 0
    %7841 = vmatprep.subr.bf16.mxu0 0
    %7842 = vmatpush1.bf16.xpose.msra.mxu0 %v7839
    %7843 = vmatprep.subr.bf16.mxu0 0
    %7844 = vmatpush1.bf16.xpose.msra.mxu0 0
    %7845 = vmatprep.subr.bf16.mxu0 0
    %7846 = vmatpush1.bf16.xpose.msra.mxu0 0
    %7847 = vmatprep.subr.bf16.mxu0 0
    %7848 = vmatpush1.bf16.xpose.msra.mxu0 0
    %7849 = vmatprep.subr.bf16.mxu0 0
    %7850 = vmatpush1.bf16.xpose.msra.mxu0 0
    %7851 = vmatprep.subr.bf16.mxu0 0
    %7852 = vmatpush1.bf16.xpose.msra.mxu0 0
    %7853 = vmatprep.subr.bf16.mxu0 0
    %7854 = vmatpush1.bf16.xpose.msra.mxu0 0
    %7855 = vmatprep.subr.bf16.mxu0 0
    %7856 = vmatpush1.bf16.xpose.msra.mxu0 0
    %7857 = vmatprep.subr.bf16.mxu0 0
    %7858 = vmatpush1.bf16.xpose.msra.mxu0 0
    %7859 = vmatprep.subr.bf16.mxu0 0
    %7860 = vmatpush1.bf16.xpose.msra.mxu0 0
    %7861 = vmatprep.subr.bf16.mxu0 0
    %7862 = vmatpush1.bf16.xpose.msra.mxu0 0
    %7863 = vmatprep.subr.bf16.mxu0 0
    %7864 = vmatpush1.bf16.xpose.msra.mxu0 0
    %7865 = vmatprep.subr.bf16.mxu0 0
    %7866 = vmatpush1.bf16.xpose.msra.mxu0 0
    %7867 = vmatprep.subr.bf16.mxu0 0
    %7868 = vmatpush1.bf16.xpose.msra.mxu0 0
    %7869 = vmatprep.subr.bf16.mxu0 0
    %7870 = vmatpush1.bf16.xpose.msra.mxu0 0
    %7871 = vmatprep.subr.bf16.mxu0 0
    %7872 = vmatpush1.bf16.xpose.msra.mxu0 0
    %7873 = vmatprep.mubr.bf16.mxu0 0
    %7874 = vmatmul.mubr.bf16.gmra.mrb[0].mxu0 %v7836
    %v7875 = vpop.f32.mrb[0].mxu0
    %v7876 = vadd.f32 0.0, %v7875
    %v7877 = vpop.f32.mrb[0].mxu0
    %v7878 = vpop.f32.mrb[0].mxu0
    %v7879 = vpop.f32.mrb[0].mxu0
    %7880 = vdwg.mxu0
    %v7881 = vsel %vm304, %v7830, -inf
    %7882 = vmax.xlane.f32.xlu0 %v7881
    %v7883 = vpop.xlane.xlu0 %7882
    %v7884 = vsel %vm304, %v7876, -inf
    %7885 = vmax.xlane.f32.xlu0 %v7884
    %v7886 = vpop.xlane.xlu0 %7885
    %v7887 = vsub.f32 %v7830, %v7883
    %v7888 = vsub.f32 %v7876, %v7886
    %v7889 = vmul.f32 %v7887, 1.442695
    %v7890 = vpow.pop %v7889
    %v7891 = vmul.f32 %v7888, 1.442695
    %v7892 = vpow.pop %v7891
    %v7893 = vsel %vm304, %v7890, 0.0
    %7894 = vadd.xlane.f32.xlu0 %v7893
    %v7895 = vpop.xlane.xlu0 %7894
    %v7896 = vsel %vm304, %v7892, 0.0
    %7897 = vadd.xlane.f32.xlu0 %v7896
    %v7898 = vpop.xlane.xlu0 %7897
    %v7899 = vpack.c.bf16 %v7890, %v7890
    %v7900 = vpack.c.bf16 %v7892, %v7892
    %v7901 = vpack.c.bf16 %v7779, %v7779
    %v7902 = vpack.c.bf16 %v7782, %v7782
    %v7904 = vsel %vm304, %v7899, 0
    %v7907 = vsel %vm940, %v7901, 0
    %7909 = vmatprep.subr.bf16.mxu0 0
    %7910 = vmatpush1.bf16.msra.mxu0 %v7907
    %7911 = vmatprep.subr.bf16.mxu0 0
    %7912 = vmatpush1.bf16.msra.mxu0 0
    %7913 = vmatprep.subr.bf16.mxu0 0
    %7914 = vmatpush1.bf16.msra.mxu0 0
    %7915 = vmatprep.subr.bf16.mxu0 0
    %7916 = vmatpush1.bf16.msra.mxu0 0
    %7917 = vmatprep.subr.bf16.mxu0 0
    %7918 = vmatpush1.bf16.msra.mxu0 0
    %7919 = vmatprep.subr.bf16.mxu0 0
    %7920 = vmatpush1.bf16.msra.mxu0 0
    %7921 = vmatprep.subr.bf16.mxu0 0
    %7922 = vmatpush1.bf16.msra.mxu0 0
    %7923 = vmatprep.subr.bf16.mxu0 0
    %7924 = vmatpush1.bf16.msra.mxu0 0
    %7925 = vmatprep.subr.bf16.mxu0 0
    %7926 = vmatpush1.bf16.msra.mxu0 0
    %7927 = vmatprep.subr.bf16.mxu0 0
    %7928 = vmatpush1.bf16.msra.mxu0 0
    %7929 = vmatprep.subr.bf16.mxu0 0
    %7930 = vmatpush1.bf16.msra.mxu0 0
    %7931 = vmatprep.subr.bf16.mxu0 0
    %7932 = vmatpush1.bf16.msra.mxu0 0
    %7933 = vmatprep.subr.bf16.mxu0 0
    %7934 = vmatpush1.bf16.msra.mxu0 0
    %7935 = vmatprep.subr.bf16.mxu0 0
    %7936 = vmatpush1.bf16.msra.mxu0 0
    %7937 = vmatprep.subr.bf16.mxu0 0
    %7938 = vmatpush1.bf16.msra.mxu0 0
    %7939 = vmatprep.subr.bf16.mxu0 0
    %7940 = vmatpush1.bf16.msra.mxu0 0
    %7941 = vmatprep.mubr.bf16.mxu0 0
    %7942 = vmatmul.mubr.bf16.gmra.mrb[0].mxu0 %v7904
    %v7943 = vpop.f32.mrb[0].mxu0
    %v7944 = vadd.f32 0.0, %v7943
    %v7945 = vpop.f32.mrb[0].mxu0
    %v7946 = vpop.f32.mrb[0].mxu0
    %v7947 = vpop.f32.mrb[0].mxu0
    %7948 = vdwg.mxu0
    %v7950 = vsel %vm304, %v7900, 0
    %v7953 = vsel %vm940, %v7902, 0
    %7955 = vmatprep.subr.bf16.mxu0 0
    %7956 = vmatpush1.bf16.msra.mxu0 %v7953
    %7957 = vmatprep.subr.bf16.mxu0 0
    %7958 = vmatpush1.bf16.msra.mxu0 0
    %7959 = vmatprep.subr.bf16.mxu0 0
    %7960 = vmatpush1.bf16.msra.mxu0 0
    %7961 = vmatprep.subr.bf16.mxu0 0
    %7962 = vmatpush1.bf16.msra.mxu0 0
    %7963 = vmatprep.subr.bf16.mxu0 0
    %7964 = vmatpush1.bf16.msra.mxu0 0
    %7965 = vmatprep.subr.bf16.mxu0 0
    %7966 = vmatpush1.bf16.msra.mxu0 0
    %7967 = vmatprep.subr.bf16.mxu0 0
    %7968 = vmatpush1.bf16.msra.mxu0 0
    %7969 = vmatprep.subr.bf16.mxu0 0
    %7970 = vmatpush1.bf16.msra.mxu0 0
    %7971 = vmatprep.subr.bf16.mxu0 0
    %7972 = vmatpush1.bf16.msra.mxu0 0
    %7973 = vmatprep.subr.bf16.mxu0 0
    %7974 = vmatpush1.bf16.msra.mxu0 0
    %7975 = vmatprep.subr.bf16.mxu0 0
    %7976 = vmatpush1.bf16.msra.mxu0 0
    %7977 = vmatprep.subr.bf16.mxu0 0
    %7978 = vmatpush1.bf16.msra.mxu0 0
    %7979 = vmatprep.subr.bf16.mxu0 0
    %7980 = vmatpush1.bf16.msra.mxu0 0
    %7981 = vmatprep.subr.bf16.mxu0 0
    %7982 = vmatpush1.bf16.msra.mxu0 0
    %7983 = vmatprep.subr.bf16.mxu0 0
    %7984 = vmatpush1.bf16.msra.mxu0 0
    %7985 = vmatprep.subr.bf16.mxu0 0
    %7986 = vmatpush1.bf16.msra.mxu0 0
    %7987 = vmatprep.mubr.bf16.mxu0 0
    %7988 = vmatmul.mubr.bf16.gmra.mrb[0].mxu0 %v7950
    %v7989 = vpop.f32.mrb[0].mxu0
    %v7990 = vadd.f32 0.0, %v7989
    %v7991 = vpop.f32.mrb[0].mxu0
    %v7992 = vpop.f32.mrb[0].mxu0
    %v7993 = vpop.f32.mrb[0].mxu0
    %7994 = vdwg.mxu0
    %v7995 = vrcp.pop %v7895
    %v7996 = vrcp.pop %v7898
    %v7997 = vmul.f32 %v7944, %v7995
    %v7998 = vmul.f32 %v7990, %v7996
    %v7999 = vpack.c.bf16 %v7998, %v7997
    %s8000 = scalar_lea.vmem %s9, 56
    %v8001 = vld [vmem:[%s8000] sm:$0xf]
    %v8003 = vsel %vm304, %v7999, 0
    %v8006 = vsel %vm940, %v8001, 0
    %8008 = vmatprep.subr.bf16.mxu0 0
    %8009 = vmatpush1.bf16.msra.mxu0 %v8006
    %8010 = vmatprep.subr.bf16.mxu0 0
    %8011 = vmatpush1.bf16.msra.mxu0 0
    %8012 = vmatprep.subr.bf16.mxu0 0
    %8013 = vmatpush1.bf16.msra.mxu0 0
    %8014 = vmatprep.subr.bf16.mxu0 0
    %8015 = vmatpush1.bf16.msra.mxu0 0
    %8016 = vmatprep.subr.bf16.mxu0 0
    %8017 = vmatpush1.bf16.msra.mxu0 0
    %8018 = vmatprep.subr.bf16.mxu0 0
    %8019 = vmatpush1.bf16.msra.mxu0 0
    %8020 = vmatprep.subr.bf16.mxu0 0
    %8021 = vmatpush1.bf16.msra.mxu0 0
    %8022 = vmatprep.subr.bf16.mxu0 0
    %8023 = vmatpush1.bf16.msra.mxu0 0
    %8024 = vmatprep.subr.bf16.mxu0 0
    %8025 = vmatpush1.bf16.msra.mxu0 0
    %8026 = vmatprep.subr.bf16.mxu0 0
    %8027 = vmatpush1.bf16.msra.mxu0 0
    %8028 = vmatprep.subr.bf16.mxu0 0
    %8029 = vmatpush1.bf16.msra.mxu0 0
    %8030 = vmatprep.subr.bf16.mxu0 0
    %8031 = vmatpush1.bf16.msra.mxu0 0
    %8032 = vmatprep.subr.bf16.mxu0 0
    %8033 = vmatpush1.bf16.msra.mxu0 0
    %8034 = vmatprep.subr.bf16.mxu0 0
    %8035 = vmatpush1.bf16.msra.mxu0 0
    %8036 = vmatprep.subr.bf16.mxu0 0
    %8037 = vmatpush1.bf16.msra.mxu0 0
    %8038 = vmatprep.subr.bf16.mxu0 0
    %8039 = vmatpush1.bf16.msra.mxu0 0
    %8040 = vmatprep.mubr.bf16.mxu0 0
    %8041 = vmatmul.mubr.bf16.gmra.mrb[0].mxu0 %v8003
    %v8042 = vpop.f32.mrb[0].mxu0
    %v8043 = vadd.f32 0.0, %v8042
    %v8044 = vpop.f32.mrb[0].mxu0
    %v8045 = vpop.f32.mrb[0].mxu0
    %v8046 = vadd.f32 0.0, %v8045
    %v8047 = vpop.f32.mrb[0].mxu0
    %8048 = vdwg.mxu0
    %v8049 = vadd.f32 %v7581, %v8043
    %v8050 = vadd.f32 %v7584, %v8046
    %s8051 = scalar_lea.vmem %s3, 240
    %v8052 = vld [vmem:[%s8051] sm:$0xf]
    %v8053 = vld [vmem:[%s8051 + $0x4] sm:$0xf]
    %v8054 = vld [vmem:[%s8051 + $0x8] sm:$0xf]
    %v8055 = vld [vmem:[%s8051 + $0xc] sm:$0xf]
    %s8056 = scalar_lea.vmem %s4, 15
    %v8057 = vld [vmem:[%s8056] sm:$0x1]
    %v8059 = vlaneseq
    %v8060 = vshrl.u32 %v8059, 7
    %v8061 = vsub.s32 0, %v8060
    %v8062 = vrot.slane %v8057, %v8061
    %v8068 = vunpack.c.l.b16 %v8052
    %v8069 = vunpack.c.l.b16 %v8053
    %v8070 = vunpack.c.l.b16 %v8054
    %v8071 = vunpack.c.l.b16 %v8055
    %v8072 = vpack.c.b16 %v8069, %v8068
    %v8073 = vpack.c.b16 %v8071, %v8070
    %8076 = vmatprep.subr.bf16.mxu0 0
    %8077 = vmatpush1.bf16.msra.mxu0 %v8072
    %8078 = vmatprep.subr.bf16.mxu0 0
    %8079 = vmatpush1.bf16.msra.mxu0 %v8073
    %8080 = vmatprep.subr.bf16.mxu0 0
    %8081 = vmatpush1.bf16.msra.mxu0 0
    %8082 = vmatprep.subr.bf16.mxu0 0
    %8083 = vmatpush1.bf16.msra.mxu0 0
    %8084 = vmatprep.subr.bf16.mxu0 0
    %8085 = vmatpush1.bf16.msra.mxu0 0
    %8086 = vmatprep.subr.bf16.mxu0 0
    %8087 = vmatpush1.bf16.msra.mxu0 0
    %8088 = vmatprep.subr.bf16.mxu0 0
    %8089 = vmatpush1.bf16.msra.mxu0 0
    %8090 = vmatprep.subr.bf16.mxu0 0
    %8091 = vmatpush1.bf16.msra.mxu0 0
    %8092 = vmatprep.subr.bf16.mxu0 0
    %8093 = vmatpush1.bf16.msra.mxu0 0
    %8094 = vmatprep.subr.bf16.mxu0 0
    %8095 = vmatpush1.bf16.msra.mxu0 0
    %8096 = vmatprep.subr.bf16.mxu0 0
    %8097 = vmatpush1.bf16.msra.mxu0 0
    %8098 = vmatprep.subr.bf16.mxu0 0
    %8099 = vmatpush1.bf16.msra.mxu0 0
    %8100 = vmatprep.subr.bf16.mxu0 0
    %8101 = vmatpush1.bf16.msra.mxu0 0
    %8102 = vmatprep.subr.bf16.mxu0 0
    %8103 = vmatpush1.bf16.msra.mxu0 0
    %8104 = vmatprep.subr.bf16.mxu0 0
    %8105 = vmatpush1.bf16.msra.mxu0 0
    %8106 = vmatprep.subr.bf16.mxu0 0
    %8107 = vmatpush1.bf16.msra.mxu0 0
    %8108 = vmatprep.mubr.bf16.mxu0 0
    %8109 = vmatmul.mubr.bf16.gmra.mrb[0].mxu0 %v6686
    %v8110 = vpop.f32.mrb[0].mxu0
    %v8111 = vadd.f32 %v8062, %v8110
    %v8112 = vpop.f32.mrb[0].mxu0
    %v8113 = vpop.f32.mrb[0].mxu0
    %v8114 = vadd.f32 %v8062, %v8113
    %v8115 = vpop.f32.mrb[0].mxu0
    %8116 = vdwg.mxu0
    %s8117 = scalar_lea.vmem %s5, 240
    %v8118 = vld [vmem:[%s8117] sm:$0xf]
    %v8119 = vld [vmem:[%s8117 + $0x4] sm:$0xf]
    %v8120 = vld [vmem:[%s8117 + $0x8] sm:$0xf]
    %v8121 = vld [vmem:[%s8117 + $0xc] sm:$0xf]
    %s8122 = scalar_lea.vmem %s6, 15
    %v8123 = vld [vmem:[%s8122] sm:$0x1]
    %v8125 = vlaneseq
    %v8126 = vshrl.u32 %v8125, 7
    %v8127 = vsub.s32 0, %v8126
    %v8128 = vrot.slane %v8123, %v8127
    %v8134 = vunpack.c.l.b16 %v8118
    %v8135 = vunpack.c.l.b16 %v8119
    %v8136 = vunpack.c.l.b16 %v8120
    %v8137 = vunpack.c.l.b16 %v8121
    %v8138 = vpack.c.b16 %v8135, %v8134
    %v8139 = vpack.c.b16 %v8137, %v8136
    %8142 = vmatprep.subr.bf16.mxu0 0
    %8143 = vmatpush1.bf16.msra.mxu0 %v8138
    %8144 = vmatprep.subr.bf16.mxu0 0
    %8145 = vmatpush1.bf16.msra.mxu0 %v8139
    %8146 = vmatprep.subr.bf16.mxu0 0
    %8147 = vmatpush1.bf16.msra.mxu0 0
    %8148 = vmatprep.subr.bf16.mxu0 0
    %8149 = vmatpush1.bf16.msra.mxu0 0
    %8150 = vmatprep.subr.bf16.mxu0 0
    %8151 = vmatpush1.bf16.msra.mxu0 0
    %8152 = vmatprep.subr.bf16.mxu0 0
    %8153 = vmatpush1.bf16.msra.mxu0 0
    %8154 = vmatprep.subr.bf16.mxu0 0
    %8155 = vmatpush1.bf16.msra.mxu0 0
    %8156 = vmatprep.subr.bf16.mxu0 0
    %8157 = vmatpush1.bf16.msra.mxu0 0
    %8158 = vmatprep.subr.bf16.mxu0 0
    %8159 = vmatpush1.bf16.msra.mxu0 0
    %8160 = vmatprep.subr.bf16.mxu0 0
    %8161 = vmatpush1.bf16.msra.mxu0 0
    %8162 = vmatprep.subr.bf16.mxu0 0
    %8163 = vmatpush1.bf16.msra.mxu0 0
    %8164 = vmatprep.subr.bf16.mxu0 0
    %8165 = vmatpush1.bf16.msra.mxu0 0
    %8166 = vmatprep.subr.bf16.mxu0 0
    %8167 = vmatpush1.bf16.msra.mxu0 0
    %8168 = vmatprep.subr.bf16.mxu0 0
    %8169 = vmatpush1.bf16.msra.mxu0 0
    %8170 = vmatprep.subr.bf16.mxu0 0
    %8171 = vmatpush1.bf16.msra.mxu0 0
    %8172 = vmatprep.subr.bf16.mxu0 0
    %8173 = vmatpush1.bf16.msra.mxu0 0
    %8174 = vmatprep.mubr.bf16.mxu0 0
    %8175 = vmatmul.mubr.bf16.gmra.mrb[0].mxu0 %v6686
    %v8176 = vpop.f32.mrb[0].mxu0
    %v8177 = vadd.f32 %v8128, %v8176
    %v8178 = vpop.f32.mrb[0].mxu0
    %v8179 = vpop.f32.mrb[0].mxu0
    %v8180 = vadd.f32 %v8128, %v8179
    %v8181 = vpop.f32.mrb[0].mxu0
    %8182 = vdwg.mxu0
    %s8183 = scalar_lea.vmem %s7, 240
    %v8184 = vld [vmem:[%s8183] sm:$0xf]
    %v8185 = vld [vmem:[%s8183 + $0x4] sm:$0xf]
    %v8186 = vld [vmem:[%s8183 + $0x8] sm:$0xf]
    %v8187 = vld [vmem:[%s8183 + $0xc] sm:$0xf]
    %s8188 = scalar_lea.vmem %s8, 15
    %v8189 = vld [vmem:[%s8188] sm:$0x1]
    %v8191 = vlaneseq
    %v8192 = vshrl.u32 %v8191, 7
    %v8193 = vsub.s32 0, %v8192
    %v8194 = vrot.slane %v8189, %v8193
    %v8200 = vunpack.c.l.b16 %v8184
    %v8201 = vunpack.c.l.b16 %v8185
    %v8202 = vunpack.c.l.b16 %v8186
    %v8203 = vunpack.c.l.b16 %v8187
    %v8204 = vpack.c.b16 %v8201, %v8200
    %v8205 = vpack.c.b16 %v8203, %v8202
    %8208 = vmatprep.subr.bf16.mxu0 0
    %8209 = vmatpush1.bf16.msra.mxu0 %v8204
    %8210 = vmatprep.subr.bf16.mxu0 0
    %8211 = vmatpush1.bf16.msra.mxu0 %v8205
    %8212 = vmatprep.subr.bf16.mxu0 0
    %8213 = vmatpush1.bf16.msra.mxu0 0
    %8214 = vmatprep.subr.bf16.mxu0 0
    %8215 = vmatpush1.bf16.msra.mxu0 0
    %8216 = vmatprep.subr.bf16.mxu0 0
    %8217 = vmatpush1.bf16.msra.mxu0 0
    %8218 = vmatprep.subr.bf16.mxu0 0
    %8219 = vmatpush1.bf16.msra.mxu0 0
    %8220 = vmatprep.subr.bf16.mxu0 0
    %8221 = vmatpush1.bf16.msra.mxu0 0
    %8222 = vmatprep.subr.bf16.mxu0 0
    %8223 = vmatpush1.bf16.msra.mxu0 0
    %8224 = vmatprep.subr.bf16.mxu0 0
    %8225 = vmatpush1.bf16.msra.mxu0 0
    %8226 = vmatprep.subr.bf16.mxu0 0
    %8227 = vmatpush1.bf16.msra.mxu0 0
    %8228 = vmatprep.subr.bf16.mxu0 0
    %8229 = vmatpush1.bf16.msra.mxu0 0
    %8230 = vmatprep.subr.bf16.mxu0 0
    %8231 = vmatpush1.bf16.msra.mxu0 0
    %8232 = vmatprep.subr.bf16.mxu0 0
    %8233 = vmatpush1.bf16.msra.mxu0 0
    %8234 = vmatprep.subr.bf16.mxu0 0
    %8235 = vmatpush1.bf16.msra.mxu0 0
    %8236 = vmatprep.subr.bf16.mxu0 0
    %8237 = vmatpush1.bf16.msra.mxu0 0
    %8238 = vmatprep.subr.bf16.mxu0 0
    %8239 = vmatpush1.bf16.msra.mxu0 0
    %8240 = vmatprep.mubr.bf16.mxu0 0
    %8241 = vmatmul.mubr.bf16.gmra.mrb[0].mxu0 %v6686
    %v8242 = vpop.f32.mrb[0].mxu0
    %v8243 = vadd.f32 %v8194, %v8242
    %v8244 = vpop.f32.mrb[0].mxu0
    %v8245 = vpop.f32.mrb[0].mxu0
    %v8246 = vadd.f32 %v8194, %v8245
    %v8247 = vpop.f32.mrb[0].mxu0
    %8248 = vdwg.mxu0
    %v8249 = vpack.c.bf16 %v8111, %v8111
    %v8250 = vpack.c.bf16 %v8114, %v8114
    %v8251 = vpack.c.bf16 %v8177, %v8177
    %v8252 = vpack.c.bf16 %v8180, %v8180
    %v8254 = vsel %vm304, %v8249, 0
    %v8257 = vsel %vm304, %v8251, 0
    %8259 = vmatprep.subr.bf16.mxu0 0
    %8260 = vmatpush1.bf16.xpose.msra.mxu0 %v8257
    %8261 = vmatprep.subr.bf16.mxu0 0
    %8262 = vmatpush1.bf16.xpose.msra.mxu0 0
    %8263 = vmatprep.subr.bf16.mxu0 0
    %8264 = vmatpush1.bf16.xpose.msra.mxu0 0
    %8265 = vmatprep.subr.bf16.mxu0 0
    %8266 = vmatpush1.bf16.xpose.msra.mxu0 0
    %8267 = vmatprep.subr.bf16.mxu0 0
    %8268 = vmatpush1.bf16.xpose.msra.mxu0 0
    %8269 = vmatprep.subr.bf16.mxu0 0
    %8270 = vmatpush1.bf16.xpose.msra.mxu0 0
    %8271 = vmatprep.subr.bf16.mxu0 0
    %8272 = vmatpush1.bf16.xpose.msra.mxu0 0
    %8273 = vmatprep.subr.bf16.mxu0 0
    %8274 = vmatpush1.bf16.xpose.msra.mxu0 0
    %8275 = vmatprep.subr.bf16.mxu0 0
    %8276 = vmatpush1.bf16.xpose.msra.mxu0 0
    %8277 = vmatprep.subr.bf16.mxu0 0
    %8278 = vmatpush1.bf16.xpose.msra.mxu0 0
    %8279 = vmatprep.subr.bf16.mxu0 0
    %8280 = vmatpush1.bf16.xpose.msra.mxu0 0
    %8281 = vmatprep.subr.bf16.mxu0 0
    %8282 = vmatpush1.bf16.xpose.msra.mxu0 0
    %8283 = vmatprep.subr.bf16.mxu0 0
    %8284 = vmatpush1.bf16.xpose.msra.mxu0 0
    %8285 = vmatprep.subr.bf16.mxu0 0
    %8286 = vmatpush1.bf16.xpose.msra.mxu0 0
    %8287 = vmatprep.subr.bf16.mxu0 0
    %8288 = vmatpush1.bf16.xpose.msra.mxu0 0
    %8289 = vmatprep.subr.bf16.mxu0 0
    %8290 = vmatpush1.bf16.xpose.msra.mxu0 0
    %8291 = vmatprep.mubr.bf16.mxu0 0
    %8292 = vmatmul.mubr.bf16.gmra.mrb[0].mxu0 %v8254
    %v8293 = vpop.f32.mrb[0].mxu0
    %v8294 = vadd.f32 0.0, %v8293
    %v8295 = vpop.f32.mrb[0].mxu0
    %v8296 = vpop.f32.mrb[0].mxu0
    %v8297 = vpop.f32.mrb[0].mxu0
    %8298 = vdwg.mxu0
    %v8300 = vsel %vm304, %v8250, 0
    %v8303 = vsel %vm304, %v8252, 0
    %8305 = vmatprep.subr.bf16.mxu0 0
    %8306 = vmatpush1.bf16.xpose.msra.mxu0 %v8303
    %8307 = vmatprep.subr.bf16.mxu0 0
    %8308 = vmatpush1.bf16.xpose.msra.mxu0 0
    %8309 = vmatprep.subr.bf16.mxu0 0
    %8310 = vmatpush1.bf16.xpose.msra.mxu0 0
    %8311 = vmatprep.subr.bf16.mxu0 0
    %8312 = vmatpush1.bf16.xpose.msra.mxu0 0
    %8313 = vmatprep.subr.bf16.mxu0 0
    %8314 = vmatpush1.bf16.xpose.msra.mxu0 0
    %8315 = vmatprep.subr.bf16.mxu0 0
    %8316 = vmatpush1.bf16.xpose.msra.mxu0 0
    %8317 = vmatprep.subr.bf16.mxu0 0
    %8318 = vmatpush1.bf16.xpose.msra.mxu0 0
    %8319 = vmatprep.subr.bf16.mxu0 0
    %8320 = vmatpush1.bf16.xpose.msra.mxu0 0
    %8321 = vmatprep.subr.bf16.mxu0 0
    %8322 = vmatpush1.bf16.xpose.msra.mxu0 0
    %8323 = vmatprep.subr.bf16.mxu0 0
    %8324 = vmatpush1.bf16.xpose.msra.mxu0 0
    %8325 = vmatprep.subr.bf16.mxu0 0
    %8326 = vmatpush1.bf16.xpose.msra.mxu0 0
    %8327 = vmatprep.subr.bf16.mxu0 0
    %8328 = vmatpush1.bf16.xpose.msra.mxu0 0
    %8329 = vmatprep.subr.bf16.mxu0 0
    %8330 = vmatpush1.bf16.xpose.msra.mxu0 0
    %8331 = vmatprep.subr.bf16.mxu0 0
    %8332 = vmatpush1.bf16.xpose.msra.mxu0 0
    %8333 = vmatprep.subr.bf16.mxu0 0
    %8334 = vmatpush1.bf16.xpose.msra.mxu0 0
    %8335 = vmatprep.subr.bf16.mxu0 0
    %8336 = vmatpush1.bf16.xpose.msra.mxu0 0
    %8337 = vmatprep.mubr.bf16.mxu0 0
    %8338 = vmatmul.mubr.bf16.gmra.mrb[0].mxu0 %v8300
    %v8339 = vpop.f32.mrb[0].mxu0
    %v8340 = vadd.f32 0.0, %v8339
    %v8341 = vpop.f32.mrb[0].mxu0
    %v8342 = vpop.f32.mrb[0].mxu0
    %v8343 = vpop.f32.mrb[0].mxu0
    %8344 = vdwg.mxu0
    %v8345 = vsel %vm304, %v8294, -inf
    %8346 = vmax.xlane.f32.xlu0 %v8345
    %v8347 = vpop.xlane.xlu0 %8346
    %v8348 = vsel %vm304, %v8340, -inf
    %8349 = vmax.xlane.f32.xlu0 %v8348
    %v8350 = vpop.xlane.xlu0 %8349
    %v8351 = vsub.f32 %v8294, %v8347
    %v8352 = vsub.f32 %v8340, %v8350
    %v8353 = vmul.f32 %v8351, 1.442695
    %v8354 = vpow.pop %v8353
    %v8355 = vmul.f32 %v8352, 1.442695
    %v8356 = vpow.pop %v8355
    %v8357 = vsel %vm304, %v8354, 0.0
    %8358 = vadd.xlane.f32.xlu0 %v8357
    %v8359 = vpop.xlane.xlu0 %8358
    %v8360 = vsel %vm304, %v8356, 0.0
    %8361 = vadd.xlane.f32.xlu0 %v8360
    %v8362 = vpop.xlane.xlu0 %8361
    %v8363 = vpack.c.bf16 %v8354, %v8354
    %v8364 = vpack.c.bf16 %v8356, %v8356
    %v8365 = vpack.c.bf16 %v8243, %v8243
    %v8366 = vpack.c.bf16 %v8246, %v8246
    %v8368 = vsel %vm304, %v8363, 0
    %v8371 = vsel %vm940, %v8365, 0
    %8373 = vmatprep.subr.bf16.mxu0 0
    %8374 = vmatpush1.bf16.msra.mxu0 %v8371
    %8375 = vmatprep.subr.bf16.mxu0 0
    %8376 = vmatpush1.bf16.msra.mxu0 0
    %8377 = vmatprep.subr.bf16.mxu0 0
    %8378 = vmatpush1.bf16.msra.mxu0 0
    %8379 = vmatprep.subr.bf16.mxu0 0
    %8380 = vmatpush1.bf16.msra.mxu0 0
    %8381 = vmatprep.subr.bf16.mxu0 0
    %8382 = vmatpush1.bf16.msra.mxu0 0
    %8383 = vmatprep.subr.bf16.mxu0 0
    %8384 = vmatpush1.bf16.msra.mxu0 0
    %8385 = vmatprep.subr.bf16.mxu0 0
    %8386 = vmatpush1.bf16.msra.mxu0 0
    %8387 = vmatprep.subr.bf16.mxu0 0
    %8388 = vmatpush1.bf16.msra.mxu0 0
    %8389 = vmatprep.subr.bf16.mxu0 0
    %8390 = vmatpush1.bf16.msra.mxu0 0
    %8391 = vmatprep.subr.bf16.mxu0 0
    %8392 = vmatpush1.bf16.msra.mxu0 0
    %8393 = vmatprep.subr.bf16.mxu0 0
    %8394 = vmatpush1.bf16.msra.mxu0 0
    %8395 = vmatprep.subr.bf16.mxu0 0
    %8396 = vmatpush1.bf16.msra.mxu0 0
    %8397 = vmatprep.subr.bf16.mxu0 0
    %8398 = vmatpush1.bf16.msra.mxu0 0
    %8399 = vmatprep.subr.bf16.mxu0 0
    %8400 = vmatpush1.bf16.msra.mxu0 0
    %8401 = vmatprep.subr.bf16.mxu0 0
    %8402 = vmatpush1.bf16.msra.mxu0 0
    %8403 = vmatprep.subr.bf16.mxu0 0
    %8404 = vmatpush1.bf16.msra.mxu0 0
    %8405 = vmatprep.mubr.bf16.mxu0 0
    %8406 = vmatmul.mubr.bf16.gmra.mrb[0].mxu0 %v8368
    %v8407 = vpop.f32.mrb[0].mxu0
    %v8408 = vadd.f32 0.0, %v8407
    %v8409 = vpop.f32.mrb[0].mxu0
    %v8410 = vpop.f32.mrb[0].mxu0
    %v8411 = vpop.f32.mrb[0].mxu0
    %8412 = vdwg.mxu0
    %v8414 = vsel %vm304, %v8364, 0
    %v8417 = vsel %vm940, %v8366, 0
    %8419 = vmatprep.subr.bf16.mxu0 0
    %8420 = vmatpush1.bf16.msra.mxu0 %v8417
    %8421 = vmatprep.subr.bf16.mxu0 0
    %8422 = vmatpush1.bf16.msra.mxu0 0
    %8423 = vmatprep.subr.bf16.mxu0 0
    %8424 = vmatpush1.bf16.msra.mxu0 0
    %8425 = vmatprep.subr.bf16.mxu0 0
    %8426 = vmatpush1.bf16.msra.mxu0 0
    %8427 = vmatprep.subr.bf16.mxu0 0
    %8428 = vmatpush1.bf16.msra.mxu0 0
    %8429 = vmatprep.subr.bf16.mxu0 0
    %8430 = vmatpush1.bf16.msra.mxu0 0
    %8431 = vmatprep.subr.bf16.mxu0 0
    %8432 = vmatpush1.bf16.msra.mxu0 0
    %8433 = vmatprep.subr.bf16.mxu0 0
    %8434 = vmatpush1.bf16.msra.mxu0 0
    %8435 = vmatprep.subr.bf16.mxu0 0
    %8436 = vmatpush1.bf16.msra.mxu0 0
    %8437 = vmatprep.subr.bf16.mxu0 0
    %8438 = vmatpush1.bf16.msra.mxu0 0
    %8439 = vmatprep.subr.bf16.mxu0 0
    %8440 = vmatpush1.bf16.msra.mxu0 0
    %8441 = vmatprep.subr.bf16.mxu0 0
    %8442 = vmatpush1.bf16.msra.mxu0 0
    %8443 = vmatprep.subr.bf16.mxu0 0
    %8444 = vmatpush1.bf16.msra.mxu0 0
    %8445 = vmatprep.subr.bf16.mxu0 0
    %8446 = vmatpush1.bf16.msra.mxu0 0
    %8447 = vmatprep.subr.bf16.mxu0 0
    %8448 = vmatpush1.bf16.msra.mxu0 0
    %8449 = vmatprep.subr.bf16.mxu0 0
    %8450 = vmatpush1.bf16.msra.mxu0 0
    %8451 = vmatprep.mubr.bf16.mxu0 0
    %8452 = vmatmul.mubr.bf16.gmra.mrb[0].mxu0 %v8414
    %v8453 = vpop.f32.mrb[0].mxu0
    %v8454 = vadd.f32 0.0, %v8453
    %v8455 = vpop.f32.mrb[0].mxu0
    %v8456 = vpop.f32.mrb[0].mxu0
    %v8457 = vpop.f32.mrb[0].mxu0
    %8458 = vdwg.mxu0
    %v8459 = vrcp.pop %v8359
    %v8460 = vrcp.pop %v8362
    %v8461 = vmul.f32 %v8408, %v8459
    %v8462 = vmul.f32 %v8454, %v8460
    %v8463 = vpack.c.bf16 %v8462, %v8461
    %s8464 = scalar_lea.vmem %s9, 60
    %v8465 = vld [vmem:[%s8464] sm:$0xf]
    %v8467 = vsel %vm304, %v8463, 0
    %v8470 = vsel %vm940, %v8465, 0
    %8472 = vmatprep.subr.bf16.mxu0 0
    %8473 = vmatpush1.bf16.msra.mxu0 %v8470
    %8474 = vmatprep.subr.bf16.mxu0 0
    %8475 = vmatpush1.bf16.msra.mxu0 0
    %8476 = vmatprep.subr.bf16.mxu0 0
    %8477 = vmatpush1.bf16.msra.mxu0 0
    %8478 = vmatprep.subr.bf16.mxu0 0
    %8479 = vmatpush1.bf16.msra.mxu0 0
    %8480 = vmatprep.subr.bf16.mxu0 0
    %8481 = vmatpush1.bf16.msra.mxu0 0
    %8482 = vmatprep.subr.bf16.mxu0 0
    %8483 = vmatpush1.bf16.msra.mxu0 0
    %8484 = vmatprep.subr.bf16.mxu0 0
    %8485 = vmatpush1.bf16.msra.mxu0 0
    %8486 = vmatprep.subr.bf16.mxu0 0
    %8487 = vmatpush1.bf16.msra.mxu0 0
    %8488 = vmatprep.subr.bf16.mxu0 0
    %8489 = vmatpush1.bf16.msra.mxu0 0
    %8490 = vmatprep.subr.bf16.mxu0 0
    %8491 = vmatpush1.bf16.msra.mxu0 0
    %8492 = vmatprep.subr.bf16.mxu0 0
    %8493 = vmatpush1.bf16.msra.mxu0 0
    %8494 = vmatprep.subr.bf16.mxu0 0
    %8495 = vmatpush1.bf16.msra.mxu0 0
    %8496 = vmatprep.subr.bf16.mxu0 0
    %8497 = vmatpush1.bf16.msra.mxu0 0
    %8498 = vmatprep.subr.bf16.mxu0 0
    %8499 = vmatpush1.bf16.msra.mxu0 0
    %8500 = vmatprep.subr.bf16.mxu0 0
    %8501 = vmatpush1.bf16.msra.mxu0 0
    %8502 = vmatprep.subr.bf16.mxu0 0
    %8503 = vmatpush1.bf16.msra.mxu0 0
    %8504 = vmatprep.mubr.bf16.mxu0 0
    %8505 = vmatmul.mubr.bf16.gmra.mrb[0].mxu0 %v8467
    %v8506 = vpop.f32.mrb[0].mxu0
    %v8507 = vadd.f32 0.0, %v8506
    %v8508 = vpop.f32.mrb[0].mxu0
    %v8509 = vpop.f32.mrb[0].mxu0
    %v8510 = vadd.f32 0.0, %v8509
    %v8511 = vpop.f32.mrb[0].mxu0
    %8512 = vdwg.mxu0
    %v8513 = vadd.f32 %v8049, %v8507
    %v8514 = vadd.f32 %v8050, %v8510
    %s8515 = scalar_lea.vmem %s10, 3
    %v8516 = vld [vmem:[%s8515] sm:$0x1]
    %v8518 = vlaneseq
    %v8519 = vshrl.u32 %v8518, 7
    %v8520 = vsub.s32 0, %v8519
    %v8521 = vrot.slane %v8516, %v8520
    %v8523 = vadd.f32 %v8513, %v8521
    %v8524 = vadd.f32 %v8514, %v8521
    %s8525 = sld [smem:[#allocation2 + $0xc]]
    %s8526 = sld [smem:[#allocation2 + $0xd]]
    %v8527 = vstv %s8525
    %v8528 = vmul.f32 %v8527, %v6657
    %v8529 = vmul.f32 %v8527, %v6658
    %v8530 = vstv %s8526
    %v8531 = vmul.f32 %v8530, %v8523
    %v8532 = vmul.f32 %v8530, %v8524
    %v8533 = vadd.f32 %v8528, %v8531
    %v8534 = vadd.f32 %v8529, %v8532
    %v8535 = vsel %vm105, %v8533, 0.0
    %8536 = vadd.xlane.f32.xlu0 %v8535
    %v8537 = vpop.xlane.xlu0 %8536
    %v8538 = vsel %vm105, %v8534, 0.0
    %8539 = vadd.xlane.f32.xlu0 %v8538
    %v8540 = vpop.xlane.xlu0 %8539
    %v8541 = vmul.f32 %v8537, %v2005
    %v8542 = vmul.f32 %v8540, %v2005
    %v8543 = vmul.f32 %v8533, %v8533
    %v8544 = vmul.f32 %v8534, %v8534
    %v8545 = vsel %vm105, %v8543, 0.0
    %8546 = vadd.xlane.f32.xlu0 %v8545
    %v8547 = vpop.xlane.xlu0 %8546
    %v8548 = vsel %vm105, %v8544, 0.0
    %8549 = vadd.xlane.f32.xlu0 %v8548
    %v8550 = vpop.xlane.xlu0 %8549
    %v8551 = vmul.f32 %v8547, %v2005
    %v8552 = vmul.f32 %v8550, %v2005
    %v8553 = vmul.f32 %v8541, %v8541
    %v8554 = vmul.f32 %v8542, %v8542
    %v8555 = vsub.f32 %v8551, %v8553
    %v8556 = vsub.f32 %v8552, %v8554
    %v8557 = vsub.f32 %v8533, %v8541
    %v8558 = vsub.f32 %v8534, %v8542
    %v8559 = vadd.f32 %v8555, 1e-12
    %v8560 = vadd.f32 %v8556, 1e-12
    %v8561 = vrsqrt.pop %v8559
    %v8562 = vrsqrt.pop %v8560
    %v8563 = vmul.f32 %v8557, %v8561
    %v8564 = vmul.f32 %v8558, %v8562
    %v8565 = vmul.f32 %v8563, %v6400
    %v8566 = vmul.f32 %v8564, %v6400
    %v8567 = vadd.f32 %v8565, %v6408
    %v8568 = vadd.f32 %v8566, %v6408
    %v8569 = vpack.c.bf16 %v8568, %v8567
    %s8570 = scalar_lea.vmem %s11, 48
    %v8571 = vld [vmem:[%s8570] sm:$0xf]
    %v8572 = vld [vmem:[%s8570 + $0x4] sm:$0xf]
    %v8573 = vld [vmem:[%s8570 + $0x8] sm:$0xf]
    %v8574 = vld [vmem:[%s8570 + $0xc] sm:$0xf]
    %s8575 = scalar_lea.vmem %s12, 3
    %v8576 = vld [vmem:[%s8575] sm:$0x1]
    %v8578 = vlaneseq
    %v8579 = vshrl.u32 %v8578, 7
    %v8580 = vsub.s32 0, %v8579
    %v8581 = vrot.slane %v8576, %v8580
    %v8587 = vunpack.c.l.b16 %v8571
    %v8588 = vunpack.c.l.b16 %v8572
    %v8589 = vunpack.c.l.b16 %v8573
    %v8590 = vunpack.c.l.b16 %v8574
    %v8591 = vpack.c.b16 %v8588, %v8587
    %v8592 = vpack.c.b16 %v8590, %v8589
    %v8596 = vsel %vm105, %v8569, 0
    %8598 = vmatprep.subr.bf16.mxu0 0
    %8599 = vmatpush1.bf16.msra.mxu0 %v8591
    %8600 = vmatprep.subr.bf16.mxu0 0
    %8601 = vmatpush1.bf16.msra.mxu0 %v8592
    %8602 = vmatprep.subr.bf16.mxu0 0
    %8603 = vmatpush1.bf16.msra.mxu0 0
    %8604 = vmatprep.subr.bf16.mxu0 0
    %8605 = vmatpush1.bf16.msra.mxu0 0
    %8606 = vmatprep.subr.bf16.mxu0 0
    %8607 = vmatpush1.bf16.msra.mxu0 0
    %8608 = vmatprep.subr.bf16.mxu0 0
    %8609 = vmatpush1.bf16.msra.mxu0 0
    %8610 = vmatprep.subr.bf16.mxu0 0
    %8611 = vmatpush1.bf16.msra.mxu0 0
    %8612 = vmatprep.subr.bf16.mxu0 0
    %8613 = vmatpush1.bf16.msra.mxu0 0
    %8614 = vmatprep.subr.bf16.mxu0 0
    %8615 = vmatpush1.bf16.msra.mxu0 0
    %8616 = vmatprep.subr.bf16.mxu0 0
    %8617 = vmatpush1.bf16.msra.mxu0 0
    %8618 = vmatprep.subr.bf16.mxu0 0
    %8619 = vmatpush1.bf16.msra.mxu0 0
    %8620 = vmatprep.subr.bf16.mxu0 0
    %8621 = vmatpush1.bf16.msra.mxu0 0
    %8622 = vmatprep.subr.bf16.mxu0 0
    %8623 = vmatpush1.bf16.msra.mxu0 0
    %8624 = vmatprep.subr.bf16.mxu0 0
    %8625 = vmatpush1.bf16.msra.mxu0 0
    %8626 = vmatprep.subr.bf16.mxu0 0
    %8627 = vmatpush1.bf16.msra.mxu0 0
    %8628 = vmatprep.subr.bf16.mxu0 0
    %8629 = vmatpush1.bf16.msra.mxu0 0
    %8630 = vmatprep.mubr.bf16.mxu0 0
    %8631 = vmatmul.mubr.bf16.gmra.mrb[0].mxu0 %v8596
    %v8632 = vpop.f32.mrb[0].mxu0
    %v8633 = vadd.f32 %v8581, %v8632
    %v8634 = vpop.f32.mrb[0].mxu0
    %v8635 = vpop.f32.mrb[0].mxu0
    %v8636 = vadd.f32 %v8581, %v8635
    %v8637 = vpop.f32.mrb[0].mxu0
    %8638 = vdwg.mxu0
    %v8639 = vmul.f32 %v8633, %v8633
    %v8640 = vmul.f32 %v8636, %v8636
    %v8641 = vmul.f32 %v8633, %v8639
    %v8642 = vmul.f32 %v8636, %v8640
    %v8643 = vmul.f32 %v8641, 0.044715
    %v8644 = vmul.f32 %v8642, 0.044715
    %v8645 = vadd.f32 %v8633, %v8643
    %v8646 = vadd.f32 %v8636, %v8644
    %v8647 = vmul.f32 %v8645, 0.7978846
    %v8648 = vmul.f32 %v8646, 0.7978846
    %v8649 = vtanh.pop %v8647
    %v8650 = vtanh.pop %v8648
    %v8651 = vadd.f32 %v8649, 1.0
    %v8652 = vadd.f32 %v8650, 1.0
    %v8653 = vmul.f32 %v8651, 0.5
    %v8654 = vmul.f32 %v8652, 0.5
    %v8655 = vmul.f32 %v8633, %v8653
    %v8656 = vmul.f32 %v8636, %v8654
    %v8657 = vpack.c.bf16 %v8656, %v8655
    %s8658 = scalar_lea.vmem %s13, 192
    %v8659 = vld [vmem:[%s8658] sm:$0xf]
    %v8660 = vld [vmem:[%s8658 + $0x4] sm:$0xf]
    %v8661 = vld [vmem:[%s8658 + $0x8] sm:$0xf]
    %v8662 = vld [vmem:[%s8658 + $0xc] sm:$0xf]
    %v8663 = vld [vmem:[%s8658 + $0x10] sm:$0xf]
    %v8664 = vld [vmem:[%s8658 + $0x14] sm:$0xf]
    %v8665 = vld [vmem:[%s8658 + $0x18] sm:$0xf]
    %v8666 = vld [vmem:[%s8658 + $0x1c] sm:$0xf]
    %v8667 = vld [vmem:[%s8658 + $0x20] sm:$0xf]
    %v8668 = vld [vmem:[%s8658 + $0x24] sm:$0xf]
    %v8669 = vld [vmem:[%s8658 + $0x28] sm:$0xf]
    %v8670 = vld [vmem:[%s8658 + $0x2c] sm:$0xf]
    %v8671 = vld [vmem:[%s8658 + $0x30] sm:$0xf]
    %v8672 = vld [vmem:[%s8658 + $0x34] sm:$0xf]
    %v8673 = vld [vmem:[%s8658 + $0x38] sm:$0xf]
    %v8674 = vld [vmem:[%s8658 + $0x3c] sm:$0xf]
    %s8675 = scalar_lea.vmem %s14, 3
    %v8676 = vld [vmem:[%s8675] sm:$0x1]
    %v8678 = vlaneseq
    %v8679 = vshrl.u32 %v8678, 7
    %v8680 = vsub.s32 0, %v8679
    %v8681 = vrot.slane %v8676, %v8680
    %v8699 = vunpack.c.l.b16 %v8659
    %v8700 = vunpack.c.l.b16 %v8660
    %v8701 = vunpack.c.l.b16 %v8661
    %v8702 = vunpack.c.l.b16 %v8662
    %v8703 = vunpack.c.l.b16 %v8663
    %v8704 = vunpack.c.l.b16 %v8664
    %v8705 = vunpack.c.l.b16 %v8665
    %v8706 = vunpack.c.l.b16 %v8666
    %v8707 = vunpack.c.l.b16 %v8667
    %v8708 = vunpack.c.l.b16 %v8668
    %v8709 = vunpack.c.l.b16 %v8669
    %v8710 = vunpack.c.l.b16 %v8670
    %v8711 = vunpack.c.l.b16 %v8671
    %v8712 = vunpack.c.l.b16 %v8672
    %v8713 = vunpack.c.l.b16 %v8673
    %v8714 = vunpack.c.l.b16 %v8674
    %v8715 = vpack.c.b16 %v8700, %v8699
    %v8716 = vpack.c.b16 %v8702, %v8701
    %v8717 = vpack.c.b16 %v8704, %v8703
    %v8718 = vpack.c.b16 %v8706, %v8705
    %v8719 = vpack.c.b16 %v8708, %v8707
    %v8720 = vpack.c.b16 %v8710, %v8709
    %v8721 = vpack.c.b16 %v8712, %v8711
    %v8722 = vpack.c.b16 %v8714, %v8713
    %8731 = vmatprep.subr.bf16.mxu0 0
    %8732 = vmatpush1.bf16.msra.mxu0 %v8715
    %8733 = vmatprep.subr.bf16.mxu0 0
    %8734 = vmatpush1.bf16.msra.mxu0 %v8716
    %8735 = vmatprep.subr.bf16.mxu0 0
    %8736 = vmatpush1.bf16.msra.mxu0 %v8717
    %8737 = vmatprep.subr.bf16.mxu0 0
    %8738 = vmatpush1.bf16.msra.mxu0 %v8718
    %8739 = vmatprep.subr.bf16.mxu0 0
    %8740 = vmatpush1.bf16.msra.mxu0 %v8719
    %8741 = vmatprep.subr.bf16.mxu0 0
    %8742 = vmatpush1.bf16.msra.mxu0 %v8720
    %8743 = vmatprep.subr.bf16.mxu0 0
    %8744 = vmatpush1.bf16.msra.mxu0 %v8721
    %8745 = vmatprep.subr.bf16.mxu0 0
    %8746 = vmatpush1.bf16.msra.mxu0 %v8722
    %8747 = vmatprep.subr.bf16.mxu0 0
    %8748 = vmatpush1.bf16.msra.mxu0 0
    %8749 = vmatprep.subr.bf16.mxu0 0
    %8750 = vmatpush1.bf16.msra.mxu0 0
    %8751 = vmatprep.subr.bf16.mxu0 0
    %8752 = vmatpush1.bf16.msra.mxu0 0
    %8753 = vmatprep.subr.bf16.mxu0 0
    %8754 = vmatpush1.bf16.msra.mxu0 0
    %8755 = vmatprep.subr.bf16.mxu0 0
    %8756 = vmatpush1.bf16.msra.mxu0 0
    %8757 = vmatprep.subr.bf16.mxu0 0
    %8758 = vmatpush1.bf16.msra.mxu0 0
    %8759 = vmatprep.subr.bf16.mxu0 0
    %8760 = vmatpush1.bf16.msra.mxu0 0
    %8761 = vmatprep.subr.bf16.mxu0 0
    %8762 = vmatpush1.bf16.msra.mxu0 0
    %8763 = vmatprep.mubr.bf16.mxu0 0
    %8764 = vmatmul.mubr.bf16.gmra.mrb[0].mxu0 %v8657
    %v8765 = vpop.f32.mrb[0].mxu0
    %v8766 = vadd.f32 %v8681, %v8765
    %v8767 = vpop.f32.mrb[0].mxu0
    %v8768 = vpop.f32.mrb[0].mxu0
    %v8769 = vadd.f32 %v8681, %v8768
    %v8770 = vpop.f32.mrb[0].mxu0
    %8771 = vdwg.mxu0
    %s8772 = sld [smem:[#allocation2 + $0xe]]
    %s8773 = sld [smem:[#allocation2 + $0xf]]
    %v8774 = vstv %s8772
    %v8775 = vmul.f32 %v8774, %v8567
    %v8776 = vmul.f32 %v8774, %v8568
    %v8777 = vstv %s8773
    %v8778 = vmul.f32 %v8777, %v8766
    %v8779 = vmul.f32 %v8777, %v8769
    %v8780 = vadd.f32 %v8775, %v8778
    %v8781 = vadd.f32 %v8776, %v8779
    %v8782 = vsel %vm105, %v8780, 0.0
    %8783 = vadd.xlane.f32.xlu0 %v8782
    %v8784 = vpop.xlane.xlu0 %8783
    %v8785 = vsel %vm105, %v8781, 0.0
    %8786 = vadd.xlane.f32.xlu0 %v8785
    %v8787 = vpop.xlane.xlu0 %8786
    %v8788 = vmul.f32 %v8784, %v2005
    %v8789 = vmul.f32 %v8787, %v2005
    %v8790 = vmul.f32 %v8780, %v8780
    %v8791 = vmul.f32 %v8781, %v8781
    %v8792 = vsel %vm105, %v8790, 0.0
    %8793 = vadd.xlane.f32.xlu0 %v8792
    %v8794 = vpop.xlane.xlu0 %8793
    %v8795 = vsel %vm105, %v8791, 0.0
    %8796 = vadd.xlane.f32.xlu0 %v8795
    %v8797 = vpop.xlane.xlu0 %8796
    %v8798 = vmul.f32 %v8794, %v2005
    %v8799 = vmul.f32 %v8797, %v2005
    %v8800 = vmul.f32 %v8788, %v8788
    %v8801 = vmul.f32 %v8789, %v8789
    %v8802 = vsub.f32 %v8798, %v8800
    %v8803 = vsub.f32 %v8799, %v8801
    %v8804 = vsub.f32 %v8780, %v8788
    %v8805 = vsub.f32 %v8781, %v8789
    %v8806 = vadd.f32 %v8802, 1e-12
    %v8807 = vadd.f32 %v8803, 1e-12
    %v8808 = vrsqrt.pop %v8806
    %v8809 = vrsqrt.pop %v8807
    %v8810 = vmul.f32 %v8804, %v8808
    %v8811 = vmul.f32 %v8805, %v8809
    %v8812 = vmul.f32 %v8810, %v6400
    %v8813 = vmul.f32 %v8811, %v6400
    %v8814 = vadd.f32 %v8812, %v6408
    %v8815 = vadd.f32 %v8813, %v6408
    %8816 = vst.msk [vmem:[#allocation5] sm:$0xff] %vm105, %v8814
    %8817 = vst.msk [vmem:[#allocation5 + $0x8] sm:$0xff] %vm105, %v8815
    // Predicated region
    $region74: #{cross_attention_encoder.1} parent=1 // pred_check
      _
    $region75: #{cross_attention_encoder.1} parent=1 // pred_check_branch
      %8819 = sbr.rel (0) target = $region77
    $region76: #{cross_attention_encoder.1} parent=1 // pred_region
      %s8821 = ssub.s32 256, 256
      %8822 = vsyncadd [#allocation3], %s8821
      %s8823 = sshll.u32 [#allocation5], 4
      %s8824 = int_to_ptr.vmem [resolvable:$true] %s8823
      %8829 = dma.vmem_to_hbm [thread:$0]  %s8824, 256, %s17, [#allocation3], 128, 128, 8
    $region77: #{cross_attention_encoder.1} parent=1 // pred_fallthru
      _
    // Predicated region
    $region78: #{cross_attention_encoder.1} parent=1 // pred_check
      _
    $region79: #{cross_attention_encoder.1} parent=1 // pred_check_branch
      %8831 = sbr.rel (0) target = $region81
    $region80: #{cross_attention_encoder.1} parent=1 // pred_region
      %8832 = dma.done [#allocation3], 256
    $region81: #{cross_attention_encoder.1} parent=1 // pred_fallthru
      _
    %8833 = vsyncpa [#allocation3], 1
    %8834 = vsyncpa [#allocation4], 1

</llo_original>
